<compile_context>
chip_gen: v7x
topology: tpu7x:2x2x1
jax: 0.10.0
libtpu: 0.0.40
codegen_flags: <defaults>
</compile_context>

<pallas_src>
import functools

import jax
import jax.numpy as jnp
from jax.experimental import pallas as pl
from jax.experimental.pallas import tpu as pltpu

EPS = 1e-12   # the module passes eps=EPS to every BatchNorm2d


def _round_up(x, m):
    return ((x + m - 1) // m) * m


def _split_pad(total):
    lo = total // 2
    return lo, total - lo


def _vmem_limit_bytes():
    """Per-generation VMEM budget (review: don't leave VMEM on the table)."""
    try:
        kind = jax.devices()[0].device_kind.lower()
    except Exception:
        return None
    if "v7" in kind:
        return 48 * 1024 * 1024        # 64 MiB physical, leave DMA headroom
    if any(t in kind for t in ("v5 lite", "v5e", "v5litepod", "v6")):
        return 96 * 1024 * 1024        # 128 MiB physical
    return None                        # unknown generation -> compiler default


# --------------------------------------------------------------------------- #
# Fused DownSampleDenseBlock kernel                                            #
#   grid = (depth + 1, N); phase 0 = staging + layer-0 stats,                  #
#   phase l+1 = fused ConvBlock l + epilogue stats for layer l+1.              #
# --------------------------------------------------------------------------- #
def _dense_block_kernel(x_ref, mask_ref, gam_ref, bet_ref, w_ref, b_ref,
                        o_ref,
                        res_ref, ext_ref, mean_ref, m2_ref, sc_ref, sh_ref,
                        *, layer_meta, depth, L, m0a, cinp, coutp,
                        count, total, eps):
    p = pl.program_id(0)                 # 0 = staging, 1..depth = layers
    n = pl.program_id(1)                 # batch element (sequential)
    nf = n.astype(jnp.float32)
    mask = mask_ref[...]                 # (1, L): 1 inside the Hb x Wb image
    ext_w = ext_ref.shape[1]
    ntaps = w_ref.shape[0] // depth

    def _accum_stats(l, xs):
        """Chan/Welford merge of one sample's per-channel stats into layer l.

        xs: (rows, L) slab whose canvas-border lanes are exactly zero, so sums
        over all lanes equal sums over the Hb*Wb interior (count = Hb*Wb).
        """
        rows = xs.shape[0]
        s = jnp.sum(xs, axis=1, keepdims=True)                 # (rows, 1)
        m_n = s * (1.0 / count)                                # sample mean
        d = (xs - m_n) * mask                                  # re-mask border
        m2_n = jnp.sum(d * d, axis=1, keepdims=True)
        mean_old = mean_ref[l, :rows, :]
        delta = m_n - mean_old
        inv = 1.0 / (nf + 1.0)
        mean_ref[l, :rows, :] = mean_old + delta * inv
        m2_ref[l, :rows, :] = (m2_ref[l, :rows, :] + m2_n
                               + delta * delta * (count * nf * inv))

    # ------------- phase 0: stage padded input + layer-0 statistics ---------
    @pl.when(p == 0)
    def _stage():
        @pl.when(n == 0)
        def _init_once():
            # Zero only the conv margins of the tap scratch, exactly once; the
            # interior is fully rewritten every layer step (review item).
            if m0a > 0:
                ext_ref[:, :m0a] = jnp.zeros((cinp, m0a), jnp.float32)
            if ext_w - m0a - L > 0:
                ext_ref[:, m0a + L:] = jnp.zeros((cinp, ext_w - m0a - L),
                                                 jnp.float32)
            mean_ref[0] = jnp.zeros((cinp, 1), jnp.float32)
            m2_ref[0] = jnp.zeros((cinp, 1), jnp.float32)

        x = x_ref[0]                                           # (cinp, L)
        res_ref[n, :cinp, :] = x                               # residual canvas
        if layer_meta[0][3]:                                   # layer 0 has BN
            _accum_stats(0, x)

    # ------------- phases 1..depth: one fused ConvBlock per phase -----------
    for l in range(depth):
        cin_l, cout_l, taps_l, norm_l, relu_l = layer_meta[l]
        if l + 1 < depth:
            cin_nx, _, _, norm_nx, _ = layer_meta[l + 1]
        else:
            cin_nx, norm_nx = 0, False

        @pl.when(p == l + 1)
        def _layer(l=l, cin=cin_l, cout=cout_l, taps=taps_l, do_norm=norm_l,
                   do_relu=relu_l, cin_nx=cin_nx, norm_nx=norm_nx,
                   is_last=(l + 1 == depth)):
            # -- finalize this layer's folded BN affine once per phase --------
            @pl.when(n == 0)
            def _finalize():
                if do_norm:
                    mean = mean_ref[l]
                    var = jnp.maximum(m2_ref[l] * (1.0 / total), 0.0)
                    sc = gam_ref[l] * jax.lax.rsqrt(var + eps)   # 0 on pad rows
                    sc_ref[...] = sc
                    sh_ref[...] = bet_ref[l] - mean * sc
                else:
                    rows = jax.lax.broadcasted_iota(jnp.int32, (cinp, 1), 0)
                    sc_ref[...] = (rows < cin).astype(jnp.float32)
                    sh_ref[...] = jnp.zeros((cinp, 1), jnp.float32)
                if (not is_last) and norm_nx:
                    mean_ref[l + 1] = jnp.zeros((cinp, 1), jnp.float32)
                    m2_ref[l + 1] = jnp.zeros((cinp, 1), jnp.float32)

            # -- BN apply + ReLU, then restore the zero conv-pad border -------
            x8 = res_ref[n, :cinp, :]                          # (cinp, L)
            xn = x8 * sc_ref[...] + sh_ref[...]
            if do_relu:
                xn = jnp.maximum(xn, 0.0)
            xn = xn * mask
            ext_ref[:, m0a:m0a + L] = xn                       # 128-aligned store

            # -- dilated KxK conv: per-tap MXU matmuls, bias in acc init ------
            acc = jnp.zeros((coutp, L), jnp.float32) + b_ref[l]
            for t, off in enumerate(taps):
                acc = acc + jnp.dot(w_ref[l * ntaps + t],
                                    ext_ref[:, off:off + L],
                                    preferred_element_type=jnp.float32)
            y = acc[:cout, :] * mask                           # zero the border
            if l > 0:
                y = y + res_ref[n, cin:cin + cout, :]          # dense residual

            if is_last:
                o_ref[0] = y                                   # lane-dense store
            else:
                res_ref[n, :cout, :] = y                       # stays in VMEM
                if norm_nx:
                    # epilogue: next layer's BN stats while y is in vregs
                    _accum_stats(l + 1, y[:cin_nx, :])


# --------------------------------------------------------------------------- #
# Pure-JAX glue: geometry, parameter packing, pooling / skip crop              #
# --------------------------------------------------------------------------- #
def downsample_dense_block_forward(x, layers, *, growth_rate, kernel_size,
                                   down_scale, dilated, norm, nonlinear, eps):
    """x: (N, C, H, W) NCHW f32.  Returns (pooled, skip) in NCHW."""
    N, C, H, W = x.shape
    depth = len(growth_rate)
    Kh, Kw = kernel_size
    sh, sw = down_scale
    do_norm = bool(norm)
    do_relu = (nonlinear == 'relu')

    # DownSampleDenseBlock F.pad so (H, W) divide the pooling window.
    bt, bb = _split_pad((sh - H % sh) % sh)
    bl, br = _split_pad((sw - W % sw) % sw)
    Hb, Wb = H + bt + bb, W + bl + br

    # Per-layer conv padding / dilation; shared canvas border = per-side max.
    dils, cpads = [], []
    for idx in range(depth):
        d = 2 ** idx if dilated else 1
        pu, pb = _split_pad((Kh - 1) * d)
        plft, prt = _split_pad((Kw - 1) * d)
        dils.append(d)
        cpads.append((pu, pb, plft, prt))
    CU = max(cp[0] for cp in cpads)
    CB = max(cp[1] for cp in cpads)
    CL = max(cp[2] for cp in cpads)
    CR = max(cp[3] for cp in cpads)
    Hc, Wc = Hb + CU + CB, Wb + CL + CR
    L = Hc * Wc
    m0 = CU * Wc + CL
    m1 = CB * Wc + CR
    m0a = _round_up(max(m0, 1), 128)     # 128-aligned interior start in scratch

    # Channel geometry padded to 8 sublanes (review item).
    cins = [C if i == 0 else growth_rate[i - 1] for i in range(depth)]
    couts = [sum(growth_rate[i:]) for i in range(depth)]
    CINP = _round_up(max(cins), 8)
    COUTP = _round_up(max(couts), 8)
    CT = _round_up(max(max(couts), CINP), 8)
    cout_last = couts[-1]

    # Per-layer static metadata: (cin, cout, tap offsets, norm flag, relu flag).
    layer_meta = []
    for idx in range(depth):
        d = dils[idx]
        pu, pb, plft, prt = cpads[idx]
        taps = tuple(m0a + (kh * d - pu) * Wc + (kw * d - plft)
                     for kh in range(Kh) for kw in range(Kw))
        assert min(taps) >= 0 and max(taps) + L <= m0a + L + m1
        layer_meta.append((cins[idx], couts[idx], taps, do_norm, do_relu))
    layer_meta = tuple(layer_meta)

    # Stacked, zero-padded per-layer parameters (tiny, built under jit).
    KK = Kh * Kw
    gam = jnp.zeros((depth, CINP, 1), jnp.float32)
    bet = jnp.zeros((depth, CINP, 1), jnp.float32)
    wts = jnp.zeros((depth * KK, COUTP, CINP), jnp.float32)
    bia = jnp.zeros((depth, COUTP, 1), jnp.float32)
    for idx in range(depth):
        cin, cout = cins[idx], couts[idx]
        pr = layers[idx]
        w_t = jnp.transpose(pr['w'], (2, 3, 0, 1)).reshape(KK, cout, cin)
        wts = wts.at[idx * KK:(idx + 1) * KK, :cout, :cin].set(w_t)
        gam = gam.at[idx, :cin, 0].set(pr['gamma'])
        bet = bet.at[idx, :cin, 0].set(pr['beta'])
        bia = bia.at[idx, :cout, 0].set(pr['b'])

    # Interior mask marking the Hb x Wb image inside the conv canvas.
    q = jnp.arange(L, dtype=jnp.int32)
    yi = q // Wc - CU
    xi = q % Wc - CL
    inside = (yi >= 0) & (yi < Hb) & (xi >= 0) & (xi < Wb)
    mask = inside.astype(jnp.float32).reshape(1, L)

    # One HBM pad per block: block pad + shared conv border + channel pad to 8.
    xc = jnp.pad(x, ((0, 0), (0, CINP - C),
                     (bt + CU, bb + CB), (bl + CL, br + CR))).reshape(N, CINP, L)

    kern = functools.partial(
        _dense_block_kernel, layer_meta=layer_meta, depth=depth, L=L, m0a=m0a,
        cinp=CINP, coutp=COUTP, count=float(Hb * Wb), total=float(N * Hb * Wb),
        eps=eps)

    canvas = pl.pallas_call(
        kern,
        out_shape=jax.ShapeDtypeStruct((N, cout_last, L), jnp.float32),
        grid=(depth + 1, N),
        in_specs=[
            pl.BlockSpec((1, CINP, L), lambda p_, n_: (n_, 0, 0)),
            pl.BlockSpec((1, L), lambda p_, n_: (0, 0)),
            pl.BlockSpec((depth, CINP, 1), lambda p_, n_: (0, 0, 0)),
            pl.BlockSpec((depth, CINP, 1), lambda p_, n_: (0, 0, 0)),
            pl.BlockSpec((depth * KK, COUTP, CINP), lambda p_, n_: (0, 0, 0)),
            pl.BlockSpec((depth, COUTP, 1), lambda p_, n_: (0, 0, 0)),
        ],
        out_specs=pl.BlockSpec((1, cout_last, L), lambda p_, n_: (n_, 0, 0)),
        scratch_shapes=[
            pltpu.VMEM((N, CT, L), jnp.float32),            # residual canvas
            pltpu.VMEM((CINP, m0a + L + m1), jnp.float32),  # margin tap scratch
            pltpu.VMEM((depth, CINP, 1), jnp.float32),      # Welford mean
            pltpu.VMEM((depth, CINP, 1), jnp.float32),      # Welford M2
            pltpu.VMEM((CINP, 1), jnp.float32),             # folded BN scale
            pltpu.VMEM((CINP, 1), jnp.float32),             # folded BN shift
        ],
        compiler_params=pltpu.CompilerParams(
            dimension_semantics=("arbitrary", "arbitrary"),
            vmem_limit_bytes=_vmem_limit_bytes()),
    )(xc, mask, gam, bet, wts, bia)

    # Skip crop + AvgPool2d: cheap XLA reshape/slice on the lane-dense canvas
    # (replaces the O(H^2*W^2) pooling matmul from rev.1).
    y4 = canvas.reshape(N, cout_last, Hc, Wc)
    block_img = y4[:, :, CU:CU + Hb, CL:CL + Wb]             # (N, Cg, Hb, Wb)
    skip = block_img[:, :, bt:Hb - bb, bl:Wb - br]           # crop block pad
    pooled = block_img.reshape(N, cout_last, Hb // sh, sh,
                               Wb // sw, sw).mean(axis=(3, 5))
    return pooled, skip


def encoder_forward(x, params, cfgs):
    """x: (N, C, H, W) float32.  Mirrors Encoder.forward -> (output, [skips])."""
    skips = []
    for layers, cfg in zip(params, cfgs):
        x, sk = downsample_dense_block_forward(x, layers, **cfg)
        skips.append(sk)
    return x, skips


# --------------------------------------------------------------------------- #
# Deterministic parameter init (PyTorch nn.Module shapes)                      #
# --------------------------------------------------------------------------- #
def init_encoder(key, in_channels, growth_rate, kernel_size, depth,
                 down_scale=(2, 2), dilated=False, norm=True, nonlinear='relu'):
    Kh, Kw = kernel_size
    params, cfgs = [], []
    _in = in_channels
    for g in growth_rate:
        gr = [g] * depth
        layers = []
        for j in range(depth):
            cin = _in if j == 0 else gr[j - 1]
            cout = sum(gr[j:])
            key, k1, k2, k3, k4 = jax.random.split(key, 5)
            layers.append({
                'gamma': 1.0 + 0.1 * jax.random.normal(k1, (cin,), jnp.float32),
                'beta': 0.1 * jax.random.normal(k2, (cin,), jnp.float32),
                'w': 0.1 * jax.random.normal(k3, (cout, cin, Kh, Kw), jnp.float32),
                'b': 0.05 * jax.random.normal(k4, (cout,), jnp.float32),
            })
        params.append(layers)
        cfgs.append(dict(growth_rate=gr, kernel_size=kernel_size,
                         down_scale=down_scale, dilated=dilated, norm=norm,
                         nonlinear=nonlinear, eps=EPS))
        _in = g
    return params, cfgs


# --------------------------------------------------------------------------- #
# Pure-JAX/XLA reference (mirrors the PyTorch module) for a correctness check  #
# --------------------------------------------------------------------------- #
def _ref_encoder(x, params, cfgs):
    def conv_block(xin, pr, pad, dil, do_norm, do_relu, eps):
        h = xin
        if do_norm:
            mean = h.mean(axis=(0, 2, 3), keepdims=True)
            var = h.var(axis=(0, 2, 3), keepdims=True)       # biased, like BN
            h = (h - mean) * jax.lax.rsqrt(var + eps)
            h = (h * pr['gamma'][None, :, None, None]
                 + pr['beta'][None, :, None, None])
        if do_relu:
            h = jnp.maximum(h, 0.0)
        pu, pb, plft, prt = pad
        h = jnp.pad(h, ((0, 0), (0, 0), (pu, pb), (plft, prt)))
        out = jax.lax.conv_general_dilated(
            h, pr['w'], window_strides=(1, 1), padding='VALID',
            rhs_dilation=dil, dimension_numbers=('NCHW', 'OIHW', 'NCHW'))
        return out + pr['b'][None, :, None, None]

    skips = []
    for layers, cfg in zip(params, cfgs):
        gr = cfg['growth_rate']
        depth = len(gr)
        Kh, Kw = cfg['kernel_size']
        sh, sw = cfg['down_scale']
        N, _, H, W = x.shape
        bt, bb = _split_pad((sh - H % sh) % sh)
        bl, br = _split_pad((sw - W % sw) % sw)
        xb = jnp.pad(x, ((0, 0), (0, 0), (bt, bb), (bl, br)))
        res = None
        for idx in range(depth):
            if idx == 0:
                inp = xb
            else:
                cin = gr[idx - 1]
                inp, res = res[:, :cin], res[:, cin:]
            d = 2 ** idx if cfg['dilated'] else 1
            pu, pb_ = _split_pad((Kh - 1) * d)
            plft, prt = _split_pad((Kw - 1) * d)
            y = conv_block(inp, layers[idx], (pu, pb_, plft, prt), (d, d),
                           bool(cfg['norm']), cfg['nonlinear'] == 'relu',
                           cfg['eps'])
            res = y if res is None else res + y
        Hb, Wb = xb.shape[2], xb.shape[3]
        skip = res[:, :, bt:Hb - bb, bl:Wb - br]
        pooled = res.reshape(N, res.shape[1], Hb // sh, sh,
                             Wb // sw, sw).mean(axis=(3, 5))
        skips.append(skip)
        x = pooled
    return x, skips


# --------------------------------------------------------------------------- #
if __name__ == "__main__":
    key = jax.random.PRNGKey(0)
    key, kx = jax.random.split(key)

    in_channels = 4
    growth_rate = [6, 8]          # two DownSampleDenseBlocks
    kernel_size = (3, 3)
    depth = 2
    down_scale = (2, 2)

    params, cfgs = init_encoder(key, in_channels, growth_rate, kernel_size,
                                depth, down_scale=down_scale, dilated=False,
                                norm=True, nonlinear='relu')

    x = jax.random.normal(kx, (2, in_channels, 16, 16), jnp.float32)  # NCHW

    fwd = jax.jit(lambda xx, pp: encoder_forward(xx, pp, cfgs))
    out, skips = fwd(x, params)
    out = jax.block_until_ready(out)
    skips = [jax.block_until_ready(s) for s in skips]

    assert out.shape == (2, growth_rate[-1], 4, 4), out.shape
    assert skips[0].shape == (2, growth_rate[0], 16, 16), skips[0].shape
    assert skips[1].shape == (2, growth_rate[1], 8, 8), skips[1].shape
    assert all(bool(jnp.isfinite(a).all()) for a in [out] + skips)

    # Cross-check the fused kernel against a pure-JAX/XLA reference.
    ref_out, ref_skips = _ref_encoder(x, params, cfgs)
    assert bool(jnp.allclose(out, ref_out, atol=2e-3, rtol=2e-3)), \
        float(jnp.max(jnp.abs(out - ref_out)))
    for s, r in zip(skips, ref_skips):
        assert bool(jnp.allclose(s, r, atol=2e-3, rtol=2e-3)), \
            float(jnp.max(jnp.abs(s - r)))

    print("KERNEL_OK")
</pallas_src>

<mosaic_0001>
module attributes {stable_mosaic.version = 11 : i64} {
  func.func @_dense_block_kernel(%arg0: i32, %arg1: i32, %arg2: memref<1x8x324xf32, #tpu.memory_space<vmem>>, %arg3: memref<1x324xf32, #tpu.memory_space<vmem>>, %arg4: memref<2x8x1xf32, #tpu.memory_space<vmem>>, %arg5: memref<2x8x1xf32, #tpu.memory_space<vmem>>, %arg6: memref<18x16x8xf32, #tpu.memory_space<vmem>>, %arg7: memref<2x16x1xf32, #tpu.memory_space<vmem>>, %arg8: memref<1x6x324xf32, #tpu.memory_space<vmem>>, %arg9: memref<2x16x324xf32, #tpu.memory_space<vmem>>, %arg10: memref<8x471xf32, #tpu.memory_space<vmem>>, %arg11: memref<2x8x1xf32, #tpu.memory_space<vmem>>, %arg12: memref<2x8x1xf32, #tpu.memory_space<vmem>>, %arg13: memref<8x1xf32, #tpu.memory_space<vmem>>, %arg14: memref<8x1xf32, #tpu.memory_space<vmem>>) attributes {dimension_semantics = [#tpu.dimension_semantics<arbitrary>, #tpu.dimension_semantics<arbitrary>], iteration_bounds = array<i64: 3, 2>, scalar_prefetch = 0 : i64, scratch_operands = 6 : i64, tpu.core_type = #tpu.core_type<tc>, window_params = [{transform_indices = @transform_0, window_bounds = array<i64: 1, 8, 324>}, {pipeline_mode = #tpu.pipeline_mode<synchronous>, transform_indices = @transform_1, window_bounds = array<i64: 1, 324>}, {pipeline_mode = #tpu.pipeline_mode<synchronous>, transform_indices = @transform_2, window_bounds = array<i64: 2, 8, 1>}, {pipeline_mode = #tpu.pipeline_mode<synchronous>, transform_indices = @transform_3, window_bounds = array<i64: 2, 8, 1>}, {pipeline_mode = #tpu.pipeline_mode<synchronous>, transform_indices = @transform_4, window_bounds = array<i64: 18, 16, 8>}, {pipeline_mode = #tpu.pipeline_mode<synchronous>, transform_indices = @transform_5, window_bounds = array<i64: 2, 16, 1>}, {transform_indices = @transform_6, window_bounds = array<i64: 1, 6, 324>}]} {
    %0 = arith.sitofp %arg1 : i32 to f32
    %c0 = arith.constant 0 : index
    %c0_0 = arith.constant 0 : index
    %1 = vector.load %arg3[%c0, %c0_0] : memref<1x324xf32, #tpu.memory_space<vmem>>, vector<1x324xf32>
    %c0_i32 = arith.constant 0 : i32
    %2 = arith.cmpi eq, %arg0, %c0_i32 : i32
    %3 = arith.extui %2 : i1 to i32
    %c0_i32_1 = arith.constant 0 : i32
    %4 = arith.cmpi ne, %3, %c0_i32_1 : i32
    scf.if %4 {
      %c0_i32_4 = arith.constant 0 : i32
      %11 = arith.cmpi eq, %arg1, %c0_i32_4 : i32
      %12 = arith.extui %11 : i1 to i32
      %c0_i32_5 = arith.constant 0 : i32
      %13 = arith.cmpi ne, %12, %c0_i32_5 : i32
      scf.if %13 {
        %cst_28 = arith.constant 0.000000e+00 : f32
        %54 = vector.broadcast %cst_28 : f32 to vector<8x128xf32>
        %c0_29 = arith.constant 0 : index
        %c0_30 = arith.constant 0 : index
        %55 = vector.load %arg10[%c0_29, %c0_30] : memref<8x471xf32, #tpu.memory_space<vmem>>, vector<8x128xf32>
        tpu.vector_store %arg10[%c0_29, %c0_30], %54 {strides = array<i32>} : memref<8x471xf32, #tpu.memory_space<vmem>>, vector<8x128xf32>,
        %cst_31 = arith.constant 0.000000e+00 : f32
        %56 = vector.broadcast %cst_31 : f32 to vector<8x19xf32>
        %c0_32 = arith.constant 0 : index
        %c452 = arith.constant 452 : index
        %57 = vector.load %arg10[%c0_32, %c452] : memref<8x471xf32, #tpu.memory_space<vmem>>, vector<8x19xf32>
        tpu.vector_store %arg10[%c0_32, %c452], %56 {strides = array<i32>} : memref<8x471xf32, #tpu.memory_space<vmem>>, vector<8x19xf32>,
        %cst_33 = arith.constant 0.000000e+00 : f32
        %58 = vector.broadcast %cst_33 : f32 to vector<8x1xf32>
        %c0_34 = arith.constant 0 : index
        %c0_35 = arith.constant 0 : index
        %c0_36 = arith.constant 0 : index
        %59 = vector.load %arg11[%c0_34, %c0_35, %c0_36] : memref<2x8x1xf32, #tpu.memory_space<vmem>>, vector<1x8x1xf32>
        %60 = vector.shape_cast %59 : vector<1x8x1xf32> to vector<8x1xf32>
        %61 = vector.shape_cast %58 : vector<8x1xf32> to vector<1x8x1xf32>
        tpu.vector_store %arg11[%c0_34, %c0_35, %c0_36], %61 {strides = array<i32>} : memref<2x8x1xf32, #tpu.memory_space<vmem>>, vector<1x8x1xf32>,
        %cst_37 = arith.constant 0.000000e+00 : f32
        %62 = vector.broadcast %cst_37 : f32 to vector<8x1xf32>
        %c0_38 = arith.constant 0 : index
        %c0_39 = arith.constant 0 : index
        %c0_40 = arith.constant 0 : index
        %63 = vector.load %arg12[%c0_38, %c0_39, %c0_40] : memref<2x8x1xf32, #tpu.memory_space<vmem>>, vector<1x8x1xf32>
        %64 = vector.shape_cast %63 : vector<1x8x1xf32> to vector<8x1xf32>
        %65 = vector.shape_cast %62 : vector<8x1xf32> to vector<1x8x1xf32>
        tpu.vector_store %arg12[%c0_38, %c0_39, %c0_40], %65 {strides = array<i32>} : memref<2x8x1xf32, #tpu.memory_space<vmem>>, vector<1x8x1xf32>,
      } else {
      }
      %c0_6 = arith.constant 0 : index
      %c0_7 = arith.constant 0 : index
      %c0_8 = arith.constant 0 : index
      %14 = vector.load %arg2[%c0_6, %c0_7, %c0_8] : memref<1x8x324xf32, #tpu.memory_space<vmem>>, vector<1x8x324xf32>
      %15 = vector.shape_cast %14 : vector<1x8x324xf32> to vector<8x324xf32>
      %16 = arith.index_cast %arg1 : i32 to index
      %c0_9 = arith.constant 0 : index
      %c0_10 = arith.constant 0 : index
      %17 = vector.load %arg9[%16, %c0_9, %c0_10] : memref<2x16x324xf32, #tpu.memory_space<vmem>>, vector<1x8x324xf32>
      %18 = vector.shape_cast %17 : vector<1x8x324xf32> to vector<8x324xf32>
      %19 = vector.shape_cast %15 : vector<8x324xf32> to vector<1x8x324xf32>
      tpu.vector_store %arg9[%16, %c0_9, %c0_10], %19 {strides = array<i32>} : memref<2x16x324xf32, #tpu.memory_space<vmem>>, vector<1x8x324xf32>,
      %cst = arith.constant dense<0.000000e+00> : vector<8xf32>
      %20 = vector.multi_reduction <add>, %15, %cst [1] : vector<8x324xf32> to vector<8xf32>
      %21 = vector.shape_cast %20 : vector<8xf32> to vector<8x1xf32>
      %cst_11 = arith.constant 3.906250e-03 : f32
      %22 = vector.broadcast %cst_11 : f32 to vector<8x1xf32>
      %23 = arith.mulf %21, %22 : vector<8x1xf32>
      %24 = vector.broadcast %23 : vector<8x1xf32> to vector<8x324xf32>
      %25 = arith.subf %15, %24 : vector<8x324xf32>
      %26 = vector.broadcast %1 : vector<1x324xf32> to vector<8x324xf32>
      %27 = arith.mulf %25, %26 : vector<8x324xf32>
      %28 = arith.mulf %27, %27 : vector<8x324xf32>
      %cst_12 = arith.constant dense<0.000000e+00> : vector<8xf32>
      %29 = vector.multi_reduction <add>, %28, %cst_12 [1] : vector<8x324xf32> to vector<8xf32>
      %30 = vector.shape_cast %29 : vector<8xf32> to vector<8x1xf32>
      %c0_13 = arith.constant 0 : index
      %c0_14 = arith.constant 0 : index
      %c0_15 = arith.constant 0 : index
      %31 = vector.load %arg11[%c0_13, %c0_14, %c0_15] : memref<2x8x1xf32, #tpu.memory_space<vmem>>, vector<1x8x1xf32>
      %32 = vector.shape_cast %31 : vector<1x8x1xf32> to vector<8x1xf32>
      %33 = arith.subf %23, %32 : vector<8x1xf32>
      %cst_16 = arith.constant 1.000000e+00 : f32
      %34 = arith.addf %0, %cst_16 : f32
      %cst_17 = arith.constant 1.000000e+00 : f32
      %35 = arith.divf %cst_17, %34 : f32
      %36 = vector.broadcast %35 : f32 to vector<8x1xf32>
      %37 = arith.mulf %33, %36 : vector<8x1xf32>
      %38 = arith.addf %32, %37 : vector<8x1xf32>
      %c0_18 = arith.constant 0 : index
      %c0_19 = arith.constant 0 : index
      %c0_20 = arith.constant 0 : index
      %39 = vector.load %arg11[%c0_18, %c0_19, %c0_20] : memref<2x8x1xf32, #tpu.memory_space<vmem>>, vector<1x8x1xf32>
      %40 = vector.shape_cast %39 : vector<1x8x1xf32> to vector<8x1xf32>
      %41 = vector.shape_cast %38 : vector<8x1xf32> to vector<1x8x1xf32>
      tpu.vector_store %arg11[%c0_18, %c0_19, %c0_20], %41 {strides = array<i32>} : memref<2x8x1xf32, #tpu.memory_space<vmem>>, vector<1x8x1xf32>,
      %c0_21 = arith.constant 0 : index
      %c0_22 = arith.constant 0 : index
      %c0_23 = arith.constant 0 : index
      %42 = vector.load %arg12[%c0_21, %c0_22, %c0_23] : memref<2x8x1xf32, #tpu.memory_space<vmem>>, vector<1x8x1xf32>
      %43 = vector.shape_cast %42 : vector<1x8x1xf32> to vector<8x1xf32>
      %44 = arith.addf %43, %30 : vector<8x1xf32>
      %45 = arith.mulf %33, %33 : vector<8x1xf32>
      %cst_24 = arith.constant 2.560000e+02 : f32
      %46 = arith.mulf %cst_24, %0 : f32
      %47 = arith.mulf %46, %35 : f32
      %48 = vector.broadcast %47 : f32 to vector<8x1xf32>
      %49 = arith.mulf %45, %48 : vector<8x1xf32>
      %50 = arith.addf %44, %49 : vector<8x1xf32>
      %c0_25 = arith.constant 0 : index
      %c0_26 = arith.constant 0 : index
      %c0_27 = arith.constant 0 : index
      %51 = vector.load %arg12[%c0_25, %c0_26, %c0_27] : memref<2x8x1xf32, #tpu.memory_space<vmem>>, vector<1x8x1xf32>
      %52 = vector.shape_cast %51 : vector<1x8x1xf32> to vector<8x1xf32>
      %53 = vector.shape_cast %50 : vector<8x1xf32> to vector<1x8x1xf32>
      tpu.vector_store %arg12[%c0_25, %c0_26, %c0_27], %53 {strides = array<i32>} : memref<2x8x1xf32, #tpu.memory_space<vmem>>, vector<1x8x1xf32>,
    } else {
    }
    %c1_i32 = arith.constant 1 : i32
    %5 = arith.cmpi eq, %arg0, %c1_i32 : i32
    %6 = arith.extui %5 : i1 to i32
    %c0_i32_2 = arith.constant 0 : i32
    %7 = arith.cmpi ne, %6, %c0_i32_2 : i32
    scf.if %7 {
      %c0_i32_4 = arith.constant 0 : i32
      %11 = arith.cmpi eq, %arg1, %c0_i32_4 : i32
      %12 = arith.extui %11 : i1 to i32
      %c0_i32_5 = arith.constant 0 : i32
      %13 = arith.cmpi ne, %12, %c0_i32_5 : i32
      scf.if %13 {
        %c0_75 = arith.constant 0 : index
        %c0_76 = arith.constant 0 : index
        %c0_77 = arith.constant 0 : index
        %120 = vector.load %arg11[%c0_75, %c0_76, %c0_77] : memref<2x8x1xf32, #tpu.memory_space<vmem>>, vector<1x8x1xf32>
        %121 = vector.shape_cast %120 : vector<1x8x1xf32> to vector<8x1xf32>
        %c0_78 = arith.constant 0 : index
        %c0_79 = arith.constant 0 : index
        %c0_80 = arith.constant 0 : index
        %122 = vector.load %arg12[%c0_78, %c0_79, %c0_80] : memref<2x8x1xf32, #tpu.memory_space<vmem>>, vector<1x8x1xf32>
        %123 = vector.shape_cast %122 : vector<1x8x1xf32> to vector<8x1xf32>
        %cst_81 = arith.constant 0.001953125 : f32
        %124 = vector.broadcast %cst_81 : f32 to vector<8x1xf32>
        %125 = arith.mulf %123, %124 : vector<8x1xf32>
        %cst_82 = arith.constant 0.000000e+00 : f32
        %126 = vector.broadcast %cst_82 : f32 to vector<8x1xf32>
        %127 = arith.maximumf %125, %126 : vector<8x1xf32>
        %c0_83 = arith.constant 0 : index
        %c0_84 = arith.constant 0 : index
        %c0_85 = arith.constant 0 : index
        %128 = vector.load %arg4[%c0_83, %c0_84, %c0_85] : memref<2x8x1xf32, #tpu.memory_space<vmem>>, vector<1x8x1xf32>
        %129 = vector.shape_cast %128 : vector<1x8x1xf32> to vector<8x1xf32>
        %cst_86 = arith.constant 9.99999996E-13 : f32
        %130 = vector.broadcast %cst_86 : f32 to vector<8x1xf32>
        %131 = arith.addf %127, %130 : vector<8x1xf32>
        %132 = math.rsqrt %131 : vector<8x1xf32>
        %133 = arith.mulf %129, %132 : vector<8x1xf32>
        %c0_87 = arith.constant 0 : index
        %c0_88 = arith.constant 0 : index
        %134 = vector.load %arg13[%c0_87, %c0_88] : memref<8x1xf32, #tpu.memory_space<vmem>>, vector<8x1xf32>
        tpu.vector_store %arg13[%c0_87, %c0_88], %133 {strides = array<i32>} : memref<8x1xf32, #tpu.memory_space<vmem>>, vector<8x1xf32>,
        %c0_89 = arith.constant 0 : index
        %c0_90 = arith.constant 0 : index
        %c0_91 = arith.constant 0 : index
        %135 = vector.load %arg5[%c0_89, %c0_90, %c0_91] : memref<2x8x1xf32, #tpu.memory_space<vmem>>, vector<1x8x1xf32>
        %136 = vector.shape_cast %135 : vector<1x8x1xf32> to vector<8x1xf32>
        %137 = arith.mulf %121, %133 : vector<8x1xf32>
        %138 = arith.subf %136, %137 : vector<8x1xf32>
        %c0_92 = arith.constant 0 : index
        %c0_93 = arith.constant 0 : index
        %139 = vector.load %arg14[%c0_92, %c0_93] : memref<8x1xf32, #tpu.memory_space<vmem>>, vector<8x1xf32>
        tpu.vector_store %arg14[%c0_92, %c0_93], %138 {strides = array<i32>} : memref<8x1xf32, #tpu.memory_space<vmem>>, vector<8x1xf32>,
        %cst_94 = arith.constant 0.000000e+00 : f32
        %140 = vector.broadcast %cst_94 : f32 to vector<8x1xf32>
        %c1_95 = arith.constant 1 : index
        %c0_96 = arith.constant 0 : index
        %c0_97 = arith.constant 0 : index
        %141 = vector.load %arg11[%c1_95, %c0_96, %c0_97] : memref<2x8x1xf32, #tpu.memory_space<vmem>>, vector<1x8x1xf32>
        %142 = vector.shape_cast %141 : vector<1x8x1xf32> to vector<8x1xf32>
        %143 = vector.shape_cast %140 : vector<8x1xf32> to vector<1x8x1xf32>
        tpu.vector_store %arg11[%c1_95, %c0_96, %c0_97], %143 {strides = array<i32>} : memref<2x8x1xf32, #tpu.memory_space<vmem>>, vector<1x8x1xf32>,
        %cst_98 = arith.constant 0.000000e+00 : f32
        %144 = vector.broadcast %cst_98 : f32 to vector<8x1xf32>
        %c1_99 = arith.constant 1 : index
        %c0_100 = arith.constant 0 : index
        %c0_101 = arith.constant 0 : index
        %145 = vector.load %arg12[%c1_99, %c0_100, %c0_101] : memref<2x8x1xf32, #tpu.memory_space<vmem>>, vector<1x8x1xf32>
        %146 = vector.shape_cast %145 : vector<1x8x1xf32> to vector<8x1xf32>
        %147 = vector.shape_cast %144 : vector<8x1xf32> to vector<1x8x1xf32>
        tpu.vector_store %arg12[%c1_99, %c0_100, %c0_101], %147 {strides = array<i32>} : memref<2x8x1xf32, #tpu.memory_space<vmem>>, vector<1x8x1xf32>,
      } else {
      }
      %14 = arith.index_cast %arg1 : i32 to index
      %c0_6 = arith.constant 0 : index
      %c0_7 = arith.constant 0 : index
      %15 = vector.load %arg9[%14, %c0_6, %c0_7] : memref<2x16x324xf32, #tpu.memory_space<vmem>>, vector<1x8x324xf32>
      %16 = vector.shape_cast %15 : vector<1x8x324xf32> to vector<8x324xf32>
      %c0_8 = arith.constant 0 : index
      %c0_9 = arith.constant 0 : index
      %17 = vector.load %arg13[%c0_8, %c0_9] : memref<8x1xf32, #tpu.memory_space<vmem>>, vector<8x1xf32>
      %18 = vector.broadcast %17 : vector<8x1xf32> to vector<8x324xf32>
      %19 = arith.mulf %16, %18 : vector<8x324xf32>
      %c0_10 = arith.constant 0 : index
      %c0_11 = arith.constant 0 : index
      %20 = vector.load %arg14[%c0_10, %c0_11] : memref<8x1xf32, #tpu.memory_space<vmem>>, vector<8x1xf32>
      %21 = vector.broadcast %20 : vector<8x1xf32> to vector<8x324xf32>
      %22 = arith.addf %19, %21 : vector<8x324xf32>
      %cst = arith.constant 0.000000e+00 : f32
      %23 = vector.broadcast %cst : f32 to vector<8x324xf32>
      %24 = arith.maximumf %22, %23 : vector<8x324xf32>
      %25 = vector.broadcast %1 : vector<1x324xf32> to vector<8x324xf32>
      %26 = arith.mulf %24, %25 : vector<8x324xf32>
      %c0_12 = arith.constant 0 : index
      %c128 = arith.constant 128 : index
      %27 = vector.load %arg10[%c0_12, %c128] : memref<8x471xf32, #tpu.memory_space<vmem>>, vector<8x324xf32>
      tpu.vector_store %arg10[%c0_12, %c128], %26 {strides = array<i32>} : memref<8x471xf32, #tpu.memory_space<vmem>>, vector<8x324xf32>,
      %cst_13 = arith.constant 0.000000e+00 : f32
      %28 = vector.broadcast %cst_13 : f32 to vector<16x324xf32>
      %c0_14 = arith.constant 0 : index
      %c0_15 = arith.constant 0 : index
      %c0_16 = arith.constant 0 : index
      %29 = vector.load %arg7[%c0_14, %c0_15, %c0_16] : memref<2x16x1xf32, #tpu.memory_space<vmem>>, vector<1x16x1xf32>
      %30 = vector.shape_cast %29 : vector<1x16x1xf32> to vector<16x1xf32>
      %31 = vector.broadcast %30 : vector<16x1xf32> to vector<16x324xf32>
      %32 = arith.addf %28, %31 : vector<16x324xf32>
      %c0_17 = arith.constant 0 : index
      %c0_18 = arith.constant 0 : index
      %c0_19 = arith.constant 0 : index
      %33 = vector.load %arg6[%c0_17, %c0_18, %c0_19] : memref<18x16x8xf32, #tpu.memory_space<vmem>>, vector<1x16x8xf32>
      %34 = vector.shape_cast %33 : vector<1x16x8xf32> to vector<16x8xf32>
      %c0_20 = arith.constant 0 : index
      %c109 = arith.constant 109 : index
      %35 = vector.load %arg10[%c0_20, %c109] : memref<8x471xf32, #tpu.memory_space<vmem>>, vector<8x324xf32>
      %cst_21 = arith.constant dense<0.000000e+00> : vector<16x324xf32>
      %36 = tpu.matmul %34, %35, %cst_21 {dimension_numbers = #tpu.dot_dimension_numbers<[1], [0], [0], [1], [0, 0, 1, 1], [], []>} : vector<16x8xf32>, vector<8x324xf32>, vector<16x324xf32> -> vector<16x324xf32>
      %37 = arith.addf %32, %36 : vector<16x324xf32>
      %c1 = arith.constant 1 : index
      %c0_22 = arith.constant 0 : index
      %c0_23 = arith.constant 0 : index
      %38 = vector.load %arg6[%c1, %c0_22, %c0_23] : memref<18x16x8xf32, #tpu.memory_space<vmem>>, vector<1x16x8xf32>
      %39 = vector.shape_cast %38 : vector<1x16x8xf32> to vector<16x8xf32>
      %c0_24 = arith.constant 0 : index
      %c110 = arith.constant 110 : index
      %40 = vector.load %arg10[%c0_24, %c110] : memref<8x471xf32, #tpu.memory_space<vmem>>, vector<8x324xf32>
      %cst_25 = arith.constant dense<0.000000e+00> : vector<16x324xf32>
      %41 = tpu.matmul %39, %40, %cst_25 {dimension_numbers = #tpu.dot_dimension_numbers<[1], [0], [0], [1], [0, 0, 1, 1], [], []>} : vector<16x8xf32>, vector<8x324xf32>, vector<16x324xf32> -> vector<16x324xf32>
      %42 = arith.addf %37, %41 : vector<16x324xf32>
      %c2 = arith.constant 2 : index
      %c0_26 = arith.constant 0 : index
      %c0_27 = arith.constant 0 : index
      %43 = vector.load %arg6[%c2, %c0_26, %c0_27] : memref<18x16x8xf32, #tpu.memory_space<vmem>>, vector<1x16x8xf32>
      %44 = vector.shape_cast %43 : vector<1x16x8xf32> to vector<16x8xf32>
      %c0_28 = arith.constant 0 : index
      %c111 = arith.constant 111 : index
      %45 = vector.load %arg10[%c0_28, %c111] : memref<8x471xf32, #tpu.memory_space<vmem>>, vector<8x324xf32>
      %cst_29 = arith.constant dense<0.000000e+00> : vector<16x324xf32>
      %46 = tpu.matmul %44, %45, %cst_29 {dimension_numbers = #tpu.dot_dimension_numbers<[1], [0], [0], [1], [0, 0, 1, 1], [], []>} : vector<16x8xf32>, vector<8x324xf32>, vector<16x324xf32> -> vector<16x324xf32>
      %47 = arith.addf %42, %46 : vector<16x324xf32>
      %c3 = arith.constant 3 : index
      %c0_30 = arith.constant 0 : index
      %c0_31 = arith.constant 0 : index
      %48 = vector.load %arg6[%c3, %c0_30, %c0_31] : memref<18x16x8xf32, #tpu.memory_space<vmem>>, vector<1x16x8xf32>
      %49 = vector.shape_cast %48 : vector<1x16x8xf32> to vector<16x8xf32>
      %c0_32 = arith.constant 0 : index
      %c127 = arith.constant 127 : index
      %50 = vector.load %arg10[%c0_32, %c127] : memref<8x471xf32, #tpu.memory_space<vmem>>, vector<8x324xf32>
      %cst_33 = arith.constant dense<0.000000e+00> : vector<16x324xf32>
      %51 = tpu.matmul %49, %50, %cst_33 {dimension_numbers = #tpu.dot_dimension_numbers<[1], [0], [0], [1], [0, 0, 1, 1], [], []>} : vector<16x8xf32>, vector<8x324xf32>, vector<16x324xf32> -> vector<16x324xf32>
      %52 = arith.addf %47, %51 : vector<16x324xf32>
      %c4 = arith.constant 4 : index
      %c0_34 = arith.constant 0 : index
      %c0_35 = arith.constant 0 : index
      %53 = vector.load %arg6[%c4, %c0_34, %c0_35] : memref<18x16x8xf32, #tpu.memory_space<vmem>>, vector<1x16x8xf32>
      %54 = vector.shape_cast %53 : vector<1x16x8xf32> to vector<16x8xf32>
      %c0_36 = arith.constant 0 : index
      %c128_37 = arith.constant 128 : index
      %55 = vector.load %arg10[%c0_36, %c128_37] : memref<8x471xf32, #tpu.memory_space<vmem>>, vector<8x324xf32>
      %cst_38 = arith.constant dense<0.000000e+00> : vector<16x324xf32>
      %56 = tpu.matmul %54, %55, %cst_38 {dimension_numbers = #tpu.dot_dimension_numbers<[1], [0], [0], [1], [0, 0, 1, 1], [], []>} : vector<16x8xf32>, vector<8x324xf32>, vector<16x324xf32> -> vector<16x324xf32>
      %57 = arith.addf %52, %56 : vector<16x324xf32>
      %c5 = arith.constant 5 : index
      %c0_39 = arith.constant 0 : index
      %c0_40 = arith.constant 0 : index
      %58 = vector.load %arg6[%c5, %c0_39, %c0_40] : memref<18x16x8xf32, #tpu.memory_space<vmem>>, vector<1x16x8xf32>
      %59 = vector.shape_cast %58 : vector<1x16x8xf32> to vector<16x8xf32>
      %c0_41 = arith.constant 0 : index
      %c129 = arith.constant 129 : index
      %60 = vector.load %arg10[%c0_41, %c129] : memref<8x471xf32, #tpu.memory_space<vmem>>, vector<8x324xf32>
      %cst_42 = arith.constant dense<0.000000e+00> : vector<16x324xf32>
      %61 = tpu.matmul %59, %60, %cst_42 {dimension_numbers = #tpu.dot_dimension_numbers<[1], [0], [0], [1], [0, 0, 1, 1], [], []>} : vector<16x8xf32>, vector<8x324xf32>, vector<16x324xf32> -> vector<16x324xf32>
      %62 = arith.addf %57, %61 : vector<16x324xf32>
      %c6 = arith.constant 6 : index
      %c0_43 = arith.constant 0 : index
      %c0_44 = arith.constant 0 : index
      %63 = vector.load %arg6[%c6, %c0_43, %c0_44] : memref<18x16x8xf32, #tpu.memory_space<vmem>>, vector<1x16x8xf32>
      %64 = vector.shape_cast %63 : vector<1x16x8xf32> to vector<16x8xf32>
      %c0_45 = arith.constant 0 : index
      %c145 = arith.constant 145 : index
      %65 = vector.load %arg10[%c0_45, %c145] : memref<8x471xf32, #tpu.memory_space<vmem>>, vector<8x324xf32>
      %cst_46 = arith.constant dense<0.000000e+00> : vector<16x324xf32>
      %66 = tpu.matmul %64, %65, %cst_46 {dimension_numbers = #tpu.dot_dimension_numbers<[1], [0], [0], [1], [0, 0, 1, 1], [], []>} : vector<16x8xf32>, vector<8x324xf32>, vector<16x324xf32> -> vector<16x324xf32>
      %67 = arith.addf %62, %66 : vector<16x324xf32>
      %c7 = arith.constant 7 : index
      %c0_47 = arith.constant 0 : index
      %c0_48 = arith.constant 0 : index
      %68 = vector.load %arg6[%c7, %c0_47, %c0_48] : memref<18x16x8xf32, #tpu.memory_space<vmem>>, vector<1x16x8xf32>
      %69 = vector.shape_cast %68 : vector<1x16x8xf32> to vector<16x8xf32>
      %c0_49 = arith.constant 0 : index
      %c146 = arith.constant 146 : index
      %70 = vector.load %arg10[%c0_49, %c146] : memref<8x471xf32, #tpu.memory_space<vmem>>, vector<8x324xf32>
      %cst_50 = arith.constant dense<0.000000e+00> : vector<16x324xf32>
      %71 = tpu.matmul %69, %70, %cst_50 {dimension_numbers = #tpu.dot_dimension_numbers<[1], [0], [0], [1], [0, 0, 1, 1], [], []>} : vector<16x8xf32>, vector<8x324xf32>, vector<16x324xf32> -> vector<16x324xf32>
      %72 = arith.addf %67, %71 : vector<16x324xf32>
      %c8 = arith.constant 8 : index
      %c0_51 = arith.constant 0 : index
      %c0_52 = arith.constant 0 : index
      %73 = vector.load %arg6[%c8, %c0_51, %c0_52] : memref<18x16x8xf32, #tpu.memory_space<vmem>>, vector<1x16x8xf32>
      %74 = vector.shape_cast %73 : vector<1x16x8xf32> to vector<16x8xf32>
      %c0_53 = arith.constant 0 : index
      %c147 = arith.constant 147 : index
      %75 = vector.load %arg10[%c0_53, %c147] : memref<8x471xf32, #tpu.memory_space<vmem>>, vector<8x324xf32>
      %cst_54 = arith.constant dense<0.000000e+00> : vector<16x324xf32>
      %76 = tpu.matmul %74, %75, %cst_54 {dimension_numbers = #tpu.dot_dimension_numbers<[1], [0], [0], [1], [0, 0, 1, 1], [], []>} : vector<16x8xf32>, vector<8x324xf32>, vector<16x324xf32> -> vector<16x324xf32>
      %77 = arith.addf %72, %76 : vector<16x324xf32>
      %78 = vector.extract_strided_slice %77 {offsets = [0, 0], sizes = [12, 324], strides = [1, 1]} : vector<16x324xf32> to vector<12x324xf32>
      %79 = vector.broadcast %1 : vector<1x324xf32> to vector<12x324xf32>
      %80 = arith.mulf %78, %79 : vector<12x324xf32>
      %81 = arith.index_cast %arg1 : i32 to index
      %c0_55 = arith.constant 0 : index
      %c0_56 = arith.constant 0 : index
      %82 = vector.load %arg9[%81, %c0_55, %c0_56] : memref<2x16x324xf32, #tpu.memory_space<vmem>>, vector<1x12x324xf32>
      %83 = vector.shape_cast %82 : vector<1x12x324xf32> to vector<12x324xf32>
      %84 = vector.shape_cast %80 : vector<12x324xf32> to vector<1x12x324xf32>
      tpu.vector_store %arg9[%81, %c0_55, %c0_56], %84 {strides = array<i32>} : memref<2x16x324xf32, #tpu.memory_space<vmem>>, vector<1x12x324xf32>,
      %85 = vector.extract_strided_slice %80 {offsets = [0, 0], sizes = [6, 324], strides = [1, 1]} : vector<12x324xf32> to vector<6x324xf32>
      %cst_57 = arith.constant dense<0.000000e+00> : vector<6xf32>
      %86 = vector.multi_reduction <add>, %85, %cst_57 [1] : vector<6x324xf32> to vector<6xf32>
      %87 = vector.shape_cast %86 : vector<6xf32> to vector<6x1xf32>
      %cst_58 = arith.constant 3.906250e-03 : f32
      %88 = vector.broadcast %cst_58 : f32 to vector<6x1xf32>
      %89 = arith.mulf %87, %88 : vector<6x1xf32>
      %90 = vector.broadcast %89 : vector<6x1xf32> to vector<6x324xf32>
      %91 = arith.subf %85, %90 : vector<6x324xf32>
      %92 = vector.broadcast %1 : vector<1x324xf32> to vector<6x324xf32>
      %93 = arith.mulf %91, %92 : vector<6x324xf32>
      %94 = arith.mulf %93, %93 : vector<6x324xf32>
      %cst_59 = arith.constant dense<0.000000e+00> : vector<6xf32>
      %95 = vector.multi_reduction <add>, %94, %cst_59 [1] : vector<6x324xf32> to vector<6xf32>
      %96 = vector.shape_cast %95 : vector<6xf32> to vector<6x1xf32>
      %c1_60 = arith.constant 1 : index
      %c0_61 = arith.constant 0 : index
      %c0_62 = arith.constant 0 : index
      %97 = vector.load %arg11[%c1_60, %c0_61, %c0_62] : memref<2x8x1xf32, #tpu.memory_space<vmem>>, vector<1x6x1xf32>
      %98 = vector.shape_cast %97 : vector<1x6x1xf32> to vector<6x1xf32>
      %99 = arith.subf %89, %98 : vector<6x1xf32>
      %cst_63 = arith.constant 1.000000e+00 : f32
      %100 = arith.addf %0, %cst_63 : f32
      %cst_64 = arith.constant 1.000000e+00 : f32
      %101 = arith.divf %cst_64, %100 : f32
      %102 = vector.broadcast %101 : f32 to vector<6x1xf32>
      %103 = arith.mulf %99, %102 : vector<6x1xf32>
      %104 = arith.addf %98, %103 : vector<6x1xf32>
      %c1_65 = arith.constant 1 : index
      %c0_66 = arith.constant 0 : index
      %c0_67 = arith.constant 0 : index
      %105 = vector.load %arg11[%c1_65, %c0_66, %c0_67] : memref<2x8x1xf32, #tpu.memory_space<vmem>>, vector<1x6x1xf32>
      %106 = vector.shape_cast %105 : vector<1x6x1xf32> to vector<6x1xf32>
      %107 = vector.shape_cast %104 : vector<6x1xf32> to vector<1x6x1xf32>
      tpu.vector_store %arg11[%c1_65, %c0_66, %c0_67], %107 {strides = array<i32>} : memref<2x8x1xf32, #tpu.memory_space<vmem>>, vector<1x6x1xf32>,
      %c1_68 = arith.constant 1 : index
      %c0_69 = arith.constant 0 : index
      %c0_70 = arith.constant 0 : index
      %108 = vector.load %arg12[%c1_68, %c0_69, %c0_70] : memref<2x8x1xf32, #tpu.memory_space<vmem>>, vector<1x6x1xf32>
      %109 = vector.shape_cast %108 : vector<1x6x1xf32> to vector<6x1xf32>
      %110 = arith.addf %109, %96 : vector<6x1xf32>
      %111 = arith.mulf %99, %99 : vector<6x1xf32>
      %cst_71 = arith.constant 2.560000e+02 : f32
      %112 = arith.mulf %cst_71, %0 : f32
      %113 = arith.mulf %112, %101 : f32
      %114 = vector.broadcast %113 : f32 to vector<6x1xf32>
      %115 = arith.mulf %111, %114 : vector<6x1xf32>
      %116 = arith.addf %110, %115 : vector<6x1xf32>
      %c1_72 = arith.constant 1 : index
      %c0_73 = arith.constant 0 : index
      %c0_74 = arith.constant 0 : index
      %117 = vector.load %arg12[%c1_72, %c0_73, %c0_74] : memref<2x8x1xf32, #tpu.memory_space<vmem>>, vector<1x6x1xf32>
      %118 = vector.shape_cast %117 : vector<1x6x1xf32> to vector<6x1xf32>
      %119 = vector.shape_cast %116 : vector<6x1xf32> to vector<1x6x1xf32>
      tpu.vector_store %arg12[%c1_72, %c0_73, %c0_74], %119 {strides = array<i32>} : memref<2x8x1xf32, #tpu.memory_space<vmem>>, vector<1x6x1xf32>,
    } else {
    }
    %c2_i32 = arith.constant 2 : i32
    %8 = arith.cmpi eq, %arg0, %c2_i32 : i32
    %9 = arith.extui %8 : i1 to i32
    %c0_i32_3 = arith.constant 0 : i32
    %10 = arith.cmpi ne, %9, %c0_i32_3 : i32
    scf.if %10 {
      %c0_i32_4 = arith.constant 0 : i32
      %11 = arith.cmpi eq, %arg1, %c0_i32_4 : i32
      %12 = arith.extui %11 : i1 to i32
      %c0_i32_5 = arith.constant 0 : i32
      %13 = arith.cmpi ne, %12, %c0_i32_5 : i32
      scf.if %13 {
        %c1_57 = arith.constant 1 : index
        %c0_58 = arith.constant 0 : index
        %c0_59 = arith.constant 0 : index
        %88 = vector.load %arg11[%c1_57, %c0_58, %c0_59] : memref<2x8x1xf32, #tpu.memory_space<vmem>>, vector<1x8x1xf32>
        %89 = vector.shape_cast %88 : vector<1x8x1xf32> to vector<8x1xf32>
        %c1_60 = arith.constant 1 : index
        %c0_61 = arith.constant 0 : index
        %c0_62 = arith.constant 0 : index
        %90 = vector.load %arg12[%c1_60, %c0_61, %c0_62] : memref<2x8x1xf32, #tpu.memory_space<vmem>>, vector<1x8x1xf32>
        %91 = vector.shape_cast %90 : vector<1x8x1xf32> to vector<8x1xf32>
        %cst_63 = arith.constant 0.001953125 : f32
        %92 = vector.broadcast %cst_63 : f32 to vector<8x1xf32>
        %93 = arith.mulf %91, %92 : vector<8x1xf32>
        %cst_64 = arith.constant 0.000000e+00 : f32
        %94 = vector.broadcast %cst_64 : f32 to vector<8x1xf32>
        %95 = arith.maximumf %93, %94 : vector<8x1xf32>
        %c1_65 = arith.constant 1 : index
        %c0_66 = arith.constant 0 : index
        %c0_67 = arith.constant 0 : index
        %96 = vector.load %arg4[%c1_65, %c0_66, %c0_67] : memref<2x8x1xf32, #tpu.memory_space<vmem>>, vector<1x8x1xf32>
        %97 = vector.shape_cast %96 : vector<1x8x1xf32> to vector<8x1xf32>
        %cst_68 = arith.constant 9.99999996E-13 : f32
        %98 = vector.broadcast %cst_68 : f32 to vector<8x1xf32>
        %99 = arith.addf %95, %98 : vector<8x1xf32>
        %100 = math.rsqrt %99 : vector<8x1xf32>
        %101 = arith.mulf %97, %100 : vector<8x1xf32>
        %c0_69 = arith.constant 0 : index
        %c0_70 = arith.constant 0 : index
        %102 = vector.load %arg13[%c0_69, %c0_70] : memref<8x1xf32, #tpu.memory_space<vmem>>, vector<8x1xf32>
        tpu.vector_store %arg13[%c0_69, %c0_70], %101 {strides = array<i32>} : memref<8x1xf32, #tpu.memory_space<vmem>>, vector<8x1xf32>,
        %c1_71 = arith.constant 1 : index
        %c0_72 = arith.constant 0 : index
        %c0_73 = arith.constant 0 : index
        %103 = vector.load %arg5[%c1_71, %c0_72, %c0_73] : memref<2x8x1xf32, #tpu.memory_space<vmem>>, vector<1x8x1xf32>
        %104 = vector.shape_cast %103 : vector<1x8x1xf32> to vector<8x1xf32>
        %105 = arith.mulf %89, %101 : vector<8x1xf32>
        %106 = arith.subf %104, %105 : vector<8x1xf32>
        %c0_74 = arith.constant 0 : index
        %c0_75 = arith.constant 0 : index
        %107 = vector.load %arg14[%c0_74, %c0_75] : memref<8x1xf32, #tpu.memory_space<vmem>>, vector<8x1xf32>
        tpu.vector_store %arg14[%c0_74, %c0_75], %106 {strides = array<i32>} : memref<8x1xf32, #tpu.memory_space<vmem>>, vector<8x1xf32>,
      } else {
      }
      %14 = arith.index_cast %arg1 : i32 to index
      %c0_6 = arith.constant 0 : index
      %c0_7 = arith.constant 0 : index
      %15 = vector.load %arg9[%14, %c0_6, %c0_7] : memref<2x16x324xf32, #tpu.memory_space<vmem>>, vector<1x8x324xf32>
      %16 = vector.shape_cast %15 : vector<1x8x324xf32> to vector<8x324xf32>
      %c0_8 = arith.constant 0 : index
      %c0_9 = arith.constant 0 : index
      %17 = vector.load %arg13[%c0_8, %c0_9] : memref<8x1xf32, #tpu.memory_space<vmem>>, vector<8x1xf32>
      %18 = vector.broadcast %17 : vector<8x1xf32> to vector<8x324xf32>
      %19 = arith.mulf %16, %18 : vector<8x324xf32>
      %c0_10 = arith.constant 0 : index
      %c0_11 = arith.constant 0 : index
      %20 = vector.load %arg14[%c0_10, %c0_11] : memref<8x1xf32, #tpu.memory_space<vmem>>, vector<8x1xf32>
      %21 = vector.broadcast %20 : vector<8x1xf32> to vector<8x324xf32>
      %22 = arith.addf %19, %21 : vector<8x324xf32>
      %cst = arith.constant 0.000000e+00 : f32
      %23 = vector.broadcast %cst : f32 to vector<8x324xf32>
      %24 = arith.maximumf %22, %23 : vector<8x324xf32>
      %25 = vector.broadcast %1 : vector<1x324xf32> to vector<8x324xf32>
      %26 = arith.mulf %24, %25 : vector<8x324xf32>
      %c0_12 = arith.constant 0 : index
      %c128 = arith.constant 128 : index
      %27 = vector.load %arg10[%c0_12, %c128] : memref<8x471xf32, #tpu.memory_space<vmem>>, vector<8x324xf32>
      tpu.vector_store %arg10[%c0_12, %c128], %26 {strides = array<i32>} : memref<8x471xf32, #tpu.memory_space<vmem>>, vector<8x324xf32>,
      %cst_13 = arith.constant 0.000000e+00 : f32
      %28 = vector.broadcast %cst_13 : f32 to vector<16x324xf32>
      %c1 = arith.constant 1 : index
      %c0_14 = arith.constant 0 : index
      %c0_15 = arith.constant 0 : index
      %29 = vector.load %arg7[%c1, %c0_14, %c0_15] : memref<2x16x1xf32, #tpu.memory_space<vmem>>, vector<1x16x1xf32>
      %30 = vector.shape_cast %29 : vector<1x16x1xf32> to vector<16x1xf32>
      %31 = vector.broadcast %30 : vector<16x1xf32> to vector<16x324xf32>
      %32 = arith.addf %28, %31 : vector<16x324xf32>
      %c9 = arith.constant 9 : index
      %c0_16 = arith.constant 0 : index
      %c0_17 = arith.constant 0 : index
      %33 = vector.load %arg6[%c9, %c0_16, %c0_17] : memref<18x16x8xf32, #tpu.memory_space<vmem>>, vector<1x16x8xf32>
      %34 = vector.shape_cast %33 : vector<1x16x8xf32> to vector<16x8xf32>
      %c0_18 = arith.constant 0 : index
      %c109 = arith.constant 109 : index
      %35 = vector.load %arg10[%c0_18, %c109] : memref<8x471xf32, #tpu.memory_space<vmem>>, vector<8x324xf32>
      %cst_19 = arith.constant dense<0.000000e+00> : vector<16x324xf32>
      %36 = tpu.matmul %34, %35, %cst_19 {dimension_numbers = #tpu.dot_dimension_numbers<[1], [0], [0], [1], [0, 0, 1, 1], [], []>} : vector<16x8xf32>, vector<8x324xf32>, vector<16x324xf32> -> vector<16x324xf32>
      %37 = arith.addf %32, %36 : vector<16x324xf32>
      %c10 = arith.constant 10 : index
      %c0_20 = arith.constant 0 : index
      %c0_21 = arith.constant 0 : index
      %38 = vector.load %arg6[%c10, %c0_20, %c0_21] : memref<18x16x8xf32, #tpu.memory_space<vmem>>, vector<1x16x8xf32>
      %39 = vector.shape_cast %38 : vector<1x16x8xf32> to vector<16x8xf32>
      %c0_22 = arith.constant 0 : index
      %c110 = arith.constant 110 : index
      %40 = vector.load %arg10[%c0_22, %c110] : memref<8x471xf32, #tpu.memory_space<vmem>>, vector<8x324xf32>
      %cst_23 = arith.constant dense<0.000000e+00> : vector<16x324xf32>
      %41 = tpu.matmul %39, %40, %cst_23 {dimension_numbers = #tpu.dot_dimension_numbers<[1], [0], [0], [1], [0, 0, 1, 1], [], []>} : vector<16x8xf32>, vector<8x324xf32>, vector<16x324xf32> -> vector<16x324xf32>
      %42 = arith.addf %37, %41 : vector<16x324xf32>
      %c11 = arith.constant 11 : index
      %c0_24 = arith.constant 0 : index
      %c0_25 = arith.constant 0 : index
      %43 = vector.load %arg6[%c11, %c0_24, %c0_25] : memref<18x16x8xf32, #tpu.memory_space<vmem>>, vector<1x16x8xf32>
      %44 = vector.shape_cast %43 : vector<1x16x8xf32> to vector<16x8xf32>
      %c0_26 = arith.constant 0 : index
      %c111 = arith.constant 111 : index
      %45 = vector.load %arg10[%c0_26, %c111] : memref<8x471xf32, #tpu.memory_space<vmem>>, vector<8x324xf32>
      %cst_27 = arith.constant dense<0.000000e+00> : vector<16x324xf32>
      %46 = tpu.matmul %44, %45, %cst_27 {dimension_numbers = #tpu.dot_dimension_numbers<[1], [0], [0], [1], [0, 0, 1, 1], [], []>} : vector<16x8xf32>, vector<8x324xf32>, vector<16x324xf32> -> vector<16x324xf32>
      %47 = arith.addf %42, %46 : vector<16x324xf32>
      %c12 = arith.constant 12 : index
      %c0_28 = arith.constant 0 : index
      %c0_29 = arith.constant 0 : index
      %48 = vector.load %arg6[%c12, %c0_28, %c0_29] : memref<18x16x8xf32, #tpu.memory_space<vmem>>, vector<1x16x8xf32>
      %49 = vector.shape_cast %48 : vector<1x16x8xf32> to vector<16x8xf32>
      %c0_30 = arith.constant 0 : index
      %c127 = arith.constant 127 : index
      %50 = vector.load %arg10[%c0_30, %c127] : memref<8x471xf32, #tpu.memory_space<vmem>>, vector<8x324xf32>
      %cst_31 = arith.constant dense<0.000000e+00> : vector<16x324xf32>
      %51 = tpu.matmul %49, %50, %cst_31 {dimension_numbers = #tpu.dot_dimension_numbers<[1], [0], [0], [1], [0, 0, 1, 1], [], []>} : vector<16x8xf32>, vector<8x324xf32>, vector<16x324xf32> -> vector<16x324xf32>
      %52 = arith.addf %47, %51 : vector<16x324xf32>
      %c13 = arith.constant 13 : index
      %c0_32 = arith.constant 0 : index
      %c0_33 = arith.constant 0 : index
      %53 = vector.load %arg6[%c13, %c0_32, %c0_33] : memref<18x16x8xf32, #tpu.memory_space<vmem>>, vector<1x16x8xf32>
      %54 = vector.shape_cast %53 : vector<1x16x8xf32> to vector<16x8xf32>
      %c0_34 = arith.constant 0 : index
      %c128_35 = arith.constant 128 : index
      %55 = vector.load %arg10[%c0_34, %c128_35] : memref<8x471xf32, #tpu.memory_space<vmem>>, vector<8x324xf32>
      %cst_36 = arith.constant dense<0.000000e+00> : vector<16x324xf32>
      %56 = tpu.matmul %54, %55, %cst_36 {dimension_numbers = #tpu.dot_dimension_numbers<[1], [0], [0], [1], [0, 0, 1, 1], [], []>} : vector<16x8xf32>, vector<8x324xf32>, vector<16x324xf32> -> vector<16x324xf32>
      %57 = arith.addf %52, %56 : vector<16x324xf32>
      %c14 = arith.constant 14 : index
      %c0_37 = arith.constant 0 : index
      %c0_38 = arith.constant 0 : index
      %58 = vector.load %arg6[%c14, %c0_37, %c0_38] : memref<18x16x8xf32, #tpu.memory_space<vmem>>, vector<1x16x8xf32>
      %59 = vector.shape_cast %58 : vector<1x16x8xf32> to vector<16x8xf32>
      %c0_39 = arith.constant 0 : index
      %c129 = arith.constant 129 : index
      %60 = vector.load %arg10[%c0_39, %c129] : memref<8x471xf32, #tpu.memory_space<vmem>>, vector<8x324xf32>
      %cst_40 = arith.constant dense<0.000000e+00> : vector<16x324xf32>
      %61 = tpu.matmul %59, %60, %cst_40 {dimension_numbers = #tpu.dot_dimension_numbers<[1], [0], [0], [1], [0, 0, 1, 1], [], []>} : vector<16x8xf32>, vector<8x324xf32>, vector<16x324xf32> -> vector<16x324xf32>
      %62 = arith.addf %57, %61 : vector<16x324xf32>
      %c15 = arith.constant 15 : index
      %c0_41 = arith.constant 0 : index
      %c0_42 = arith.constant 0 : index
      %63 = vector.load %arg6[%c15, %c0_41, %c0_42] : memref<18x16x8xf32, #tpu.memory_space<vmem>>, vector<1x16x8xf32>
      %64 = vector.shape_cast %63 : vector<1x16x8xf32> to vector<16x8xf32>
      %c0_43 = arith.constant 0 : index
      %c145 = arith.constant 145 : index
      %65 = vector.load %arg10[%c0_43, %c145] : memref<8x471xf32, #tpu.memory_space<vmem>>, vector<8x324xf32>
      %cst_44 = arith.constant dense<0.000000e+00> : vector<16x324xf32>
      %66 = tpu.matmul %64, %65, %cst_44 {dimension_numbers = #tpu.dot_dimension_numbers<[1], [0], [0], [1], [0, 0, 1, 1], [], []>} : vector<16x8xf32>, vector<8x324xf32>, vector<16x324xf32> -> vector<16x324xf32>
      %67 = arith.addf %62, %66 : vector<16x324xf32>
      %c16 = arith.constant 16 : index
      %c0_45 = arith.constant 0 : index
      %c0_46 = arith.constant 0 : index
      %68 = vector.load %arg6[%c16, %c0_45, %c0_46] : memref<18x16x8xf32, #tpu.memory_space<vmem>>, vector<1x16x8xf32>
      %69 = vector.shape_cast %68 : vector<1x16x8xf32> to vector<16x8xf32>
      %c0_47 = arith.constant 0 : index
      %c146 = arith.constant 146 : index
      %70 = vector.load %arg10[%c0_47, %c146] : memref<8x471xf32, #tpu.memory_space<vmem>>, vector<8x324xf32>
      %cst_48 = arith.constant dense<0.000000e+00> : vector<16x324xf32>
      %71 = tpu.matmul %69, %70, %cst_48 {dimension_numbers = #tpu.dot_dimension_numbers<[1], [0], [0], [1], [0, 0, 1, 1], [], []>} : vector<16x8xf32>, vector<8x324xf32>, vector<16x324xf32> -> vector<16x324xf32>
      %72 = arith.addf %67, %71 : vector<16x324xf32>
      %c17 = arith.constant 17 : index
      %c0_49 = arith.constant 0 : index
      %c0_50 = arith.constant 0 : index
      %73 = vector.load %arg6[%c17, %c0_49, %c0_50] : memref<18x16x8xf32, #tpu.memory_space<vmem>>, vector<1x16x8xf32>
      %74 = vector.shape_cast %73 : vector<1x16x8xf32> to vector<16x8xf32>
      %c0_51 = arith.constant 0 : index
      %c147 = arith.constant 147 : index
      %75 = vector.load %arg10[%c0_51, %c147] : memref<8x471xf32, #tpu.memory_space<vmem>>, vector<8x324xf32>
      %cst_52 = arith.constant dense<0.000000e+00> : vector<16x324xf32>
      %76 = tpu.matmul %74, %75, %cst_52 {dimension_numbers = #tpu.dot_dimension_numbers<[1], [0], [0], [1], [0, 0, 1, 1], [], []>} : vector<16x8xf32>, vector<8x324xf32>, vector<16x324xf32> -> vector<16x324xf32>
      %77 = arith.addf %72, %76 : vector<16x324xf32>
      %78 = vector.extract_strided_slice %77 {offsets = [0, 0], sizes = [6, 324], strides = [1, 1]} : vector<16x324xf32> to vector<6x324xf32>
      %79 = vector.broadcast %1 : vector<1x324xf32> to vector<6x324xf32>
      %80 = arith.mulf %78, %79 : vector<6x324xf32>
      %81 = arith.index_cast %arg1 : i32 to index
      %c6 = arith.constant 6 : index
      %c0_53 = arith.constant 0 : index
      %82 = vector.load %arg9[%81, %c6, %c0_53] : memref<2x16x324xf32, #tpu.memory_space<vmem>>, vector<1x6x324xf32>
      %83 = vector.shape_cast %82 : vector<1x6x324xf32> to vector<6x324xf32>
      %84 = arith.addf %80, %83 : vector<6x324xf32>
      %c0_54 = arith.constant 0 : index
      %c0_55 = arith.constant 0 : index
      %c0_56 = arith.constant 0 : index
      %85 = vector.load %arg8[%c0_54, %c0_55, %c0_56] : memref<1x6x324xf32, #tpu.memory_space<vmem>>, vector<1x6x324xf32>
      %86 = vector.shape_cast %85 : vector<1x6x324xf32> to vector<6x324xf32>
      %87 = vector.shape_cast %84 : vector<6x324xf32> to vector<1x6x324xf32>
      tpu.vector_store %arg8[%c0_54, %c0_55, %c0_56], %87 {strides = array<i32>} : memref<1x6x324xf32, #tpu.memory_space<vmem>>, vector<1x6x324xf32>,
    } else {
    }
    return
  }
  func.func @transform_0(%arg0: i32, %arg1: i32) -> (i32, i32, i32) {
    %c0_i32 = arith.constant 0 : i32
    %c0_i32_0 = arith.constant 0 : i32
    %c0_i32_1 = arith.constant 0 : i32
    return %arg1, %c0_i32, %c0_i32_0 : i32, i32, i32
  }
  func.func @transform_1(%arg0: i32, %arg1: i32) -> (i32, i32) {
    %c0_i32 = arith.constant 0 : i32
    %c0_i32_0 = arith.constant 0 : i32
    %c0_i32_1 = arith.constant 0 : i32
    return %c0_i32, %c0_i32_0 : i32, i32
  }
  func.func @transform_2(%arg0: i32, %arg1: i32) -> (i32, i32, i32) {
    %c0_i32 = arith.constant 0 : i32
    %c0_i32_0 = arith.constant 0 : i32
    %c0_i32_1 = arith.constant 0 : i32
    %c0_i32_2 = arith.constant 0 : i32
    return %c0_i32, %c0_i32_0, %c0_i32_1 : i32, i32, i32
  }
  func.func @transform_3(%arg0: i32, %arg1: i32) -> (i32, i32, i32) {
    %c0_i32 = arith.constant 0 : i32
    %c0_i32_0 = arith.constant 0 : i32
    %c0_i32_1 = arith.constant 0 : i32
    %c0_i32_2 = arith.constant 0 : i32
    return %c0_i32, %c0_i32_0, %c0_i32_1 : i32, i32, i32
  }
  func.func @transform_4(%arg0: i32, %arg1: i32) -> (i32, i32, i32) {
    %c0_i32 = arith.constant 0 : i32
    %c0_i32_0 = arith.constant 0 : i32
    %c0_i32_1 = arith.constant 0 : i32
    %c0_i32_2 = arith.constant 0 : i32
    return %c0_i32, %c0_i32_0, %c0_i32_1 : i32, i32, i32
  }
  func.func @transform_5(%arg0: i32, %arg1: i32) -> (i32, i32, i32) {
    %c0_i32 = arith.constant 0 : i32
    %c0_i32_0 = arith.constant 0 : i32
    %c0_i32_1 = arith.constant 0 : i32
    %c0_i32_2 = arith.constant 0 : i32
    return %c0_i32, %c0_i32_0, %c0_i32_1 : i32, i32, i32
  }
  func.func @transform_6(%arg0: i32, %arg1: i32) -> (i32, i32, i32) {
    %c0_i32 = arith.constant 0 : i32
    %c0_i32_0 = arith.constant 0 : i32
    %c0_i32_1 = arith.constant 0 : i32
    return %arg1, %c0_i32, %c0_i32_0 : i32, i32, i32
  }
}

module attributes {stable_mosaic.version = 11 : i64} {
  func.func @_dense_block_kernel(%arg0: i32, %arg1: i32, %arg2: memref<1x8x100xf32, #tpu.memory_space<vmem>>, %arg3: memref<1x100xf32, #tpu.memory_space<vmem>>, %arg4: memref<2x8x1xf32, #tpu.memory_space<vmem>>, %arg5: memref<2x8x1xf32, #tpu.memory_space<vmem>>, %arg6: memref<18x16x8xf32, #tpu.memory_space<vmem>>, %arg7: memref<2x16x1xf32, #tpu.memory_space<vmem>>, %arg8: memref<1x8x100xf32, #tpu.memory_space<vmem>>, %arg9: memref<2x16x100xf32, #tpu.memory_space<vmem>>, %arg10: memref<8x239xf32, #tpu.memory_space<vmem>>, %arg11: memref<2x8x1xf32, #tpu.memory_space<vmem>>, %arg12: memref<2x8x1xf32, #tpu.memory_space<vmem>>, %arg13: memref<8x1xf32, #tpu.memory_space<vmem>>, %arg14: memref<8x1xf32, #tpu.memory_space<vmem>>) attributes {dimension_semantics = [#tpu.dimension_semantics<arbitrary>, #tpu.dimension_semantics<arbitrary>], iteration_bounds = array<i64: 3, 2>, scalar_prefetch = 0 : i64, scratch_operands = 6 : i64, tpu.core_type = #tpu.core_type<tc>, window_params = [{transform_indices = @transform_0, window_bounds = array<i64: 1, 8, 100>}, {pipeline_mode = #tpu.pipeline_mode<synchronous>, transform_indices = @transform_1, window_bounds = array<i64: 1, 100>}, {pipeline_mode = #tpu.pipeline_mode<synchronous>, transform_indices = @transform_2, window_bounds = array<i64: 2, 8, 1>}, {pipeline_mode = #tpu.pipeline_mode<synchronous>, transform_indices = @transform_3, window_bounds = array<i64: 2, 8, 1>}, {pipeline_mode = #tpu.pipeline_mode<synchronous>, transform_indices = @transform_4, window_bounds = array<i64: 18, 16, 8>}, {pipeline_mode = #tpu.pipeline_mode<synchronous>, transform_indices = @transform_5, window_bounds = array<i64: 2, 16, 1>}, {transform_indices = @transform_6, window_bounds = array<i64: 1, 8, 100>}]} {
    %0 = arith.sitofp %arg1 : i32 to f32
    %c0 = arith.constant 0 : index
    %c0_0 = arith.constant 0 : index
    %1 = vector.load %arg3[%c0, %c0_0] : memref<1x100xf32, #tpu.memory_space<vmem>>, vector<1x100xf32>
    %c0_i32 = arith.constant 0 : i32
    %2 = arith.cmpi eq, %arg0, %c0_i32 : i32
    %3 = arith.extui %2 : i1 to i32
    %c0_i32_1 = arith.constant 0 : i32
    %4 = arith.cmpi ne, %3, %c0_i32_1 : i32
    scf.if %4 {
      %c0_i32_4 = arith.constant 0 : i32
      %11 = arith.cmpi eq, %arg1, %c0_i32_4 : i32
      %12 = arith.extui %11 : i1 to i32
      %c0_i32_5 = arith.constant 0 : i32
      %13 = arith.cmpi ne, %12, %c0_i32_5 : i32
      scf.if %13 {
        %cst_28 = arith.constant 0.000000e+00 : f32
        %54 = vector.broadcast %cst_28 : f32 to vector<8x128xf32>
        %c0_29 = arith.constant 0 : index
        %c0_30 = arith.constant 0 : index
        %55 = vector.load %arg10[%c0_29, %c0_30] : memref<8x239xf32, #tpu.memory_space<vmem>>, vector<8x128xf32>
        tpu.vector_store %arg10[%c0_29, %c0_30], %54 {strides = array<i32>} : memref<8x239xf32, #tpu.memory_space<vmem>>, vector<8x128xf32>,
        %cst_31 = arith.constant 0.000000e+00 : f32
        %56 = vector.broadcast %cst_31 : f32 to vector<8x11xf32>
        %c0_32 = arith.constant 0 : index
        %c228 = arith.constant 228 : index
        %57 = vector.load %arg10[%c0_32, %c228] : memref<8x239xf32, #tpu.memory_space<vmem>>, vector<8x11xf32>
        tpu.vector_store %arg10[%c0_32, %c228], %56 {strides = array<i32>} : memref<8x239xf32, #tpu.memory_space<vmem>>, vector<8x11xf32>,
        %cst_33 = arith.constant 0.000000e+00 : f32
        %58 = vector.broadcast %cst_33 : f32 to vector<8x1xf32>
        %c0_34 = arith.constant 0 : index
        %c0_35 = arith.constant 0 : index
        %c0_36 = arith.constant 0 : index
        %59 = vector.load %arg11[%c0_34, %c0_35, %c0_36] : memref<2x8x1xf32, #tpu.memory_space<vmem>>, vector<1x8x1xf32>
        %60 = vector.shape_cast %59 : vector<1x8x1xf32> to vector<8x1xf32>
        %61 = vector.shape_cast %58 : vector<8x1xf32> to vector<1x8x1xf32>
        tpu.vector_store %arg11[%c0_34, %c0_35, %c0_36], %61 {strides = array<i32>} : memref<2x8x1xf32, #tpu.memory_space<vmem>>, vector<1x8x1xf32>,
        %cst_37 = arith.constant 0.000000e+00 : f32
        %62 = vector.broadcast %cst_37 : f32 to vector<8x1xf32>
        %c0_38 = arith.constant 0 : index
        %c0_39 = arith.constant 0 : index
        %c0_40 = arith.constant 0 : index
        %63 = vector.load %arg12[%c0_38, %c0_39, %c0_40] : memref<2x8x1xf32, #tpu.memory_space<vmem>>, vector<1x8x1xf32>
        %64 = vector.shape_cast %63 : vector<1x8x1xf32> to vector<8x1xf32>
        %65 = vector.shape_cast %62 : vector<8x1xf32> to vector<1x8x1xf32>
        tpu.vector_store %arg12[%c0_38, %c0_39, %c0_40], %65 {strides = array<i32>} : memref<2x8x1xf32, #tpu.memory_space<vmem>>, vector<1x8x1xf32>,
      } else {
      }
      %c0_6 = arith.constant 0 : index
      %c0_7 = arith.constant 0 : index
      %c0_8 = arith.constant 0 : index
      %14 = vector.load %arg2[%c0_6, %c0_7, %c0_8] : memref<1x8x100xf32, #tpu.memory_space<vmem>>, vector<1x8x100xf32>
      %15 = vector.shape_cast %14 : vector<1x8x100xf32> to vector<8x100xf32>
      %16 = arith.index_cast %arg1 : i32 to index
      %c0_9 = arith.constant 0 : index
      %c0_10 = arith.constant 0 : index
      %17 = vector.load %arg9[%16, %c0_9, %c0_10] : memref<2x16x100xf32, #tpu.memory_space<vmem>>, vector<1x8x100xf32>
      %18 = vector.shape_cast %17 : vector<1x8x100xf32> to vector<8x100xf32>
      %19 = vector.shape_cast %15 : vector<8x100xf32> to vector<1x8x100xf32>
      tpu.vector_store %arg9[%16, %c0_9, %c0_10], %19 {strides = array<i32>} : memref<2x16x100xf32, #tpu.memory_space<vmem>>, vector<1x8x100xf32>,
      %cst = arith.constant dense<0.000000e+00> : vector<8xf32>
      %20 = vector.multi_reduction <add>, %15, %cst [1] : vector<8x100xf32> to vector<8xf32>
      %21 = vector.shape_cast %20 : vector<8xf32> to vector<8x1xf32>
      %cst_11 = arith.constant 1.562500e-02 : f32
      %22 = vector.broadcast %cst_11 : f32 to vector<8x1xf32>
      %23 = arith.mulf %21, %22 : vector<8x1xf32>
      %24 = vector.broadcast %23 : vector<8x1xf32> to vector<8x100xf32>
      %25 = arith.subf %15, %24 : vector<8x100xf32>
      %26 = vector.broadcast %1 : vector<1x100xf32> to vector<8x100xf32>
      %27 = arith.mulf %25, %26 : vector<8x100xf32>
      %28 = arith.mulf %27, %27 : vector<8x100xf32>
      %cst_12 = arith.constant dense<0.000000e+00> : vector<8xf32>
      %29 = vector.multi_reduction <add>, %28, %cst_12 [1] : vector<8x100xf32> to vector<8xf32>
      %30 = vector.shape_cast %29 : vector<8xf32> to vector<8x1xf32>
      %c0_13 = arith.constant 0 : index
      %c0_14 = arith.constant 0 : index
      %c0_15 = arith.constant 0 : index
      %31 = vector.load %arg11[%c0_13, %c0_14, %c0_15] : memref<2x8x1xf32, #tpu.memory_space<vmem>>, vector<1x8x1xf32>
      %32 = vector.shape_cast %31 : vector<1x8x1xf32> to vector<8x1xf32>
      %33 = arith.subf %23, %32 : vector<8x1xf32>
      %cst_16 = arith.constant 1.000000e+00 : f32
      %34 = arith.addf %0, %cst_16 : f32
      %cst_17 = arith.constant 1.000000e+00 : f32
      %35 = arith.divf %cst_17, %34 : f32
      %36 = vector.broadcast %35 : f32 to vector<8x1xf32>
      %37 = arith.mulf %33, %36 : vector<8x1xf32>
      %38 = arith.addf %32, %37 : vector<8x1xf32>
      %c0_18 = arith.constant 0 : index
      %c0_19 = arith.constant 0 : index
      %c0_20 = arith.constant 0 : index
      %39 = vector.load %arg11[%c0_18, %c0_19, %c0_20] : memref<2x8x1xf32, #tpu.memory_space<vmem>>, vector<1x8x1xf32>
      %40 = vector.shape_cast %39 : vector<1x8x1xf32> to vector<8x1xf32>
      %41 = vector.shape_cast %38 : vector<8x1xf32> to vector<1x8x1xf32>
      tpu.vector_store %arg11[%c0_18, %c0_19, %c0_20], %41 {strides = array<i32>} : memref<2x8x1xf32, #tpu.memory_space<vmem>>, vector<1x8x1xf32>,
      %c0_21 = arith.constant 0 : index
      %c0_22 = arith.constant 0 : index
      %c0_23 = arith.constant 0 : index
      %42 = vector.load %arg12[%c0_21, %c0_22, %c0_23] : memref<2x8x1xf32, #tpu.memory_space<vmem>>, vector<1x8x1xf32>
      %43 = vector.shape_cast %42 : vector<1x8x1xf32> to vector<8x1xf32>
      %44 = arith.addf %43, %30 : vector<8x1xf32>
      %45 = arith.mulf %33, %33 : vector<8x1xf32>
      %cst_24 = arith.constant 6.400000e+01 : f32
      %46 = arith.mulf %cst_24, %0 : f32
      %47 = arith.mulf %46, %35 : f32
      %48 = vector.broadcast %47 : f32 to vector<8x1xf32>
      %49 = arith.mulf %45, %48 : vector<8x1xf32>
      %50 = arith.addf %44, %49 : vector<8x1xf32>
      %c0_25 = arith.constant 0 : index
      %c0_26 = arith.constant 0 : index
      %c0_27 = arith.constant 0 : index
      %51 = vector.load %arg12[%c0_25, %c0_26, %c0_27] : memref<2x8x1xf32, #tpu.memory_space<vmem>>, vector<1x8x1xf32>
      %52 = vector.shape_cast %51 : vector<1x8x1xf32> to vector<8x1xf32>
      %53 = vector.shape_cast %50 : vector<8x1xf32> to vector<1x8x1xf32>
      tpu.vector_store %arg12[%c0_25, %c0_26, %c0_27], %53 {strides = array<i32>} : memref<2x8x1xf32, #tpu.memory_space<vmem>>, vector<1x8x1xf32>,
    } else {
    }
    %c1_i32 = arith.constant 1 : i32
    %5 = arith.cmpi eq, %arg0, %c1_i32 : i32
    %6 = arith.extui %5 : i1 to i32
    %c0_i32_2 = arith.constant 0 : i32
    %7 = arith.cmpi ne, %6, %c0_i32_2 : i32
    scf.if %7 {
      %c0_i32_4 = arith.constant 0 : i32
      %11 = arith.cmpi eq, %arg1, %c0_i32_4 : i32
      %12 = arith.extui %11 : i1 to i32
      %c0_i32_5 = arith.constant 0 : i32
      %13 = arith.cmpi ne, %12, %c0_i32_5 : i32
      scf.if %13 {
        %c0_75 = arith.constant 0 : index
        %c0_76 = arith.constant 0 : index
        %c0_77 = arith.constant 0 : index
        %119 = vector.load %arg11[%c0_75, %c0_76, %c0_77] : memref<2x8x1xf32, #tpu.memory_space<vmem>>, vector<1x8x1xf32>
        %120 = vector.shape_cast %119 : vector<1x8x1xf32> to vector<8x1xf32>
        %c0_78 = arith.constant 0 : index
        %c0_79 = arith.constant 0 : index
        %c0_80 = arith.constant 0 : index
        %121 = vector.load %arg12[%c0_78, %c0_79, %c0_80] : memref<2x8x1xf32, #tpu.memory_space<vmem>>, vector<1x8x1xf32>
        %122 = vector.shape_cast %121 : vector<1x8x1xf32> to vector<8x1xf32>
        %cst_81 = arith.constant 7.812500e-03 : f32
        %123 = vector.broadcast %cst_81 : f32 to vector<8x1xf32>
        %124 = arith.mulf %122, %123 : vector<8x1xf32>
        %cst_82 = arith.constant 0.000000e+00 : f32
        %125 = vector.broadcast %cst_82 : f32 to vector<8x1xf32>
        %126 = arith.maximumf %124, %125 : vector<8x1xf32>
        %c0_83 = arith.constant 0 : index
        %c0_84 = arith.constant 0 : index
        %c0_85 = arith.constant 0 : index
        %127 = vector.load %arg4[%c0_83, %c0_84, %c0_85] : memref<2x8x1xf32, #tpu.memory_space<vmem>>, vector<1x8x1xf32>
        %128 = vector.shape_cast %127 : vector<1x8x1xf32> to vector<8x1xf32>
        %cst_86 = arith.constant 9.99999996E-13 : f32
        %129 = vector.broadcast %cst_86 : f32 to vector<8x1xf32>
        %130 = arith.addf %126, %129 : vector<8x1xf32>
        %131 = math.rsqrt %130 : vector<8x1xf32>
        %132 = arith.mulf %128, %131 : vector<8x1xf32>
        %c0_87 = arith.constant 0 : index
        %c0_88 = arith.constant 0 : index
        %133 = vector.load %arg13[%c0_87, %c0_88] : memref<8x1xf32, #tpu.memory_space<vmem>>, vector<8x1xf32>
        tpu.vector_store %arg13[%c0_87, %c0_88], %132 {strides = array<i32>} : memref<8x1xf32, #tpu.memory_space<vmem>>, vector<8x1xf32>,
        %c0_89 = arith.constant 0 : index
        %c0_90 = arith.constant 0 : index
        %c0_91 = arith.constant 0 : index
        %134 = vector.load %arg5[%c0_89, %c0_90, %c0_91] : memref<2x8x1xf32, #tpu.memory_space<vmem>>, vector<1x8x1xf32>
        %135 = vector.shape_cast %134 : vector<1x8x1xf32> to vector<8x1xf32>
        %136 = arith.mulf %120, %132 : vector<8x1xf32>
        %137 = arith.subf %135, %136 : vector<8x1xf32>
        %c0_92 = arith.constant 0 : index
        %c0_93 = arith.constant 0 : index
        %138 = vector.load %arg14[%c0_92, %c0_93] : memref<8x1xf32, #tpu.memory_space<vmem>>, vector<8x1xf32>
        tpu.vector_store %arg14[%c0_92, %c0_93], %137 {strides = array<i32>} : memref<8x1xf32, #tpu.memory_space<vmem>>, vector<8x1xf32>,
        %cst_94 = arith.constant 0.000000e+00 : f32
        %139 = vector.broadcast %cst_94 : f32 to vector<8x1xf32>
        %c1_95 = arith.constant 1 : index
        %c0_96 = arith.constant 0 : index
        %c0_97 = arith.constant 0 : index
        %140 = vector.load %arg11[%c1_95, %c0_96, %c0_97] : memref<2x8x1xf32, #tpu.memory_space<vmem>>, vector<1x8x1xf32>
        %141 = vector.shape_cast %140 : vector<1x8x1xf32> to vector<8x1xf32>
        %142 = vector.shape_cast %139 : vector<8x1xf32> to vector<1x8x1xf32>
        tpu.vector_store %arg11[%c1_95, %c0_96, %c0_97], %142 {strides = array<i32>} : memref<2x8x1xf32, #tpu.memory_space<vmem>>, vector<1x8x1xf32>,
        %cst_98 = arith.constant 0.000000e+00 : f32
        %143 = vector.broadcast %cst_98 : f32 to vector<8x1xf32>
        %c1_99 = arith.constant 1 : index
        %c0_100 = arith.constant 0 : index
        %c0_101 = arith.constant 0 : index
        %144 = vector.load %arg12[%c1_99, %c0_100, %c0_101] : memref<2x8x1xf32, #tpu.memory_space<vmem>>, vector<1x8x1xf32>
        %145 = vector.shape_cast %144 : vector<1x8x1xf32> to vector<8x1xf32>
        %146 = vector.shape_cast %143 : vector<8x1xf32> to vector<1x8x1xf32>
        tpu.vector_store %arg12[%c1_99, %c0_100, %c0_101], %146 {strides = array<i32>} : memref<2x8x1xf32, #tpu.memory_space<vmem>>, vector<1x8x1xf32>,
      } else {
      }
      %14 = arith.index_cast %arg1 : i32 to index
      %c0_6 = arith.constant 0 : index
      %c0_7 = arith.constant 0 : index
      %15 = vector.load %arg9[%14, %c0_6, %c0_7] : memref<2x16x100xf32, #tpu.memory_space<vmem>>, vector<1x8x100xf32>
      %16 = vector.shape_cast %15 : vector<1x8x100xf32> to vector<8x100xf32>
      %c0_8 = arith.constant 0 : index
      %c0_9 = arith.constant 0 : index
      %17 = vector.load %arg13[%c0_8, %c0_9] : memref<8x1xf32, #tpu.memory_space<vmem>>, vector<8x1xf32>
      %18 = vector.broadcast %17 : vector<8x1xf32> to vector<8x100xf32>
      %19 = arith.mulf %16, %18 : vector<8x100xf32>
      %c0_10 = arith.constant 0 : index
      %c0_11 = arith.constant 0 : index
      %20 = vector.load %arg14[%c0_10, %c0_11] : memref<8x1xf32, #tpu.memory_space<vmem>>, vector<8x1xf32>
      %21 = vector.broadcast %20 : vector<8x1xf32> to vector<8x100xf32>
      %22 = arith.addf %19, %21 : vector<8x100xf32>
      %cst = arith.constant 0.000000e+00 : f32
      %23 = vector.broadcast %cst : f32 to vector<8x100xf32>
      %24 = arith.maximumf %22, %23 : vector<8x100xf32>
      %25 = vector.broadcast %1 : vector<1x100xf32> to vector<8x100xf32>
      %26 = arith.mulf %24, %25 : vector<8x100xf32>
      %c0_12 = arith.constant 0 : index
      %c128 = arith.constant 128 : index
      %27 = vector.load %arg10[%c0_12, %c128] : memref<8x239xf32, #tpu.memory_space<vmem>>, vector<8x100xf32>
      tpu.vector_store %arg10[%c0_12, %c128], %26 {strides = array<i32>} : memref<8x239xf32, #tpu.memory_space<vmem>>, vector<8x100xf32>,
      %cst_13 = arith.constant 0.000000e+00 : f32
      %28 = vector.broadcast %cst_13 : f32 to vector<16x100xf32>
      %c0_14 = arith.constant 0 : index
      %c0_15 = arith.constant 0 : index
      %c0_16 = arith.constant 0 : index
      %29 = vector.load %arg7[%c0_14, %c0_15, %c0_16] : memref<2x16x1xf32, #tpu.memory_space<vmem>>, vector<1x16x1xf32>
      %30 = vector.shape_cast %29 : vector<1x16x1xf32> to vector<16x1xf32>
      %31 = vector.broadcast %30 : vector<16x1xf32> to vector<16x100xf32>
      %32 = arith.addf %28, %31 : vector<16x100xf32>
      %c0_17 = arith.constant 0 : index
      %c0_18 = arith.constant 0 : index
      %c0_19 = arith.constant 0 : index
      %33 = vector.load %arg6[%c0_17, %c0_18, %c0_19] : memref<18x16x8xf32, #tpu.memory_space<vmem>>, vector<1x16x8xf32>
      %34 = vector.shape_cast %33 : vector<1x16x8xf32> to vector<16x8xf32>
      %c0_20 = arith.constant 0 : index
      %c117 = arith.constant 117 : index
      %35 = vector.load %arg10[%c0_20, %c117] : memref<8x239xf32, #tpu.memory_space<vmem>>, vector<8x100xf32>
      %cst_21 = arith.constant dense<0.000000e+00> : vector<16x100xf32>
      %36 = tpu.matmul %34, %35, %cst_21 {dimension_numbers = #tpu.dot_dimension_numbers<[1], [0], [0], [1], [0, 0, 1, 1], [], []>} : vector<16x8xf32>, vector<8x100xf32>, vector<16x100xf32> -> vector<16x100xf32>
      %37 = arith.addf %32, %36 : vector<16x100xf32>
      %c1 = arith.constant 1 : index
      %c0_22 = arith.constant 0 : index
      %c0_23 = arith.constant 0 : index
      %38 = vector.load %arg6[%c1, %c0_22, %c0_23] : memref<18x16x8xf32, #tpu.memory_space<vmem>>, vector<1x16x8xf32>
      %39 = vector.shape_cast %38 : vector<1x16x8xf32> to vector<16x8xf32>
      %c0_24 = arith.constant 0 : index
      %c118 = arith.constant 118 : index
      %40 = vector.load %arg10[%c0_24, %c118] : memref<8x239xf32, #tpu.memory_space<vmem>>, vector<8x100xf32>
      %cst_25 = arith.constant dense<0.000000e+00> : vector<16x100xf32>
      %41 = tpu.matmul %39, %40, %cst_25 {dimension_numbers = #tpu.dot_dimension_numbers<[1], [0], [0], [1], [0, 0, 1, 1], [], []>} : vector<16x8xf32>, vector<8x100xf32>, vector<16x100xf32> -> vector<16x100xf32>
      %42 = arith.addf %37, %41 : vector<16x100xf32>
      %c2 = arith.constant 2 : index
      %c0_26 = arith.constant 0 : index
      %c0_27 = arith.constant 0 : index
      %43 = vector.load %arg6[%c2, %c0_26, %c0_27] : memref<18x16x8xf32, #tpu.memory_space<vmem>>, vector<1x16x8xf32>
      %44 = vector.shape_cast %43 : vector<1x16x8xf32> to vector<16x8xf32>
      %c0_28 = arith.constant 0 : index
      %c119 = arith.constant 119 : index
      %45 = vector.load %arg10[%c0_28, %c119] : memref<8x239xf32, #tpu.memory_space<vmem>>, vector<8x100xf32>
      %cst_29 = arith.constant dense<0.000000e+00> : vector<16x100xf32>
      %46 = tpu.matmul %44, %45, %cst_29 {dimension_numbers = #tpu.dot_dimension_numbers<[1], [0], [0], [1], [0, 0, 1, 1], [], []>} : vector<16x8xf32>, vector<8x100xf32>, vector<16x100xf32> -> vector<16x100xf32>
      %47 = arith.addf %42, %46 : vector<16x100xf32>
      %c3 = arith.constant 3 : index
      %c0_30 = arith.constant 0 : index
      %c0_31 = arith.constant 0 : index
      %48 = vector.load %arg6[%c3, %c0_30, %c0_31] : memref<18x16x8xf32, #tpu.memory_space<vmem>>, vector<1x16x8xf32>
      %49 = vector.shape_cast %48 : vector<1x16x8xf32> to vector<16x8xf32>
      %c0_32 = arith.constant 0 : index
      %c127 = arith.constant 127 : index
      %50 = vector.load %arg10[%c0_32, %c127] : memref<8x239xf32, #tpu.memory_space<vmem>>, vector<8x100xf32>
      %cst_33 = arith.constant dense<0.000000e+00> : vector<16x100xf32>
      %51 = tpu.matmul %49, %50, %cst_33 {dimension_numbers = #tpu.dot_dimension_numbers<[1], [0], [0], [1], [0, 0, 1, 1], [], []>} : vector<16x8xf32>, vector<8x100xf32>, vector<16x100xf32> -> vector<16x100xf32>
      %52 = arith.addf %47, %51 : vector<16x100xf32>
      %c4 = arith.constant 4 : index
      %c0_34 = arith.constant 0 : index
      %c0_35 = arith.constant 0 : index
      %53 = vector.load %arg6[%c4, %c0_34, %c0_35] : memref<18x16x8xf32, #tpu.memory_space<vmem>>, vector<1x16x8xf32>
      %54 = vector.shape_cast %53 : vector<1x16x8xf32> to vector<16x8xf32>
      %c0_36 = arith.constant 0 : index
      %c128_37 = arith.constant 128 : index
      %55 = vector.load %arg10[%c0_36, %c128_37] : memref<8x239xf32, #tpu.memory_space<vmem>>, vector<8x100xf32>
      %cst_38 = arith.constant dense<0.000000e+00> : vector<16x100xf32>
      %56 = tpu.matmul %54, %55, %cst_38 {dimension_numbers = #tpu.dot_dimension_numbers<[1], [0], [0], [1], [0, 0, 1, 1], [], []>} : vector<16x8xf32>, vector<8x100xf32>, vector<16x100xf32> -> vector<16x100xf32>
      %57 = arith.addf %52, %56 : vector<16x100xf32>
      %c5 = arith.constant 5 : index
      %c0_39 = arith.constant 0 : index
      %c0_40 = arith.constant 0 : index
      %58 = vector.load %arg6[%c5, %c0_39, %c0_40] : memref<18x16x8xf32, #tpu.memory_space<vmem>>, vector<1x16x8xf32>
      %59 = vector.shape_cast %58 : vector<1x16x8xf32> to vector<16x8xf32>
      %c0_41 = arith.constant 0 : index
      %c129 = arith.constant 129 : index
      %60 = vector.load %arg10[%c0_41, %c129] : memref<8x239xf32, #tpu.memory_space<vmem>>, vector<8x100xf32>
      %cst_42 = arith.constant dense<0.000000e+00> : vector<16x100xf32>
      %61 = tpu.matmul %59, %60, %cst_42 {dimension_numbers = #tpu.dot_dimension_numbers<[1], [0], [0], [1], [0, 0, 1, 1], [], []>} : vector<16x8xf32>, vector<8x100xf32>, vector<16x100xf32> -> vector<16x100xf32>
      %62 = arith.addf %57, %61 : vector<16x100xf32>
      %c6 = arith.constant 6 : index
      %c0_43 = arith.constant 0 : index
      %c0_44 = arith.constant 0 : index
      %63 = vector.load %arg6[%c6, %c0_43, %c0_44] : memref<18x16x8xf32, #tpu.memory_space<vmem>>, vector<1x16x8xf32>
      %64 = vector.shape_cast %63 : vector<1x16x8xf32> to vector<16x8xf32>
      %c0_45 = arith.constant 0 : index
      %c137 = arith.constant 137 : index
      %65 = vector.load %arg10[%c0_45, %c137] : memref<8x239xf32, #tpu.memory_space<vmem>>, vector<8x100xf32>
      %cst_46 = arith.constant dense<0.000000e+00> : vector<16x100xf32>
      %66 = tpu.matmul %64, %65, %cst_46 {dimension_numbers = #tpu.dot_dimension_numbers<[1], [0], [0], [1], [0, 0, 1, 1], [], []>} : vector<16x8xf32>, vector<8x100xf32>, vector<16x100xf32> -> vector<16x100xf32>
      %67 = arith.addf %62, %66 : vector<16x100xf32>
      %c7 = arith.constant 7 : index
      %c0_47 = arith.constant 0 : index
      %c0_48 = arith.constant 0 : index
      %68 = vector.load %arg6[%c7, %c0_47, %c0_48] : memref<18x16x8xf32, #tpu.memory_space<vmem>>, vector<1x16x8xf32>
      %69 = vector.shape_cast %68 : vector<1x16x8xf32> to vector<16x8xf32>
      %c0_49 = arith.constant 0 : index
      %c138 = arith.constant 138 : index
      %70 = vector.load %arg10[%c0_49, %c138] : memref<8x239xf32, #tpu.memory_space<vmem>>, vector<8x100xf32>
      %cst_50 = arith.constant dense<0.000000e+00> : vector<16x100xf32>
      %71 = tpu.matmul %69, %70, %cst_50 {dimension_numbers = #tpu.dot_dimension_numbers<[1], [0], [0], [1], [0, 0, 1, 1], [], []>} : vector<16x8xf32>, vector<8x100xf32>, vector<16x100xf32> -> vector<16x100xf32>
      %72 = arith.addf %67, %71 : vector<16x100xf32>
      %c8 = arith.constant 8 : index
      %c0_51 = arith.constant 0 : index
      %c0_52 = arith.constant 0 : index
      %73 = vector.load %arg6[%c8, %c0_51, %c0_52] : memref<18x16x8xf32, #tpu.memory_space<vmem>>, vector<1x16x8xf32>
      %74 = vector.shape_cast %73 : vector<1x16x8xf32> to vector<16x8xf32>
      %c0_53 = arith.constant 0 : index
      %c139 = arith.constant 139 : index
      %75 = vector.load %arg10[%c0_53, %c139] : memref<8x239xf32, #tpu.memory_space<vmem>>, vector<8x100xf32>
      %cst_54 = arith.constant dense<0.000000e+00> : vector<16x100xf32>
      %76 = tpu.matmul %74, %75, %cst_54 {dimension_numbers = #tpu.dot_dimension_numbers<[1], [0], [0], [1], [0, 0, 1, 1], [], []>} : vector<16x8xf32>, vector<8x100xf32>, vector<16x100xf32> -> vector<16x100xf32>
      %77 = arith.addf %72, %76 : vector<16x100xf32>
      %78 = vector.broadcast %1 : vector<1x100xf32> to vector<16x100xf32>
      %79 = arith.mulf %77, %78 : vector<16x100xf32>
      %80 = arith.index_cast %arg1 : i32 to index
      %c0_55 = arith.constant 0 : index
      %c0_56 = arith.constant 0 : index
      %81 = vector.load %arg9[%80, %c0_55, %c0_56] : memref<2x16x100xf32, #tpu.memory_space<vmem>>, vector<1x16x100xf32>
      %82 = vector.shape_cast %81 : vector<1x16x100xf32> to vector<16x100xf32>
      %83 = vector.shape_cast %79 : vector<16x100xf32> to vector<1x16x100xf32>
      tpu.vector_store %arg9[%80, %c0_55, %c0_56], %83 {strides = array<i32>} : memref<2x16x100xf32, #tpu.memory_space<vmem>>, vector<1x16x100xf32>,
      %84 = vector.extract_strided_slice %79 {offsets = [0, 0], sizes = [8, 100], strides = [1, 1]} : vector<16x100xf32> to vector<8x100xf32>
      %cst_57 = arith.constant dense<0.000000e+00> : vector<8xf32>
      %85 = vector.multi_reduction <add>, %84, %cst_57 [1] : vector<8x100xf32> to vector<8xf32>
      %86 = vector.shape_cast %85 : vector<8xf32> to vector<8x1xf32>
      %cst_58 = arith.constant 1.562500e-02 : f32
      %87 = vector.broadcast %cst_58 : f32 to vector<8x1xf32>
      %88 = arith.mulf %86, %87 : vector<8x1xf32>
      %89 = vector.broadcast %88 : vector<8x1xf32> to vector<8x100xf32>
      %90 = arith.subf %84, %89 : vector<8x100xf32>
      %91 = vector.broadcast %1 : vector<1x100xf32> to vector<8x100xf32>
      %92 = arith.mulf %90, %91 : vector<8x100xf32>
      %93 = arith.mulf %92, %92 : vector<8x100xf32>
      %cst_59 = arith.constant dense<0.000000e+00> : vector<8xf32>
      %94 = vector.multi_reduction <add>, %93, %cst_59 [1] : vector<8x100xf32> to vector<8xf32>
      %95 = vector.shape_cast %94 : vector<8xf32> to vector<8x1xf32>
      %c1_60 = arith.constant 1 : index
      %c0_61 = arith.constant 0 : index
      %c0_62 = arith.constant 0 : index
      %96 = vector.load %arg11[%c1_60, %c0_61, %c0_62] : memref<2x8x1xf32, #tpu.memory_space<vmem>>, vector<1x8x1xf32>
      %97 = vector.shape_cast %96 : vector<1x8x1xf32> to vector<8x1xf32>
      %98 = arith.subf %88, %97 : vector<8x1xf32>
      %cst_63 = arith.constant 1.000000e+00 : f32
      %99 = arith.addf %0, %cst_63 : f32
      %cst_64 = arith.constant 1.000000e+00 : f32
      %100 = arith.divf %cst_64, %99 : f32
      %101 = vector.broadcast %100 : f32 to vector<8x1xf32>
      %102 = arith.mulf %98, %101 : vector<8x1xf32>
      %103 = arith.addf %97, %102 : vector<8x1xf32>
      %c1_65 = arith.constant 1 : index
      %c0_66 = arith.constant 0 : index
      %c0_67 = arith.constant 0 : index
      %104 = vector.load %arg11[%c1_65, %c0_66, %c0_67] : memref<2x8x1xf32, #tpu.memory_space<vmem>>, vector<1x8x1xf32>
      %105 = vector.shape_cast %104 : vector<1x8x1xf32> to vector<8x1xf32>
      %106 = vector.shape_cast %103 : vector<8x1xf32> to vector<1x8x1xf32>
      tpu.vector_store %arg11[%c1_65, %c0_66, %c0_67], %106 {strides = array<i32>} : memref<2x8x1xf32, #tpu.memory_space<vmem>>, vector<1x8x1xf32>,
      %c1_68 = arith.constant 1 : index
      %c0_69 = arith.constant 0 : index
      %c0_70 = arith.constant 0 : index
      %107 = vector.load %arg12[%c1_68, %c0_69, %c0_70] : memref<2x8x1xf32, #tpu.memory_space<vmem>>, vector<1x8x1xf32>
      %108 = vector.shape_cast %107 : vector<1x8x1xf32> to vector<8x1xf32>
      %109 = arith.addf %108, %95 : vector<8x1xf32>
      %110 = arith.mulf %98, %98 : vector<8x1xf32>
      %cst_71 = arith.constant 6.400000e+01 : f32
      %111 = arith.mulf %cst_71, %0 : f32
      %112 = arith.mulf %111, %100 : f32
      %113 = vector.broadcast %112 : f32 to vector<8x1xf32>
      %114 = arith.mulf %110, %113 : vector<8x1xf32>
      %115 = arith.addf %109, %114 : vector<8x1xf32>
      %c1_72 = arith.constant 1 : index
      %c0_73 = arith.constant 0 : index
      %c0_74 = arith.constant 0 : index
      %116 = vector.load %arg12[%c1_72, %c0_73, %c0_74] : memref<2x8x1xf32, #tpu.memory_space<vmem>>, vector<1x8x1xf32>
      %117 = vector.shape_cast %116 : vector<1x8x1xf32> to vector<8x1xf32>
      %118 = vector.shape_cast %115 : vector<8x1xf32> to vector<1x8x1xf32>
      tpu.vector_store %arg12[%c1_72, %c0_73, %c0_74], %118 {strides = array<i32>} : memref<2x8x1xf32, #tpu.memory_space<vmem>>, vector<1x8x1xf32>,
    } else {
    }
    %c2_i32 = arith.constant 2 : i32
    %8 = arith.cmpi eq, %arg0, %c2_i32 : i32
    %9 = arith.extui %8 : i1 to i32
    %c0_i32_3 = arith.constant 0 : i32
    %10 = arith.cmpi ne, %9, %c0_i32_3 : i32
    scf.if %10 {
      %c0_i32_4 = arith.constant 0 : i32
      %11 = arith.cmpi eq, %arg1, %c0_i32_4 : i32
      %12 = arith.extui %11 : i1 to i32
      %c0_i32_5 = arith.constant 0 : i32
      %13 = arith.cmpi ne, %12, %c0_i32_5 : i32
      scf.if %13 {
        %c1_57 = arith.constant 1 : index
        %c0_58 = arith.constant 0 : index
        %c0_59 = arith.constant 0 : index
        %88 = vector.load %arg11[%c1_57, %c0_58, %c0_59] : memref<2x8x1xf32, #tpu.memory_space<vmem>>, vector<1x8x1xf32>
        %89 = vector.shape_cast %88 : vector<1x8x1xf32> to vector<8x1xf32>
        %c1_60 = arith.constant 1 : index
        %c0_61 = arith.constant 0 : index
        %c0_62 = arith.constant 0 : index
        %90 = vector.load %arg12[%c1_60, %c0_61, %c0_62] : memref<2x8x1xf32, #tpu.memory_space<vmem>>, vector<1x8x1xf32>
        %91 = vector.shape_cast %90 : vector<1x8x1xf32> to vector<8x1xf32>
        %cst_63 = arith.constant 7.812500e-03 : f32
        %92 = vector.broadcast %cst_63 : f32 to vector<8x1xf32>
        %93 = arith.mulf %91, %92 : vector<8x1xf32>
        %cst_64 = arith.constant 0.000000e+00 : f32
        %94 = vector.broadcast %cst_64 : f32 to vector<8x1xf32>
        %95 = arith.maximumf %93, %94 : vector<8x1xf32>
        %c1_65 = arith.constant 1 : index
        %c0_66 = arith.constant 0 : index
        %c0_67 = arith.constant 0 : index
        %96 = vector.load %arg4[%c1_65, %c0_66, %c0_67] : memref<2x8x1xf32, #tpu.memory_space<vmem>>, vector<1x8x1xf32>
        %97 = vector.shape_cast %96 : vector<1x8x1xf32> to vector<8x1xf32>
        %cst_68 = arith.constant 9.99999996E-13 : f32
        %98 = vector.broadcast %cst_68 : f32 to vector<8x1xf32>
        %99 = arith.addf %95, %98 : vector<8x1xf32>
        %100 = math.rsqrt %99 : vector<8x1xf32>
        %101 = arith.mulf %97, %100 : vector<8x1xf32>
        %c0_69 = arith.constant 0 : index
        %c0_70 = arith.constant 0 : index
        %102 = vector.load %arg13[%c0_69, %c0_70] : memref<8x1xf32, #tpu.memory_space<vmem>>, vector<8x1xf32>
        tpu.vector_store %arg13[%c0_69, %c0_70], %101 {strides = array<i32>} : memref<8x1xf32, #tpu.memory_space<vmem>>, vector<8x1xf32>,
        %c1_71 = arith.constant 1 : index
        %c0_72 = arith.constant 0 : index
        %c0_73 = arith.constant 0 : index
        %103 = vector.load %arg5[%c1_71, %c0_72, %c0_73] : memref<2x8x1xf32, #tpu.memory_space<vmem>>, vector<1x8x1xf32>
        %104 = vector.shape_cast %103 : vector<1x8x1xf32> to vector<8x1xf32>
        %105 = arith.mulf %89, %101 : vector<8x1xf32>
        %106 = arith.subf %104, %105 : vector<8x1xf32>
        %c0_74 = arith.constant 0 : index
        %c0_75 = arith.constant 0 : index
        %107 = vector.load %arg14[%c0_74, %c0_75] : memref<8x1xf32, #tpu.memory_space<vmem>>, vector<8x1xf32>
        tpu.vector_store %arg14[%c0_74, %c0_75], %106 {strides = array<i32>} : memref<8x1xf32, #tpu.memory_space<vmem>>, vector<8x1xf32>,
      } else {
      }
      %14 = arith.index_cast %arg1 : i32 to index
      %c0_6 = arith.constant 0 : index
      %c0_7 = arith.constant 0 : index
      %15 = vector.load %arg9[%14, %c0_6, %c0_7] : memref<2x16x100xf32, #tpu.memory_space<vmem>>, vector<1x8x100xf32>
      %16 = vector.shape_cast %15 : vector<1x8x100xf32> to vector<8x100xf32>
      %c0_8 = arith.constant 0 : index
      %c0_9 = arith.constant 0 : index
      %17 = vector.load %arg13[%c0_8, %c0_9] : memref<8x1xf32, #tpu.memory_space<vmem>>, vector<8x1xf32>
      %18 = vector.broadcast %17 : vector<8x1xf32> to vector<8x100xf32>
      %19 = arith.mulf %16, %18 : vector<8x100xf32>
      %c0_10 = arith.constant 0 : index
      %c0_11 = arith.constant 0 : index
      %20 = vector.load %arg14[%c0_10, %c0_11] : memref<8x1xf32, #tpu.memory_space<vmem>>, vector<8x1xf32>
      %21 = vector.broadcast %20 : vector<8x1xf32> to vector<8x100xf32>
      %22 = arith.addf %19, %21 : vector<8x100xf32>
      %cst = arith.constant 0.000000e+00 : f32
      %23 = vector.broadcast %cst : f32 to vector<8x100xf32>
      %24 = arith.maximumf %22, %23 : vector<8x100xf32>
      %25 = vector.broadcast %1 : vector<1x100xf32> to vector<8x100xf32>
      %26 = arith.mulf %24, %25 : vector<8x100xf32>
      %c0_12 = arith.constant 0 : index
      %c128 = arith.constant 128 : index
      %27 = vector.load %arg10[%c0_12, %c128] : memref<8x239xf32, #tpu.memory_space<vmem>>, vector<8x100xf32>
      tpu.vector_store %arg10[%c0_12, %c128], %26 {strides = array<i32>} : memref<8x239xf32, #tpu.memory_space<vmem>>, vector<8x100xf32>,
      %cst_13 = arith.constant 0.000000e+00 : f32
      %28 = vector.broadcast %cst_13 : f32 to vector<16x100xf32>
      %c1 = arith.constant 1 : index
      %c0_14 = arith.constant 0 : index
      %c0_15 = arith.constant 0 : index
      %29 = vector.load %arg7[%c1, %c0_14, %c0_15] : memref<2x16x1xf32, #tpu.memory_space<vmem>>, vector<1x16x1xf32>
      %30 = vector.shape_cast %29 : vector<1x16x1xf32> to vector<16x1xf32>
      %31 = vector.broadcast %30 : vector<16x1xf32> to vector<16x100xf32>
      %32 = arith.addf %28, %31 : vector<16x100xf32>
      %c9 = arith.constant 9 : index
      %c0_16 = arith.constant 0 : index
      %c0_17 = arith.constant 0 : index
      %33 = vector.load %arg6[%c9, %c0_16, %c0_17] : memref<18x16x8xf32, #tpu.memory_space<vmem>>, vector<1x16x8xf32>
      %34 = vector.shape_cast %33 : vector<1x16x8xf32> to vector<16x8xf32>
      %c0_18 = arith.constant 0 : index
      %c117 = arith.constant 117 : index
      %35 = vector.load %arg10[%c0_18, %c117] : memref<8x239xf32, #tpu.memory_space<vmem>>, vector<8x100xf32>
      %cst_19 = arith.constant dense<0.000000e+00> : vector<16x100xf32>
      %36 = tpu.matmul %34, %35, %cst_19 {dimension_numbers = #tpu.dot_dimension_numbers<[1], [0], [0], [1], [0, 0, 1, 1], [], []>} : vector<16x8xf32>, vector<8x100xf32>, vector<16x100xf32> -> vector<16x100xf32>
      %37 = arith.addf %32, %36 : vector<16x100xf32>
      %c10 = arith.constant 10 : index
      %c0_20 = arith.constant 0 : index
      %c0_21 = arith.constant 0 : index
      %38 = vector.load %arg6[%c10, %c0_20, %c0_21] : memref<18x16x8xf32, #tpu.memory_space<vmem>>, vector<1x16x8xf32>
      %39 = vector.shape_cast %38 : vector<1x16x8xf32> to vector<16x8xf32>
      %c0_22 = arith.constant 0 : index
      %c118 = arith.constant 118 : index
      %40 = vector.load %arg10[%c0_22, %c118] : memref<8x239xf32, #tpu.memory_space<vmem>>, vector<8x100xf32>
      %cst_23 = arith.constant dense<0.000000e+00> : vector<16x100xf32>
      %41 = tpu.matmul %39, %40, %cst_23 {dimension_numbers = #tpu.dot_dimension_numbers<[1], [0], [0], [1], [0, 0, 1, 1], [], []>} : vector<16x8xf32>, vector<8x100xf32>, vector<16x100xf32> -> vector<16x100xf32>
      %42 = arith.addf %37, %41 : vector<16x100xf32>
      %c11 = arith.constant 11 : index
      %c0_24 = arith.constant 0 : index
      %c0_25 = arith.constant 0 : index
      %43 = vector.load %arg6[%c11, %c0_24, %c0_25] : memref<18x16x8xf32, #tpu.memory_space<vmem>>, vector<1x16x8xf32>
      %44 = vector.shape_cast %43 : vector<1x16x8xf32> to vector<16x8xf32>
      %c0_26 = arith.constant 0 : index
      %c119 = arith.constant 119 : index
      %45 = vector.load %arg10[%c0_26, %c119] : memref<8x239xf32, #tpu.memory_space<vmem>>, vector<8x100xf32>
      %cst_27 = arith.constant dense<0.000000e+00> : vector<16x100xf32>
      %46 = tpu.matmul %44, %45, %cst_27 {dimension_numbers = #tpu.dot_dimension_numbers<[1], [0], [0], [1], [0, 0, 1, 1], [], []>} : vector<16x8xf32>, vector<8x100xf32>, vector<16x100xf32> -> vector<16x100xf32>
      %47 = arith.addf %42, %46 : vector<16x100xf32>
      %c12 = arith.constant 12 : index
      %c0_28 = arith.constant 0 : index
      %c0_29 = arith.constant 0 : index
      %48 = vector.load %arg6[%c12, %c0_28, %c0_29] : memref<18x16x8xf32, #tpu.memory_space<vmem>>, vector<1x16x8xf32>
      %49 = vector.shape_cast %48 : vector<1x16x8xf32> to vector<16x8xf32>
      %c0_30 = arith.constant 0 : index
      %c127 = arith.constant 127 : index
      %50 = vector.load %arg10[%c0_30, %c127] : memref<8x239xf32, #tpu.memory_space<vmem>>, vector<8x100xf32>
      %cst_31 = arith.constant dense<0.000000e+00> : vector<16x100xf32>
      %51 = tpu.matmul %49, %50, %cst_31 {dimension_numbers = #tpu.dot_dimension_numbers<[1], [0], [0], [1], [0, 0, 1, 1], [], []>} : vector<16x8xf32>, vector<8x100xf32>, vector<16x100xf32> -> vector<16x100xf32>
      %52 = arith.addf %47, %51 : vector<16x100xf32>
      %c13 = arith.constant 13 : index
      %c0_32 = arith.constant 0 : index
      %c0_33 = arith.constant 0 : index
      %53 = vector.load %arg6[%c13, %c0_32, %c0_33] : memref<18x16x8xf32, #tpu.memory_space<vmem>>, vector<1x16x8xf32>
      %54 = vector.shape_cast %53 : vector<1x16x8xf32> to vector<16x8xf32>
      %c0_34 = arith.constant 0 : index
      %c128_35 = arith.constant 128 : index
      %55 = vector.load %arg10[%c0_34, %c128_35] : memref<8x239xf32, #tpu.memory_space<vmem>>, vector<8x100xf32>
      %cst_36 = arith.constant dense<0.000000e+00> : vector<16x100xf32>
      %56 = tpu.matmul %54, %55, %cst_36 {dimension_numbers = #tpu.dot_dimension_numbers<[1], [0], [0], [1], [0, 0, 1, 1], [], []>} : vector<16x8xf32>, vector<8x100xf32>, vector<16x100xf32> -> vector<16x100xf32>
      %57 = arith.addf %52, %56 : vector<16x100xf32>
      %c14 = arith.constant 14 : index
      %c0_37 = arith.constant 0 : index
      %c0_38 = arith.constant 0 : index
      %58 = vector.load %arg6[%c14, %c0_37, %c0_38] : memref<18x16x8xf32, #tpu.memory_space<vmem>>, vector<1x16x8xf32>
      %59 = vector.shape_cast %58 : vector<1x16x8xf32> to vector<16x8xf32>
      %c0_39 = arith.constant 0 : index
      %c129 = arith.constant 129 : index
      %60 = vector.load %arg10[%c0_39, %c129] : memref<8x239xf32, #tpu.memory_space<vmem>>, vector<8x100xf32>
      %cst_40 = arith.constant dense<0.000000e+00> : vector<16x100xf32>
      %61 = tpu.matmul %59, %60, %cst_40 {dimension_numbers = #tpu.dot_dimension_numbers<[1], [0], [0], [1], [0, 0, 1, 1], [], []>} : vector<16x8xf32>, vector<8x100xf32>, vector<16x100xf32> -> vector<16x100xf32>
      %62 = arith.addf %57, %61 : vector<16x100xf32>
      %c15 = arith.constant 15 : index
      %c0_41 = arith.constant 0 : index
      %c0_42 = arith.constant 0 : index
      %63 = vector.load %arg6[%c15, %c0_41, %c0_42] : memref<18x16x8xf32, #tpu.memory_space<vmem>>, vector<1x16x8xf32>
      %64 = vector.shape_cast %63 : vector<1x16x8xf32> to vector<16x8xf32>
      %c0_43 = arith.constant 0 : index
      %c137 = arith.constant 137 : index
      %65 = vector.load %arg10[%c0_43, %c137] : memref<8x239xf32, #tpu.memory_space<vmem>>, vector<8x100xf32>
      %cst_44 = arith.constant dense<0.000000e+00> : vector<16x100xf32>
      %66 = tpu.matmul %64, %65, %cst_44 {dimension_numbers = #tpu.dot_dimension_numbers<[1], [0], [0], [1], [0, 0, 1, 1], [], []>} : vector<16x8xf32>, vector<8x100xf32>, vector<16x100xf32> -> vector<16x100xf32>
      %67 = arith.addf %62, %66 : vector<16x100xf32>
      %c16 = arith.constant 16 : index
      %c0_45 = arith.constant 0 : index
      %c0_46 = arith.constant 0 : index
      %68 = vector.load %arg6[%c16, %c0_45, %c0_46] : memref<18x16x8xf32, #tpu.memory_space<vmem>>, vector<1x16x8xf32>
      %69 = vector.shape_cast %68 : vector<1x16x8xf32> to vector<16x8xf32>
      %c0_47 = arith.constant 0 : index
      %c138 = arith.constant 138 : index
      %70 = vector.load %arg10[%c0_47, %c138] : memref<8x239xf32, #tpu.memory_space<vmem>>, vector<8x100xf32>
      %cst_48 = arith.constant dense<0.000000e+00> : vector<16x100xf32>
      %71 = tpu.matmul %69, %70, %cst_48 {dimension_numbers = #tpu.dot_dimension_numbers<[1], [0], [0], [1], [0, 0, 1, 1], [], []>} : vector<16x8xf32>, vector<8x100xf32>, vector<16x100xf32> -> vector<16x100xf32>
      %72 = arith.addf %67, %71 : vector<16x100xf32>
      %c17 = arith.constant 17 : index
      %c0_49 = arith.constant 0 : index
      %c0_50 = arith.constant 0 : index
      %73 = vector.load %arg6[%c17, %c0_49, %c0_50] : memref<18x16x8xf32, #tpu.memory_space<vmem>>, vector<1x16x8xf32>
      %74 = vector.shape_cast %73 : vector<1x16x8xf32> to vector<16x8xf32>
      %c0_51 = arith.constant 0 : index
      %c139 = arith.constant 139 : index
      %75 = vector.load %arg10[%c0_51, %c139] : memref<8x239xf32, #tpu.memory_space<vmem>>, vector<8x100xf32>
      %cst_52 = arith.constant dense<0.000000e+00> : vector<16x100xf32>
      %76 = tpu.matmul %74, %75, %cst_52 {dimension_numbers = #tpu.dot_dimension_numbers<[1], [0], [0], [1], [0, 0, 1, 1], [], []>} : vector<16x8xf32>, vector<8x100xf32>, vector<16x100xf32> -> vector<16x100xf32>
      %77 = arith.addf %72, %76 : vector<16x100xf32>
      %78 = vector.extract_strided_slice %77 {offsets = [0, 0], sizes = [8, 100], strides = [1, 1]} : vector<16x100xf32> to vector<8x100xf32>
      %79 = vector.broadcast %1 : vector<1x100xf32> to vector<8x100xf32>
      %80 = arith.mulf %78, %79 : vector<8x100xf32>
      %81 = arith.index_cast %arg1 : i32 to index
      %c8 = arith.constant 8 : index
      %c0_53 = arith.constant 0 : index
      %82 = vector.load %arg9[%81, %c8, %c0_53] : memref<2x16x100xf32, #tpu.memory_space<vmem>>, vector<1x8x100xf32>
      %83 = vector.shape_cast %82 : vector<1x8x100xf32> to vector<8x100xf32>
      %84 = arith.addf %80, %83 : vector<8x100xf32>
      %c0_54 = arith.constant 0 : index
      %c0_55 = arith.constant 0 : index
      %c0_56 = arith.constant 0 : index
      %85 = vector.load %arg8[%c0_54, %c0_55, %c0_56] : memref<1x8x100xf32, #tpu.memory_space<vmem>>, vector<1x8x100xf32>
      %86 = vector.shape_cast %85 : vector<1x8x100xf32> to vector<8x100xf32>
      %87 = vector.shape_cast %84 : vector<8x100xf32> to vector<1x8x100xf32>
      tpu.vector_store %arg8[%c0_54, %c0_55, %c0_56], %87 {strides = array<i32>} : memref<1x8x100xf32, #tpu.memory_space<vmem>>, vector<1x8x100xf32>,
    } else {
    }
    return
  }
  func.func @transform_0(%arg0: i32, %arg1: i32) -> (i32, i32, i32) {
    %c0_i32 = arith.constant 0 : i32
    %c0_i32_0 = arith.constant 0 : i32
    %c0_i32_1 = arith.constant 0 : i32
    return %arg1, %c0_i32, %c0_i32_0 : i32, i32, i32
  }
  func.func @transform_1(%arg0: i32, %arg1: i32) -> (i32, i32) {
    %c0_i32 = arith.constant 0 : i32
    %c0_i32_0 = arith.constant 0 : i32
    %c0_i32_1 = arith.constant 0 : i32
    return %c0_i32, %c0_i32_0 : i32, i32
  }
  func.func @transform_2(%arg0: i32, %arg1: i32) -> (i32, i32, i32) {
    %c0_i32 = arith.constant 0 : i32
    %c0_i32_0 = arith.constant 0 : i32
    %c0_i32_1 = arith.constant 0 : i32
    %c0_i32_2 = arith.constant 0 : i32
    return %c0_i32, %c0_i32_0, %c0_i32_1 : i32, i32, i32
  }
  func.func @transform_3(%arg0: i32, %arg1: i32) -> (i32, i32, i32) {
    %c0_i32 = arith.constant 0 : i32
    %c0_i32_0 = arith.constant 0 : i32
    %c0_i32_1 = arith.constant 0 : i32
    %c0_i32_2 = arith.constant 0 : i32
    return %c0_i32, %c0_i32_0, %c0_i32_1 : i32, i32, i32
  }
  func.func @transform_4(%arg0: i32, %arg1: i32) -> (i32, i32, i32) {
    %c0_i32 = arith.constant 0 : i32
    %c0_i32_0 = arith.constant 0 : i32
    %c0_i32_1 = arith.constant 0 : i32
    %c0_i32_2 = arith.constant 0 : i32
    return %c0_i32, %c0_i32_0, %c0_i32_1 : i32, i32, i32
  }
  func.func @transform_5(%arg0: i32, %arg1: i32) -> (i32, i32, i32) {
    %c0_i32 = arith.constant 0 : i32
    %c0_i32_0 = arith.constant 0 : i32
    %c0_i32_1 = arith.constant 0 : i32
    %c0_i32_2 = arith.constant 0 : i32
    return %c0_i32, %c0_i32_0, %c0_i32_1 : i32, i32, i32
  }
  func.func @transform_6(%arg0: i32, %arg1: i32) -> (i32, i32, i32) {
    %c0_i32 = arith.constant 0 : i32
    %c0_i32_0 = arith.constant 0 : i32
    %c0_i32_1 = arith.constant 0 : i32
    return %arg1, %c0_i32, %c0_i32_0 : i32, i32, i32
  }
}

</mosaic_0001>

<llo_original>
// kernel: _lambda_.2
$region0: #{_lambda_.2}
  #allocation0 [shape = 'u32[]', space=smem, size = 0x4, offset = 0x4, fixed_abs, tag = 'smem constant byte address 0x4 - core index']
  #allocation1 [shape = 'u32[144,128]{1,0:T(1,128)}', space=vmem, size = 0x12000, scoped, tag = 'internal scratch']
  #allocation2 [shape = 'f32[2,16,324]{2,1,0:T(8,128)}', space=vmem, size = 0xc000, scoped, tag = 'scratch operand']
  #allocation3 [shape = 'f32[8,471]{1,0:T(8,128)}', space=vmem, size = 0x4000, scoped, tag = 'scratch operand']
  #allocation4 [shape = 'f32[2,8,1]{2,1,0:T(8,128)}', space=vmem, size = 0x2000, scoped, tag = 'scratch operand']
  #allocation5 [shape = 'f32[2,8,1]{2,1,0:T(8,128)}', space=vmem, size = 0x2000, scoped, tag = 'scratch operand']
  #allocation6 [shape = 'f32[8,1]{1,0:T(8,128)}', space=vmem, size = 0x1000, scoped, tag = 'scratch operand']
  #allocation7 [shape = 'f32[8,1]{1,0:T(8,128)}', space=vmem, size = 0x1000, scoped, tag = 'scratch operand']
  %s0 = inlined_call_operand.vmem [shape: f32[2,8,324], index: 0, kind: input, shape index: {}]
  %s1 = inlined_call_operand.vmem [shape: f32[1,324], index: 1, kind: input, shape index: {}]
  %s2 = inlined_call_operand.vmem [shape: f32[2,8,1], index: 2, kind: input, shape index: {}]
  %s3 = inlined_call_operand.vmem [shape: f32[2,8,1], index: 3, kind: input, shape index: {}]
  %s4 = inlined_call_operand.vmem [shape: f32[18,16,8], index: 4, kind: input, shape index: {}]
  %s5 = inlined_call_operand.vmem [shape: f32[2,16,1], index: 5, kind: input, shape index: {}]
  %s6 = inlined_call_operand.vmem [shape: f32[2,6,324], index: 6, kind: output, shape index: {}]
  %s7 = sld [smem:[#allocation0]]
  $region81: #{_lambda_.2} parent=0
    _
  %s9 = ssub.s32 1, %s7
  %s10 = scalar_select 0, %s9, %s7
  loop: start=0, step=1, limit=8
  $region2: #{_lambda_.2} parent=0 // loop_pre_header
    _
  $region3: #{_lambda_.2} parent=0 // loop_header
    %s12 = sphi 0, %s16
    %p13 = scmp.ge.s32.totalorder %s12, 8
    %s19 = sphi 0, %s31
    %s20 = sphi 0, %s27
    %s21 = sphi 0, %s19
    %s22 = sphi 0, %s20
    %s23 = sphi 0, %s21
    %s24 = sphi 0, %s22
    %s34 = sphi 0, %s36
    %s37 = sphi 0, %s34
    %s38 = sphi 0, %s37
    %s54 = sphi 0, %s38
    %s58 = sphi 0, %s58
    %s60 = sphi 0, %s58
    %s61 = sphi 0, %s60
    %s75 = sphi 0, %s61
    %s79 = sphi 0, %s79
    %s81 = sphi 0, %s79
    %s82 = sphi 0, %s81
    %s96 = sphi 0, %s82
    %s100 = sphi 0, %s100
    %s102 = sphi 0, %s100
    %s103 = sphi 0, %s102
    %s117 = sphi 0, %s103
    %s121 = sphi 0, %s121
    %s123 = sphi 0, %s121
    %s124 = sphi 0, %s123
    %s138 = sphi 0, %s124
    %s142 = sphi 0, %s142
    %s144 = sphi 0, %s142
    %s145 = sphi 0, %s144
    %s159 = sphi 0, %s145
    %s165 = sphi 0, %s167
    %s168 = sphi 0, %s165
    %s169 = sphi 0, %s168
    %s185 = sphi 0, %s169
  $region4: #{_lambda_.2} parent=0 // loop_header_branch
    %15 = sbr.rel (%p13) target = $region8
  $region5: #{_lambda_.2} parent=0 // loop_body
    %s17 = ssub.s32 %s12, 1
    %s18 = ssub.s32 %s12, 2
    %s25 = sadd.s32 1, %s20
    %p26 = scmp.ge.s32.totalorder %s25, 2
    %s27 = scalar_select %p26, 0, %s25
    %s28 = sadd.s32 1, %s19
    %s29 = scalar_select %p26, %s28, %s19
    %p30 = scmp.ge.s32.totalorder %s29, 3
    %s31 = scalar_select %p30, 0, %s29
    %s32 = ssub.s32 %s20, %s27
    %p33 = scmp.eq.s32.totalorder %s32, 0
    %s35 = sadd.s32 %s34, 1
    %s36 = scalar_select %p33, %s34, %s35
    %p39 = pneg %p33
    %p40 = scmp.eq.s32.totalorder %s12, 5
    %p41 = por %p39, %p40
    %p42 = scmp.ne.s32.totalorder %s34, %s37
    %p43 = scmp.eq.s32.totalorder %s12, 0
    %p44 = por %p42, %p43
    %p45 = scmp.ne.s32.totalorder %s34, %s37
    %p46 = scmp.eq.s32.totalorder %s17, 5
    %p47 = por %p45, %p46
    %p48 = scmp.ne.s32.totalorder %s37, %s38
    %p49 = scmp.eq.s32.totalorder %s17, 0
    %p50 = por %p48, %p49
    %p51 = scmp.ne.s32.totalorder %s37, %s38
    %p52 = scmp.eq.s32.totalorder %s18, 5
    %p53 = por %p51, %p52
    %p55 = scmp.ne.s32.totalorder %s38, %s54
    %p56 = scmp.eq.s32.totalorder %s18, 0
    %p57 = por %p55, %p56
    %s59 = sadd.s32 %s58, 1
    %p62 = scmp.eq.s32.totalorder %s12, 5
    %p63 = scmp.ne.s32.totalorder %s58, %s60
    %p64 = scmp.eq.s32.totalorder %s12, 0
    %p65 = por %p63, %p64
    %p66 = scmp.ne.s32.totalorder %s58, %s60
    %p67 = scmp.eq.s32.totalorder %s17, 5
    %p68 = por %p66, %p67
    %p69 = scmp.ne.s32.totalorder %s60, %s61
    %p70 = scmp.eq.s32.totalorder %s17, 0
    %p71 = por %p69, %p70
    %p72 = scmp.ne.s32.totalorder %s60, %s61
    %p73 = scmp.eq.s32.totalorder %s18, 5
    %p74 = por %p72, %p73
    %p76 = scmp.ne.s32.totalorder %s61, %s75
    %p77 = scmp.eq.s32.totalorder %s18, 0
    %p78 = por %p76, %p77
    %s80 = sadd.s32 %s79, 1
    %p83 = scmp.eq.s32.totalorder %s12, 5
    %p84 = scmp.ne.s32.totalorder %s79, %s81
    %p85 = scmp.eq.s32.totalorder %s12, 0
    %p86 = por %p84, %p85
    %p87 = scmp.ne.s32.totalorder %s79, %s81
    %p88 = scmp.eq.s32.totalorder %s17, 5
    %p89 = por %p87, %p88
    %p90 = scmp.ne.s32.totalorder %s81, %s82
    %p91 = scmp.eq.s32.totalorder %s17, 0
    %p92 = por %p90, %p91
    %p93 = scmp.ne.s32.totalorder %s81, %s82
    %p94 = scmp.eq.s32.totalorder %s18, 5
    %p95 = por %p93, %p94
    %p97 = scmp.ne.s32.totalorder %s82, %s96
    %p98 = scmp.eq.s32.totalorder %s18, 0
    %p99 = por %p97, %p98
    %s101 = sadd.s32 %s100, 1
    %p104 = scmp.eq.s32.totalorder %s12, 5
    %p105 = scmp.ne.s32.totalorder %s100, %s102
    %p106 = scmp.eq.s32.totalorder %s12, 0
    %p107 = por %p105, %p106
    %p108 = scmp.ne.s32.totalorder %s100, %s102
    %p109 = scmp.eq.s32.totalorder %s17, 5
    %p110 = por %p108, %p109
    %p111 = scmp.ne.s32.totalorder %s102, %s103
    %p112 = scmp.eq.s32.totalorder %s17, 0
    %p113 = por %p111, %p112
    %p114 = scmp.ne.s32.totalorder %s102, %s103
    %p115 = scmp.eq.s32.totalorder %s18, 5
    %p116 = por %p114, %p115
    %p118 = scmp.ne.s32.totalorder %s103, %s117
    %p119 = scmp.eq.s32.totalorder %s18, 0
    %p120 = por %p118, %p119
    %s122 = sadd.s32 %s121, 1
    %p125 = scmp.eq.s32.totalorder %s12, 5
    %p126 = scmp.ne.s32.totalorder %s121, %s123
    %p127 = scmp.eq.s32.totalorder %s12, 0
    %p128 = por %p126, %p127
    %p129 = scmp.ne.s32.totalorder %s121, %s123
    %p130 = scmp.eq.s32.totalorder %s17, 5
    %p131 = por %p129, %p130
    %p132 = scmp.ne.s32.totalorder %s123, %s124
    %p133 = scmp.eq.s32.totalorder %s17, 0
    %p134 = por %p132, %p133
    %p135 = scmp.ne.s32.totalorder %s123, %s124
    %p136 = scmp.eq.s32.totalorder %s18, 5
    %p137 = por %p135, %p136
    %p139 = scmp.ne.s32.totalorder %s124, %s138
    %p140 = scmp.eq.s32.totalorder %s18, 0
    %p141 = por %p139, %p140
    %s143 = sadd.s32 %s142, 1
    %p146 = scmp.eq.s32.totalorder %s12, 5
    %p147 = scmp.ne.s32.totalorder %s142, %s144
    %p148 = scmp.eq.s32.totalorder %s12, 0
    %p149 = por %p147, %p148
    %p150 = scmp.ne.s32.totalorder %s142, %s144
    %p151 = scmp.eq.s32.totalorder %s17, 5
    %p152 = por %p150, %p151
    %p153 = scmp.ne.s32.totalorder %s144, %s145
    %p154 = scmp.eq.s32.totalorder %s17, 0
    %p155 = por %p153, %p154
    %p156 = scmp.ne.s32.totalorder %s144, %s145
    %p157 = scmp.eq.s32.totalorder %s18, 5
    %p158 = por %p156, %p157
    %p160 = scmp.ne.s32.totalorder %s145, %s159
    %p161 = scmp.eq.s32.totalorder %s18, 0
    %p162 = por %p160, %p161
    %s163 = ssub.s32 %s20, %s27
    %p164 = scmp.eq.s32.totalorder %s163, 0
    %s166 = sadd.s32 %s165, 1
    %s167 = scalar_select %p164, %s165, %s166
    %p170 = pneg %p164
    %p171 = scmp.eq.s32.totalorder %s12, 5
    %p172 = por %p170, %p171
    %p173 = scmp.ne.s32.totalorder %s165, %s168
    %p174 = scmp.eq.s32.totalorder %s12, 0
    %p175 = por %p173, %p174
    %p176 = scmp.ne.s32.totalorder %s165, %s168
    %p177 = scmp.eq.s32.totalorder %s17, 5
    %p178 = por %p176, %p177
    %p179 = scmp.ne.s32.totalorder %s168, %s169
    %p180 = scmp.eq.s32.totalorder %s17, 0
    %p181 = por %p179, %p180
    %p182 = scmp.ne.s32.totalorder %s168, %s169
    %p183 = scmp.eq.s32.totalorder %s18, 5
    %p184 = por %p182, %p183
    %p186 = scmp.ne.s32.totalorder %s169, %s185
    %p187 = scmp.eq.s32.totalorder %s18, 0
    %p188 = por %p186, %p187
    %p189 = scmp.le.s32.totalorder 1, %s12
    %p190 = scmp.lt.s32.totalorder %s12, 7
    %p191 = pnand %p189, %p190
    %p192 = pneg %p191
    // Predicated region
    $region9: #{_lambda_.2} parent=5 // pred_check
      _
    $region10: #{_lambda_.2} parent=5 // pred_check_branch
      %194 = sbr.rel (%p191) target = $region12
    $region11: #{_lambda_.2} parent=5 // pred_region
      %s195 = ssub.s32 %s12, 1
      // Predicated region
      $region13: #{_lambda_.2} parent=11 // pred_check
        %p196 = pneg %p71
      $region14: #{_lambda_.2} parent=11 // pred_check_branch
        %198 = sbr.rel (%p196) target = $region16
      $region15: #{_lambda_.2} parent=11 // pred_region
        _
      $region16: #{_lambda_.2} parent=11 // pred_fallthru
        _
      // Predicated region
      $region17: #{_lambda_.2} parent=11 // pred_check
        %p199 = pneg %p92
      $region18: #{_lambda_.2} parent=11 // pred_check_branch
        %201 = sbr.rel (%p199) target = $region20
      $region19: #{_lambda_.2} parent=11 // pred_region
        _
      $region20: #{_lambda_.2} parent=11 // pred_fallthru
        _
      // Predicated region
      $region21: #{_lambda_.2} parent=11 // pred_check
        %p202 = pneg %p113
      $region22: #{_lambda_.2} parent=11 // pred_check_branch
        %204 = sbr.rel (%p202) target = $region24
      $region23: #{_lambda_.2} parent=11 // pred_region
        _
      $region24: #{_lambda_.2} parent=11 // pred_fallthru
        _
      // Predicated region
      $region25: #{_lambda_.2} parent=11 // pred_check
        %p205 = pneg %p134
      $region26: #{_lambda_.2} parent=11 // pred_check_branch
        %207 = sbr.rel (%p205) target = $region28
      $region27: #{_lambda_.2} parent=11 // pred_region
        _
      $region28: #{_lambda_.2} parent=11 // pred_fallthru
        _
      // Predicated region
      $region29: #{_lambda_.2} parent=11 // pred_check
        %p208 = pneg %p155
      $region30: #{_lambda_.2} parent=11 // pred_check_branch
        %210 = sbr.rel (%p208) target = $region32
      $region31: #{_lambda_.2} parent=11 // pred_region
        _
      $region32: #{_lambda_.2} parent=11 // pred_fallthru
        _
    $region12: #{_lambda_.2} parent=5 // pred_fallthru
      _
    %p211 = scmp.lt.s32.totalorder %s12, 6
    // Predicated region
    $region33: #{_lambda_.2} parent=5 // pred_check
      %p212 = pneg %p211
    $region34: #{_lambda_.2} parent=5 // pred_check_branch
      %214 = sbr.rel (%p212) target = $region36
    $region35: #{_lambda_.2} parent=5 // pred_region
      // Predicated region
      $region37: #{_lambda_.2} parent=35 // pred_check
        %p215 = pneg %p44
      $region38: #{_lambda_.2} parent=35 // pred_check_branch
        %217 = sbr.rel (%p215) target = $region40
      $region39: #{_lambda_.2} parent=35 // pred_region
        %p218 = scmp.lt.s32.totalorder %s20, 1
        %s219 = scalar_select %p218, %s20, 1
        %s220 = smul.addr %s219, 3
        %s221 = smul.addr %s220, 8
        %s222 = scalar_lea.vmem %s0, %s221
      $region40: #{_lambda_.2} parent=35 // pred_fallthru
        _
    $region36: #{_lambda_.2} parent=5 // pred_fallthru
      _
    %p223 = scmp.le.s32.totalorder 1, %s12
    %p224 = scmp.lt.s32.totalorder %s12, 7
    %p225 = pnand %p223, %p224
    %p226 = pneg %p225
    // Predicated region
    $region41: #{_lambda_.2} parent=5 // pred_check
      _
    $region42: #{_lambda_.2} parent=5 // pred_check_branch
      %228 = sbr.rel (%p225) target = $region44
    $region43: #{_lambda_.2} parent=5 // pred_region
      %s229 = ssub.s32 %s12, 1
      %p230 = scmp.lt.s32.totalorder %s22, 1
      %s231 = scalar_select %p230, %s22, 1
      %s232 = smul.addr %s231, 3
      %s233 = smul.addr %s232, 8
      %s234 = scalar_lea.vmem %s0, %s233
      %p235 = pneg %p50
      %p236 = pneg %p47
      %p237 = pneg %p71
      %p238 = pneg %p68
      %p239 = pneg %p92
      %p240 = pneg %p89
      %p241 = pneg %p113
      %p242 = pneg %p110
      %p243 = pneg %p134
      %p244 = pneg %p131
      %p245 = pneg %p155
      %p246 = pneg %p152
      %p247 = pneg %p181
      %p248 = pneg %p178
      %p249 = scmp.lt.s32.totalorder %s22, 1
      %s250 = scalar_select %p249, %s22, 1
      %s251 = smul.addr %s250, 3
      %s252 = smul.addr %s251, 8
      %s253 = scalar_lea.vmem %s6, %s252
      %p254 = scmp.lt.s32.totalorder %s22, 1
      %s255 = scalar_select %p254, %s22, 1
      %s256 = smul.addr %s255, 3
      %s257 = smul.addr %s256, 8
      %s258 = scalar_lea.vmem %s0, %s257
      %p259 = scmp.lt.s32.totalorder %s22, 1
      %s260 = scalar_select %p259, %s22, 1
      %s261 = smul.addr %s260, 3
      %s262 = smul.addr %s261, 8
      %s263 = scalar_lea.vmem %s6, %s262
      %s264 = scvt.s32.f32 %s22
      %v265 = vld [vmem:[%s1] sm:$0x7]
      %p266 = scmp.eq.s32.totalorder %s21, 0
      // Predicated region
      $region45: #{_lambda_.2} parent=43 // pred_check
        %p267 = pneg %p266
      $region46: #{_lambda_.2} parent=43 // pred_check_branch
        %269 = sbr.rel (%p267) target = $region48
      $region47: #{_lambda_.2} parent=43 // pred_region
        %p270 = scmp.eq.s32.totalorder %s22, 0
        // Predicated region
        $region49: #{_lambda_.2} parent=47 // pred_check
          %p271 = pneg %p270
        $region50: #{_lambda_.2} parent=47 // pred_check_branch
          %273 = sbr.rel (%p271) target = $region52
        $region51: #{_lambda_.2} parent=47 // pred_region
          %274 = vst [vmem:[#allocation3] sm:$0xff] 0.0
          %vm275 = vcmask 712224
          %276 = vst.msk [vmem:[#allocation3 + $0x18] sm:$0xff] %vm275, 0.0
          %vm277 = vcmask 7168
          %278 = vst.msk [vmem:[#allocation4] sm:$0xff] %vm277, 0.0
          %279 = vst.msk [vmem:[#allocation5] sm:$0xff] %vm277, 0.0
        $region52: #{_lambda_.2} parent=47 // pred_fallthru
          _
        %v280 = vld [vmem:[%s258] sm:$0xff]
        %v281 = vld [vmem:[%s258 + $0x8] sm:$0xff]
        %v282 = vld [vmem:[%s258 + $0x10] sm:$0xff]
        %s283 = smul.u32 %s22, 6
        %s284 = smul.addr %s283, 8
        %s285 = scalar_lea.vmem [#allocation2], %s284
        %286 = vst [vmem:[%s285] sm:$0xff] %v280
        %287 = vst [vmem:[%s285 + $0x8] sm:$0xff] %v281
        %vm288 = vcmask 556032
        %289 = vst.msk [vmem:[%s285 + $0x10] sm:$0xff] %vm288, %v282
        %v290 = vadd.f32 %v280, %v281
        %v291 = vsel %vm288, %v282, 0.0
        %v292 = vadd.f32 %v290, %v291
        %293 = vadd.xlane.f32.xlu0 %v292
        %v294 = vpop.xlane.xlu0 %293
        %v295 = vmul.f32 %v294, 0.00390625
        %v296 = vsub.f32 %v280, %v295
        %v297 = vsub.f32 %v281, %v295
        %v298 = vsub.f32 %v282, %v295
        %v300 = vlaneseq
        %v301 = vshrl.u32 %v300, 7
        %v302 = vsub.s32 0, %v301
        %v303 = vrot.slane %v265, %v302
        %v304 = vlaneseq
        %v305 = vshrl.u32 %v304, 7
        %v306 = vsub.s32 1, %v305
        %v307 = vrot.slane %v265, %v306
        %v308 = vlaneseq
        %v309 = vshrl.u32 %v308, 7
        %v310 = vsub.s32 2, %v309
        %v311 = vrot.slane %v265, %v310
        %v315 = vmul.f32 %v296, %v303
        %v316 = vmul.f32 %v297, %v307
        %v317 = vmul.f32 %v298, %v311
        %v318 = vmul.f32 %v315, %v315
        %v319 = vmul.f32 %v316, %v316
        %v320 = vmul.f32 %v317, %v317
        %v321 = vadd.f32 %v318, %v319
        %v322 = vsel %vm288, %v320, 0.0
        %v323 = vadd.f32 %v321, %v322
        %324 = vadd.xlane.f32.xlu0 %v323
        %v325 = vpop.xlane.xlu0 %324
        %v326 = vld [vmem:[#allocation4] sm:$0xff]
        %v327 = vsub.f32 %v295, %v326
        %s328 = sadd.f32 %s264, 1.0
        %v329 = vstv %s328
        %v330 = vrcp.pop %v329
        %s331 = vtos %v330
        %v332 = vstv %s331
        %v333 = vmul.f32 %v327, %v332
        %v334 = vadd.f32 %v326, %v333
        %vm335 = vcmask 7168
        %336 = vst.msk [vmem:[#allocation4] sm:$0xff] %vm335, %v334
        %v337 = vld [vmem:[#allocation5] sm:$0xff]
        %v338 = vadd.f32 %v337, %v325
        %v339 = vmul.f32 %v327, %v327
        %s340 = smul.f32 %s264, 256.0
        %s341 = smul.f32 %s340, %s331
        %v342 = vstv %s341
        %v343 = vmul.f32 %v339, %v342
        %v344 = vadd.f32 %v338, %v343
        %345 = vst.msk [vmem:[#allocation5] sm:$0xff] %vm335, %v344
      $region48: #{_lambda_.2} parent=43 // pred_fallthru
        _
      %p346 = scmp.eq.s32.totalorder %s21, 1
      // Predicated region
      $region53: #{_lambda_.2} parent=43 // pred_check
        %p347 = pneg %p346
      $region54: #{_lambda_.2} parent=43 // pred_check_branch
        %349 = sbr.rel (%p347) target = $region56
      $region55: #{_lambda_.2} parent=43 // pred_region
        %p350 = scmp.eq.s32.totalorder %s22, 0
        // Predicated region
        $region57: #{_lambda_.2} parent=55 // pred_check
          %p351 = pneg %p350
        $region58: #{_lambda_.2} parent=55 // pred_check_branch
          %353 = sbr.rel (%p351) target = $region60
        $region59: #{_lambda_.2} parent=55 // pred_region
          %v354 = vld [vmem:[#allocation4] sm:$0xff]
          %v355 = vld [vmem:[#allocation5] sm:$0xff]
          %v356 = vmul.f32 %v355, 0.001953125
          %v357 = vmax.f32 %v356, 0.0
          %v358 = vld [vmem:[%s2] sm:$0xff]
          %v359 = vadd.f32 %v357, 1e-12
          %v360 = vrsqrt.pop %v359
          %v361 = vmul.f32 %v358, %v360
          %vm362 = vcmask 7168
          %363 = vst.msk [vmem:[#allocation6] sm:$0xff] %vm362, %v361
          %v364 = vld [vmem:[%s3] sm:$0xff]
          %v365 = vmul.f32 %v354, %v361
          %v366 = vsub.f32 %v364, %v365
          %367 = vst.msk [vmem:[#allocation7] sm:$0xff] %vm362, %v366
          %s368 = scalar_lea.vmem [#allocation4], 8
          %369 = vst.msk [vmem:[%s368] sm:$0xff] %vm362, 0.0
          %s370 = scalar_lea.vmem [#allocation5], 8
          %371 = vst.msk [vmem:[%s370] sm:$0xff] %vm362, 0.0
        $region60: #{_lambda_.2} parent=55 // pred_fallthru
          _
        %s372 = smul.u32 %s22, 6
        %s373 = smul.addr %s372, 8
        %s374 = scalar_lea.vmem [#allocation2], %s373
        %v375 = vld [vmem:[%s374] sm:$0xff]
        %v376 = vld [vmem:[%s374 + $0x8] sm:$0xff]
        %v377 = vld [vmem:[%s374 + $0x10] sm:$0xff]
        %v378 = vld [vmem:[#allocation6] sm:$0xff]
        %380 = vset.pattern.permute.xlu0 0
        %381 = vperm.xlu0 %380, %v378
        %v382 = vpop.permute.xlu0 %381
        %v384 = vmul.f32 %v375, %v382
        %v385 = vmul.f32 %v376, %v382
        %v386 = vmul.f32 %v377, %v382
        %v387 = vld [vmem:[#allocation7] sm:$0xff]
        %389 = vset.pattern.permute.xlu0 0
        %390 = vperm.xlu0 %389, %v387
        %v391 = vpop.permute.xlu0 %390
        %v393 = vadd.f32 %v384, %v391
        %v394 = vadd.f32 %v385, %v391
        %v395 = vadd.f32 %v386, %v391
        %v396 = vmax.f32 %v393, 0.0
        %v397 = vmax.f32 %v394, 0.0
        %v398 = vmax.f32 %v395, 0.0
        %v400 = vlaneseq
        %v401 = vshrl.u32 %v400, 7
        %v402 = vsub.s32 0, %v401
        %v403 = vrot.slane %v265, %v402
        %v404 = vlaneseq
        %v405 = vshrl.u32 %v404, 7
        %v406 = vsub.s32 1, %v405
        %v407 = vrot.slane %v265, %v406
        %v408 = vlaneseq
        %v409 = vshrl.u32 %v408, 7
        %v410 = vsub.s32 2, %v409
        %v411 = vrot.slane %v265, %v410
        %v415 = vmul.f32 %v396, %v403
        %v416 = vmul.f32 %v397, %v407
        %v417 = vmul.f32 %v398, %v411
        %418 = vst [vmem:[#allocation3 + $0x8] sm:$0xff] %v415
        %419 = vst [vmem:[#allocation3 + $0x10] sm:$0xff] %v416
        %vm420 = vcmask 556032
        %421 = vst.msk [vmem:[#allocation3 + $0x18] sm:$0xff] %vm420, %v417
        %v422 = vld [vmem:[%s5] sm:$0xff]
        %v423 = vld [vmem:[%s5 + $0x8] sm:$0xff]
        %425 = vset.pattern.permute.xlu0 0
        %426 = vperm.xlu0 %425, %v422
        %v427 = vpop.permute.xlu0 %426
        %430 = vset.pattern.permute.xlu0 0
        %431 = vperm.xlu0 %430, %v423
        %v432 = vpop.permute.xlu0 %431
        %v434 = vadd.f32 %v427, 0.0
        %v435 = vadd.f32 %v432, 0.0
        %v436 = vld [vmem:[%s4] sm:$0xff]
        %v437 = vld [vmem:[%s4 + $0x8] sm:$0xff]
        %v438 = vld [vmem:[#allocation3] sm:$0xff]
        %v439 = vld [vmem:[#allocation3 + $0x8] sm:$0xff]
        %v440 = vld [vmem:[#allocation3 + $0x10] sm:$0xff]
        %v441 = vld [vmem:[#allocation3 + $0x18] sm:$0xff]
        %446 = vrot.lane.b32.xlu0 %v438, 19
        %v447 = vpop.permute.xlu0 %446
        %448 = vrot.lane.b32.xlu0 %v439, 19
        %v449 = vpop.permute.xlu0 %448
        %450 = vrot.lane.b32.xlu0 %v440, 19
        %v451 = vpop.permute.xlu0 %450
        %452 = vrot.lane.b32.xlu0 %v441, 19
        %v453 = vpop.permute.xlu0 %452
        %vm454 = vcmask 154624
        %v455 = vsel %vm454, %v447, %v449
        %v456 = vsel %vm454, %v449, %v451
        %v457 = vsel %vm454, %v451, %v453
        %vm461 = vcmask 64512
        %v463 = vsel %vm461, %v436, 0
        %v466 = vsel %vm461, %v437, 0
        %468 = vmatprep.subr.mxu0 %v456
        %469 = vmatpush1.msra.mxu0 %v455
        %470 = vmatprep.subr.mxu0 0.0
        %471 = vmatpush1.msra.mxu0 0.0
        %472 = vmatprep.subr.mxu0 0.0
        %473 = vmatpush1.msra.mxu0 0.0
        %474 = vmatprep.subr.mxu0 0.0
        %475 = vmatpush1.msra.mxu0 0.0
        %476 = vmatprep.subr.mxu0 0.0
        %477 = vmatpush1.msra.mxu0 0.0
        %478 = vmatprep.subr.mxu0 0.0
        %479 = vmatpush1.msra.mxu0 0.0
        %480 = vmatprep.subr.mxu0 0.0
        %481 = vmatpush1.msra.mxu0 0.0
        %482 = vmatprep.subr.mxu0 0.0
        %483 = vmatpush1.msra.mxu0 0.0
        %484 = vmatprep.subr.mxu0 0.0
        %485 = vmatpush1.msra.mxu0 0.0
        %486 = vmatprep.subr.mxu0 0.0
        %487 = vmatpush1.msra.mxu0 0.0
        %488 = vmatprep.subr.mxu0 0.0
        %489 = vmatpush1.msra.mxu0 0.0
        %490 = vmatprep.subr.mxu0 0.0
        %491 = vmatpush1.msra.mxu0 0.0
        %492 = vmatprep.subr.mxu0 0.0
        %493 = vmatpush1.msra.mxu0 0.0
        %494 = vmatprep.subr.mxu0 0.0
        %495 = vmatpush1.msra.mxu0 0.0
        %496 = vmatprep.subr.mxu0 0.0
        %497 = vmatpush1.msra.mxu0 0.0
        %498 = vmatprep.subr.mxu0 0.0
        %499 = vmatpush1.msra.mxu0 0.0
        %500 = vmatprep.subr.mxu0 0.0
        %501 = vmatpush1.msra.mxu0 0.0
        %502 = vmatprep.subr.mxu0 0.0
        %503 = vmatpush1.msra.mxu0 0.0
        %504 = vmatprep.subr.mxu0 0.0
        %505 = vmatpush1.msra.mxu0 0.0
        %506 = vmatprep.subr.mxu0 0.0
        %507 = vmatpush1.msra.mxu0 0.0
        %508 = vmatprep.subr.mxu0 0.0
        %509 = vmatpush1.msra.mxu0 0.0
        %510 = vmatprep.subr.mxu0 0.0
        %511 = vmatpush1.msra.mxu0 0.0
        %512 = vmatprep.subr.mxu0 0.0
        %513 = vmatpush1.msra.mxu0 0.0
        %514 = vmatprep.subr.mxu0 0.0
        %515 = vmatpush1.msra.mxu0 0.0
        %516 = vmatprep.subr.mxu0 0.0
        %517 = vmatpush1.msra.mxu0 0.0
        %518 = vmatprep.subr.mxu0 0.0
        %519 = vmatpush1.msra.mxu0 0.0
        %520 = vmatprep.subr.mxu0 0.0
        %521 = vmatpush1.msra.mxu0 0.0
        %522 = vmatprep.subr.mxu0 0.0
        %523 = vmatpush1.msra.mxu0 0.0
        %524 = vmatprep.subr.mxu0 0.0
        %525 = vmatpush1.msra.mxu0 0.0
        %526 = vmatprep.subr.mxu0 0.0
        %527 = vmatpush1.msra.mxu0 0.0
        %528 = vmatprep.subr.mxu0 0.0
        %529 = vmatpush1.msra.mxu0 0.0
        %530 = vmatprep.subr.mxu0 0.0
        %531 = vmatpush1.msra.mxu0 0.0
        %532 = vmatprep.mubr.f32.mxu0 0.0
        %533 = vmatmul.mubr.f32.gmra.mrb[0].mxu0 %v463
        %v534 = vpop.f32.mrb[0].mxu0
        %v535 = vadd.f32 0.0, %v534
        %v536 = vpop.f32.mrb[0].mxu0
        %v537 = vadd.f32 0.0, %v536
        %538 = vmatprep.mubr.f32.mxu0 0.0
        %539 = vmatmul.mubr.f32.gmra.mrb[0].mxu0 %v466
        %v540 = vpop.f32.mrb[0].mxu0
        %v541 = vadd.f32 0.0, %v540
        %v542 = vpop.f32.mrb[0].mxu0
        %v543 = vadd.f32 0.0, %v542
        %544 = vdwg.mxu0
        %545 = vmatprep.subr.mxu0 0.0
        %546 = vmatpush1.msra.mxu0 %v457
        %547 = vmatprep.subr.mxu0 0.0
        %548 = vmatpush1.msra.mxu0 0.0
        %549 = vmatprep.subr.mxu0 0.0
        %550 = vmatpush1.msra.mxu0 0.0
        %551 = vmatprep.subr.mxu0 0.0
        %552 = vmatpush1.msra.mxu0 0.0
        %553 = vmatprep.subr.mxu0 0.0
        %554 = vmatpush1.msra.mxu0 0.0
        %555 = vmatprep.subr.mxu0 0.0
        %556 = vmatpush1.msra.mxu0 0.0
        %557 = vmatprep.subr.mxu0 0.0
        %558 = vmatpush1.msra.mxu0 0.0
        %559 = vmatprep.subr.mxu0 0.0
        %560 = vmatpush1.msra.mxu0 0.0
        %561 = vmatprep.subr.mxu0 0.0
        %562 = vmatpush1.msra.mxu0 0.0
        %563 = vmatprep.subr.mxu0 0.0
        %564 = vmatpush1.msra.mxu0 0.0
        %565 = vmatprep.subr.mxu0 0.0
        %566 = vmatpush1.msra.mxu0 0.0
        %567 = vmatprep.subr.mxu0 0.0
        %568 = vmatpush1.msra.mxu0 0.0
        %569 = vmatprep.subr.mxu0 0.0
        %570 = vmatpush1.msra.mxu0 0.0
        %571 = vmatprep.subr.mxu0 0.0
        %572 = vmatpush1.msra.mxu0 0.0
        %573 = vmatprep.subr.mxu0 0.0
        %574 = vmatpush1.msra.mxu0 0.0
        %575 = vmatprep.subr.mxu0 0.0
        %576 = vmatpush1.msra.mxu0 0.0
        %577 = vmatprep.subr.mxu0 0.0
        %578 = vmatpush1.msra.mxu0 0.0
        %579 = vmatprep.subr.mxu0 0.0
        %580 = vmatpush1.msra.mxu0 0.0
        %581 = vmatprep.subr.mxu0 0.0
        %582 = vmatpush1.msra.mxu0 0.0
        %583 = vmatprep.subr.mxu0 0.0
        %584 = vmatpush1.msra.mxu0 0.0
        %585 = vmatprep.subr.mxu0 0.0
        %586 = vmatpush1.msra.mxu0 0.0
        %587 = vmatprep.subr.mxu0 0.0
        %588 = vmatpush1.msra.mxu0 0.0
        %589 = vmatprep.subr.mxu0 0.0
        %590 = vmatpush1.msra.mxu0 0.0
        %591 = vmatprep.subr.mxu0 0.0
        %592 = vmatpush1.msra.mxu0 0.0
        %593 = vmatprep.subr.mxu0 0.0
        %594 = vmatpush1.msra.mxu0 0.0
        %595 = vmatprep.subr.mxu0 0.0
        %596 = vmatpush1.msra.mxu0 0.0
        %597 = vmatprep.subr.mxu0 0.0
        %598 = vmatpush1.msra.mxu0 0.0
        %599 = vmatprep.subr.mxu0 0.0
        %600 = vmatpush1.msra.mxu0 0.0
        %601 = vmatprep.subr.mxu0 0.0
        %602 = vmatpush1.msra.mxu0 0.0
        %603 = vmatprep.subr.mxu0 0.0
        %604 = vmatpush1.msra.mxu0 0.0
        %605 = vmatprep.subr.mxu0 0.0
        %606 = vmatpush1.msra.mxu0 0.0
        %607 = vmatprep.subr.mxu0 0.0
        %608 = vmatpush1.msra.mxu0 0.0
        %609 = vmatprep.mubr.f32.mxu0 0.0
        %610 = vmatmul.mubr.f32.gmra.mrb[0].mxu0 %v463
        %v611 = vpop.f32.mrb[0].mxu0
        %v612 = vadd.f32 0.0, %v611
        %v613 = vpop.f32.mrb[0].mxu0
        %614 = vmatprep.mubr.f32.mxu0 0.0
        %615 = vmatmul.mubr.f32.gmra.mrb[0].mxu0 %v466
        %v616 = vpop.f32.mrb[0].mxu0
        %v617 = vadd.f32 0.0, %v616
        %v618 = vpop.f32.mrb[0].mxu0
        %619 = vdwg.mxu0
        %v620 = vadd.f32 %v434, %v535
        %v621 = vadd.f32 %v434, %v537
        %v622 = vadd.f32 %v434, %v612
        %v623 = vadd.f32 %v435, %v541
        %v624 = vadd.f32 %v435, %v543
        %v625 = vadd.f32 %v435, %v617
        %s626 = scalar_lea.vmem %s4, 16
        %v627 = vld [vmem:[%s626] sm:$0xff]
        %v628 = vld [vmem:[%s626 + $0x8] sm:$0xff]
        %629 = vrot.lane.b32.xlu0 %v438, 18
        %v630 = vpop.permute.xlu0 %629
        %631 = vrot.lane.b32.xlu0 %v439, 18
        %v632 = vpop.permute.xlu0 %631
        %633 = vrot.lane.b32.xlu0 %v440, 18
        %v634 = vpop.permute.xlu0 %633
        %635 = vrot.lane.b32.xlu0 %v441, 18
        %v636 = vpop.permute.xlu0 %635
        %vm637 = vcmask 146432
        %v638 = vsel %vm637, %v630, %v632
        %v639 = vsel %vm637, %v632, %v634
        %v640 = vsel %vm637, %v634, %v636
        %v645 = vsel %vm461, %v627, 0
        %v648 = vsel %vm461, %v628, 0
        %650 = vmatprep.subr.mxu0 %v639
        %651 = vmatpush1.msra.mxu0 %v638
        %652 = vmatprep.subr.mxu0 0.0
        %653 = vmatpush1.msra.mxu0 0.0
        %654 = vmatprep.subr.mxu0 0.0
        %655 = vmatpush1.msra.mxu0 0.0
        %656 = vmatprep.subr.mxu0 0.0
        %657 = vmatpush1.msra.mxu0 0.0
        %658 = vmatprep.subr.mxu0 0.0
        %659 = vmatpush1.msra.mxu0 0.0
        %660 = vmatprep.subr.mxu0 0.0
        %661 = vmatpush1.msra.mxu0 0.0
        %662 = vmatprep.subr.mxu0 0.0
        %663 = vmatpush1.msra.mxu0 0.0
        %664 = vmatprep.subr.mxu0 0.0
        %665 = vmatpush1.msra.mxu0 0.0
        %666 = vmatprep.subr.mxu0 0.0
        %667 = vmatpush1.msra.mxu0 0.0
        %668 = vmatprep.subr.mxu0 0.0
        %669 = vmatpush1.msra.mxu0 0.0
        %670 = vmatprep.subr.mxu0 0.0
        %671 = vmatpush1.msra.mxu0 0.0
        %672 = vmatprep.subr.mxu0 0.0
        %673 = vmatpush1.msra.mxu0 0.0
        %674 = vmatprep.subr.mxu0 0.0
        %675 = vmatpush1.msra.mxu0 0.0
        %676 = vmatprep.subr.mxu0 0.0
        %677 = vmatpush1.msra.mxu0 0.0
        %678 = vmatprep.subr.mxu0 0.0
        %679 = vmatpush1.msra.mxu0 0.0
        %680 = vmatprep.subr.mxu0 0.0
        %681 = vmatpush1.msra.mxu0 0.0
        %682 = vmatprep.subr.mxu0 0.0
        %683 = vmatpush1.msra.mxu0 0.0
        %684 = vmatprep.subr.mxu0 0.0
        %685 = vmatpush1.msra.mxu0 0.0
        %686 = vmatprep.subr.mxu0 0.0
        %687 = vmatpush1.msra.mxu0 0.0
        %688 = vmatprep.subr.mxu0 0.0
        %689 = vmatpush1.msra.mxu0 0.0
        %690 = vmatprep.subr.mxu0 0.0
        %691 = vmatpush1.msra.mxu0 0.0
        %692 = vmatprep.subr.mxu0 0.0
        %693 = vmatpush1.msra.mxu0 0.0
        %694 = vmatprep.subr.mxu0 0.0
        %695 = vmatpush1.msra.mxu0 0.0
        %696 = vmatprep.subr.mxu0 0.0
        %697 = vmatpush1.msra.mxu0 0.0
        %698 = vmatprep.subr.mxu0 0.0
        %699 = vmatpush1.msra.mxu0 0.0
        %700 = vmatprep.subr.mxu0 0.0
        %701 = vmatpush1.msra.mxu0 0.0
        %702 = vmatprep.subr.mxu0 0.0
        %703 = vmatpush1.msra.mxu0 0.0
        %704 = vmatprep.subr.mxu0 0.0
        %705 = vmatpush1.msra.mxu0 0.0
        %706 = vmatprep.subr.mxu0 0.0
        %707 = vmatpush1.msra.mxu0 0.0
        %708 = vmatprep.subr.mxu0 0.0
        %709 = vmatpush1.msra.mxu0 0.0
        %710 = vmatprep.subr.mxu0 0.0
        %711 = vmatpush1.msra.mxu0 0.0
        %712 = vmatprep.subr.mxu0 0.0
        %713 = vmatpush1.msra.mxu0 0.0
        %714 = vmatprep.mubr.f32.mxu0 0.0
        %715 = vmatmul.mubr.f32.gmra.mrb[0].mxu0 %v645
        %v716 = vpop.f32.mrb[0].mxu0
        %v717 = vadd.f32 0.0, %v716
        %v718 = vpop.f32.mrb[0].mxu0
        %v719 = vadd.f32 0.0, %v718
        %720 = vmatprep.mubr.f32.mxu0 0.0
        %721 = vmatmul.mubr.f32.gmra.mrb[0].mxu0 %v648
        %v722 = vpop.f32.mrb[0].mxu0
        %v723 = vadd.f32 0.0, %v722
        %v724 = vpop.f32.mrb[0].mxu0
        %v725 = vadd.f32 0.0, %v724
        %726 = vdwg.mxu0
        %727 = vmatprep.subr.mxu0 0.0
        %728 = vmatpush1.msra.mxu0 %v640
        %729 = vmatprep.subr.mxu0 0.0
        %730 = vmatpush1.msra.mxu0 0.0
        %731 = vmatprep.subr.mxu0 0.0
        %732 = vmatpush1.msra.mxu0 0.0
        %733 = vmatprep.subr.mxu0 0.0
        %734 = vmatpush1.msra.mxu0 0.0
        %735 = vmatprep.subr.mxu0 0.0
        %736 = vmatpush1.msra.mxu0 0.0
        %737 = vmatprep.subr.mxu0 0.0
        %738 = vmatpush1.msra.mxu0 0.0
        %739 = vmatprep.subr.mxu0 0.0
        %740 = vmatpush1.msra.mxu0 0.0
        %741 = vmatprep.subr.mxu0 0.0
        %742 = vmatpush1.msra.mxu0 0.0
        %743 = vmatprep.subr.mxu0 0.0
        %744 = vmatpush1.msra.mxu0 0.0
        %745 = vmatprep.subr.mxu0 0.0
        %746 = vmatpush1.msra.mxu0 0.0
        %747 = vmatprep.subr.mxu0 0.0
        %748 = vmatpush1.msra.mxu0 0.0
        %749 = vmatprep.subr.mxu0 0.0
        %750 = vmatpush1.msra.mxu0 0.0
        %751 = vmatprep.subr.mxu0 0.0
        %752 = vmatpush1.msra.mxu0 0.0
        %753 = vmatprep.subr.mxu0 0.0
        %754 = vmatpush1.msra.mxu0 0.0
        %755 = vmatprep.subr.mxu0 0.0
        %756 = vmatpush1.msra.mxu0 0.0
        %757 = vmatprep.subr.mxu0 0.0
        %758 = vmatpush1.msra.mxu0 0.0
        %759 = vmatprep.subr.mxu0 0.0
        %760 = vmatpush1.msra.mxu0 0.0
        %761 = vmatprep.subr.mxu0 0.0
        %762 = vmatpush1.msra.mxu0 0.0
        %763 = vmatprep.subr.mxu0 0.0
        %764 = vmatpush1.msra.mxu0 0.0
        %765 = vmatprep.subr.mxu0 0.0
        %766 = vmatpush1.msra.mxu0 0.0
        %767 = vmatprep.subr.mxu0 0.0
        %768 = vmatpush1.msra.mxu0 0.0
        %769 = vmatprep.subr.mxu0 0.0
        %770 = vmatpush1.msra.mxu0 0.0
        %771 = vmatprep.subr.mxu0 0.0
        %772 = vmatpush1.msra.mxu0 0.0
        %773 = vmatprep.subr.mxu0 0.0
        %774 = vmatpush1.msra.mxu0 0.0
        %775 = vmatprep.subr.mxu0 0.0
        %776 = vmatpush1.msra.mxu0 0.0
        %777 = vmatprep.subr.mxu0 0.0
        %778 = vmatpush1.msra.mxu0 0.0
        %779 = vmatprep.subr.mxu0 0.0
        %780 = vmatpush1.msra.mxu0 0.0
        %781 = vmatprep.subr.mxu0 0.0
        %782 = vmatpush1.msra.mxu0 0.0
        %783 = vmatprep.subr.mxu0 0.0
        %784 = vmatpush1.msra.mxu0 0.0
        %785 = vmatprep.subr.mxu0 0.0
        %786 = vmatpush1.msra.mxu0 0.0
        %787 = vmatprep.subr.mxu0 0.0
        %788 = vmatpush1.msra.mxu0 0.0
        %789 = vmatprep.subr.mxu0 0.0
        %790 = vmatpush1.msra.mxu0 0.0
        %791 = vmatprep.mubr.f32.mxu0 0.0
        %792 = vmatmul.mubr.f32.gmra.mrb[0].mxu0 %v645
        %v793 = vpop.f32.mrb[0].mxu0
        %v794 = vadd.f32 0.0, %v793
        %v795 = vpop.f32.mrb[0].mxu0
        %796 = vmatprep.mubr.f32.mxu0 0.0
        %797 = vmatmul.mubr.f32.gmra.mrb[0].mxu0 %v648
        %v798 = vpop.f32.mrb[0].mxu0
        %v799 = vadd.f32 0.0, %v798
        %v800 = vpop.f32.mrb[0].mxu0
        %801 = vdwg.mxu0
        %v802 = vadd.f32 %v620, %v717
        %v803 = vadd.f32 %v621, %v719
        %v804 = vadd.f32 %v622, %v794
        %v805 = vadd.f32 %v623, %v723
        %v806 = vadd.f32 %v624, %v725
        %v807 = vadd.f32 %v625, %v799
        %s808 = scalar_lea.vmem %s4, 32
        %v809 = vld [vmem:[%s808] sm:$0xff]
        %v810 = vld [vmem:[%s808 + $0x8] sm:$0xff]
        %811 = vrot.lane.b32.xlu0 %v438, 17
        %v812 = vpop.permute.xlu0 %811
        %813 = vrot.lane.b32.xlu0 %v439, 17
        %v814 = vpop.permute.xlu0 %813
        %815 = vrot.lane.b32.xlu0 %v440, 17
        %v816 = vpop.permute.xlu0 %815
        %817 = vrot.lane.b32.xlu0 %v441, 17
        %v818 = vpop.permute.xlu0 %817
        %vm819 = vcmask 138240
        %v820 = vsel %vm819, %v812, %v814
        %v821 = vsel %vm819, %v814, %v816
        %v822 = vsel %vm819, %v816, %v818
        %v827 = vsel %vm461, %v809, 0
        %v830 = vsel %vm461, %v810, 0
        %832 = vmatprep.subr.mxu0 %v821
        %833 = vmatpush1.msra.mxu0 %v820
        %834 = vmatprep.subr.mxu0 0.0
        %835 = vmatpush1.msra.mxu0 0.0
        %836 = vmatprep.subr.mxu0 0.0
        %837 = vmatpush1.msra.mxu0 0.0
        %838 = vmatprep.subr.mxu0 0.0
        %839 = vmatpush1.msra.mxu0 0.0
        %840 = vmatprep.subr.mxu0 0.0
        %841 = vmatpush1.msra.mxu0 0.0
        %842 = vmatprep.subr.mxu0 0.0
        %843 = vmatpush1.msra.mxu0 0.0
        %844 = vmatprep.subr.mxu0 0.0
        %845 = vmatpush1.msra.mxu0 0.0
        %846 = vmatprep.subr.mxu0 0.0
        %847 = vmatpush1.msra.mxu0 0.0
        %848 = vmatprep.subr.mxu0 0.0
        %849 = vmatpush1.msra.mxu0 0.0
        %850 = vmatprep.subr.mxu0 0.0
        %851 = vmatpush1.msra.mxu0 0.0
        %852 = vmatprep.subr.mxu0 0.0
        %853 = vmatpush1.msra.mxu0 0.0
        %854 = vmatprep.subr.mxu0 0.0
        %855 = vmatpush1.msra.mxu0 0.0
        %856 = vmatprep.subr.mxu0 0.0
        %857 = vmatpush1.msra.mxu0 0.0
        %858 = vmatprep.subr.mxu0 0.0
        %859 = vmatpush1.msra.mxu0 0.0
        %860 = vmatprep.subr.mxu0 0.0
        %861 = vmatpush1.msra.mxu0 0.0
        %862 = vmatprep.subr.mxu0 0.0
        %863 = vmatpush1.msra.mxu0 0.0
        %864 = vmatprep.subr.mxu0 0.0
        %865 = vmatpush1.msra.mxu0 0.0
        %866 = vmatprep.subr.mxu0 0.0
        %867 = vmatpush1.msra.mxu0 0.0
        %868 = vmatprep.subr.mxu0 0.0
        %869 = vmatpush1.msra.mxu0 0.0
        %870 = vmatprep.subr.mxu0 0.0
        %871 = vmatpush1.msra.mxu0 0.0
        %872 = vmatprep.subr.mxu0 0.0
        %873 = vmatpush1.msra.mxu0 0.0
        %874 = vmatprep.subr.mxu0 0.0
        %875 = vmatpush1.msra.mxu0 0.0
        %876 = vmatprep.subr.mxu0 0.0
        %877 = vmatpush1.msra.mxu0 0.0
        %878 = vmatprep.subr.mxu0 0.0
        %879 = vmatpush1.msra.mxu0 0.0
        %880 = vmatprep.subr.mxu0 0.0
        %881 = vmatpush1.msra.mxu0 0.0
        %882 = vmatprep.subr.mxu0 0.0
        %883 = vmatpush1.msra.mxu0 0.0
        %884 = vmatprep.subr.mxu0 0.0
        %885 = vmatpush1.msra.mxu0 0.0
        %886 = vmatprep.subr.mxu0 0.0
        %887 = vmatpush1.msra.mxu0 0.0
        %888 = vmatprep.subr.mxu0 0.0
        %889 = vmatpush1.msra.mxu0 0.0
        %890 = vmatprep.subr.mxu0 0.0
        %891 = vmatpush1.msra.mxu0 0.0
        %892 = vmatprep.subr.mxu0 0.0
        %893 = vmatpush1.msra.mxu0 0.0
        %894 = vmatprep.subr.mxu0 0.0
        %895 = vmatpush1.msra.mxu0 0.0
        %896 = vmatprep.mubr.f32.mxu0 0.0
        %897 = vmatmul.mubr.f32.gmra.mrb[0].mxu0 %v827
        %v898 = vpop.f32.mrb[0].mxu0
        %v899 = vadd.f32 0.0, %v898
        %v900 = vpop.f32.mrb[0].mxu0
        %v901 = vadd.f32 0.0, %v900
        %902 = vmatprep.mubr.f32.mxu0 0.0
        %903 = vmatmul.mubr.f32.gmra.mrb[0].mxu0 %v830
        %v904 = vpop.f32.mrb[0].mxu0
        %v905 = vadd.f32 0.0, %v904
        %v906 = vpop.f32.mrb[0].mxu0
        %v907 = vadd.f32 0.0, %v906
        %908 = vdwg.mxu0
        %909 = vmatprep.subr.mxu0 0.0
        %910 = vmatpush1.msra.mxu0 %v822
        %911 = vmatprep.subr.mxu0 0.0
        %912 = vmatpush1.msra.mxu0 0.0
        %913 = vmatprep.subr.mxu0 0.0
        %914 = vmatpush1.msra.mxu0 0.0
        %915 = vmatprep.subr.mxu0 0.0
        %916 = vmatpush1.msra.mxu0 0.0
        %917 = vmatprep.subr.mxu0 0.0
        %918 = vmatpush1.msra.mxu0 0.0
        %919 = vmatprep.subr.mxu0 0.0
        %920 = vmatpush1.msra.mxu0 0.0
        %921 = vmatprep.subr.mxu0 0.0
        %922 = vmatpush1.msra.mxu0 0.0
        %923 = vmatprep.subr.mxu0 0.0
        %924 = vmatpush1.msra.mxu0 0.0
        %925 = vmatprep.subr.mxu0 0.0
        %926 = vmatpush1.msra.mxu0 0.0
        %927 = vmatprep.subr.mxu0 0.0
        %928 = vmatpush1.msra.mxu0 0.0
        %929 = vmatprep.subr.mxu0 0.0
        %930 = vmatpush1.msra.mxu0 0.0
        %931 = vmatprep.subr.mxu0 0.0
        %932 = vmatpush1.msra.mxu0 0.0
        %933 = vmatprep.subr.mxu0 0.0
        %934 = vmatpush1.msra.mxu0 0.0
        %935 = vmatprep.subr.mxu0 0.0
        %936 = vmatpush1.msra.mxu0 0.0
        %937 = vmatprep.subr.mxu0 0.0
        %938 = vmatpush1.msra.mxu0 0.0
        %939 = vmatprep.subr.mxu0 0.0
        %940 = vmatpush1.msra.mxu0 0.0
        %941 = vmatprep.subr.mxu0 0.0
        %942 = vmatpush1.msra.mxu0 0.0
        %943 = vmatprep.subr.mxu0 0.0
        %944 = vmatpush1.msra.mxu0 0.0
        %945 = vmatprep.subr.mxu0 0.0
        %946 = vmatpush1.msra.mxu0 0.0
        %947 = vmatprep.subr.mxu0 0.0
        %948 = vmatpush1.msra.mxu0 0.0
        %949 = vmatprep.subr.mxu0 0.0
        %950 = vmatpush1.msra.mxu0 0.0
        %951 = vmatprep.subr.mxu0 0.0
        %952 = vmatpush1.msra.mxu0 0.0
        %953 = vmatprep.subr.mxu0 0.0
        %954 = vmatpush1.msra.mxu0 0.0
        %955 = vmatprep.subr.mxu0 0.0
        %956 = vmatpush1.msra.mxu0 0.0
        %957 = vmatprep.subr.mxu0 0.0
        %958 = vmatpush1.msra.mxu0 0.0
        %959 = vmatprep.subr.mxu0 0.0
        %960 = vmatpush1.msra.mxu0 0.0
        %961 = vmatprep.subr.mxu0 0.0
        %962 = vmatpush1.msra.mxu0 0.0
        %963 = vmatprep.subr.mxu0 0.0
        %964 = vmatpush1.msra.mxu0 0.0
        %965 = vmatprep.subr.mxu0 0.0
        %966 = vmatpush1.msra.mxu0 0.0
        %967 = vmatprep.subr.mxu0 0.0
        %968 = vmatpush1.msra.mxu0 0.0
        %969 = vmatprep.subr.mxu0 0.0
        %970 = vmatpush1.msra.mxu0 0.0
        %971 = vmatprep.subr.mxu0 0.0
        %972 = vmatpush1.msra.mxu0 0.0
        %973 = vmatprep.mubr.f32.mxu0 0.0
        %974 = vmatmul.mubr.f32.gmra.mrb[0].mxu0 %v827
        %v975 = vpop.f32.mrb[0].mxu0
        %v976 = vadd.f32 0.0, %v975
        %v977 = vpop.f32.mrb[0].mxu0
        %978 = vmatprep.mubr.f32.mxu0 0.0
        %979 = vmatmul.mubr.f32.gmra.mrb[0].mxu0 %v830
        %v980 = vpop.f32.mrb[0].mxu0
        %v981 = vadd.f32 0.0, %v980
        %v982 = vpop.f32.mrb[0].mxu0
        %983 = vdwg.mxu0
        %v984 = vadd.f32 %v802, %v899
        %v985 = vadd.f32 %v803, %v901
        %v986 = vadd.f32 %v804, %v976
        %v987 = vadd.f32 %v805, %v905
        %v988 = vadd.f32 %v806, %v907
        %v989 = vadd.f32 %v807, %v981
        %s990 = scalar_lea.vmem %s4, 48
        %v991 = vld [vmem:[%s990] sm:$0xff]
        %v992 = vld [vmem:[%s990 + $0x8] sm:$0xff]
        %993 = vrot.lane.b32.xlu0 %v438, 1
        %v994 = vpop.permute.xlu0 %993
        %995 = vrot.lane.b32.xlu0 %v439, 1
        %v996 = vpop.permute.xlu0 %995
        %997 = vrot.lane.b32.xlu0 %v440, 1
        %v998 = vpop.permute.xlu0 %997
        %999 = vrot.lane.b32.xlu0 %v441, 1
        %v1000 = vpop.permute.xlu0 %999
        %vm1001 = vcmask 7168
        %v1002 = vsel %vm1001, %v994, %v996
        %v1003 = vsel %vm1001, %v996, %v998
        %v1004 = vsel %vm1001, %v998, %v1000
        %v1009 = vsel %vm461, %v991, 0
        %v1012 = vsel %vm461, %v992, 0
        %1014 = vmatprep.subr.mxu0 %v1003
        %1015 = vmatpush1.msra.mxu0 %v1002
        %1016 = vmatprep.subr.mxu0 0.0
        %1017 = vmatpush1.msra.mxu0 0.0
        %1018 = vmatprep.subr.mxu0 0.0
        %1019 = vmatpush1.msra.mxu0 0.0
        %1020 = vmatprep.subr.mxu0 0.0
        %1021 = vmatpush1.msra.mxu0 0.0
        %1022 = vmatprep.subr.mxu0 0.0
        %1023 = vmatpush1.msra.mxu0 0.0
        %1024 = vmatprep.subr.mxu0 0.0
        %1025 = vmatpush1.msra.mxu0 0.0
        %1026 = vmatprep.subr.mxu0 0.0
        %1027 = vmatpush1.msra.mxu0 0.0
        %1028 = vmatprep.subr.mxu0 0.0
        %1029 = vmatpush1.msra.mxu0 0.0
        %1030 = vmatprep.subr.mxu0 0.0
        %1031 = vmatpush1.msra.mxu0 0.0
        %1032 = vmatprep.subr.mxu0 0.0
        %1033 = vmatpush1.msra.mxu0 0.0
        %1034 = vmatprep.subr.mxu0 0.0
        %1035 = vmatpush1.msra.mxu0 0.0
        %1036 = vmatprep.subr.mxu0 0.0
        %1037 = vmatpush1.msra.mxu0 0.0
        %1038 = vmatprep.subr.mxu0 0.0
        %1039 = vmatpush1.msra.mxu0 0.0
        %1040 = vmatprep.subr.mxu0 0.0
        %1041 = vmatpush1.msra.mxu0 0.0
        %1042 = vmatprep.subr.mxu0 0.0
        %1043 = vmatpush1.msra.mxu0 0.0
        %1044 = vmatprep.subr.mxu0 0.0
        %1045 = vmatpush1.msra.mxu0 0.0
        %1046 = vmatprep.subr.mxu0 0.0
        %1047 = vmatpush1.msra.mxu0 0.0
        %1048 = vmatprep.subr.mxu0 0.0
        %1049 = vmatpush1.msra.mxu0 0.0
        %1050 = vmatprep.subr.mxu0 0.0
        %1051 = vmatpush1.msra.mxu0 0.0
        %1052 = vmatprep.subr.mxu0 0.0
        %1053 = vmatpush1.msra.mxu0 0.0
        %1054 = vmatprep.subr.mxu0 0.0
        %1055 = vmatpush1.msra.mxu0 0.0
        %1056 = vmatprep.subr.mxu0 0.0
        %1057 = vmatpush1.msra.mxu0 0.0
        %1058 = vmatprep.subr.mxu0 0.0
        %1059 = vmatpush1.msra.mxu0 0.0
        %1060 = vmatprep.subr.mxu0 0.0
        %1061 = vmatpush1.msra.mxu0 0.0
        %1062 = vmatprep.subr.mxu0 0.0
        %1063 = vmatpush1.msra.mxu0 0.0
        %1064 = vmatprep.subr.mxu0 0.0
        %1065 = vmatpush1.msra.mxu0 0.0
        %1066 = vmatprep.subr.mxu0 0.0
        %1067 = vmatpush1.msra.mxu0 0.0
        %1068 = vmatprep.subr.mxu0 0.0
        %1069 = vmatpush1.msra.mxu0 0.0
        %1070 = vmatprep.subr.mxu0 0.0
        %1071 = vmatpush1.msra.mxu0 0.0
        %1072 = vmatprep.subr.mxu0 0.0
        %1073 = vmatpush1.msra.mxu0 0.0
        %1074 = vmatprep.subr.mxu0 0.0
        %1075 = vmatpush1.msra.mxu0 0.0
        %1076 = vmatprep.subr.mxu0 0.0
        %1077 = vmatpush1.msra.mxu0 0.0
        %1078 = vmatprep.mubr.f32.mxu0 0.0
        %1079 = vmatmul.mubr.f32.gmra.mrb[0].mxu0 %v1009
        %v1080 = vpop.f32.mrb[0].mxu0
        %v1081 = vadd.f32 0.0, %v1080
        %v1082 = vpop.f32.mrb[0].mxu0
        %v1083 = vadd.f32 0.0, %v1082
        %1084 = vmatprep.mubr.f32.mxu0 0.0
        %1085 = vmatmul.mubr.f32.gmra.mrb[0].mxu0 %v1012
        %v1086 = vpop.f32.mrb[0].mxu0
        %v1087 = vadd.f32 0.0, %v1086
        %v1088 = vpop.f32.mrb[0].mxu0
        %v1089 = vadd.f32 0.0, %v1088
        %1090 = vdwg.mxu0
        %1091 = vmatprep.subr.mxu0 0.0
        %1092 = vmatpush1.msra.mxu0 %v1004
        %1093 = vmatprep.subr.mxu0 0.0
        %1094 = vmatpush1.msra.mxu0 0.0
        %1095 = vmatprep.subr.mxu0 0.0
        %1096 = vmatpush1.msra.mxu0 0.0
        %1097 = vmatprep.subr.mxu0 0.0
        %1098 = vmatpush1.msra.mxu0 0.0
        %1099 = vmatprep.subr.mxu0 0.0
        %1100 = vmatpush1.msra.mxu0 0.0
        %1101 = vmatprep.subr.mxu0 0.0
        %1102 = vmatpush1.msra.mxu0 0.0
        %1103 = vmatprep.subr.mxu0 0.0
        %1104 = vmatpush1.msra.mxu0 0.0
        %1105 = vmatprep.subr.mxu0 0.0
        %1106 = vmatpush1.msra.mxu0 0.0
        %1107 = vmatprep.subr.mxu0 0.0
        %1108 = vmatpush1.msra.mxu0 0.0
        %1109 = vmatprep.subr.mxu0 0.0
        %1110 = vmatpush1.msra.mxu0 0.0
        %1111 = vmatprep.subr.mxu0 0.0
        %1112 = vmatpush1.msra.mxu0 0.0
        %1113 = vmatprep.subr.mxu0 0.0
        %1114 = vmatpush1.msra.mxu0 0.0
        %1115 = vmatprep.subr.mxu0 0.0
        %1116 = vmatpush1.msra.mxu0 0.0
        %1117 = vmatprep.subr.mxu0 0.0
        %1118 = vmatpush1.msra.mxu0 0.0
        %1119 = vmatprep.subr.mxu0 0.0
        %1120 = vmatpush1.msra.mxu0 0.0
        %1121 = vmatprep.subr.mxu0 0.0
        %1122 = vmatpush1.msra.mxu0 0.0
        %1123 = vmatprep.subr.mxu0 0.0
        %1124 = vmatpush1.msra.mxu0 0.0
        %1125 = vmatprep.subr.mxu0 0.0
        %1126 = vmatpush1.msra.mxu0 0.0
        %1127 = vmatprep.subr.mxu0 0.0
        %1128 = vmatpush1.msra.mxu0 0.0
        %1129 = vmatprep.subr.mxu0 0.0
        %1130 = vmatpush1.msra.mxu0 0.0
        %1131 = vmatprep.subr.mxu0 0.0
        %1132 = vmatpush1.msra.mxu0 0.0
        %1133 = vmatprep.subr.mxu0 0.0
        %1134 = vmatpush1.msra.mxu0 0.0
        %1135 = vmatprep.subr.mxu0 0.0
        %1136 = vmatpush1.msra.mxu0 0.0
        %1137 = vmatprep.subr.mxu0 0.0
        %1138 = vmatpush1.msra.mxu0 0.0
        %1139 = vmatprep.subr.mxu0 0.0
        %1140 = vmatpush1.msra.mxu0 0.0
        %1141 = vmatprep.subr.mxu0 0.0
        %1142 = vmatpush1.msra.mxu0 0.0
        %1143 = vmatprep.subr.mxu0 0.0
        %1144 = vmatpush1.msra.mxu0 0.0
        %1145 = vmatprep.subr.mxu0 0.0
        %1146 = vmatpush1.msra.mxu0 0.0
        %1147 = vmatprep.subr.mxu0 0.0
        %1148 = vmatpush1.msra.mxu0 0.0
        %1149 = vmatprep.subr.mxu0 0.0
        %1150 = vmatpush1.msra.mxu0 0.0
        %1151 = vmatprep.subr.mxu0 0.0
        %1152 = vmatpush1.msra.mxu0 0.0
        %1153 = vmatprep.subr.mxu0 0.0
        %1154 = vmatpush1.msra.mxu0 0.0
        %1155 = vmatprep.mubr.f32.mxu0 0.0
        %1156 = vmatmul.mubr.f32.gmra.mrb[0].mxu0 %v1009
        %v1157 = vpop.f32.mrb[0].mxu0
        %v1158 = vadd.f32 0.0, %v1157
        %v1159 = vpop.f32.mrb[0].mxu0
        %1160 = vmatprep.mubr.f32.mxu0 0.0
        %1161 = vmatmul.mubr.f32.gmra.mrb[0].mxu0 %v1012
        %v1162 = vpop.f32.mrb[0].mxu0
        %v1163 = vadd.f32 0.0, %v1162
        %v1164 = vpop.f32.mrb[0].mxu0
        %1165 = vdwg.mxu0
        %v1166 = vadd.f32 %v984, %v1081
        %v1167 = vadd.f32 %v985, %v1083
        %v1168 = vadd.f32 %v986, %v1158
        %v1169 = vadd.f32 %v987, %v1087
        %v1170 = vadd.f32 %v988, %v1089
        %v1171 = vadd.f32 %v989, %v1163
        %s1172 = scalar_lea.vmem %s4, 64
        %v1173 = vld [vmem:[%s1172] sm:$0xff]
        %v1174 = vld [vmem:[%s1172 + $0x8] sm:$0xff]
        %v1176 = vsel %vm461, %v1173, 0
        %v1179 = vsel %vm461, %v1174, 0
        %1181 = vmatprep.subr.mxu0 %v440
        %1182 = vmatpush1.msra.mxu0 %v439
        %1183 = vmatprep.subr.mxu0 0.0
        %1184 = vmatpush1.msra.mxu0 0.0
        %1185 = vmatprep.subr.mxu0 0.0
        %1186 = vmatpush1.msra.mxu0 0.0
        %1187 = vmatprep.subr.mxu0 0.0
        %1188 = vmatpush1.msra.mxu0 0.0
        %1189 = vmatprep.subr.mxu0 0.0
        %1190 = vmatpush1.msra.mxu0 0.0
        %1191 = vmatprep.subr.mxu0 0.0
        %1192 = vmatpush1.msra.mxu0 0.0
        %1193 = vmatprep.subr.mxu0 0.0
        %1194 = vmatpush1.msra.mxu0 0.0
        %1195 = vmatprep.subr.mxu0 0.0
        %1196 = vmatpush1.msra.mxu0 0.0
        %1197 = vmatprep.subr.mxu0 0.0
        %1198 = vmatpush1.msra.mxu0 0.0
        %1199 = vmatprep.subr.mxu0 0.0
        %1200 = vmatpush1.msra.mxu0 0.0
        %1201 = vmatprep.subr.mxu0 0.0
        %1202 = vmatpush1.msra.mxu0 0.0
        %1203 = vmatprep.subr.mxu0 0.0
        %1204 = vmatpush1.msra.mxu0 0.0
        %1205 = vmatprep.subr.mxu0 0.0
        %1206 = vmatpush1.msra.mxu0 0.0
        %1207 = vmatprep.subr.mxu0 0.0
        %1208 = vmatpush1.msra.mxu0 0.0
        %1209 = vmatprep.subr.mxu0 0.0
        %1210 = vmatpush1.msra.mxu0 0.0
        %1211 = vmatprep.subr.mxu0 0.0
        %1212 = vmatpush1.msra.mxu0 0.0
        %1213 = vmatprep.subr.mxu0 0.0
        %1214 = vmatpush1.msra.mxu0 0.0
        %1215 = vmatprep.subr.mxu0 0.0
        %1216 = vmatpush1.msra.mxu0 0.0
        %1217 = vmatprep.subr.mxu0 0.0
        %1218 = vmatpush1.msra.mxu0 0.0
        %1219 = vmatprep.subr.mxu0 0.0
        %1220 = vmatpush1.msra.mxu0 0.0
        %1221 = vmatprep.subr.mxu0 0.0
        %1222 = vmatpush1.msra.mxu0 0.0
        %1223 = vmatprep.subr.mxu0 0.0
        %1224 = vmatpush1.msra.mxu0 0.0
        %1225 = vmatprep.subr.mxu0 0.0
        %1226 = vmatpush1.msra.mxu0 0.0
        %1227 = vmatprep.subr.mxu0 0.0
        %1228 = vmatpush1.msra.mxu0 0.0
        %1229 = vmatprep.subr.mxu0 0.0
        %1230 = vmatpush1.msra.mxu0 0.0
        %1231 = vmatprep.subr.mxu0 0.0
        %1232 = vmatpush1.msra.mxu0 0.0
        %1233 = vmatprep.subr.mxu0 0.0
        %1234 = vmatpush1.msra.mxu0 0.0
        %1235 = vmatprep.subr.mxu0 0.0
        %1236 = vmatpush1.msra.mxu0 0.0
        %1237 = vmatprep.subr.mxu0 0.0
        %1238 = vmatpush1.msra.mxu0 0.0
        %1239 = vmatprep.subr.mxu0 0.0
        %1240 = vmatpush1.msra.mxu0 0.0
        %1241 = vmatprep.subr.mxu0 0.0
        %1242 = vmatpush1.msra.mxu0 0.0
        %1243 = vmatprep.subr.mxu0 0.0
        %1244 = vmatpush1.msra.mxu0 0.0
        %1245 = vmatprep.mubr.f32.mxu0 0.0
        %1246 = vmatmul.mubr.f32.gmra.mrb[0].mxu0 %v1176
        %v1247 = vpop.f32.mrb[0].mxu0
        %v1248 = vadd.f32 0.0, %v1247
        %v1249 = vpop.f32.mrb[0].mxu0
        %v1250 = vadd.f32 0.0, %v1249
        %1251 = vmatprep.mubr.f32.mxu0 0.0
        %1252 = vmatmul.mubr.f32.gmra.mrb[0].mxu0 %v1179
        %v1253 = vpop.f32.mrb[0].mxu0
        %v1254 = vadd.f32 0.0, %v1253
        %v1255 = vpop.f32.mrb[0].mxu0
        %v1256 = vadd.f32 0.0, %v1255
        %1257 = vdwg.mxu0
        %1258 = vmatprep.subr.mxu0 0.0
        %1259 = vmatpush1.msra.mxu0 %v441
        %1260 = vmatprep.subr.mxu0 0.0
        %1261 = vmatpush1.msra.mxu0 0.0
        %1262 = vmatprep.subr.mxu0 0.0
        %1263 = vmatpush1.msra.mxu0 0.0
        %1264 = vmatprep.subr.mxu0 0.0
        %1265 = vmatpush1.msra.mxu0 0.0
        %1266 = vmatprep.subr.mxu0 0.0
        %1267 = vmatpush1.msra.mxu0 0.0
        %1268 = vmatprep.subr.mxu0 0.0
        %1269 = vmatpush1.msra.mxu0 0.0
        %1270 = vmatprep.subr.mxu0 0.0
        %1271 = vmatpush1.msra.mxu0 0.0
        %1272 = vmatprep.subr.mxu0 0.0
        %1273 = vmatpush1.msra.mxu0 0.0
        %1274 = vmatprep.subr.mxu0 0.0
        %1275 = vmatpush1.msra.mxu0 0.0
        %1276 = vmatprep.subr.mxu0 0.0
        %1277 = vmatpush1.msra.mxu0 0.0
        %1278 = vmatprep.subr.mxu0 0.0
        %1279 = vmatpush1.msra.mxu0 0.0
        %1280 = vmatprep.subr.mxu0 0.0
        %1281 = vmatpush1.msra.mxu0 0.0
        %1282 = vmatprep.subr.mxu0 0.0
        %1283 = vmatpush1.msra.mxu0 0.0
        %1284 = vmatprep.subr.mxu0 0.0
        %1285 = vmatpush1.msra.mxu0 0.0
        %1286 = vmatprep.subr.mxu0 0.0
        %1287 = vmatpush1.msra.mxu0 0.0
        %1288 = vmatprep.subr.mxu0 0.0
        %1289 = vmatpush1.msra.mxu0 0.0
        %1290 = vmatprep.subr.mxu0 0.0
        %1291 = vmatpush1.msra.mxu0 0.0
        %1292 = vmatprep.subr.mxu0 0.0
        %1293 = vmatpush1.msra.mxu0 0.0
        %1294 = vmatprep.subr.mxu0 0.0
        %1295 = vmatpush1.msra.mxu0 0.0
        %1296 = vmatprep.subr.mxu0 0.0
        %1297 = vmatpush1.msra.mxu0 0.0
        %1298 = vmatprep.subr.mxu0 0.0
        %1299 = vmatpush1.msra.mxu0 0.0
        %1300 = vmatprep.subr.mxu0 0.0
        %1301 = vmatpush1.msra.mxu0 0.0
        %1302 = vmatprep.subr.mxu0 0.0
        %1303 = vmatpush1.msra.mxu0 0.0
        %1304 = vmatprep.subr.mxu0 0.0
        %1305 = vmatpush1.msra.mxu0 0.0
        %1306 = vmatprep.subr.mxu0 0.0
        %1307 = vmatpush1.msra.mxu0 0.0
        %1308 = vmatprep.subr.mxu0 0.0
        %1309 = vmatpush1.msra.mxu0 0.0
        %1310 = vmatprep.subr.mxu0 0.0
        %1311 = vmatpush1.msra.mxu0 0.0
        %1312 = vmatprep.subr.mxu0 0.0
        %1313 = vmatpush1.msra.mxu0 0.0
        %1314 = vmatprep.subr.mxu0 0.0
        %1315 = vmatpush1.msra.mxu0 0.0
        %1316 = vmatprep.subr.mxu0 0.0
        %1317 = vmatpush1.msra.mxu0 0.0
        %1318 = vmatprep.subr.mxu0 0.0
        %1319 = vmatpush1.msra.mxu0 0.0
        %1320 = vmatprep.subr.mxu0 0.0
        %1321 = vmatpush1.msra.mxu0 0.0
        %1322 = vmatprep.mubr.f32.mxu0 0.0
        %1323 = vmatmul.mubr.f32.gmra.mrb[0].mxu0 %v1176
        %v1324 = vpop.f32.mrb[0].mxu0
        %v1325 = vadd.f32 0.0, %v1324
        %v1326 = vpop.f32.mrb[0].mxu0
        %1327 = vmatprep.mubr.f32.mxu0 0.0
        %1328 = vmatmul.mubr.f32.gmra.mrb[0].mxu0 %v1179
        %v1329 = vpop.f32.mrb[0].mxu0
        %v1330 = vadd.f32 0.0, %v1329
        %v1331 = vpop.f32.mrb[0].mxu0
        %1332 = vdwg.mxu0
        %v1333 = vadd.f32 %v1166, %v1248
        %v1334 = vadd.f32 %v1167, %v1250
        %v1335 = vadd.f32 %v1168, %v1325
        %v1336 = vadd.f32 %v1169, %v1254
        %v1337 = vadd.f32 %v1170, %v1256
        %v1338 = vadd.f32 %v1171, %v1330
        %s1339 = scalar_lea.vmem %s4, 80
        %v1340 = vld [vmem:[%s1339] sm:$0xff]
        %v1341 = vld [vmem:[%s1339 + $0x8] sm:$0xff]
        %1342 = vrot.lane.b32.xlu0 %v439, 127
        %v1343 = vpop.permute.xlu0 %1342
        %1344 = vrot.lane.b32.xlu0 %v440, 127
        %v1345 = vpop.permute.xlu0 %1344
        %1346 = vrot.lane.b32.xlu0 %v441, 127
        %v1347 = vpop.permute.xlu0 %1346
        %vm1348 = vcmask 1039360
        %v1349 = vsel %vm1348, %v1343, %v1345
        %v1350 = vsel %vm1348, %v1345, %v1347
        %v1355 = vsel %vm461, %v1340, 0
        %v1358 = vsel %vm461, %v1341, 0
        %1360 = vmatprep.subr.mxu0 %v1350
        %1361 = vmatpush1.msra.mxu0 %v1349
        %1362 = vmatprep.subr.mxu0 0.0
        %1363 = vmatpush1.msra.mxu0 0.0
        %1364 = vmatprep.subr.mxu0 0.0
        %1365 = vmatpush1.msra.mxu0 0.0
        %1366 = vmatprep.subr.mxu0 0.0
        %1367 = vmatpush1.msra.mxu0 0.0
        %1368 = vmatprep.subr.mxu0 0.0
        %1369 = vmatpush1.msra.mxu0 0.0
        %1370 = vmatprep.subr.mxu0 0.0
        %1371 = vmatpush1.msra.mxu0 0.0
        %1372 = vmatprep.subr.mxu0 0.0
        %1373 = vmatpush1.msra.mxu0 0.0
        %1374 = vmatprep.subr.mxu0 0.0
        %1375 = vmatpush1.msra.mxu0 0.0
        %1376 = vmatprep.subr.mxu0 0.0
        %1377 = vmatpush1.msra.mxu0 0.0
        %1378 = vmatprep.subr.mxu0 0.0
        %1379 = vmatpush1.msra.mxu0 0.0
        %1380 = vmatprep.subr.mxu0 0.0
        %1381 = vmatpush1.msra.mxu0 0.0
        %1382 = vmatprep.subr.mxu0 0.0
        %1383 = vmatpush1.msra.mxu0 0.0
        %1384 = vmatprep.subr.mxu0 0.0
        %1385 = vmatpush1.msra.mxu0 0.0
        %1386 = vmatprep.subr.mxu0 0.0
        %1387 = vmatpush1.msra.mxu0 0.0
        %1388 = vmatprep.subr.mxu0 0.0
        %1389 = vmatpush1.msra.mxu0 0.0
        %1390 = vmatprep.subr.mxu0 0.0
        %1391 = vmatpush1.msra.mxu0 0.0
        %1392 = vmatprep.subr.mxu0 0.0
        %1393 = vmatpush1.msra.mxu0 0.0
        %1394 = vmatprep.subr.mxu0 0.0
        %1395 = vmatpush1.msra.mxu0 0.0
        %1396 = vmatprep.subr.mxu0 0.0
        %1397 = vmatpush1.msra.mxu0 0.0
        %1398 = vmatprep.subr.mxu0 0.0
        %1399 = vmatpush1.msra.mxu0 0.0
        %1400 = vmatprep.subr.mxu0 0.0
        %1401 = vmatpush1.msra.mxu0 0.0
        %1402 = vmatprep.subr.mxu0 0.0
        %1403 = vmatpush1.msra.mxu0 0.0
        %1404 = vmatprep.subr.mxu0 0.0
        %1405 = vmatpush1.msra.mxu0 0.0
        %1406 = vmatprep.subr.mxu0 0.0
        %1407 = vmatpush1.msra.mxu0 0.0
        %1408 = vmatprep.subr.mxu0 0.0
        %1409 = vmatpush1.msra.mxu0 0.0
        %1410 = vmatprep.subr.mxu0 0.0
        %1411 = vmatpush1.msra.mxu0 0.0
        %1412 = vmatprep.subr.mxu0 0.0
        %1413 = vmatpush1.msra.mxu0 0.0
        %1414 = vmatprep.subr.mxu0 0.0
        %1415 = vmatpush1.msra.mxu0 0.0
        %1416 = vmatprep.subr.mxu0 0.0
        %1417 = vmatpush1.msra.mxu0 0.0
        %1418 = vmatprep.subr.mxu0 0.0
        %1419 = vmatpush1.msra.mxu0 0.0
        %1420 = vmatprep.subr.mxu0 0.0
        %1421 = vmatpush1.msra.mxu0 0.0
        %1422 = vmatprep.subr.mxu0 0.0
        %1423 = vmatpush1.msra.mxu0 0.0
        %1424 = vmatprep.mubr.f32.mxu0 0.0
        %1425 = vmatmul.mubr.f32.gmra.mrb[0].mxu0 %v1355
        %v1426 = vpop.f32.mrb[0].mxu0
        %v1427 = vadd.f32 0.0, %v1426
        %v1428 = vpop.f32.mrb[0].mxu0
        %v1429 = vadd.f32 0.0, %v1428
        %1430 = vmatprep.mubr.f32.mxu0 0.0
        %1431 = vmatmul.mubr.f32.gmra.mrb[0].mxu0 %v1358
        %v1432 = vpop.f32.mrb[0].mxu0
        %v1433 = vadd.f32 0.0, %v1432
        %v1434 = vpop.f32.mrb[0].mxu0
        %v1435 = vadd.f32 0.0, %v1434
        %1436 = vdwg.mxu0
        %1437 = vmatprep.subr.mxu0 0.0
        %1438 = vmatpush1.msra.mxu0 %v1347
        %1439 = vmatprep.subr.mxu0 0.0
        %1440 = vmatpush1.msra.mxu0 0.0
        %1441 = vmatprep.subr.mxu0 0.0
        %1442 = vmatpush1.msra.mxu0 0.0
        %1443 = vmatprep.subr.mxu0 0.0
        %1444 = vmatpush1.msra.mxu0 0.0
        %1445 = vmatprep.subr.mxu0 0.0
        %1446 = vmatpush1.msra.mxu0 0.0
        %1447 = vmatprep.subr.mxu0 0.0
        %1448 = vmatpush1.msra.mxu0 0.0
        %1449 = vmatprep.subr.mxu0 0.0
        %1450 = vmatpush1.msra.mxu0 0.0
        %1451 = vmatprep.subr.mxu0 0.0
        %1452 = vmatpush1.msra.mxu0 0.0
        %1453 = vmatprep.subr.mxu0 0.0
        %1454 = vmatpush1.msra.mxu0 0.0
        %1455 = vmatprep.subr.mxu0 0.0
        %1456 = vmatpush1.msra.mxu0 0.0
        %1457 = vmatprep.subr.mxu0 0.0
        %1458 = vmatpush1.msra.mxu0 0.0
        %1459 = vmatprep.subr.mxu0 0.0
        %1460 = vmatpush1.msra.mxu0 0.0
        %1461 = vmatprep.subr.mxu0 0.0
        %1462 = vmatpush1.msra.mxu0 0.0
        %1463 = vmatprep.subr.mxu0 0.0
        %1464 = vmatpush1.msra.mxu0 0.0
        %1465 = vmatprep.subr.mxu0 0.0
        %1466 = vmatpush1.msra.mxu0 0.0
        %1467 = vmatprep.subr.mxu0 0.0
        %1468 = vmatpush1.msra.mxu0 0.0
        %1469 = vmatprep.subr.mxu0 0.0
        %1470 = vmatpush1.msra.mxu0 0.0
        %1471 = vmatprep.subr.mxu0 0.0
        %1472 = vmatpush1.msra.mxu0 0.0
        %1473 = vmatprep.subr.mxu0 0.0
        %1474 = vmatpush1.msra.mxu0 0.0
        %1475 = vmatprep.subr.mxu0 0.0
        %1476 = vmatpush1.msra.mxu0 0.0
        %1477 = vmatprep.subr.mxu0 0.0
        %1478 = vmatpush1.msra.mxu0 0.0
        %1479 = vmatprep.subr.mxu0 0.0
        %1480 = vmatpush1.msra.mxu0 0.0
        %1481 = vmatprep.subr.mxu0 0.0
        %1482 = vmatpush1.msra.mxu0 0.0
        %1483 = vmatprep.subr.mxu0 0.0
        %1484 = vmatpush1.msra.mxu0 0.0
        %1485 = vmatprep.subr.mxu0 0.0
        %1486 = vmatpush1.msra.mxu0 0.0
        %1487 = vmatprep.subr.mxu0 0.0
        %1488 = vmatpush1.msra.mxu0 0.0
        %1489 = vmatprep.subr.mxu0 0.0
        %1490 = vmatpush1.msra.mxu0 0.0
        %1491 = vmatprep.subr.mxu0 0.0
        %1492 = vmatpush1.msra.mxu0 0.0
        %1493 = vmatprep.subr.mxu0 0.0
        %1494 = vmatpush1.msra.mxu0 0.0
        %1495 = vmatprep.subr.mxu0 0.0
        %1496 = vmatpush1.msra.mxu0 0.0
        %1497 = vmatprep.subr.mxu0 0.0
        %1498 = vmatpush1.msra.mxu0 0.0
        %1499 = vmatprep.subr.mxu0 0.0
        %1500 = vmatpush1.msra.mxu0 0.0
        %1501 = vmatprep.mubr.f32.mxu0 0.0
        %1502 = vmatmul.mubr.f32.gmra.mrb[0].mxu0 %v1355
        %v1503 = vpop.f32.mrb[0].mxu0
        %v1504 = vadd.f32 0.0, %v1503
        %v1505 = vpop.f32.mrb[0].mxu0
        %1506 = vmatprep.mubr.f32.mxu0 0.0
        %1507 = vmatmul.mubr.f32.gmra.mrb[0].mxu0 %v1358
        %v1508 = vpop.f32.mrb[0].mxu0
        %v1509 = vadd.f32 0.0, %v1508
        %v1510 = vpop.f32.mrb[0].mxu0
        %1511 = vdwg.mxu0
        %v1512 = vadd.f32 %v1333, %v1427
        %v1513 = vadd.f32 %v1334, %v1429
        %v1514 = vadd.f32 %v1335, %v1504
        %v1515 = vadd.f32 %v1336, %v1433
        %v1516 = vadd.f32 %v1337, %v1435
        %v1517 = vadd.f32 %v1338, %v1509
        %s1518 = scalar_lea.vmem %s4, 96
        %v1519 = vld [vmem:[%s1518] sm:$0xff]
        %v1520 = vld [vmem:[%s1518 + $0x8] sm:$0xff]
        %1521 = vrot.lane.b32.xlu0 %v439, 111
        %v1522 = vpop.permute.xlu0 %1521
        %1523 = vrot.lane.b32.xlu0 %v440, 111
        %v1524 = vpop.permute.xlu0 %1523
        %1525 = vrot.lane.b32.xlu0 %v441, 111
        %v1526 = vpop.permute.xlu0 %1525
        %vm1527 = vcmask 908288
        %v1528 = vsel %vm1527, %v1522, %v1524
        %v1529 = vsel %vm1527, %v1524, %v1526
        %v1534 = vsel %vm461, %v1519, 0
        %v1537 = vsel %vm461, %v1520, 0
        %1539 = vmatprep.subr.mxu0 %v1529
        %1540 = vmatpush1.msra.mxu0 %v1528
        %1541 = vmatprep.subr.mxu0 0.0
        %1542 = vmatpush1.msra.mxu0 0.0
        %1543 = vmatprep.subr.mxu0 0.0
        %1544 = vmatpush1.msra.mxu0 0.0
        %1545 = vmatprep.subr.mxu0 0.0
        %1546 = vmatpush1.msra.mxu0 0.0
        %1547 = vmatprep.subr.mxu0 0.0
        %1548 = vmatpush1.msra.mxu0 0.0
        %1549 = vmatprep.subr.mxu0 0.0
        %1550 = vmatpush1.msra.mxu0 0.0
        %1551 = vmatprep.subr.mxu0 0.0
        %1552 = vmatpush1.msra.mxu0 0.0
        %1553 = vmatprep.subr.mxu0 0.0
        %1554 = vmatpush1.msra.mxu0 0.0
        %1555 = vmatprep.subr.mxu0 0.0
        %1556 = vmatpush1.msra.mxu0 0.0
        %1557 = vmatprep.subr.mxu0 0.0
        %1558 = vmatpush1.msra.mxu0 0.0
        %1559 = vmatprep.subr.mxu0 0.0
        %1560 = vmatpush1.msra.mxu0 0.0
        %1561 = vmatprep.subr.mxu0 0.0
        %1562 = vmatpush1.msra.mxu0 0.0
        %1563 = vmatprep.subr.mxu0 0.0
        %1564 = vmatpush1.msra.mxu0 0.0
        %1565 = vmatprep.subr.mxu0 0.0
        %1566 = vmatpush1.msra.mxu0 0.0
        %1567 = vmatprep.subr.mxu0 0.0
        %1568 = vmatpush1.msra.mxu0 0.0
        %1569 = vmatprep.subr.mxu0 0.0
        %1570 = vmatpush1.msra.mxu0 0.0
        %1571 = vmatprep.subr.mxu0 0.0
        %1572 = vmatpush1.msra.mxu0 0.0
        %1573 = vmatprep.subr.mxu0 0.0
        %1574 = vmatpush1.msra.mxu0 0.0
        %1575 = vmatprep.subr.mxu0 0.0
        %1576 = vmatpush1.msra.mxu0 0.0
        %1577 = vmatprep.subr.mxu0 0.0
        %1578 = vmatpush1.msra.mxu0 0.0
        %1579 = vmatprep.subr.mxu0 0.0
        %1580 = vmatpush1.msra.mxu0 0.0
        %1581 = vmatprep.subr.mxu0 0.0
        %1582 = vmatpush1.msra.mxu0 0.0
        %1583 = vmatprep.subr.mxu0 0.0
        %1584 = vmatpush1.msra.mxu0 0.0
        %1585 = vmatprep.subr.mxu0 0.0
        %1586 = vmatpush1.msra.mxu0 0.0
        %1587 = vmatprep.subr.mxu0 0.0
        %1588 = vmatpush1.msra.mxu0 0.0
        %1589 = vmatprep.subr.mxu0 0.0
        %1590 = vmatpush1.msra.mxu0 0.0
        %1591 = vmatprep.subr.mxu0 0.0
        %1592 = vmatpush1.msra.mxu0 0.0
        %1593 = vmatprep.subr.mxu0 0.0
        %1594 = vmatpush1.msra.mxu0 0.0
        %1595 = vmatprep.subr.mxu0 0.0
        %1596 = vmatpush1.msra.mxu0 0.0
        %1597 = vmatprep.subr.mxu0 0.0
        %1598 = vmatpush1.msra.mxu0 0.0
        %1599 = vmatprep.subr.mxu0 0.0
        %1600 = vmatpush1.msra.mxu0 0.0
        %1601 = vmatprep.subr.mxu0 0.0
        %1602 = vmatpush1.msra.mxu0 0.0
        %1603 = vmatprep.mubr.f32.mxu0 0.0
        %1604 = vmatmul.mubr.f32.gmra.mrb[0].mxu0 %v1534
        %v1605 = vpop.f32.mrb[0].mxu0
        %v1606 = vadd.f32 0.0, %v1605
        %v1607 = vpop.f32.mrb[0].mxu0
        %v1608 = vadd.f32 0.0, %v1607
        %1609 = vmatprep.mubr.f32.mxu0 0.0
        %1610 = vmatmul.mubr.f32.gmra.mrb[0].mxu0 %v1537
        %v1611 = vpop.f32.mrb[0].mxu0
        %v1612 = vadd.f32 0.0, %v1611
        %v1613 = vpop.f32.mrb[0].mxu0
        %v1614 = vadd.f32 0.0, %v1613
        %1615 = vdwg.mxu0
        %1616 = vmatprep.subr.mxu0 0.0
        %1617 = vmatpush1.msra.mxu0 %v1526
        %1618 = vmatprep.subr.mxu0 0.0
        %1619 = vmatpush1.msra.mxu0 0.0
        %1620 = vmatprep.subr.mxu0 0.0
        %1621 = vmatpush1.msra.mxu0 0.0
        %1622 = vmatprep.subr.mxu0 0.0
        %1623 = vmatpush1.msra.mxu0 0.0
        %1624 = vmatprep.subr.mxu0 0.0
        %1625 = vmatpush1.msra.mxu0 0.0
        %1626 = vmatprep.subr.mxu0 0.0
        %1627 = vmatpush1.msra.mxu0 0.0
        %1628 = vmatprep.subr.mxu0 0.0
        %1629 = vmatpush1.msra.mxu0 0.0
        %1630 = vmatprep.subr.mxu0 0.0
        %1631 = vmatpush1.msra.mxu0 0.0
        %1632 = vmatprep.subr.mxu0 0.0
        %1633 = vmatpush1.msra.mxu0 0.0
        %1634 = vmatprep.subr.mxu0 0.0
        %1635 = vmatpush1.msra.mxu0 0.0
        %1636 = vmatprep.subr.mxu0 0.0
        %1637 = vmatpush1.msra.mxu0 0.0
        %1638 = vmatprep.subr.mxu0 0.0
        %1639 = vmatpush1.msra.mxu0 0.0
        %1640 = vmatprep.subr.mxu0 0.0
        %1641 = vmatpush1.msra.mxu0 0.0
        %1642 = vmatprep.subr.mxu0 0.0
        %1643 = vmatpush1.msra.mxu0 0.0
        %1644 = vmatprep.subr.mxu0 0.0
        %1645 = vmatpush1.msra.mxu0 0.0
        %1646 = vmatprep.subr.mxu0 0.0
        %1647 = vmatpush1.msra.mxu0 0.0
        %1648 = vmatprep.subr.mxu0 0.0
        %1649 = vmatpush1.msra.mxu0 0.0
        %1650 = vmatprep.subr.mxu0 0.0
        %1651 = vmatpush1.msra.mxu0 0.0
        %1652 = vmatprep.subr.mxu0 0.0
        %1653 = vmatpush1.msra.mxu0 0.0
        %1654 = vmatprep.subr.mxu0 0.0
        %1655 = vmatpush1.msra.mxu0 0.0
        %1656 = vmatprep.subr.mxu0 0.0
        %1657 = vmatpush1.msra.mxu0 0.0
        %1658 = vmatprep.subr.mxu0 0.0
        %1659 = vmatpush1.msra.mxu0 0.0
        %1660 = vmatprep.subr.mxu0 0.0
        %1661 = vmatpush1.msra.mxu0 0.0
        %1662 = vmatprep.subr.mxu0 0.0
        %1663 = vmatpush1.msra.mxu0 0.0
        %1664 = vmatprep.subr.mxu0 0.0
        %1665 = vmatpush1.msra.mxu0 0.0
        %1666 = vmatprep.subr.mxu0 0.0
        %1667 = vmatpush1.msra.mxu0 0.0
        %1668 = vmatprep.subr.mxu0 0.0
        %1669 = vmatpush1.msra.mxu0 0.0
        %1670 = vmatprep.subr.mxu0 0.0
        %1671 = vmatpush1.msra.mxu0 0.0
        %1672 = vmatprep.subr.mxu0 0.0
        %1673 = vmatpush1.msra.mxu0 0.0
        %1674 = vmatprep.subr.mxu0 0.0
        %1675 = vmatpush1.msra.mxu0 0.0
        %1676 = vmatprep.subr.mxu0 0.0
        %1677 = vmatpush1.msra.mxu0 0.0
        %1678 = vmatprep.subr.mxu0 0.0
        %1679 = vmatpush1.msra.mxu0 0.0
        %1680 = vmatprep.mubr.f32.mxu0 0.0
        %1681 = vmatmul.mubr.f32.gmra.mrb[0].mxu0 %v1534
        %v1682 = vpop.f32.mrb[0].mxu0
        %v1683 = vadd.f32 0.0, %v1682
        %v1684 = vpop.f32.mrb[0].mxu0
        %1685 = vmatprep.mubr.f32.mxu0 0.0
        %1686 = vmatmul.mubr.f32.gmra.mrb[0].mxu0 %v1537
        %v1687 = vpop.f32.mrb[0].mxu0
        %v1688 = vadd.f32 0.0, %v1687
        %v1689 = vpop.f32.mrb[0].mxu0
        %1690 = vdwg.mxu0
        %v1691 = vadd.f32 %v1512, %v1606
        %v1692 = vadd.f32 %v1513, %v1608
        %v1693 = vadd.f32 %v1514, %v1683
        %v1694 = vadd.f32 %v1515, %v1612
        %v1695 = vadd.f32 %v1516, %v1614
        %v1696 = vadd.f32 %v1517, %v1688
        %s1697 = scalar_lea.vmem %s4, 112
        %v1698 = vld [vmem:[%s1697] sm:$0xff]
        %v1699 = vld [vmem:[%s1697 + $0x8] sm:$0xff]
        %1700 = vrot.lane.b32.xlu0 %v439, 110
        %v1701 = vpop.permute.xlu0 %1700
        %1702 = vrot.lane.b32.xlu0 %v440, 110
        %v1703 = vpop.permute.xlu0 %1702
        %1704 = vrot.lane.b32.xlu0 %v441, 110
        %v1705 = vpop.permute.xlu0 %1704
        %vm1706 = vcmask 900096
        %v1707 = vsel %vm1706, %v1701, %v1703
        %v1708 = vsel %vm1706, %v1703, %v1705
        %v1713 = vsel %vm461, %v1698, 0
        %v1716 = vsel %vm461, %v1699, 0
        %1718 = vmatprep.subr.mxu0 %v1708
        %1719 = vmatpush1.msra.mxu0 %v1707
        %1720 = vmatprep.subr.mxu0 0.0
        %1721 = vmatpush1.msra.mxu0 0.0
        %1722 = vmatprep.subr.mxu0 0.0
        %1723 = vmatpush1.msra.mxu0 0.0
        %1724 = vmatprep.subr.mxu0 0.0
        %1725 = vmatpush1.msra.mxu0 0.0
        %1726 = vmatprep.subr.mxu0 0.0
        %1727 = vmatpush1.msra.mxu0 0.0
        %1728 = vmatprep.subr.mxu0 0.0
        %1729 = vmatpush1.msra.mxu0 0.0
        %1730 = vmatprep.subr.mxu0 0.0
        %1731 = vmatpush1.msra.mxu0 0.0
        %1732 = vmatprep.subr.mxu0 0.0
        %1733 = vmatpush1.msra.mxu0 0.0
        %1734 = vmatprep.subr.mxu0 0.0
        %1735 = vmatpush1.msra.mxu0 0.0
        %1736 = vmatprep.subr.mxu0 0.0
        %1737 = vmatpush1.msra.mxu0 0.0
        %1738 = vmatprep.subr.mxu0 0.0
        %1739 = vmatpush1.msra.mxu0 0.0
        %1740 = vmatprep.subr.mxu0 0.0
        %1741 = vmatpush1.msra.mxu0 0.0
        %1742 = vmatprep.subr.mxu0 0.0
        %1743 = vmatpush1.msra.mxu0 0.0
        %1744 = vmatprep.subr.mxu0 0.0
        %1745 = vmatpush1.msra.mxu0 0.0
        %1746 = vmatprep.subr.mxu0 0.0
        %1747 = vmatpush1.msra.mxu0 0.0
        %1748 = vmatprep.subr.mxu0 0.0
        %1749 = vmatpush1.msra.mxu0 0.0
        %1750 = vmatprep.subr.mxu0 0.0
        %1751 = vmatpush1.msra.mxu0 0.0
        %1752 = vmatprep.subr.mxu0 0.0
        %1753 = vmatpush1.msra.mxu0 0.0
        %1754 = vmatprep.subr.mxu0 0.0
        %1755 = vmatpush1.msra.mxu0 0.0
        %1756 = vmatprep.subr.mxu0 0.0
        %1757 = vmatpush1.msra.mxu0 0.0
        %1758 = vmatprep.subr.mxu0 0.0
        %1759 = vmatpush1.msra.mxu0 0.0
        %1760 = vmatprep.subr.mxu0 0.0
        %1761 = vmatpush1.msra.mxu0 0.0
        %1762 = vmatprep.subr.mxu0 0.0
        %1763 = vmatpush1.msra.mxu0 0.0
        %1764 = vmatprep.subr.mxu0 0.0
        %1765 = vmatpush1.msra.mxu0 0.0
        %1766 = vmatprep.subr.mxu0 0.0
        %1767 = vmatpush1.msra.mxu0 0.0
        %1768 = vmatprep.subr.mxu0 0.0
        %1769 = vmatpush1.msra.mxu0 0.0
        %1770 = vmatprep.subr.mxu0 0.0
        %1771 = vmatpush1.msra.mxu0 0.0
        %1772 = vmatprep.subr.mxu0 0.0
        %1773 = vmatpush1.msra.mxu0 0.0
        %1774 = vmatprep.subr.mxu0 0.0
        %1775 = vmatpush1.msra.mxu0 0.0
        %1776 = vmatprep.subr.mxu0 0.0
        %1777 = vmatpush1.msra.mxu0 0.0
        %1778 = vmatprep.subr.mxu0 0.0
        %1779 = vmatpush1.msra.mxu0 0.0
        %1780 = vmatprep.subr.mxu0 0.0
        %1781 = vmatpush1.msra.mxu0 0.0
        %1782 = vmatprep.mubr.f32.mxu0 0.0
        %1783 = vmatmul.mubr.f32.gmra.mrb[0].mxu0 %v1713
        %v1784 = vpop.f32.mrb[0].mxu0
        %v1785 = vadd.f32 0.0, %v1784
        %v1786 = vpop.f32.mrb[0].mxu0
        %v1787 = vadd.f32 0.0, %v1786
        %1788 = vmatprep.mubr.f32.mxu0 0.0
        %1789 = vmatmul.mubr.f32.gmra.mrb[0].mxu0 %v1716
        %v1790 = vpop.f32.mrb[0].mxu0
        %v1791 = vadd.f32 0.0, %v1790
        %v1792 = vpop.f32.mrb[0].mxu0
        %v1793 = vadd.f32 0.0, %v1792
        %1794 = vdwg.mxu0
        %1795 = vmatprep.subr.mxu0 0.0
        %1796 = vmatpush1.msra.mxu0 %v1705
        %1797 = vmatprep.subr.mxu0 0.0
        %1798 = vmatpush1.msra.mxu0 0.0
        %1799 = vmatprep.subr.mxu0 0.0
        %1800 = vmatpush1.msra.mxu0 0.0
        %1801 = vmatprep.subr.mxu0 0.0
        %1802 = vmatpush1.msra.mxu0 0.0
        %1803 = vmatprep.subr.mxu0 0.0
        %1804 = vmatpush1.msra.mxu0 0.0
        %1805 = vmatprep.subr.mxu0 0.0
        %1806 = vmatpush1.msra.mxu0 0.0
        %1807 = vmatprep.subr.mxu0 0.0
        %1808 = vmatpush1.msra.mxu0 0.0
        %1809 = vmatprep.subr.mxu0 0.0
        %1810 = vmatpush1.msra.mxu0 0.0
        %1811 = vmatprep.subr.mxu0 0.0
        %1812 = vmatpush1.msra.mxu0 0.0
        %1813 = vmatprep.subr.mxu0 0.0
        %1814 = vmatpush1.msra.mxu0 0.0
        %1815 = vmatprep.subr.mxu0 0.0
        %1816 = vmatpush1.msra.mxu0 0.0
        %1817 = vmatprep.subr.mxu0 0.0
        %1818 = vmatpush1.msra.mxu0 0.0
        %1819 = vmatprep.subr.mxu0 0.0
        %1820 = vmatpush1.msra.mxu0 0.0
        %1821 = vmatprep.subr.mxu0 0.0
        %1822 = vmatpush1.msra.mxu0 0.0
        %1823 = vmatprep.subr.mxu0 0.0
        %1824 = vmatpush1.msra.mxu0 0.0
        %1825 = vmatprep.subr.mxu0 0.0
        %1826 = vmatpush1.msra.mxu0 0.0
        %1827 = vmatprep.subr.mxu0 0.0
        %1828 = vmatpush1.msra.mxu0 0.0
        %1829 = vmatprep.subr.mxu0 0.0
        %1830 = vmatpush1.msra.mxu0 0.0
        %1831 = vmatprep.subr.mxu0 0.0
        %1832 = vmatpush1.msra.mxu0 0.0
        %1833 = vmatprep.subr.mxu0 0.0
        %1834 = vmatpush1.msra.mxu0 0.0
        %1835 = vmatprep.subr.mxu0 0.0
        %1836 = vmatpush1.msra.mxu0 0.0
        %1837 = vmatprep.subr.mxu0 0.0
        %1838 = vmatpush1.msra.mxu0 0.0
        %1839 = vmatprep.subr.mxu0 0.0
        %1840 = vmatpush1.msra.mxu0 0.0
        %1841 = vmatprep.subr.mxu0 0.0
        %1842 = vmatpush1.msra.mxu0 0.0
        %1843 = vmatprep.subr.mxu0 0.0
        %1844 = vmatpush1.msra.mxu0 0.0
        %1845 = vmatprep.subr.mxu0 0.0
        %1846 = vmatpush1.msra.mxu0 0.0
        %1847 = vmatprep.subr.mxu0 0.0
        %1848 = vmatpush1.msra.mxu0 0.0
        %1849 = vmatprep.subr.mxu0 0.0
        %1850 = vmatpush1.msra.mxu0 0.0
        %1851 = vmatprep.subr.mxu0 0.0
        %1852 = vmatpush1.msra.mxu0 0.0
        %1853 = vmatprep.subr.mxu0 0.0
        %1854 = vmatpush1.msra.mxu0 0.0
        %1855 = vmatprep.subr.mxu0 0.0
        %1856 = vmatpush1.msra.mxu0 0.0
        %1857 = vmatprep.subr.mxu0 0.0
        %1858 = vmatpush1.msra.mxu0 0.0
        %1859 = vmatprep.mubr.f32.mxu0 0.0
        %1860 = vmatmul.mubr.f32.gmra.mrb[0].mxu0 %v1713
        %v1861 = vpop.f32.mrb[0].mxu0
        %v1862 = vadd.f32 0.0, %v1861
        %v1863 = vpop.f32.mrb[0].mxu0
        %1864 = vmatprep.mubr.f32.mxu0 0.0
        %1865 = vmatmul.mubr.f32.gmra.mrb[0].mxu0 %v1716
        %v1866 = vpop.f32.mrb[0].mxu0
        %v1867 = vadd.f32 0.0, %v1866
        %v1868 = vpop.f32.mrb[0].mxu0
        %1869 = vdwg.mxu0
        %v1870 = vadd.f32 %v1691, %v1785
        %v1871 = vadd.f32 %v1692, %v1787
        %v1872 = vadd.f32 %v1693, %v1862
        %v1873 = vadd.f32 %v1694, %v1791
        %v1874 = vadd.f32 %v1695, %v1793
        %v1875 = vadd.f32 %v1696, %v1867
        %s1876 = scalar_lea.vmem %s4, 128
        %v1877 = vld [vmem:[%s1876] sm:$0xff]
        %v1878 = vld [vmem:[%s1876 + $0x8] sm:$0xff]
        %1879 = vrot.lane.b32.xlu0 %v439, 109
        %v1880 = vpop.permute.xlu0 %1879
        %1881 = vrot.lane.b32.xlu0 %v440, 109
        %v1882 = vpop.permute.xlu0 %1881
        %1883 = vrot.lane.b32.xlu0 %v441, 109
        %v1884 = vpop.permute.xlu0 %1883
        %vm1885 = vcmask 891904
        %v1886 = vsel %vm1885, %v1880, %v1882
        %v1887 = vsel %vm1885, %v1882, %v1884
        %v1892 = vsel %vm461, %v1877, 0
        %v1895 = vsel %vm461, %v1878, 0
        %1897 = vmatprep.subr.mxu0 %v1887
        %1898 = vmatpush1.msra.mxu0 %v1886
        %1899 = vmatprep.subr.mxu0 0.0
        %1900 = vmatpush1.msra.mxu0 0.0
        %1901 = vmatprep.subr.mxu0 0.0
        %1902 = vmatpush1.msra.mxu0 0.0
        %1903 = vmatprep.subr.mxu0 0.0
        %1904 = vmatpush1.msra.mxu0 0.0
        %1905 = vmatprep.subr.mxu0 0.0
        %1906 = vmatpush1.msra.mxu0 0.0
        %1907 = vmatprep.subr.mxu0 0.0
        %1908 = vmatpush1.msra.mxu0 0.0
        %1909 = vmatprep.subr.mxu0 0.0
        %1910 = vmatpush1.msra.mxu0 0.0
        %1911 = vmatprep.subr.mxu0 0.0
        %1912 = vmatpush1.msra.mxu0 0.0
        %1913 = vmatprep.subr.mxu0 0.0
        %1914 = vmatpush1.msra.mxu0 0.0
        %1915 = vmatprep.subr.mxu0 0.0
        %1916 = vmatpush1.msra.mxu0 0.0
        %1917 = vmatprep.subr.mxu0 0.0
        %1918 = vmatpush1.msra.mxu0 0.0
        %1919 = vmatprep.subr.mxu0 0.0
        %1920 = vmatpush1.msra.mxu0 0.0
        %1921 = vmatprep.subr.mxu0 0.0
        %1922 = vmatpush1.msra.mxu0 0.0
        %1923 = vmatprep.subr.mxu0 0.0
        %1924 = vmatpush1.msra.mxu0 0.0
        %1925 = vmatprep.subr.mxu0 0.0
        %1926 = vmatpush1.msra.mxu0 0.0
        %1927 = vmatprep.subr.mxu0 0.0
        %1928 = vmatpush1.msra.mxu0 0.0
        %1929 = vmatprep.subr.mxu0 0.0
        %1930 = vmatpush1.msra.mxu0 0.0
        %1931 = vmatprep.subr.mxu0 0.0
        %1932 = vmatpush1.msra.mxu0 0.0
        %1933 = vmatprep.subr.mxu0 0.0
        %1934 = vmatpush1.msra.mxu0 0.0
        %1935 = vmatprep.subr.mxu0 0.0
        %1936 = vmatpush1.msra.mxu0 0.0
        %1937 = vmatprep.subr.mxu0 0.0
        %1938 = vmatpush1.msra.mxu0 0.0
        %1939 = vmatprep.subr.mxu0 0.0
        %1940 = vmatpush1.msra.mxu0 0.0
        %1941 = vmatprep.subr.mxu0 0.0
        %1942 = vmatpush1.msra.mxu0 0.0
        %1943 = vmatprep.subr.mxu0 0.0
        %1944 = vmatpush1.msra.mxu0 0.0
        %1945 = vmatprep.subr.mxu0 0.0
        %1946 = vmatpush1.msra.mxu0 0.0
        %1947 = vmatprep.subr.mxu0 0.0
        %1948 = vmatpush1.msra.mxu0 0.0
        %1949 = vmatprep.subr.mxu0 0.0
        %1950 = vmatpush1.msra.mxu0 0.0
        %1951 = vmatprep.subr.mxu0 0.0
        %1952 = vmatpush1.msra.mxu0 0.0
        %1953 = vmatprep.subr.mxu0 0.0
        %1954 = vmatpush1.msra.mxu0 0.0
        %1955 = vmatprep.subr.mxu0 0.0
        %1956 = vmatpush1.msra.mxu0 0.0
        %1957 = vmatprep.subr.mxu0 0.0
        %1958 = vmatpush1.msra.mxu0 0.0
        %1959 = vmatprep.subr.mxu0 0.0
        %1960 = vmatpush1.msra.mxu0 0.0
        %1961 = vmatprep.mubr.f32.mxu0 0.0
        %1962 = vmatmul.mubr.f32.gmra.mrb[0].mxu0 %v1892
        %v1963 = vpop.f32.mrb[0].mxu0
        %v1964 = vadd.f32 0.0, %v1963
        %v1965 = vpop.f32.mrb[0].mxu0
        %v1966 = vadd.f32 0.0, %v1965
        %1967 = vmatprep.mubr.f32.mxu0 0.0
        %1968 = vmatmul.mubr.f32.gmra.mrb[0].mxu0 %v1895
        %v1969 = vpop.f32.mrb[0].mxu0
        %v1970 = vadd.f32 0.0, %v1969
        %v1971 = vpop.f32.mrb[0].mxu0
        %v1972 = vadd.f32 0.0, %v1971
        %1973 = vdwg.mxu0
        %1974 = vmatprep.subr.mxu0 0.0
        %1975 = vmatpush1.msra.mxu0 %v1884
        %1976 = vmatprep.subr.mxu0 0.0
        %1977 = vmatpush1.msra.mxu0 0.0
        %1978 = vmatprep.subr.mxu0 0.0
        %1979 = vmatpush1.msra.mxu0 0.0
        %1980 = vmatprep.subr.mxu0 0.0
        %1981 = vmatpush1.msra.mxu0 0.0
        %1982 = vmatprep.subr.mxu0 0.0
        %1983 = vmatpush1.msra.mxu0 0.0
        %1984 = vmatprep.subr.mxu0 0.0
        %1985 = vmatpush1.msra.mxu0 0.0
        %1986 = vmatprep.subr.mxu0 0.0
        %1987 = vmatpush1.msra.mxu0 0.0
        %1988 = vmatprep.subr.mxu0 0.0
        %1989 = vmatpush1.msra.mxu0 0.0
        %1990 = vmatprep.subr.mxu0 0.0
        %1991 = vmatpush1.msra.mxu0 0.0
        %1992 = vmatprep.subr.mxu0 0.0
        %1993 = vmatpush1.msra.mxu0 0.0
        %1994 = vmatprep.subr.mxu0 0.0
        %1995 = vmatpush1.msra.mxu0 0.0
        %1996 = vmatprep.subr.mxu0 0.0
        %1997 = vmatpush1.msra.mxu0 0.0
        %1998 = vmatprep.subr.mxu0 0.0
        %1999 = vmatpush1.msra.mxu0 0.0
        %2000 = vmatprep.subr.mxu0 0.0
        %2001 = vmatpush1.msra.mxu0 0.0
        %2002 = vmatprep.subr.mxu0 0.0
        %2003 = vmatpush1.msra.mxu0 0.0
        %2004 = vmatprep.subr.mxu0 0.0
        %2005 = vmatpush1.msra.mxu0 0.0
        %2006 = vmatprep.subr.mxu0 0.0
        %2007 = vmatpush1.msra.mxu0 0.0
        %2008 = vmatprep.subr.mxu0 0.0
        %2009 = vmatpush1.msra.mxu0 0.0
        %2010 = vmatprep.subr.mxu0 0.0
        %2011 = vmatpush1.msra.mxu0 0.0
        %2012 = vmatprep.subr.mxu0 0.0
        %2013 = vmatpush1.msra.mxu0 0.0
        %2014 = vmatprep.subr.mxu0 0.0
        %2015 = vmatpush1.msra.mxu0 0.0
        %2016 = vmatprep.subr.mxu0 0.0
        %2017 = vmatpush1.msra.mxu0 0.0
        %2018 = vmatprep.subr.mxu0 0.0
        %2019 = vmatpush1.msra.mxu0 0.0
        %2020 = vmatprep.subr.mxu0 0.0
        %2021 = vmatpush1.msra.mxu0 0.0
        %2022 = vmatprep.subr.mxu0 0.0
        %2023 = vmatpush1.msra.mxu0 0.0
        %2024 = vmatprep.subr.mxu0 0.0
        %2025 = vmatpush1.msra.mxu0 0.0
        %2026 = vmatprep.subr.mxu0 0.0
        %2027 = vmatpush1.msra.mxu0 0.0
        %2028 = vmatprep.subr.mxu0 0.0
        %2029 = vmatpush1.msra.mxu0 0.0
        %2030 = vmatprep.subr.mxu0 0.0
        %2031 = vmatpush1.msra.mxu0 0.0
        %2032 = vmatprep.subr.mxu0 0.0
        %2033 = vmatpush1.msra.mxu0 0.0
        %2034 = vmatprep.subr.mxu0 0.0
        %2035 = vmatpush1.msra.mxu0 0.0
        %2036 = vmatprep.subr.mxu0 0.0
        %2037 = vmatpush1.msra.mxu0 0.0
        %2038 = vmatprep.mubr.f32.mxu0 0.0
        %2039 = vmatmul.mubr.f32.gmra.mrb[0].mxu0 %v1892
        %v2040 = vpop.f32.mrb[0].mxu0
        %v2041 = vadd.f32 0.0, %v2040
        %v2042 = vpop.f32.mrb[0].mxu0
        %2043 = vmatprep.mubr.f32.mxu0 0.0
        %2044 = vmatmul.mubr.f32.gmra.mrb[0].mxu0 %v1895
        %v2045 = vpop.f32.mrb[0].mxu0
        %v2046 = vadd.f32 0.0, %v2045
        %v2047 = vpop.f32.mrb[0].mxu0
        %2048 = vdwg.mxu0
        %v2049 = vadd.f32 %v1870, %v1964
        %v2050 = vadd.f32 %v1871, %v1966
        %v2051 = vadd.f32 %v1872, %v2041
        %v2052 = vadd.f32 %v1873, %v1970
        %v2053 = vadd.f32 %v1874, %v1972
        %v2054 = vadd.f32 %v1875, %v2046
        %v2055 = vmul.f32 %v2049, %v403
        %v2056 = vmul.f32 %v2050, %v407
        %v2057 = vmul.f32 %v2051, %v411
        %v2058 = vmul.f32 %v2052, %v403
        %v2059 = vmul.f32 %v2053, %v407
        %v2060 = vmul.f32 %v2054, %v411
        %2061 = vst [vmem:[%s374] sm:$0xff] %v2055
        %2062 = vst [vmem:[%s374 + $0x8] sm:$0xff] %v2056
        %2063 = vst.msk [vmem:[%s374 + $0x10] sm:$0xff] %vm420, %v2057
        %2064 = vst [vmem:[%s374 + $0x18] sm:$0xf] %v2058
        %2065 = vst [vmem:[%s374 + $0x20] sm:$0xf] %v2059
        %vm2066 = vcmask 551936
        %2067 = vst.msk [vmem:[%s374 + $0x28] sm:$0xf] %vm2066, %v2060
        %vm2068 = vcmask 1045504
        %v2069 = vsel %vm2068, %v2055, 0.0
        %v2070 = vsel %vm2068, %v2056, 0.0
        %v2071 = vadd.f32 %v2069, %v2070
        %vm2072 = vcmask 553984
        %v2073 = vsel %vm2072, %v2057, 0.0
        %v2074 = vadd.f32 %v2071, %v2073
        %2075 = vadd.xlane.f32.xlu0 %v2074
        %v2076 = vpop.xlane.xlu0 %2075
        %v2077 = vmul.f32 %v2076, 0.00390625
        %v2078 = vsub.f32 %v2055, %v2077
        %v2079 = vsub.f32 %v2056, %v2077
        %v2080 = vsub.f32 %v2057, %v2077
        %v2081 = vmul.f32 %v2078, %v403
        %v2082 = vmul.f32 %v2079, %v407
        %v2083 = vmul.f32 %v2080, %v411
        %v2084 = vmul.f32 %v2081, %v2081
        %v2085 = vmul.f32 %v2082, %v2082
        %v2086 = vmul.f32 %v2083, %v2083
        %v2087 = vsel %vm2068, %v2084, 0.0
        %v2088 = vsel %vm2068, %v2085, 0.0
        %v2089 = vadd.f32 %v2087, %v2088
        %v2090 = vsel %vm2072, %v2086, 0.0
        %v2091 = vadd.f32 %v2089, %v2090
        %2092 = vadd.xlane.f32.xlu0 %v2091
        %v2093 = vpop.xlane.xlu0 %2092
        %s2094 = scalar_lea.vmem [#allocation4], 8
        %v2095 = vld [vmem:[%s2094] sm:$0x3f]
        %v2096 = vsub.f32 %v2077, %v2095
        %s2097 = sadd.f32 %s264, 1.0
        %v2098 = vstv %s2097
        %v2099 = vrcp.pop %v2098
        %s2100 = vtos %v2099
        %v2101 = vstv %s2100
        %v2102 = vmul.f32 %v2096, %v2101
        %v2103 = vadd.f32 %v2095, %v2102
        %vm2104 = vcmask 5120
        %2105 = vst.msk [vmem:[%s2094] sm:$0x3f] %vm2104, %v2103
        %s2106 = scalar_lea.vmem [#allocation5], 8
        %v2107 = vld [vmem:[%s2106] sm:$0x3f]
        %v2108 = vadd.f32 %v2107, %v2093
        %v2109 = vmul.f32 %v2096, %v2096
        %s2110 = smul.f32 %s264, 256.0
        %s2111 = smul.f32 %s2110, %s2100
        %v2112 = vstv %s2111
        %v2113 = vmul.f32 %v2109, %v2112
        %v2114 = vadd.f32 %v2108, %v2113
        %2115 = vst.msk [vmem:[%s2106] sm:$0x3f] %vm2104, %v2114
      $region56: #{_lambda_.2} parent=43 // pred_fallthru
        _
      %p2116 = scmp.eq.s32.totalorder %s21, 2
      // Predicated region
      $region61: #{_lambda_.2} parent=43 // pred_check
        %p2117 = pneg %p2116
      $region62: #{_lambda_.2} parent=43 // pred_check_branch
        %2119 = sbr.rel (%p2117) target = $region64
      $region63: #{_lambda_.2} parent=43 // pred_region
        %p2120 = scmp.eq.s32.totalorder %s22, 0
        // Predicated region
        $region65: #{_lambda_.2} parent=63 // pred_check
          %p2121 = pneg %p2120
        $region66: #{_lambda_.2} parent=63 // pred_check_branch
          %2123 = sbr.rel (%p2121) target = $region68
        $region67: #{_lambda_.2} parent=63 // pred_region
          %s2124 = scalar_lea.vmem [#allocation4], 8
          %v2125 = vld [vmem:[%s2124] sm:$0xff]
          %s2126 = scalar_lea.vmem [#allocation5], 8
          %v2127 = vld [vmem:[%s2126] sm:$0xff]
          %v2128 = vmul.f32 %v2127, 0.001953125
          %v2129 = vmax.f32 %v2128, 0.0
          %s2130 = scalar_lea.vmem %s2, 8
          %v2131 = vld [vmem:[%s2130] sm:$0xff]
          %v2132 = vadd.f32 %v2129, 1e-12
          %v2133 = vrsqrt.pop %v2132
          %v2134 = vmul.f32 %v2131, %v2133
          %vm2135 = vcmask 7168
          %2136 = vst.msk [vmem:[#allocation6] sm:$0xff] %vm2135, %v2134
          %s2137 = scalar_lea.vmem %s3, 8
          %v2138 = vld [vmem:[%s2137] sm:$0xff]
          %v2139 = vmul.f32 %v2125, %v2134
          %v2140 = vsub.f32 %v2138, %v2139
          %2141 = vst.msk [vmem:[#allocation7] sm:$0xff] %vm2135, %v2140
        $region68: #{_lambda_.2} parent=63 // pred_fallthru
          _
        %s2142 = smul.u32 %s22, 6
        %s2143 = smul.addr %s2142, 8
        %s2144 = scalar_lea.vmem [#allocation2], %s2143
        %v2145 = vld [vmem:[%s2144] sm:$0xff]
        %v2146 = vld [vmem:[%s2144 + $0x8] sm:$0xff]
        %v2147 = vld [vmem:[%s2144 + $0x10] sm:$0xff]
        %v2148 = vld [vmem:[#allocation6] sm:$0xff]
        %2150 = vset.pattern.permute.xlu0 0
        %2151 = vperm.xlu0 %2150, %v2148
        %v2152 = vpop.permute.xlu0 %2151
        %v2154 = vmul.f32 %v2145, %v2152
        %v2155 = vmul.f32 %v2146, %v2152
        %v2156 = vmul.f32 %v2147, %v2152
        %v2157 = vld [vmem:[#allocation7] sm:$0xff]
        %2159 = vset.pattern.permute.xlu0 0
        %2160 = vperm.xlu0 %2159, %v2157
        %v2161 = vpop.permute.xlu0 %2160
        %v2163 = vadd.f32 %v2154, %v2161
        %v2164 = vadd.f32 %v2155, %v2161
        %v2165 = vadd.f32 %v2156, %v2161
        %v2166 = vmax.f32 %v2163, 0.0
        %v2167 = vmax.f32 %v2164, 0.0
        %v2168 = vmax.f32 %v2165, 0.0
        %v2170 = vlaneseq
        %v2171 = vshrl.u32 %v2170, 7
        %v2172 = vsub.s32 0, %v2171
        %v2173 = vrot.slane %v265, %v2172
        %v2174 = vlaneseq
        %v2175 = vshrl.u32 %v2174, 7
        %v2176 = vsub.s32 1, %v2175
        %v2177 = vrot.slane %v265, %v2176
        %v2178 = vlaneseq
        %v2179 = vshrl.u32 %v2178, 7
        %v2180 = vsub.s32 2, %v2179
        %v2181 = vrot.slane %v265, %v2180
        %v2185 = vmul.f32 %v2166, %v2173
        %v2186 = vmul.f32 %v2167, %v2177
        %v2187 = vmul.f32 %v2168, %v2181
        %2188 = vst [vmem:[#allocation3 + $0x8] sm:$0xff] %v2185
        %2189 = vst [vmem:[#allocation3 + $0x10] sm:$0xff] %v2186
        %vm2190 = vcmask 556032
        %2191 = vst.msk [vmem:[#allocation3 + $0x18] sm:$0xff] %vm2190, %v2187
        %s2192 = scalar_lea.vmem %s5, 16
        %v2193 = vld [vmem:[%s2192] sm:$0xff]
        %2195 = vset.pattern.permute.xlu0 0
        %2196 = vperm.xlu0 %2195, %v2193
        %v2197 = vpop.permute.xlu0 %2196
        %v2199 = vadd.f32 %v2197, 0.0
        %s2200 = scalar_lea.vmem %s4, 144
        %v2201 = vld [vmem:[%s2200] sm:$0xff]
        %v2202 = vld [vmem:[%s2200 + $0x8] sm:$0xff]
        %v2203 = vld [vmem:[#allocation3] sm:$0xff]
        %v2204 = vld [vmem:[#allocation3 + $0x8] sm:$0xff]
        %v2205 = vld [vmem:[#allocation3 + $0x10] sm:$0xff]
        %v2206 = vld [vmem:[#allocation3 + $0x18] sm:$0xff]
        %2211 = vrot.lane.b32.xlu0 %v2203, 19
        %v2212 = vpop.permute.xlu0 %2211
        %2213 = vrot.lane.b32.xlu0 %v2204, 19
        %v2214 = vpop.permute.xlu0 %2213
        %2215 = vrot.lane.b32.xlu0 %v2205, 19
        %v2216 = vpop.permute.xlu0 %2215
        %2217 = vrot.lane.b32.xlu0 %v2206, 19
        %v2218 = vpop.permute.xlu0 %2217
        %vm2219 = vcmask 154624
        %v2220 = vsel %vm2219, %v2212, %v2214
        %v2221 = vsel %vm2219, %v2214, %v2216
        %v2222 = vsel %vm2219, %v2216, %v2218
        %vm2226 = vcmask 64512
        %v2228 = vsel %vm2226, %v2201, 0
        %v2231 = vsel %vm2226, %v2202, 0
        %2233 = vmatprep.subr.mxu0 %v2221
        %2234 = vmatpush1.msra.mxu0 %v2220
        %2235 = vmatprep.subr.mxu0 0.0
        %2236 = vmatpush1.msra.mxu0 0.0
        %2237 = vmatprep.subr.mxu0 0.0
        %2238 = vmatpush1.msra.mxu0 0.0
        %2239 = vmatprep.subr.mxu0 0.0
        %2240 = vmatpush1.msra.mxu0 0.0
        %2241 = vmatprep.subr.mxu0 0.0
        %2242 = vmatpush1.msra.mxu0 0.0
        %2243 = vmatprep.subr.mxu0 0.0
        %2244 = vmatpush1.msra.mxu0 0.0
        %2245 = vmatprep.subr.mxu0 0.0
        %2246 = vmatpush1.msra.mxu0 0.0
        %2247 = vmatprep.subr.mxu0 0.0
        %2248 = vmatpush1.msra.mxu0 0.0
        %2249 = vmatprep.subr.mxu0 0.0
        %2250 = vmatpush1.msra.mxu0 0.0
        %2251 = vmatprep.subr.mxu0 0.0
        %2252 = vmatpush1.msra.mxu0 0.0
        %2253 = vmatprep.subr.mxu0 0.0
        %2254 = vmatpush1.msra.mxu0 0.0
        %2255 = vmatprep.subr.mxu0 0.0
        %2256 = vmatpush1.msra.mxu0 0.0
        %2257 = vmatprep.subr.mxu0 0.0
        %2258 = vmatpush1.msra.mxu0 0.0
        %2259 = vmatprep.subr.mxu0 0.0
        %2260 = vmatpush1.msra.mxu0 0.0
        %2261 = vmatprep.subr.mxu0 0.0
        %2262 = vmatpush1.msra.mxu0 0.0
        %2263 = vmatprep.subr.mxu0 0.0
        %2264 = vmatpush1.msra.mxu0 0.0
        %2265 = vmatprep.subr.mxu0 0.0
        %2266 = vmatpush1.msra.mxu0 0.0
        %2267 = vmatprep.subr.mxu0 0.0
        %2268 = vmatpush1.msra.mxu0 0.0
        %2269 = vmatprep.subr.mxu0 0.0
        %2270 = vmatpush1.msra.mxu0 0.0
        %2271 = vmatprep.subr.mxu0 0.0
        %2272 = vmatpush1.msra.mxu0 0.0
        %2273 = vmatprep.subr.mxu0 0.0
        %2274 = vmatpush1.msra.mxu0 0.0
        %2275 = vmatprep.subr.mxu0 0.0
        %2276 = vmatpush1.msra.mxu0 0.0
        %2277 = vmatprep.subr.mxu0 0.0
        %2278 = vmatpush1.msra.mxu0 0.0
        %2279 = vmatprep.subr.mxu0 0.0
        %2280 = vmatpush1.msra.mxu0 0.0
        %2281 = vmatprep.subr.mxu0 0.0
        %2282 = vmatpush1.msra.mxu0 0.0
        %2283 = vmatprep.subr.mxu0 0.0
        %2284 = vmatpush1.msra.mxu0 0.0
        %2285 = vmatprep.subr.mxu0 0.0
        %2286 = vmatpush1.msra.mxu0 0.0
        %2287 = vmatprep.subr.mxu0 0.0
        %2288 = vmatpush1.msra.mxu0 0.0
        %2289 = vmatprep.subr.mxu0 0.0
        %2290 = vmatpush1.msra.mxu0 0.0
        %2291 = vmatprep.subr.mxu0 0.0
        %2292 = vmatpush1.msra.mxu0 0.0
        %2293 = vmatprep.subr.mxu0 0.0
        %2294 = vmatpush1.msra.mxu0 0.0
        %2295 = vmatprep.subr.mxu0 0.0
        %2296 = vmatpush1.msra.mxu0 0.0
        %2297 = vmatprep.mubr.f32.mxu0 0.0
        %2298 = vmatmul.mubr.f32.gmra.mrb[0].mxu0 %v2228
        %v2299 = vpop.f32.mrb[0].mxu0
        %v2300 = vadd.f32 0.0, %v2299
        %v2301 = vpop.f32.mrb[0].mxu0
        %v2302 = vadd.f32 0.0, %v2301
        %2303 = vmatprep.mubr.f32.mxu0 0.0
        %2304 = vmatmul.mubr.f32.gmra.mrb[0].mxu0 %v2231
        %v2305 = vpop.f32.mrb[0].mxu0
        %v2306 = vpop.f32.mrb[0].mxu0
        %2307 = vdwg.mxu0
        %2308 = vmatprep.subr.mxu0 0.0
        %2309 = vmatpush1.msra.mxu0 %v2222
        %2310 = vmatprep.subr.mxu0 0.0
        %2311 = vmatpush1.msra.mxu0 0.0
        %2312 = vmatprep.subr.mxu0 0.0
        %2313 = vmatpush1.msra.mxu0 0.0
        %2314 = vmatprep.subr.mxu0 0.0
        %2315 = vmatpush1.msra.mxu0 0.0
        %2316 = vmatprep.subr.mxu0 0.0
        %2317 = vmatpush1.msra.mxu0 0.0
        %2318 = vmatprep.subr.mxu0 0.0
        %2319 = vmatpush1.msra.mxu0 0.0
        %2320 = vmatprep.subr.mxu0 0.0
        %2321 = vmatpush1.msra.mxu0 0.0
        %2322 = vmatprep.subr.mxu0 0.0
        %2323 = vmatpush1.msra.mxu0 0.0
        %2324 = vmatprep.subr.mxu0 0.0
        %2325 = vmatpush1.msra.mxu0 0.0
        %2326 = vmatprep.subr.mxu0 0.0
        %2327 = vmatpush1.msra.mxu0 0.0
        %2328 = vmatprep.subr.mxu0 0.0
        %2329 = vmatpush1.msra.mxu0 0.0
        %2330 = vmatprep.subr.mxu0 0.0
        %2331 = vmatpush1.msra.mxu0 0.0
        %2332 = vmatprep.subr.mxu0 0.0
        %2333 = vmatpush1.msra.mxu0 0.0
        %2334 = vmatprep.subr.mxu0 0.0
        %2335 = vmatpush1.msra.mxu0 0.0
        %2336 = vmatprep.subr.mxu0 0.0
        %2337 = vmatpush1.msra.mxu0 0.0
        %2338 = vmatprep.subr.mxu0 0.0
        %2339 = vmatpush1.msra.mxu0 0.0
        %2340 = vmatprep.subr.mxu0 0.0
        %2341 = vmatpush1.msra.mxu0 0.0
        %2342 = vmatprep.subr.mxu0 0.0
        %2343 = vmatpush1.msra.mxu0 0.0
        %2344 = vmatprep.subr.mxu0 0.0
        %2345 = vmatpush1.msra.mxu0 0.0
        %2346 = vmatprep.subr.mxu0 0.0
        %2347 = vmatpush1.msra.mxu0 0.0
        %2348 = vmatprep.subr.mxu0 0.0
        %2349 = vmatpush1.msra.mxu0 0.0
        %2350 = vmatprep.subr.mxu0 0.0
        %2351 = vmatpush1.msra.mxu0 0.0
        %2352 = vmatprep.subr.mxu0 0.0
        %2353 = vmatpush1.msra.mxu0 0.0
        %2354 = vmatprep.subr.mxu0 0.0
        %2355 = vmatpush1.msra.mxu0 0.0
        %2356 = vmatprep.subr.mxu0 0.0
        %2357 = vmatpush1.msra.mxu0 0.0
        %2358 = vmatprep.subr.mxu0 0.0
        %2359 = vmatpush1.msra.mxu0 0.0
        %2360 = vmatprep.subr.mxu0 0.0
        %2361 = vmatpush1.msra.mxu0 0.0
        %2362 = vmatprep.subr.mxu0 0.0
        %2363 = vmatpush1.msra.mxu0 0.0
        %2364 = vmatprep.subr.mxu0 0.0
        %2365 = vmatpush1.msra.mxu0 0.0
        %2366 = vmatprep.subr.mxu0 0.0
        %2367 = vmatpush1.msra.mxu0 0.0
        %2368 = vmatprep.subr.mxu0 0.0
        %2369 = vmatpush1.msra.mxu0 0.0
        %2370 = vmatprep.subr.mxu0 0.0
        %2371 = vmatpush1.msra.mxu0 0.0
        %2372 = vmatprep.mubr.f32.mxu0 0.0
        %2373 = vmatmul.mubr.f32.gmra.mrb[0].mxu0 %v2228
        %v2374 = vpop.f32.mrb[0].mxu0
        %v2375 = vadd.f32 0.0, %v2374
        %v2376 = vpop.f32.mrb[0].mxu0
        %2377 = vmatprep.mubr.f32.mxu0 0.0
        %2378 = vmatmul.mubr.f32.gmra.mrb[0].mxu0 %v2231
        %v2379 = vpop.f32.mrb[0].mxu0
        %v2380 = vpop.f32.mrb[0].mxu0
        %2381 = vdwg.mxu0
        %v2382 = vadd.f32 %v2199, %v2300
        %v2383 = vadd.f32 %v2199, %v2302
        %v2384 = vadd.f32 %v2199, %v2375
        %s2385 = scalar_lea.vmem %s4, 160
        %v2386 = vld [vmem:[%s2385] sm:$0xff]
        %v2387 = vld [vmem:[%s2385 + $0x8] sm:$0xff]
        %2388 = vrot.lane.b32.xlu0 %v2203, 18
        %v2389 = vpop.permute.xlu0 %2388
        %2390 = vrot.lane.b32.xlu0 %v2204, 18
        %v2391 = vpop.permute.xlu0 %2390
        %2392 = vrot.lane.b32.xlu0 %v2205, 18
        %v2393 = vpop.permute.xlu0 %2392
        %2394 = vrot.lane.b32.xlu0 %v2206, 18
        %v2395 = vpop.permute.xlu0 %2394
        %vm2396 = vcmask 146432
        %v2397 = vsel %vm2396, %v2389, %v2391
        %v2398 = vsel %vm2396, %v2391, %v2393
        %v2399 = vsel %vm2396, %v2393, %v2395
        %v2404 = vsel %vm2226, %v2386, 0
        %v2407 = vsel %vm2226, %v2387, 0
        %2409 = vmatprep.subr.mxu0 %v2398
        %2410 = vmatpush1.msra.mxu0 %v2397
        %2411 = vmatprep.subr.mxu0 0.0
        %2412 = vmatpush1.msra.mxu0 0.0
        %2413 = vmatprep.subr.mxu0 0.0
        %2414 = vmatpush1.msra.mxu0 0.0
        %2415 = vmatprep.subr.mxu0 0.0
        %2416 = vmatpush1.msra.mxu0 0.0
        %2417 = vmatprep.subr.mxu0 0.0
        %2418 = vmatpush1.msra.mxu0 0.0
        %2419 = vmatprep.subr.mxu0 0.0
        %2420 = vmatpush1.msra.mxu0 0.0
        %2421 = vmatprep.subr.mxu0 0.0
        %2422 = vmatpush1.msra.mxu0 0.0
        %2423 = vmatprep.subr.mxu0 0.0
        %2424 = vmatpush1.msra.mxu0 0.0
        %2425 = vmatprep.subr.mxu0 0.0
        %2426 = vmatpush1.msra.mxu0 0.0
        %2427 = vmatprep.subr.mxu0 0.0
        %2428 = vmatpush1.msra.mxu0 0.0
        %2429 = vmatprep.subr.mxu0 0.0
        %2430 = vmatpush1.msra.mxu0 0.0
        %2431 = vmatprep.subr.mxu0 0.0
        %2432 = vmatpush1.msra.mxu0 0.0
        %2433 = vmatprep.subr.mxu0 0.0
        %2434 = vmatpush1.msra.mxu0 0.0
        %2435 = vmatprep.subr.mxu0 0.0
        %2436 = vmatpush1.msra.mxu0 0.0
        %2437 = vmatprep.subr.mxu0 0.0
        %2438 = vmatpush1.msra.mxu0 0.0
        %2439 = vmatprep.subr.mxu0 0.0
        %2440 = vmatpush1.msra.mxu0 0.0
        %2441 = vmatprep.subr.mxu0 0.0
        %2442 = vmatpush1.msra.mxu0 0.0
        %2443 = vmatprep.subr.mxu0 0.0
        %2444 = vmatpush1.msra.mxu0 0.0
        %2445 = vmatprep.subr.mxu0 0.0
        %2446 = vmatpush1.msra.mxu0 0.0
        %2447 = vmatprep.subr.mxu0 0.0
        %2448 = vmatpush1.msra.mxu0 0.0
        %2449 = vmatprep.subr.mxu0 0.0
        %2450 = vmatpush1.msra.mxu0 0.0
        %2451 = vmatprep.subr.mxu0 0.0
        %2452 = vmatpush1.msra.mxu0 0.0
        %2453 = vmatprep.subr.mxu0 0.0
        %2454 = vmatpush1.msra.mxu0 0.0
        %2455 = vmatprep.subr.mxu0 0.0
        %2456 = vmatpush1.msra.mxu0 0.0
        %2457 = vmatprep.subr.mxu0 0.0
        %2458 = vmatpush1.msra.mxu0 0.0
        %2459 = vmatprep.subr.mxu0 0.0
        %2460 = vmatpush1.msra.mxu0 0.0
        %2461 = vmatprep.subr.mxu0 0.0
        %2462 = vmatpush1.msra.mxu0 0.0
        %2463 = vmatprep.subr.mxu0 0.0
        %2464 = vmatpush1.msra.mxu0 0.0
        %2465 = vmatprep.subr.mxu0 0.0
        %2466 = vmatpush1.msra.mxu0 0.0
        %2467 = vmatprep.subr.mxu0 0.0
        %2468 = vmatpush1.msra.mxu0 0.0
        %2469 = vmatprep.subr.mxu0 0.0
        %2470 = vmatpush1.msra.mxu0 0.0
        %2471 = vmatprep.subr.mxu0 0.0
        %2472 = vmatpush1.msra.mxu0 0.0
        %2473 = vmatprep.mubr.f32.mxu0 0.0
        %2474 = vmatmul.mubr.f32.gmra.mrb[0].mxu0 %v2404
        %v2475 = vpop.f32.mrb[0].mxu0
        %v2476 = vadd.f32 0.0, %v2475
        %v2477 = vpop.f32.mrb[0].mxu0
        %v2478 = vadd.f32 0.0, %v2477
        %2479 = vmatprep.mubr.f32.mxu0 0.0
        %2480 = vmatmul.mubr.f32.gmra.mrb[0].mxu0 %v2407
        %v2481 = vpop.f32.mrb[0].mxu0
        %v2482 = vpop.f32.mrb[0].mxu0
        %2483 = vdwg.mxu0
        %2484 = vmatprep.subr.mxu0 0.0
        %2485 = vmatpush1.msra.mxu0 %v2399
        %2486 = vmatprep.subr.mxu0 0.0
        %2487 = vmatpush1.msra.mxu0 0.0
        %2488 = vmatprep.subr.mxu0 0.0
        %2489 = vmatpush1.msra.mxu0 0.0
        %2490 = vmatprep.subr.mxu0 0.0
        %2491 = vmatpush1.msra.mxu0 0.0
        %2492 = vmatprep.subr.mxu0 0.0
        %2493 = vmatpush1.msra.mxu0 0.0
        %2494 = vmatprep.subr.mxu0 0.0
        %2495 = vmatpush1.msra.mxu0 0.0
        %2496 = vmatprep.subr.mxu0 0.0
        %2497 = vmatpush1.msra.mxu0 0.0
        %2498 = vmatprep.subr.mxu0 0.0
        %2499 = vmatpush1.msra.mxu0 0.0
        %2500 = vmatprep.subr.mxu0 0.0
        %2501 = vmatpush1.msra.mxu0 0.0
        %2502 = vmatprep.subr.mxu0 0.0
        %2503 = vmatpush1.msra.mxu0 0.0
        %2504 = vmatprep.subr.mxu0 0.0
        %2505 = vmatpush1.msra.mxu0 0.0
        %2506 = vmatprep.subr.mxu0 0.0
        %2507 = vmatpush1.msra.mxu0 0.0
        %2508 = vmatprep.subr.mxu0 0.0
        %2509 = vmatpush1.msra.mxu0 0.0
        %2510 = vmatprep.subr.mxu0 0.0
        %2511 = vmatpush1.msra.mxu0 0.0
        %2512 = vmatprep.subr.mxu0 0.0
        %2513 = vmatpush1.msra.mxu0 0.0
        %2514 = vmatprep.subr.mxu0 0.0
        %2515 = vmatpush1.msra.mxu0 0.0
        %2516 = vmatprep.subr.mxu0 0.0
        %2517 = vmatpush1.msra.mxu0 0.0
        %2518 = vmatprep.subr.mxu0 0.0
        %2519 = vmatpush1.msra.mxu0 0.0
        %2520 = vmatprep.subr.mxu0 0.0
        %2521 = vmatpush1.msra.mxu0 0.0
        %2522 = vmatprep.subr.mxu0 0.0
        %2523 = vmatpush1.msra.mxu0 0.0
        %2524 = vmatprep.subr.mxu0 0.0
        %2525 = vmatpush1.msra.mxu0 0.0
        %2526 = vmatprep.subr.mxu0 0.0
        %2527 = vmatpush1.msra.mxu0 0.0
        %2528 = vmatprep.subr.mxu0 0.0
        %2529 = vmatpush1.msra.mxu0 0.0
        %2530 = vmatprep.subr.mxu0 0.0
        %2531 = vmatpush1.msra.mxu0 0.0
        %2532 = vmatprep.subr.mxu0 0.0
        %2533 = vmatpush1.msra.mxu0 0.0
        %2534 = vmatprep.subr.mxu0 0.0
        %2535 = vmatpush1.msra.mxu0 0.0
        %2536 = vmatprep.subr.mxu0 0.0
        %2537 = vmatpush1.msra.mxu0 0.0
        %2538 = vmatprep.subr.mxu0 0.0
        %2539 = vmatpush1.msra.mxu0 0.0
        %2540 = vmatprep.subr.mxu0 0.0
        %2541 = vmatpush1.msra.mxu0 0.0
        %2542 = vmatprep.subr.mxu0 0.0
        %2543 = vmatpush1.msra.mxu0 0.0
        %2544 = vmatprep.subr.mxu0 0.0
        %2545 = vmatpush1.msra.mxu0 0.0
        %2546 = vmatprep.subr.mxu0 0.0
        %2547 = vmatpush1.msra.mxu0 0.0
        %2548 = vmatprep.mubr.f32.mxu0 0.0
        %2549 = vmatmul.mubr.f32.gmra.mrb[0].mxu0 %v2404
        %v2550 = vpop.f32.mrb[0].mxu0
        %v2551 = vadd.f32 0.0, %v2550
        %v2552 = vpop.f32.mrb[0].mxu0
        %2553 = vmatprep.mubr.f32.mxu0 0.0
        %2554 = vmatmul.mubr.f32.gmra.mrb[0].mxu0 %v2407
        %v2555 = vpop.f32.mrb[0].mxu0
        %v2556 = vpop.f32.mrb[0].mxu0
        %2557 = vdwg.mxu0
        %v2558 = vadd.f32 %v2382, %v2476
        %v2559 = vadd.f32 %v2383, %v2478
        %v2560 = vadd.f32 %v2384, %v2551
        %s2561 = scalar_lea.vmem %s4, 176
        %v2562 = vld [vmem:[%s2561] sm:$0xff]
        %v2563 = vld [vmem:[%s2561 + $0x8] sm:$0xff]
        %2564 = vrot.lane.b32.xlu0 %v2203, 17
        %v2565 = vpop.permute.xlu0 %2564
        %2566 = vrot.lane.b32.xlu0 %v2204, 17
        %v2567 = vpop.permute.xlu0 %2566
        %2568 = vrot.lane.b32.xlu0 %v2205, 17
        %v2569 = vpop.permute.xlu0 %2568
        %2570 = vrot.lane.b32.xlu0 %v2206, 17
        %v2571 = vpop.permute.xlu0 %2570
        %vm2572 = vcmask 138240
        %v2573 = vsel %vm2572, %v2565, %v2567
        %v2574 = vsel %vm2572, %v2567, %v2569
        %v2575 = vsel %vm2572, %v2569, %v2571
        %v2580 = vsel %vm2226, %v2562, 0
        %v2583 = vsel %vm2226, %v2563, 0
        %2585 = vmatprep.subr.mxu0 %v2574
        %2586 = vmatpush1.msra.mxu0 %v2573
        %2587 = vmatprep.subr.mxu0 0.0
        %2588 = vmatpush1.msra.mxu0 0.0
        %2589 = vmatprep.subr.mxu0 0.0
        %2590 = vmatpush1.msra.mxu0 0.0
        %2591 = vmatprep.subr.mxu0 0.0
        %2592 = vmatpush1.msra.mxu0 0.0
        %2593 = vmatprep.subr.mxu0 0.0
        %2594 = vmatpush1.msra.mxu0 0.0
        %2595 = vmatprep.subr.mxu0 0.0
        %2596 = vmatpush1.msra.mxu0 0.0
        %2597 = vmatprep.subr.mxu0 0.0
        %2598 = vmatpush1.msra.mxu0 0.0
        %2599 = vmatprep.subr.mxu0 0.0
        %2600 = vmatpush1.msra.mxu0 0.0
        %2601 = vmatprep.subr.mxu0 0.0
        %2602 = vmatpush1.msra.mxu0 0.0
        %2603 = vmatprep.subr.mxu0 0.0
        %2604 = vmatpush1.msra.mxu0 0.0
        %2605 = vmatprep.subr.mxu0 0.0
        %2606 = vmatpush1.msra.mxu0 0.0
        %2607 = vmatprep.subr.mxu0 0.0
        %2608 = vmatpush1.msra.mxu0 0.0
        %2609 = vmatprep.subr.mxu0 0.0
        %2610 = vmatpush1.msra.mxu0 0.0
        %2611 = vmatprep.subr.mxu0 0.0
        %2612 = vmatpush1.msra.mxu0 0.0
        %2613 = vmatprep.subr.mxu0 0.0
        %2614 = vmatpush1.msra.mxu0 0.0
        %2615 = vmatprep.subr.mxu0 0.0
        %2616 = vmatpush1.msra.mxu0 0.0
        %2617 = vmatprep.subr.mxu0 0.0
        %2618 = vmatpush1.msra.mxu0 0.0
        %2619 = vmatprep.subr.mxu0 0.0
        %2620 = vmatpush1.msra.mxu0 0.0
        %2621 = vmatprep.subr.mxu0 0.0
        %2622 = vmatpush1.msra.mxu0 0.0
        %2623 = vmatprep.subr.mxu0 0.0
        %2624 = vmatpush1.msra.mxu0 0.0
        %2625 = vmatprep.subr.mxu0 0.0
        %2626 = vmatpush1.msra.mxu0 0.0
        %2627 = vmatprep.subr.mxu0 0.0
        %2628 = vmatpush1.msra.mxu0 0.0
        %2629 = vmatprep.subr.mxu0 0.0
        %2630 = vmatpush1.msra.mxu0 0.0
        %2631 = vmatprep.subr.mxu0 0.0
        %2632 = vmatpush1.msra.mxu0 0.0
        %2633 = vmatprep.subr.mxu0 0.0
        %2634 = vmatpush1.msra.mxu0 0.0
        %2635 = vmatprep.subr.mxu0 0.0
        %2636 = vmatpush1.msra.mxu0 0.0
        %2637 = vmatprep.subr.mxu0 0.0
        %2638 = vmatpush1.msra.mxu0 0.0
        %2639 = vmatprep.subr.mxu0 0.0
        %2640 = vmatpush1.msra.mxu0 0.0
        %2641 = vmatprep.subr.mxu0 0.0
        %2642 = vmatpush1.msra.mxu0 0.0
        %2643 = vmatprep.subr.mxu0 0.0
        %2644 = vmatpush1.msra.mxu0 0.0
        %2645 = vmatprep.subr.mxu0 0.0
        %2646 = vmatpush1.msra.mxu0 0.0
        %2647 = vmatprep.subr.mxu0 0.0
        %2648 = vmatpush1.msra.mxu0 0.0
        %2649 = vmatprep.mubr.f32.mxu0 0.0
        %2650 = vmatmul.mubr.f32.gmra.mrb[0].mxu0 %v2580
        %v2651 = vpop.f32.mrb[0].mxu0
        %v2652 = vadd.f32 0.0, %v2651
        %v2653 = vpop.f32.mrb[0].mxu0
        %v2654 = vadd.f32 0.0, %v2653
        %2655 = vmatprep.mubr.f32.mxu0 0.0
        %2656 = vmatmul.mubr.f32.gmra.mrb[0].mxu0 %v2583
        %v2657 = vpop.f32.mrb[0].mxu0
        %v2658 = vpop.f32.mrb[0].mxu0
        %2659 = vdwg.mxu0
        %2660 = vmatprep.subr.mxu0 0.0
        %2661 = vmatpush1.msra.mxu0 %v2575
        %2662 = vmatprep.subr.mxu0 0.0
        %2663 = vmatpush1.msra.mxu0 0.0
        %2664 = vmatprep.subr.mxu0 0.0
        %2665 = vmatpush1.msra.mxu0 0.0
        %2666 = vmatprep.subr.mxu0 0.0
        %2667 = vmatpush1.msra.mxu0 0.0
        %2668 = vmatprep.subr.mxu0 0.0
        %2669 = vmatpush1.msra.mxu0 0.0
        %2670 = vmatprep.subr.mxu0 0.0
        %2671 = vmatpush1.msra.mxu0 0.0
        %2672 = vmatprep.subr.mxu0 0.0
        %2673 = vmatpush1.msra.mxu0 0.0
        %2674 = vmatprep.subr.mxu0 0.0
        %2675 = vmatpush1.msra.mxu0 0.0
        %2676 = vmatprep.subr.mxu0 0.0
        %2677 = vmatpush1.msra.mxu0 0.0
        %2678 = vmatprep.subr.mxu0 0.0
        %2679 = vmatpush1.msra.mxu0 0.0
        %2680 = vmatprep.subr.mxu0 0.0
        %2681 = vmatpush1.msra.mxu0 0.0
        %2682 = vmatprep.subr.mxu0 0.0
        %2683 = vmatpush1.msra.mxu0 0.0
        %2684 = vmatprep.subr.mxu0 0.0
        %2685 = vmatpush1.msra.mxu0 0.0
        %2686 = vmatprep.subr.mxu0 0.0
        %2687 = vmatpush1.msra.mxu0 0.0
        %2688 = vmatprep.subr.mxu0 0.0
        %2689 = vmatpush1.msra.mxu0 0.0
        %2690 = vmatprep.subr.mxu0 0.0
        %2691 = vmatpush1.msra.mxu0 0.0
        %2692 = vmatprep.subr.mxu0 0.0
        %2693 = vmatpush1.msra.mxu0 0.0
        %2694 = vmatprep.subr.mxu0 0.0
        %2695 = vmatpush1.msra.mxu0 0.0
        %2696 = vmatprep.subr.mxu0 0.0
        %2697 = vmatpush1.msra.mxu0 0.0
        %2698 = vmatprep.subr.mxu0 0.0
        %2699 = vmatpush1.msra.mxu0 0.0
        %2700 = vmatprep.subr.mxu0 0.0
        %2701 = vmatpush1.msra.mxu0 0.0
        %2702 = vmatprep.subr.mxu0 0.0
        %2703 = vmatpush1.msra.mxu0 0.0
        %2704 = vmatprep.subr.mxu0 0.0
        %2705 = vmatpush1.msra.mxu0 0.0
        %2706 = vmatprep.subr.mxu0 0.0
        %2707 = vmatpush1.msra.mxu0 0.0
        %2708 = vmatprep.subr.mxu0 0.0
        %2709 = vmatpush1.msra.mxu0 0.0
        %2710 = vmatprep.subr.mxu0 0.0
        %2711 = vmatpush1.msra.mxu0 0.0
        %2712 = vmatprep.subr.mxu0 0.0
        %2713 = vmatpush1.msra.mxu0 0.0
        %2714 = vmatprep.subr.mxu0 0.0
        %2715 = vmatpush1.msra.mxu0 0.0
        %2716 = vmatprep.subr.mxu0 0.0
        %2717 = vmatpush1.msra.mxu0 0.0
        %2718 = vmatprep.subr.mxu0 0.0
        %2719 = vmatpush1.msra.mxu0 0.0
        %2720 = vmatprep.subr.mxu0 0.0
        %2721 = vmatpush1.msra.mxu0 0.0
        %2722 = vmatprep.subr.mxu0 0.0
        %2723 = vmatpush1.msra.mxu0 0.0
        %2724 = vmatprep.mubr.f32.mxu0 0.0
        %2725 = vmatmul.mubr.f32.gmra.mrb[0].mxu0 %v2580
        %v2726 = vpop.f32.mrb[0].mxu0
        %v2727 = vadd.f32 0.0, %v2726
        %v2728 = vpop.f32.mrb[0].mxu0
        %2729 = vmatprep.mubr.f32.mxu0 0.0
        %2730 = vmatmul.mubr.f32.gmra.mrb[0].mxu0 %v2583
        %v2731 = vpop.f32.mrb[0].mxu0
        %v2732 = vpop.f32.mrb[0].mxu0
        %2733 = vdwg.mxu0
        %v2734 = vadd.f32 %v2558, %v2652
        %v2735 = vadd.f32 %v2559, %v2654
        %v2736 = vadd.f32 %v2560, %v2727
        %s2737 = scalar_lea.vmem %s4, 192
        %v2738 = vld [vmem:[%s2737] sm:$0xff]
        %v2739 = vld [vmem:[%s2737 + $0x8] sm:$0xff]
        %2740 = vrot.lane.b32.xlu0 %v2203, 1
        %v2741 = vpop.permute.xlu0 %2740
        %2742 = vrot.lane.b32.xlu0 %v2204, 1
        %v2743 = vpop.permute.xlu0 %2742
        %2744 = vrot.lane.b32.xlu0 %v2205, 1
        %v2745 = vpop.permute.xlu0 %2744
        %2746 = vrot.lane.b32.xlu0 %v2206, 1
        %v2747 = vpop.permute.xlu0 %2746
        %vm2748 = vcmask 7168
        %v2749 = vsel %vm2748, %v2741, %v2743
        %v2750 = vsel %vm2748, %v2743, %v2745
        %v2751 = vsel %vm2748, %v2745, %v2747
        %v2756 = vsel %vm2226, %v2738, 0
        %v2759 = vsel %vm2226, %v2739, 0
        %2761 = vmatprep.subr.mxu0 %v2750
        %2762 = vmatpush1.msra.mxu0 %v2749
        %2763 = vmatprep.subr.mxu0 0.0
        %2764 = vmatpush1.msra.mxu0 0.0
        %2765 = vmatprep.subr.mxu0 0.0
        %2766 = vmatpush1.msra.mxu0 0.0
        %2767 = vmatprep.subr.mxu0 0.0
        %2768 = vmatpush1.msra.mxu0 0.0
        %2769 = vmatprep.subr.mxu0 0.0
        %2770 = vmatpush1.msra.mxu0 0.0
        %2771 = vmatprep.subr.mxu0 0.0
        %2772 = vmatpush1.msra.mxu0 0.0
        %2773 = vmatprep.subr.mxu0 0.0
        %2774 = vmatpush1.msra.mxu0 0.0
        %2775 = vmatprep.subr.mxu0 0.0
        %2776 = vmatpush1.msra.mxu0 0.0
        %2777 = vmatprep.subr.mxu0 0.0
        %2778 = vmatpush1.msra.mxu0 0.0
        %2779 = vmatprep.subr.mxu0 0.0
        %2780 = vmatpush1.msra.mxu0 0.0
        %2781 = vmatprep.subr.mxu0 0.0
        %2782 = vmatpush1.msra.mxu0 0.0
        %2783 = vmatprep.subr.mxu0 0.0
        %2784 = vmatpush1.msra.mxu0 0.0
        %2785 = vmatprep.subr.mxu0 0.0
        %2786 = vmatpush1.msra.mxu0 0.0
        %2787 = vmatprep.subr.mxu0 0.0
        %2788 = vmatpush1.msra.mxu0 0.0
        %2789 = vmatprep.subr.mxu0 0.0
        %2790 = vmatpush1.msra.mxu0 0.0
        %2791 = vmatprep.subr.mxu0 0.0
        %2792 = vmatpush1.msra.mxu0 0.0
        %2793 = vmatprep.subr.mxu0 0.0
        %2794 = vmatpush1.msra.mxu0 0.0
        %2795 = vmatprep.subr.mxu0 0.0
        %2796 = vmatpush1.msra.mxu0 0.0
        %2797 = vmatprep.subr.mxu0 0.0
        %2798 = vmatpush1.msra.mxu0 0.0
        %2799 = vmatprep.subr.mxu0 0.0
        %2800 = vmatpush1.msra.mxu0 0.0
        %2801 = vmatprep.subr.mxu0 0.0
        %2802 = vmatpush1.msra.mxu0 0.0
        %2803 = vmatprep.subr.mxu0 0.0
        %2804 = vmatpush1.msra.mxu0 0.0
        %2805 = vmatprep.subr.mxu0 0.0
        %2806 = vmatpush1.msra.mxu0 0.0
        %2807 = vmatprep.subr.mxu0 0.0
        %2808 = vmatpush1.msra.mxu0 0.0
        %2809 = vmatprep.subr.mxu0 0.0
        %2810 = vmatpush1.msra.mxu0 0.0
        %2811 = vmatprep.subr.mxu0 0.0
        %2812 = vmatpush1.msra.mxu0 0.0
        %2813 = vmatprep.subr.mxu0 0.0
        %2814 = vmatpush1.msra.mxu0 0.0
        %2815 = vmatprep.subr.mxu0 0.0
        %2816 = vmatpush1.msra.mxu0 0.0
        %2817 = vmatprep.subr.mxu0 0.0
        %2818 = vmatpush1.msra.mxu0 0.0
        %2819 = vmatprep.subr.mxu0 0.0
        %2820 = vmatpush1.msra.mxu0 0.0
        %2821 = vmatprep.subr.mxu0 0.0
        %2822 = vmatpush1.msra.mxu0 0.0
        %2823 = vmatprep.subr.mxu0 0.0
        %2824 = vmatpush1.msra.mxu0 0.0
        %2825 = vmatprep.mubr.f32.mxu0 0.0
        %2826 = vmatmul.mubr.f32.gmra.mrb[0].mxu0 %v2756
        %v2827 = vpop.f32.mrb[0].mxu0
        %v2828 = vadd.f32 0.0, %v2827
        %v2829 = vpop.f32.mrb[0].mxu0
        %v2830 = vadd.f32 0.0, %v2829
        %2831 = vmatprep.mubr.f32.mxu0 0.0
        %2832 = vmatmul.mubr.f32.gmra.mrb[0].mxu0 %v2759
        %v2833 = vpop.f32.mrb[0].mxu0
        %v2834 = vpop.f32.mrb[0].mxu0
        %2835 = vdwg.mxu0
        %2836 = vmatprep.subr.mxu0 0.0
        %2837 = vmatpush1.msra.mxu0 %v2751
        %2838 = vmatprep.subr.mxu0 0.0
        %2839 = vmatpush1.msra.mxu0 0.0
        %2840 = vmatprep.subr.mxu0 0.0
        %2841 = vmatpush1.msra.mxu0 0.0
        %2842 = vmatprep.subr.mxu0 0.0
        %2843 = vmatpush1.msra.mxu0 0.0
        %2844 = vmatprep.subr.mxu0 0.0
        %2845 = vmatpush1.msra.mxu0 0.0
        %2846 = vmatprep.subr.mxu0 0.0
        %2847 = vmatpush1.msra.mxu0 0.0
        %2848 = vmatprep.subr.mxu0 0.0
        %2849 = vmatpush1.msra.mxu0 0.0
        %2850 = vmatprep.subr.mxu0 0.0
        %2851 = vmatpush1.msra.mxu0 0.0
        %2852 = vmatprep.subr.mxu0 0.0
        %2853 = vmatpush1.msra.mxu0 0.0
        %2854 = vmatprep.subr.mxu0 0.0
        %2855 = vmatpush1.msra.mxu0 0.0
        %2856 = vmatprep.subr.mxu0 0.0
        %2857 = vmatpush1.msra.mxu0 0.0
        %2858 = vmatprep.subr.mxu0 0.0
        %2859 = vmatpush1.msra.mxu0 0.0
        %2860 = vmatprep.subr.mxu0 0.0
        %2861 = vmatpush1.msra.mxu0 0.0
        %2862 = vmatprep.subr.mxu0 0.0
        %2863 = vmatpush1.msra.mxu0 0.0
        %2864 = vmatprep.subr.mxu0 0.0
        %2865 = vmatpush1.msra.mxu0 0.0
        %2866 = vmatprep.subr.mxu0 0.0
        %2867 = vmatpush1.msra.mxu0 0.0
        %2868 = vmatprep.subr.mxu0 0.0
        %2869 = vmatpush1.msra.mxu0 0.0
        %2870 = vmatprep.subr.mxu0 0.0
        %2871 = vmatpush1.msra.mxu0 0.0
        %2872 = vmatprep.subr.mxu0 0.0
        %2873 = vmatpush1.msra.mxu0 0.0
        %2874 = vmatprep.subr.mxu0 0.0
        %2875 = vmatpush1.msra.mxu0 0.0
        %2876 = vmatprep.subr.mxu0 0.0
        %2877 = vmatpush1.msra.mxu0 0.0
        %2878 = vmatprep.subr.mxu0 0.0
        %2879 = vmatpush1.msra.mxu0 0.0
        %2880 = vmatprep.subr.mxu0 0.0
        %2881 = vmatpush1.msra.mxu0 0.0
        %2882 = vmatprep.subr.mxu0 0.0
        %2883 = vmatpush1.msra.mxu0 0.0
        %2884 = vmatprep.subr.mxu0 0.0
        %2885 = vmatpush1.msra.mxu0 0.0
        %2886 = vmatprep.subr.mxu0 0.0
        %2887 = vmatpush1.msra.mxu0 0.0
        %2888 = vmatprep.subr.mxu0 0.0
        %2889 = vmatpush1.msra.mxu0 0.0
        %2890 = vmatprep.subr.mxu0 0.0
        %2891 = vmatpush1.msra.mxu0 0.0
        %2892 = vmatprep.subr.mxu0 0.0
        %2893 = vmatpush1.msra.mxu0 0.0
        %2894 = vmatprep.subr.mxu0 0.0
        %2895 = vmatpush1.msra.mxu0 0.0
        %2896 = vmatprep.subr.mxu0 0.0
        %2897 = vmatpush1.msra.mxu0 0.0
        %2898 = vmatprep.subr.mxu0 0.0
        %2899 = vmatpush1.msra.mxu0 0.0
        %2900 = vmatprep.mubr.f32.mxu0 0.0
        %2901 = vmatmul.mubr.f32.gmra.mrb[0].mxu0 %v2756
        %v2902 = vpop.f32.mrb[0].mxu0
        %v2903 = vadd.f32 0.0, %v2902
        %v2904 = vpop.f32.mrb[0].mxu0
        %2905 = vmatprep.mubr.f32.mxu0 0.0
        %2906 = vmatmul.mubr.f32.gmra.mrb[0].mxu0 %v2759
        %v2907 = vpop.f32.mrb[0].mxu0
        %v2908 = vpop.f32.mrb[0].mxu0
        %2909 = vdwg.mxu0
        %v2910 = vadd.f32 %v2734, %v2828
        %v2911 = vadd.f32 %v2735, %v2830
        %v2912 = vadd.f32 %v2736, %v2903
        %s2913 = scalar_lea.vmem %s4, 208
        %v2914 = vld [vmem:[%s2913] sm:$0xff]
        %v2915 = vld [vmem:[%s2913 + $0x8] sm:$0xff]
        %v2917 = vsel %vm2226, %v2914, 0
        %v2920 = vsel %vm2226, %v2915, 0
        %2922 = vmatprep.subr.mxu0 %v2205
        %2923 = vmatpush1.msra.mxu0 %v2204
        %2924 = vmatprep.subr.mxu0 0.0
        %2925 = vmatpush1.msra.mxu0 0.0
        %2926 = vmatprep.subr.mxu0 0.0
        %2927 = vmatpush1.msra.mxu0 0.0
        %2928 = vmatprep.subr.mxu0 0.0
        %2929 = vmatpush1.msra.mxu0 0.0
        %2930 = vmatprep.subr.mxu0 0.0
        %2931 = vmatpush1.msra.mxu0 0.0
        %2932 = vmatprep.subr.mxu0 0.0
        %2933 = vmatpush1.msra.mxu0 0.0
        %2934 = vmatprep.subr.mxu0 0.0
        %2935 = vmatpush1.msra.mxu0 0.0
        %2936 = vmatprep.subr.mxu0 0.0
        %2937 = vmatpush1.msra.mxu0 0.0
        %2938 = vmatprep.subr.mxu0 0.0
        %2939 = vmatpush1.msra.mxu0 0.0
        %2940 = vmatprep.subr.mxu0 0.0
        %2941 = vmatpush1.msra.mxu0 0.0
        %2942 = vmatprep.subr.mxu0 0.0
        %2943 = vmatpush1.msra.mxu0 0.0
        %2944 = vmatprep.subr.mxu0 0.0
        %2945 = vmatpush1.msra.mxu0 0.0
        %2946 = vmatprep.subr.mxu0 0.0
        %2947 = vmatpush1.msra.mxu0 0.0
        %2948 = vmatprep.subr.mxu0 0.0
        %2949 = vmatpush1.msra.mxu0 0.0
        %2950 = vmatprep.subr.mxu0 0.0
        %2951 = vmatpush1.msra.mxu0 0.0
        %2952 = vmatprep.subr.mxu0 0.0
        %2953 = vmatpush1.msra.mxu0 0.0
        %2954 = vmatprep.subr.mxu0 0.0
        %2955 = vmatpush1.msra.mxu0 0.0
        %2956 = vmatprep.subr.mxu0 0.0
        %2957 = vmatpush1.msra.mxu0 0.0
        %2958 = vmatprep.subr.mxu0 0.0
        %2959 = vmatpush1.msra.mxu0 0.0
        %2960 = vmatprep.subr.mxu0 0.0
        %2961 = vmatpush1.msra.mxu0 0.0
        %2962 = vmatprep.subr.mxu0 0.0
        %2963 = vmatpush1.msra.mxu0 0.0
        %2964 = vmatprep.subr.mxu0 0.0
        %2965 = vmatpush1.msra.mxu0 0.0
        %2966 = vmatprep.subr.mxu0 0.0
        %2967 = vmatpush1.msra.mxu0 0.0
        %2968 = vmatprep.subr.mxu0 0.0
        %2969 = vmatpush1.msra.mxu0 0.0
        %2970 = vmatprep.subr.mxu0 0.0
        %2971 = vmatpush1.msra.mxu0 0.0
        %2972 = vmatprep.subr.mxu0 0.0
        %2973 = vmatpush1.msra.mxu0 0.0
        %2974 = vmatprep.subr.mxu0 0.0
        %2975 = vmatpush1.msra.mxu0 0.0
        %2976 = vmatprep.subr.mxu0 0.0
        %2977 = vmatpush1.msra.mxu0 0.0
        %2978 = vmatprep.subr.mxu0 0.0
        %2979 = vmatpush1.msra.mxu0 0.0
        %2980 = vmatprep.subr.mxu0 0.0
        %2981 = vmatpush1.msra.mxu0 0.0
        %2982 = vmatprep.subr.mxu0 0.0
        %2983 = vmatpush1.msra.mxu0 0.0
        %2984 = vmatprep.subr.mxu0 0.0
        %2985 = vmatpush1.msra.mxu0 0.0
        %2986 = vmatprep.mubr.f32.mxu0 0.0
        %2987 = vmatmul.mubr.f32.gmra.mrb[0].mxu0 %v2917
        %v2988 = vpop.f32.mrb[0].mxu0
        %v2989 = vadd.f32 0.0, %v2988
        %v2990 = vpop.f32.mrb[0].mxu0
        %v2991 = vadd.f32 0.0, %v2990
        %2992 = vmatprep.mubr.f32.mxu0 0.0
        %2993 = vmatmul.mubr.f32.gmra.mrb[0].mxu0 %v2920
        %v2994 = vpop.f32.mrb[0].mxu0
        %v2995 = vpop.f32.mrb[0].mxu0
        %2996 = vdwg.mxu0
        %2997 = vmatprep.subr.mxu0 0.0
        %2998 = vmatpush1.msra.mxu0 %v2206
        %2999 = vmatprep.subr.mxu0 0.0
        %3000 = vmatpush1.msra.mxu0 0.0
        %3001 = vmatprep.subr.mxu0 0.0
        %3002 = vmatpush1.msra.mxu0 0.0
        %3003 = vmatprep.subr.mxu0 0.0
        %3004 = vmatpush1.msra.mxu0 0.0
        %3005 = vmatprep.subr.mxu0 0.0
        %3006 = vmatpush1.msra.mxu0 0.0
        %3007 = vmatprep.subr.mxu0 0.0
        %3008 = vmatpush1.msra.mxu0 0.0
        %3009 = vmatprep.subr.mxu0 0.0
        %3010 = vmatpush1.msra.mxu0 0.0
        %3011 = vmatprep.subr.mxu0 0.0
        %3012 = vmatpush1.msra.mxu0 0.0
        %3013 = vmatprep.subr.mxu0 0.0
        %3014 = vmatpush1.msra.mxu0 0.0
        %3015 = vmatprep.subr.mxu0 0.0
        %3016 = vmatpush1.msra.mxu0 0.0
        %3017 = vmatprep.subr.mxu0 0.0
        %3018 = vmatpush1.msra.mxu0 0.0
        %3019 = vmatprep.subr.mxu0 0.0
        %3020 = vmatpush1.msra.mxu0 0.0
        %3021 = vmatprep.subr.mxu0 0.0
        %3022 = vmatpush1.msra.mxu0 0.0
        %3023 = vmatprep.subr.mxu0 0.0
        %3024 = vmatpush1.msra.mxu0 0.0
        %3025 = vmatprep.subr.mxu0 0.0
        %3026 = vmatpush1.msra.mxu0 0.0
        %3027 = vmatprep.subr.mxu0 0.0
        %3028 = vmatpush1.msra.mxu0 0.0
        %3029 = vmatprep.subr.mxu0 0.0
        %3030 = vmatpush1.msra.mxu0 0.0
        %3031 = vmatprep.subr.mxu0 0.0
        %3032 = vmatpush1.msra.mxu0 0.0
        %3033 = vmatprep.subr.mxu0 0.0
        %3034 = vmatpush1.msra.mxu0 0.0
        %3035 = vmatprep.subr.mxu0 0.0
        %3036 = vmatpush1.msra.mxu0 0.0
        %3037 = vmatprep.subr.mxu0 0.0
        %3038 = vmatpush1.msra.mxu0 0.0
        %3039 = vmatprep.subr.mxu0 0.0
        %3040 = vmatpush1.msra.mxu0 0.0
        %3041 = vmatprep.subr.mxu0 0.0
        %3042 = vmatpush1.msra.mxu0 0.0
        %3043 = vmatprep.subr.mxu0 0.0
        %3044 = vmatpush1.msra.mxu0 0.0
        %3045 = vmatprep.subr.mxu0 0.0
        %3046 = vmatpush1.msra.mxu0 0.0
        %3047 = vmatprep.subr.mxu0 0.0
        %3048 = vmatpush1.msra.mxu0 0.0
        %3049 = vmatprep.subr.mxu0 0.0
        %3050 = vmatpush1.msra.mxu0 0.0
        %3051 = vmatprep.subr.mxu0 0.0
        %3052 = vmatpush1.msra.mxu0 0.0
        %3053 = vmatprep.subr.mxu0 0.0
        %3054 = vmatpush1.msra.mxu0 0.0
        %3055 = vmatprep.subr.mxu0 0.0
        %3056 = vmatpush1.msra.mxu0 0.0
        %3057 = vmatprep.subr.mxu0 0.0
        %3058 = vmatpush1.msra.mxu0 0.0
        %3059 = vmatprep.subr.mxu0 0.0
        %3060 = vmatpush1.msra.mxu0 0.0
        %3061 = vmatprep.mubr.f32.mxu0 0.0
        %3062 = vmatmul.mubr.f32.gmra.mrb[0].mxu0 %v2917
        %v3063 = vpop.f32.mrb[0].mxu0
        %v3064 = vadd.f32 0.0, %v3063
        %v3065 = vpop.f32.mrb[0].mxu0
        %3066 = vmatprep.mubr.f32.mxu0 0.0
        %3067 = vmatmul.mubr.f32.gmra.mrb[0].mxu0 %v2920
        %v3068 = vpop.f32.mrb[0].mxu0
        %v3069 = vpop.f32.mrb[0].mxu0
        %3070 = vdwg.mxu0
        %v3071 = vadd.f32 %v2910, %v2989
        %v3072 = vadd.f32 %v2911, %v2991
        %v3073 = vadd.f32 %v2912, %v3064
        %s3074 = scalar_lea.vmem %s4, 224
        %v3075 = vld [vmem:[%s3074] sm:$0xff]
        %v3076 = vld [vmem:[%s3074 + $0x8] sm:$0xff]
        %3077 = vrot.lane.b32.xlu0 %v2204, 127
        %v3078 = vpop.permute.xlu0 %3077
        %3079 = vrot.lane.b32.xlu0 %v2205, 127
        %v3080 = vpop.permute.xlu0 %3079
        %3081 = vrot.lane.b32.xlu0 %v2206, 127
        %v3082 = vpop.permute.xlu0 %3081
        %vm3083 = vcmask 1039360
        %v3084 = vsel %vm3083, %v3078, %v3080
        %v3085 = vsel %vm3083, %v3080, %v3082
        %v3090 = vsel %vm2226, %v3075, 0
        %v3093 = vsel %vm2226, %v3076, 0
        %3095 = vmatprep.subr.mxu0 %v3085
        %3096 = vmatpush1.msra.mxu0 %v3084
        %3097 = vmatprep.subr.mxu0 0.0
        %3098 = vmatpush1.msra.mxu0 0.0
        %3099 = vmatprep.subr.mxu0 0.0
        %3100 = vmatpush1.msra.mxu0 0.0
        %3101 = vmatprep.subr.mxu0 0.0
        %3102 = vmatpush1.msra.mxu0 0.0
        %3103 = vmatprep.subr.mxu0 0.0
        %3104 = vmatpush1.msra.mxu0 0.0
        %3105 = vmatprep.subr.mxu0 0.0
        %3106 = vmatpush1.msra.mxu0 0.0
        %3107 = vmatprep.subr.mxu0 0.0
        %3108 = vmatpush1.msra.mxu0 0.0
        %3109 = vmatprep.subr.mxu0 0.0
        %3110 = vmatpush1.msra.mxu0 0.0
        %3111 = vmatprep.subr.mxu0 0.0
        %3112 = vmatpush1.msra.mxu0 0.0
        %3113 = vmatprep.subr.mxu0 0.0
        %3114 = vmatpush1.msra.mxu0 0.0
        %3115 = vmatprep.subr.mxu0 0.0
        %3116 = vmatpush1.msra.mxu0 0.0
        %3117 = vmatprep.subr.mxu0 0.0
        %3118 = vmatpush1.msra.mxu0 0.0
        %3119 = vmatprep.subr.mxu0 0.0
        %3120 = vmatpush1.msra.mxu0 0.0
        %3121 = vmatprep.subr.mxu0 0.0
        %3122 = vmatpush1.msra.mxu0 0.0
        %3123 = vmatprep.subr.mxu0 0.0
        %3124 = vmatpush1.msra.mxu0 0.0
        %3125 = vmatprep.subr.mxu0 0.0
        %3126 = vmatpush1.msra.mxu0 0.0
        %3127 = vmatprep.subr.mxu0 0.0
        %3128 = vmatpush1.msra.mxu0 0.0
        %3129 = vmatprep.subr.mxu0 0.0
        %3130 = vmatpush1.msra.mxu0 0.0
        %3131 = vmatprep.subr.mxu0 0.0
        %3132 = vmatpush1.msra.mxu0 0.0
        %3133 = vmatprep.subr.mxu0 0.0
        %3134 = vmatpush1.msra.mxu0 0.0
        %3135 = vmatprep.subr.mxu0 0.0
        %3136 = vmatpush1.msra.mxu0 0.0
        %3137 = vmatprep.subr.mxu0 0.0
        %3138 = vmatpush1.msra.mxu0 0.0
        %3139 = vmatprep.subr.mxu0 0.0
        %3140 = vmatpush1.msra.mxu0 0.0
        %3141 = vmatprep.subr.mxu0 0.0
        %3142 = vmatpush1.msra.mxu0 0.0
        %3143 = vmatprep.subr.mxu0 0.0
        %3144 = vmatpush1.msra.mxu0 0.0
        %3145 = vmatprep.subr.mxu0 0.0
        %3146 = vmatpush1.msra.mxu0 0.0
        %3147 = vmatprep.subr.mxu0 0.0
        %3148 = vmatpush1.msra.mxu0 0.0
        %3149 = vmatprep.subr.mxu0 0.0
        %3150 = vmatpush1.msra.mxu0 0.0
        %3151 = vmatprep.subr.mxu0 0.0
        %3152 = vmatpush1.msra.mxu0 0.0
        %3153 = vmatprep.subr.mxu0 0.0
        %3154 = vmatpush1.msra.mxu0 0.0
        %3155 = vmatprep.subr.mxu0 0.0
        %3156 = vmatpush1.msra.mxu0 0.0
        %3157 = vmatprep.subr.mxu0 0.0
        %3158 = vmatpush1.msra.mxu0 0.0
        %3159 = vmatprep.mubr.f32.mxu0 0.0
        %3160 = vmatmul.mubr.f32.gmra.mrb[0].mxu0 %v3090
        %v3161 = vpop.f32.mrb[0].mxu0
        %v3162 = vadd.f32 0.0, %v3161
        %v3163 = vpop.f32.mrb[0].mxu0
        %v3164 = vadd.f32 0.0, %v3163
        %3165 = vmatprep.mubr.f32.mxu0 0.0
        %3166 = vmatmul.mubr.f32.gmra.mrb[0].mxu0 %v3093
        %v3167 = vpop.f32.mrb[0].mxu0
        %v3168 = vpop.f32.mrb[0].mxu0
        %3169 = vdwg.mxu0
        %3170 = vmatprep.subr.mxu0 0.0
        %3171 = vmatpush1.msra.mxu0 %v3082
        %3172 = vmatprep.subr.mxu0 0.0
        %3173 = vmatpush1.msra.mxu0 0.0
        %3174 = vmatprep.subr.mxu0 0.0
        %3175 = vmatpush1.msra.mxu0 0.0
        %3176 = vmatprep.subr.mxu0 0.0
        %3177 = vmatpush1.msra.mxu0 0.0
        %3178 = vmatprep.subr.mxu0 0.0
        %3179 = vmatpush1.msra.mxu0 0.0
        %3180 = vmatprep.subr.mxu0 0.0
        %3181 = vmatpush1.msra.mxu0 0.0
        %3182 = vmatprep.subr.mxu0 0.0
        %3183 = vmatpush1.msra.mxu0 0.0
        %3184 = vmatprep.subr.mxu0 0.0
        %3185 = vmatpush1.msra.mxu0 0.0
        %3186 = vmatprep.subr.mxu0 0.0
        %3187 = vmatpush1.msra.mxu0 0.0
        %3188 = vmatprep.subr.mxu0 0.0
        %3189 = vmatpush1.msra.mxu0 0.0
        %3190 = vmatprep.subr.mxu0 0.0
        %3191 = vmatpush1.msra.mxu0 0.0
        %3192 = vmatprep.subr.mxu0 0.0
        %3193 = vmatpush1.msra.mxu0 0.0
        %3194 = vmatprep.subr.mxu0 0.0
        %3195 = vmatpush1.msra.mxu0 0.0
        %3196 = vmatprep.subr.mxu0 0.0
        %3197 = vmatpush1.msra.mxu0 0.0
        %3198 = vmatprep.subr.mxu0 0.0
        %3199 = vmatpush1.msra.mxu0 0.0
        %3200 = vmatprep.subr.mxu0 0.0
        %3201 = vmatpush1.msra.mxu0 0.0
        %3202 = vmatprep.subr.mxu0 0.0
        %3203 = vmatpush1.msra.mxu0 0.0
        %3204 = vmatprep.subr.mxu0 0.0
        %3205 = vmatpush1.msra.mxu0 0.0
        %3206 = vmatprep.subr.mxu0 0.0
        %3207 = vmatpush1.msra.mxu0 0.0
        %3208 = vmatprep.subr.mxu0 0.0
        %3209 = vmatpush1.msra.mxu0 0.0
        %3210 = vmatprep.subr.mxu0 0.0
        %3211 = vmatpush1.msra.mxu0 0.0
        %3212 = vmatprep.subr.mxu0 0.0
        %3213 = vmatpush1.msra.mxu0 0.0
        %3214 = vmatprep.subr.mxu0 0.0
        %3215 = vmatpush1.msra.mxu0 0.0
        %3216 = vmatprep.subr.mxu0 0.0
        %3217 = vmatpush1.msra.mxu0 0.0
        %3218 = vmatprep.subr.mxu0 0.0
        %3219 = vmatpush1.msra.mxu0 0.0
        %3220 = vmatprep.subr.mxu0 0.0
        %3221 = vmatpush1.msra.mxu0 0.0
        %3222 = vmatprep.subr.mxu0 0.0
        %3223 = vmatpush1.msra.mxu0 0.0
        %3224 = vmatprep.subr.mxu0 0.0
        %3225 = vmatpush1.msra.mxu0 0.0
        %3226 = vmatprep.subr.mxu0 0.0
        %3227 = vmatpush1.msra.mxu0 0.0
        %3228 = vmatprep.subr.mxu0 0.0
        %3229 = vmatpush1.msra.mxu0 0.0
        %3230 = vmatprep.subr.mxu0 0.0
        %3231 = vmatpush1.msra.mxu0 0.0
        %3232 = vmatprep.subr.mxu0 0.0
        %3233 = vmatpush1.msra.mxu0 0.0
        %3234 = vmatprep.mubr.f32.mxu0 0.0
        %3235 = vmatmul.mubr.f32.gmra.mrb[0].mxu0 %v3090
        %v3236 = vpop.f32.mrb[0].mxu0
        %v3237 = vadd.f32 0.0, %v3236
        %v3238 = vpop.f32.mrb[0].mxu0
        %3239 = vmatprep.mubr.f32.mxu0 0.0
        %3240 = vmatmul.mubr.f32.gmra.mrb[0].mxu0 %v3093
        %v3241 = vpop.f32.mrb[0].mxu0
        %v3242 = vpop.f32.mrb[0].mxu0
        %3243 = vdwg.mxu0
        %v3244 = vadd.f32 %v3071, %v3162
        %v3245 = vadd.f32 %v3072, %v3164
        %v3246 = vadd.f32 %v3073, %v3237
        %s3247 = scalar_lea.vmem %s4, 240
        %v3248 = vld [vmem:[%s3247] sm:$0xff]
        %v3249 = vld [vmem:[%s3247 + $0x8] sm:$0xff]
        %3250 = vrot.lane.b32.xlu0 %v2204, 111
        %v3251 = vpop.permute.xlu0 %3250
        %3252 = vrot.lane.b32.xlu0 %v2205, 111
        %v3253 = vpop.permute.xlu0 %3252
        %3254 = vrot.lane.b32.xlu0 %v2206, 111
        %v3255 = vpop.permute.xlu0 %3254
        %vm3256 = vcmask 908288
        %v3257 = vsel %vm3256, %v3251, %v3253
        %v3258 = vsel %vm3256, %v3253, %v3255
        %v3263 = vsel %vm2226, %v3248, 0
        %v3266 = vsel %vm2226, %v3249, 0
        %3268 = vmatprep.subr.mxu0 %v3258
        %3269 = vmatpush1.msra.mxu0 %v3257
        %3270 = vmatprep.subr.mxu0 0.0
        %3271 = vmatpush1.msra.mxu0 0.0
        %3272 = vmatprep.subr.mxu0 0.0
        %3273 = vmatpush1.msra.mxu0 0.0
        %3274 = vmatprep.subr.mxu0 0.0
        %3275 = vmatpush1.msra.mxu0 0.0
        %3276 = vmatprep.subr.mxu0 0.0
        %3277 = vmatpush1.msra.mxu0 0.0
        %3278 = vmatprep.subr.mxu0 0.0
        %3279 = vmatpush1.msra.mxu0 0.0
        %3280 = vmatprep.subr.mxu0 0.0
        %3281 = vmatpush1.msra.mxu0 0.0
        %3282 = vmatprep.subr.mxu0 0.0
        %3283 = vmatpush1.msra.mxu0 0.0
        %3284 = vmatprep.subr.mxu0 0.0
        %3285 = vmatpush1.msra.mxu0 0.0
        %3286 = vmatprep.subr.mxu0 0.0
        %3287 = vmatpush1.msra.mxu0 0.0
        %3288 = vmatprep.subr.mxu0 0.0
        %3289 = vmatpush1.msra.mxu0 0.0
        %3290 = vmatprep.subr.mxu0 0.0
        %3291 = vmatpush1.msra.mxu0 0.0
        %3292 = vmatprep.subr.mxu0 0.0
        %3293 = vmatpush1.msra.mxu0 0.0
        %3294 = vmatprep.subr.mxu0 0.0
        %3295 = vmatpush1.msra.mxu0 0.0
        %3296 = vmatprep.subr.mxu0 0.0
        %3297 = vmatpush1.msra.mxu0 0.0
        %3298 = vmatprep.subr.mxu0 0.0
        %3299 = vmatpush1.msra.mxu0 0.0
        %3300 = vmatprep.subr.mxu0 0.0
        %3301 = vmatpush1.msra.mxu0 0.0
        %3302 = vmatprep.subr.mxu0 0.0
        %3303 = vmatpush1.msra.mxu0 0.0
        %3304 = vmatprep.subr.mxu0 0.0
        %3305 = vmatpush1.msra.mxu0 0.0
        %3306 = vmatprep.subr.mxu0 0.0
        %3307 = vmatpush1.msra.mxu0 0.0
        %3308 = vmatprep.subr.mxu0 0.0
        %3309 = vmatpush1.msra.mxu0 0.0
        %3310 = vmatprep.subr.mxu0 0.0
        %3311 = vmatpush1.msra.mxu0 0.0
        %3312 = vmatprep.subr.mxu0 0.0
        %3313 = vmatpush1.msra.mxu0 0.0
        %3314 = vmatprep.subr.mxu0 0.0
        %3315 = vmatpush1.msra.mxu0 0.0
        %3316 = vmatprep.subr.mxu0 0.0
        %3317 = vmatpush1.msra.mxu0 0.0
        %3318 = vmatprep.subr.mxu0 0.0
        %3319 = vmatpush1.msra.mxu0 0.0
        %3320 = vmatprep.subr.mxu0 0.0
        %3321 = vmatpush1.msra.mxu0 0.0
        %3322 = vmatprep.subr.mxu0 0.0
        %3323 = vmatpush1.msra.mxu0 0.0
        %3324 = vmatprep.subr.mxu0 0.0
        %3325 = vmatpush1.msra.mxu0 0.0
        %3326 = vmatprep.subr.mxu0 0.0
        %3327 = vmatpush1.msra.mxu0 0.0
        %3328 = vmatprep.subr.mxu0 0.0
        %3329 = vmatpush1.msra.mxu0 0.0
        %3330 = vmatprep.subr.mxu0 0.0
        %3331 = vmatpush1.msra.mxu0 0.0
        %3332 = vmatprep.mubr.f32.mxu0 0.0
        %3333 = vmatmul.mubr.f32.gmra.mrb[0].mxu0 %v3263
        %v3334 = vpop.f32.mrb[0].mxu0
        %v3335 = vadd.f32 0.0, %v3334
        %v3336 = vpop.f32.mrb[0].mxu0
        %v3337 = vadd.f32 0.0, %v3336
        %3338 = vmatprep.mubr.f32.mxu0 0.0
        %3339 = vmatmul.mubr.f32.gmra.mrb[0].mxu0 %v3266
        %v3340 = vpop.f32.mrb[0].mxu0
        %v3341 = vpop.f32.mrb[0].mxu0
        %3342 = vdwg.mxu0
        %3343 = vmatprep.subr.mxu0 0.0
        %3344 = vmatpush1.msra.mxu0 %v3255
        %3345 = vmatprep.subr.mxu0 0.0
        %3346 = vmatpush1.msra.mxu0 0.0
        %3347 = vmatprep.subr.mxu0 0.0
        %3348 = vmatpush1.msra.mxu0 0.0
        %3349 = vmatprep.subr.mxu0 0.0
        %3350 = vmatpush1.msra.mxu0 0.0
        %3351 = vmatprep.subr.mxu0 0.0
        %3352 = vmatpush1.msra.mxu0 0.0
        %3353 = vmatprep.subr.mxu0 0.0
        %3354 = vmatpush1.msra.mxu0 0.0
        %3355 = vmatprep.subr.mxu0 0.0
        %3356 = vmatpush1.msra.mxu0 0.0
        %3357 = vmatprep.subr.mxu0 0.0
        %3358 = vmatpush1.msra.mxu0 0.0
        %3359 = vmatprep.subr.mxu0 0.0
        %3360 = vmatpush1.msra.mxu0 0.0
        %3361 = vmatprep.subr.mxu0 0.0
        %3362 = vmatpush1.msra.mxu0 0.0
        %3363 = vmatprep.subr.mxu0 0.0
        %3364 = vmatpush1.msra.mxu0 0.0
        %3365 = vmatprep.subr.mxu0 0.0
        %3366 = vmatpush1.msra.mxu0 0.0
        %3367 = vmatprep.subr.mxu0 0.0
        %3368 = vmatpush1.msra.mxu0 0.0
        %3369 = vmatprep.subr.mxu0 0.0
        %3370 = vmatpush1.msra.mxu0 0.0
        %3371 = vmatprep.subr.mxu0 0.0
        %3372 = vmatpush1.msra.mxu0 0.0
        %3373 = vmatprep.subr.mxu0 0.0
        %3374 = vmatpush1.msra.mxu0 0.0
        %3375 = vmatprep.subr.mxu0 0.0
        %3376 = vmatpush1.msra.mxu0 0.0
        %3377 = vmatprep.subr.mxu0 0.0
        %3378 = vmatpush1.msra.mxu0 0.0
        %3379 = vmatprep.subr.mxu0 0.0
        %3380 = vmatpush1.msra.mxu0 0.0
        %3381 = vmatprep.subr.mxu0 0.0
        %3382 = vmatpush1.msra.mxu0 0.0
        %3383 = vmatprep.subr.mxu0 0.0
        %3384 = vmatpush1.msra.mxu0 0.0
        %3385 = vmatprep.subr.mxu0 0.0
        %3386 = vmatpush1.msra.mxu0 0.0
        %3387 = vmatprep.subr.mxu0 0.0
        %3388 = vmatpush1.msra.mxu0 0.0
        %3389 = vmatprep.subr.mxu0 0.0
        %3390 = vmatpush1.msra.mxu0 0.0
        %3391 = vmatprep.subr.mxu0 0.0
        %3392 = vmatpush1.msra.mxu0 0.0
        %3393 = vmatprep.subr.mxu0 0.0
        %3394 = vmatpush1.msra.mxu0 0.0
        %3395 = vmatprep.subr.mxu0 0.0
        %3396 = vmatpush1.msra.mxu0 0.0
        %3397 = vmatprep.subr.mxu0 0.0
        %3398 = vmatpush1.msra.mxu0 0.0
        %3399 = vmatprep.subr.mxu0 0.0
        %3400 = vmatpush1.msra.mxu0 0.0
        %3401 = vmatprep.subr.mxu0 0.0
        %3402 = vmatpush1.msra.mxu0 0.0
        %3403 = vmatprep.subr.mxu0 0.0
        %3404 = vmatpush1.msra.mxu0 0.0
        %3405 = vmatprep.subr.mxu0 0.0
        %3406 = vmatpush1.msra.mxu0 0.0
        %3407 = vmatprep.mubr.f32.mxu0 0.0
        %3408 = vmatmul.mubr.f32.gmra.mrb[0].mxu0 %v3263
        %v3409 = vpop.f32.mrb[0].mxu0
        %v3410 = vadd.f32 0.0, %v3409
        %v3411 = vpop.f32.mrb[0].mxu0
        %3412 = vmatprep.mubr.f32.mxu0 0.0
        %3413 = vmatmul.mubr.f32.gmra.mrb[0].mxu0 %v3266
        %v3414 = vpop.f32.mrb[0].mxu0
        %v3415 = vpop.f32.mrb[0].mxu0
        %3416 = vdwg.mxu0
        %v3417 = vadd.f32 %v3244, %v3335
        %v3418 = vadd.f32 %v3245, %v3337
        %v3419 = vadd.f32 %v3246, %v3410
        %s3420 = scalar_lea.vmem %s4, 256
        %v3421 = vld [vmem:[%s3420] sm:$0xff]
        %v3422 = vld [vmem:[%s3420 + $0x8] sm:$0xff]
        %3423 = vrot.lane.b32.xlu0 %v2204, 110
        %v3424 = vpop.permute.xlu0 %3423
        %3425 = vrot.lane.b32.xlu0 %v2205, 110
        %v3426 = vpop.permute.xlu0 %3425
        %3427 = vrot.lane.b32.xlu0 %v2206, 110
        %v3428 = vpop.permute.xlu0 %3427
        %vm3429 = vcmask 900096
        %v3430 = vsel %vm3429, %v3424, %v3426
        %v3431 = vsel %vm3429, %v3426, %v3428
        %v3436 = vsel %vm2226, %v3421, 0
        %v3439 = vsel %vm2226, %v3422, 0
        %3441 = vmatprep.subr.mxu0 %v3431
        %3442 = vmatpush1.msra.mxu0 %v3430
        %3443 = vmatprep.subr.mxu0 0.0
        %3444 = vmatpush1.msra.mxu0 0.0
        %3445 = vmatprep.subr.mxu0 0.0
        %3446 = vmatpush1.msra.mxu0 0.0
        %3447 = vmatprep.subr.mxu0 0.0
        %3448 = vmatpush1.msra.mxu0 0.0
        %3449 = vmatprep.subr.mxu0 0.0
        %3450 = vmatpush1.msra.mxu0 0.0
        %3451 = vmatprep.subr.mxu0 0.0
        %3452 = vmatpush1.msra.mxu0 0.0
        %3453 = vmatprep.subr.mxu0 0.0
        %3454 = vmatpush1.msra.mxu0 0.0
        %3455 = vmatprep.subr.mxu0 0.0
        %3456 = vmatpush1.msra.mxu0 0.0
        %3457 = vmatprep.subr.mxu0 0.0
        %3458 = vmatpush1.msra.mxu0 0.0
        %3459 = vmatprep.subr.mxu0 0.0
        %3460 = vmatpush1.msra.mxu0 0.0
        %3461 = vmatprep.subr.mxu0 0.0
        %3462 = vmatpush1.msra.mxu0 0.0
        %3463 = vmatprep.subr.mxu0 0.0
        %3464 = vmatpush1.msra.mxu0 0.0
        %3465 = vmatprep.subr.mxu0 0.0
        %3466 = vmatpush1.msra.mxu0 0.0
        %3467 = vmatprep.subr.mxu0 0.0
        %3468 = vmatpush1.msra.mxu0 0.0
        %3469 = vmatprep.subr.mxu0 0.0
        %3470 = vmatpush1.msra.mxu0 0.0
        %3471 = vmatprep.subr.mxu0 0.0
        %3472 = vmatpush1.msra.mxu0 0.0
        %3473 = vmatprep.subr.mxu0 0.0
        %3474 = vmatpush1.msra.mxu0 0.0
        %3475 = vmatprep.subr.mxu0 0.0
        %3476 = vmatpush1.msra.mxu0 0.0
        %3477 = vmatprep.subr.mxu0 0.0
        %3478 = vmatpush1.msra.mxu0 0.0
        %3479 = vmatprep.subr.mxu0 0.0
        %3480 = vmatpush1.msra.mxu0 0.0
        %3481 = vmatprep.subr.mxu0 0.0
        %3482 = vmatpush1.msra.mxu0 0.0
        %3483 = vmatprep.subr.mxu0 0.0
        %3484 = vmatpush1.msra.mxu0 0.0
        %3485 = vmatprep.subr.mxu0 0.0
        %3486 = vmatpush1.msra.mxu0 0.0
        %3487 = vmatprep.subr.mxu0 0.0
        %3488 = vmatpush1.msra.mxu0 0.0
        %3489 = vmatprep.subr.mxu0 0.0
        %3490 = vmatpush1.msra.mxu0 0.0
        %3491 = vmatprep.subr.mxu0 0.0
        %3492 = vmatpush1.msra.mxu0 0.0
        %3493 = vmatprep.subr.mxu0 0.0
        %3494 = vmatpush1.msra.mxu0 0.0
        %3495 = vmatprep.subr.mxu0 0.0
        %3496 = vmatpush1.msra.mxu0 0.0
        %3497 = vmatprep.subr.mxu0 0.0
        %3498 = vmatpush1.msra.mxu0 0.0
        %3499 = vmatprep.subr.mxu0 0.0
        %3500 = vmatpush1.msra.mxu0 0.0
        %3501 = vmatprep.subr.mxu0 0.0
        %3502 = vmatpush1.msra.mxu0 0.0
        %3503 = vmatprep.subr.mxu0 0.0
        %3504 = vmatpush1.msra.mxu0 0.0
        %3505 = vmatprep.mubr.f32.mxu0 0.0
        %3506 = vmatmul.mubr.f32.gmra.mrb[0].mxu0 %v3436
        %v3507 = vpop.f32.mrb[0].mxu0
        %v3508 = vadd.f32 0.0, %v3507
        %v3509 = vpop.f32.mrb[0].mxu0
        %v3510 = vadd.f32 0.0, %v3509
        %3511 = vmatprep.mubr.f32.mxu0 0.0
        %3512 = vmatmul.mubr.f32.gmra.mrb[0].mxu0 %v3439
        %v3513 = vpop.f32.mrb[0].mxu0
        %v3514 = vpop.f32.mrb[0].mxu0
        %3515 = vdwg.mxu0
        %3516 = vmatprep.subr.mxu0 0.0
        %3517 = vmatpush1.msra.mxu0 %v3428
        %3518 = vmatprep.subr.mxu0 0.0
        %3519 = vmatpush1.msra.mxu0 0.0
        %3520 = vmatprep.subr.mxu0 0.0
        %3521 = vmatpush1.msra.mxu0 0.0
        %3522 = vmatprep.subr.mxu0 0.0
        %3523 = vmatpush1.msra.mxu0 0.0
        %3524 = vmatprep.subr.mxu0 0.0
        %3525 = vmatpush1.msra.mxu0 0.0
        %3526 = vmatprep.subr.mxu0 0.0
        %3527 = vmatpush1.msra.mxu0 0.0
        %3528 = vmatprep.subr.mxu0 0.0
        %3529 = vmatpush1.msra.mxu0 0.0
        %3530 = vmatprep.subr.mxu0 0.0
        %3531 = vmatpush1.msra.mxu0 0.0
        %3532 = vmatprep.subr.mxu0 0.0
        %3533 = vmatpush1.msra.mxu0 0.0
        %3534 = vmatprep.subr.mxu0 0.0
        %3535 = vmatpush1.msra.mxu0 0.0
        %3536 = vmatprep.subr.mxu0 0.0
        %3537 = vmatpush1.msra.mxu0 0.0
        %3538 = vmatprep.subr.mxu0 0.0
        %3539 = vmatpush1.msra.mxu0 0.0
        %3540 = vmatprep.subr.mxu0 0.0
        %3541 = vmatpush1.msra.mxu0 0.0
        %3542 = vmatprep.subr.mxu0 0.0
        %3543 = vmatpush1.msra.mxu0 0.0
        %3544 = vmatprep.subr.mxu0 0.0
        %3545 = vmatpush1.msra.mxu0 0.0
        %3546 = vmatprep.subr.mxu0 0.0
        %3547 = vmatpush1.msra.mxu0 0.0
        %3548 = vmatprep.subr.mxu0 0.0
        %3549 = vmatpush1.msra.mxu0 0.0
        %3550 = vmatprep.subr.mxu0 0.0
        %3551 = vmatpush1.msra.mxu0 0.0
        %3552 = vmatprep.subr.mxu0 0.0
        %3553 = vmatpush1.msra.mxu0 0.0
        %3554 = vmatprep.subr.mxu0 0.0
        %3555 = vmatpush1.msra.mxu0 0.0
        %3556 = vmatprep.subr.mxu0 0.0
        %3557 = vmatpush1.msra.mxu0 0.0
        %3558 = vmatprep.subr.mxu0 0.0
        %3559 = vmatpush1.msra.mxu0 0.0
        %3560 = vmatprep.subr.mxu0 0.0
        %3561 = vmatpush1.msra.mxu0 0.0
        %3562 = vmatprep.subr.mxu0 0.0
        %3563 = vmatpush1.msra.mxu0 0.0
        %3564 = vmatprep.subr.mxu0 0.0
        %3565 = vmatpush1.msra.mxu0 0.0
        %3566 = vmatprep.subr.mxu0 0.0
        %3567 = vmatpush1.msra.mxu0 0.0
        %3568 = vmatprep.subr.mxu0 0.0
        %3569 = vmatpush1.msra.mxu0 0.0
        %3570 = vmatprep.subr.mxu0 0.0
        %3571 = vmatpush1.msra.mxu0 0.0
        %3572 = vmatprep.subr.mxu0 0.0
        %3573 = vmatpush1.msra.mxu0 0.0
        %3574 = vmatprep.subr.mxu0 0.0
        %3575 = vmatpush1.msra.mxu0 0.0
        %3576 = vmatprep.subr.mxu0 0.0
        %3577 = vmatpush1.msra.mxu0 0.0
        %3578 = vmatprep.subr.mxu0 0.0
        %3579 = vmatpush1.msra.mxu0 0.0
        %3580 = vmatprep.mubr.f32.mxu0 0.0
        %3581 = vmatmul.mubr.f32.gmra.mrb[0].mxu0 %v3436
        %v3582 = vpop.f32.mrb[0].mxu0
        %v3583 = vadd.f32 0.0, %v3582
        %v3584 = vpop.f32.mrb[0].mxu0
        %3585 = vmatprep.mubr.f32.mxu0 0.0
        %3586 = vmatmul.mubr.f32.gmra.mrb[0].mxu0 %v3439
        %v3587 = vpop.f32.mrb[0].mxu0
        %v3588 = vpop.f32.mrb[0].mxu0
        %3589 = vdwg.mxu0
        %v3590 = vadd.f32 %v3417, %v3508
        %v3591 = vadd.f32 %v3418, %v3510
        %v3592 = vadd.f32 %v3419, %v3583
        %s3593 = scalar_lea.vmem %s4, 272
        %v3594 = vld [vmem:[%s3593] sm:$0xff]
        %v3595 = vld [vmem:[%s3593 + $0x8] sm:$0xff]
        %3596 = vrot.lane.b32.xlu0 %v2204, 109
        %v3597 = vpop.permute.xlu0 %3596
        %3598 = vrot.lane.b32.xlu0 %v2205, 109
        %v3599 = vpop.permute.xlu0 %3598
        %3600 = vrot.lane.b32.xlu0 %v2206, 109
        %v3601 = vpop.permute.xlu0 %3600
        %vm3602 = vcmask 891904
        %v3603 = vsel %vm3602, %v3597, %v3599
        %v3604 = vsel %vm3602, %v3599, %v3601
        %v3609 = vsel %vm2226, %v3594, 0
        %v3612 = vsel %vm2226, %v3595, 0
        %3614 = vmatprep.subr.mxu0 %v3604
        %3615 = vmatpush1.msra.mxu0 %v3603
        %3616 = vmatprep.subr.mxu0 0.0
        %3617 = vmatpush1.msra.mxu0 0.0
        %3618 = vmatprep.subr.mxu0 0.0
        %3619 = vmatpush1.msra.mxu0 0.0
        %3620 = vmatprep.subr.mxu0 0.0
        %3621 = vmatpush1.msra.mxu0 0.0
        %3622 = vmatprep.subr.mxu0 0.0
        %3623 = vmatpush1.msra.mxu0 0.0
        %3624 = vmatprep.subr.mxu0 0.0
        %3625 = vmatpush1.msra.mxu0 0.0
        %3626 = vmatprep.subr.mxu0 0.0
        %3627 = vmatpush1.msra.mxu0 0.0
        %3628 = vmatprep.subr.mxu0 0.0
        %3629 = vmatpush1.msra.mxu0 0.0
        %3630 = vmatprep.subr.mxu0 0.0
        %3631 = vmatpush1.msra.mxu0 0.0
        %3632 = vmatprep.subr.mxu0 0.0
        %3633 = vmatpush1.msra.mxu0 0.0
        %3634 = vmatprep.subr.mxu0 0.0
        %3635 = vmatpush1.msra.mxu0 0.0
        %3636 = vmatprep.subr.mxu0 0.0
        %3637 = vmatpush1.msra.mxu0 0.0
        %3638 = vmatprep.subr.mxu0 0.0
        %3639 = vmatpush1.msra.mxu0 0.0
        %3640 = vmatprep.subr.mxu0 0.0
        %3641 = vmatpush1.msra.mxu0 0.0
        %3642 = vmatprep.subr.mxu0 0.0
        %3643 = vmatpush1.msra.mxu0 0.0
        %3644 = vmatprep.subr.mxu0 0.0
        %3645 = vmatpush1.msra.mxu0 0.0
        %3646 = vmatprep.subr.mxu0 0.0
        %3647 = vmatpush1.msra.mxu0 0.0
        %3648 = vmatprep.subr.mxu0 0.0
        %3649 = vmatpush1.msra.mxu0 0.0
        %3650 = vmatprep.subr.mxu0 0.0
        %3651 = vmatpush1.msra.mxu0 0.0
        %3652 = vmatprep.subr.mxu0 0.0
        %3653 = vmatpush1.msra.mxu0 0.0
        %3654 = vmatprep.subr.mxu0 0.0
        %3655 = vmatpush1.msra.mxu0 0.0
        %3656 = vmatprep.subr.mxu0 0.0
        %3657 = vmatpush1.msra.mxu0 0.0
        %3658 = vmatprep.subr.mxu0 0.0
        %3659 = vmatpush1.msra.mxu0 0.0
        %3660 = vmatprep.subr.mxu0 0.0
        %3661 = vmatpush1.msra.mxu0 0.0
        %3662 = vmatprep.subr.mxu0 0.0
        %3663 = vmatpush1.msra.mxu0 0.0
        %3664 = vmatprep.subr.mxu0 0.0
        %3665 = vmatpush1.msra.mxu0 0.0
        %3666 = vmatprep.subr.mxu0 0.0
        %3667 = vmatpush1.msra.mxu0 0.0
        %3668 = vmatprep.subr.mxu0 0.0
        %3669 = vmatpush1.msra.mxu0 0.0
        %3670 = vmatprep.subr.mxu0 0.0
        %3671 = vmatpush1.msra.mxu0 0.0
        %3672 = vmatprep.subr.mxu0 0.0
        %3673 = vmatpush1.msra.mxu0 0.0
        %3674 = vmatprep.subr.mxu0 0.0
        %3675 = vmatpush1.msra.mxu0 0.0
        %3676 = vmatprep.subr.mxu0 0.0
        %3677 = vmatpush1.msra.mxu0 0.0
        %3678 = vmatprep.mubr.f32.mxu0 0.0
        %3679 = vmatmul.mubr.f32.gmra.mrb[0].mxu0 %v3609
        %v3680 = vpop.f32.mrb[0].mxu0
        %v3681 = vadd.f32 0.0, %v3680
        %v3682 = vpop.f32.mrb[0].mxu0
        %v3683 = vadd.f32 0.0, %v3682
        %3684 = vmatprep.mubr.f32.mxu0 0.0
        %3685 = vmatmul.mubr.f32.gmra.mrb[0].mxu0 %v3612
        %v3686 = vpop.f32.mrb[0].mxu0
        %v3687 = vpop.f32.mrb[0].mxu0
        %3688 = vdwg.mxu0
        %3689 = vmatprep.subr.mxu0 0.0
        %3690 = vmatpush1.msra.mxu0 %v3601
        %3691 = vmatprep.subr.mxu0 0.0
        %3692 = vmatpush1.msra.mxu0 0.0
        %3693 = vmatprep.subr.mxu0 0.0
        %3694 = vmatpush1.msra.mxu0 0.0
        %3695 = vmatprep.subr.mxu0 0.0
        %3696 = vmatpush1.msra.mxu0 0.0
        %3697 = vmatprep.subr.mxu0 0.0
        %3698 = vmatpush1.msra.mxu0 0.0
        %3699 = vmatprep.subr.mxu0 0.0
        %3700 = vmatpush1.msra.mxu0 0.0
        %3701 = vmatprep.subr.mxu0 0.0
        %3702 = vmatpush1.msra.mxu0 0.0
        %3703 = vmatprep.subr.mxu0 0.0
        %3704 = vmatpush1.msra.mxu0 0.0
        %3705 = vmatprep.subr.mxu0 0.0
        %3706 = vmatpush1.msra.mxu0 0.0
        %3707 = vmatprep.subr.mxu0 0.0
        %3708 = vmatpush1.msra.mxu0 0.0
        %3709 = vmatprep.subr.mxu0 0.0
        %3710 = vmatpush1.msra.mxu0 0.0
        %3711 = vmatprep.subr.mxu0 0.0
        %3712 = vmatpush1.msra.mxu0 0.0
        %3713 = vmatprep.subr.mxu0 0.0
        %3714 = vmatpush1.msra.mxu0 0.0
        %3715 = vmatprep.subr.mxu0 0.0
        %3716 = vmatpush1.msra.mxu0 0.0
        %3717 = vmatprep.subr.mxu0 0.0
        %3718 = vmatpush1.msra.mxu0 0.0
        %3719 = vmatprep.subr.mxu0 0.0
        %3720 = vmatpush1.msra.mxu0 0.0
        %3721 = vmatprep.subr.mxu0 0.0
        %3722 = vmatpush1.msra.mxu0 0.0
        %3723 = vmatprep.subr.mxu0 0.0
        %3724 = vmatpush1.msra.mxu0 0.0
        %3725 = vmatprep.subr.mxu0 0.0
        %3726 = vmatpush1.msra.mxu0 0.0
        %3727 = vmatprep.subr.mxu0 0.0
        %3728 = vmatpush1.msra.mxu0 0.0
        %3729 = vmatprep.subr.mxu0 0.0
        %3730 = vmatpush1.msra.mxu0 0.0
        %3731 = vmatprep.subr.mxu0 0.0
        %3732 = vmatpush1.msra.mxu0 0.0
        %3733 = vmatprep.subr.mxu0 0.0
        %3734 = vmatpush1.msra.mxu0 0.0
        %3735 = vmatprep.subr.mxu0 0.0
        %3736 = vmatpush1.msra.mxu0 0.0
        %3737 = vmatprep.subr.mxu0 0.0
        %3738 = vmatpush1.msra.mxu0 0.0
        %3739 = vmatprep.subr.mxu0 0.0
        %3740 = vmatpush1.msra.mxu0 0.0
        %3741 = vmatprep.subr.mxu0 0.0
        %3742 = vmatpush1.msra.mxu0 0.0
        %3743 = vmatprep.subr.mxu0 0.0
        %3744 = vmatpush1.msra.mxu0 0.0
        %3745 = vmatprep.subr.mxu0 0.0
        %3746 = vmatpush1.msra.mxu0 0.0
        %3747 = vmatprep.subr.mxu0 0.0
        %3748 = vmatpush1.msra.mxu0 0.0
        %3749 = vmatprep.subr.mxu0 0.0
        %3750 = vmatpush1.msra.mxu0 0.0
        %3751 = vmatprep.subr.mxu0 0.0
        %3752 = vmatpush1.msra.mxu0 0.0
        %3753 = vmatprep.mubr.f32.mxu0 0.0
        %3754 = vmatmul.mubr.f32.gmra.mrb[0].mxu0 %v3609
        %v3755 = vpop.f32.mrb[0].mxu0
        %v3756 = vadd.f32 0.0, %v3755
        %v3757 = vpop.f32.mrb[0].mxu0
        %3758 = vmatprep.mubr.f32.mxu0 0.0
        %3759 = vmatmul.mubr.f32.gmra.mrb[0].mxu0 %v3612
        %v3760 = vpop.f32.mrb[0].mxu0
        %v3761 = vpop.f32.mrb[0].mxu0
        %3762 = vdwg.mxu0
        %v3763 = vadd.f32 %v3590, %v3681
        %v3764 = vadd.f32 %v3591, %v3683
        %v3765 = vadd.f32 %v3592, %v3756
        %v3766 = vmul.f32 %v3763, %v2173
        %v3767 = vmul.f32 %v3764, %v2177
        %v3768 = vmul.f32 %v3765, %v2181
        %v3769 = vld [vmem:[%s2144] sm:$0xc0]
        %v3770 = vld [vmem:[%s2144 + $0x8] sm:$0xc0]
        %v3771 = vld [vmem:[%s2144 + $0x10] sm:$0xc0]
        %v3772 = vld [vmem:[%s2144 + $0x18] sm:$0xf]
        %v3773 = vld [vmem:[%s2144 + $0x20] sm:$0xf]
        %v3774 = vld [vmem:[%s2144 + $0x28] sm:$0xf]
        %vm3781 = vcmask 1041408
        %v3782 = vrot.slane %v3769, 6
        %v3783 = vrot.slane %v3772, 6
        %v3784 = vsel %vm3781, %v3782, %v3783
        %v3785 = vrot.slane %v3770, 6
        %v3786 = vrot.slane %v3773, 6
        %v3787 = vsel %vm3781, %v3785, %v3786
        %v3788 = vrot.slane %v3771, 6
        %v3789 = vrot.slane %v3774, 6
        %v3790 = vsel %vm3781, %v3788, %v3789
        %v3794 = vadd.f32 %v3766, %v3784
        %v3795 = vadd.f32 %v3767, %v3787
        %v3796 = vadd.f32 %v3768, %v3790
        %3797 = vst [vmem:[%s263] sm:$0x3f] %v3794
        %3798 = vst [vmem:[%s263 + $0x8] sm:$0x3f] %v3795
        %vm3799 = vcmask 553984
        %3800 = vst.msk [vmem:[%s263 + $0x10] sm:$0x3f] %vm3799, %v3796
      $region64: #{_lambda_.2} parent=43 // pred_fallthru
        _
      %p3801 = scmp.lt.s32.totalorder %s22, 1
      %s3802 = scalar_select %p3801, %s22, 1
      %s3803 = smul.addr %s3802, 3
      %s3804 = smul.addr %s3803, 8
      %s3805 = scalar_lea.vmem %s6, %s3804
      // Predicated region
      $region69: #{_lambda_.2} parent=43 // pred_check
        %p3806 = pneg %p178
      $region70: #{_lambda_.2} parent=43 // pred_check_branch
        %3808 = sbr.rel (%p3806) target = $region72
      $region71: #{_lambda_.2} parent=43 // pred_region
        _
      $region72: #{_lambda_.2} parent=43 // pred_fallthru
        _
    $region44: #{_lambda_.2} parent=5 // pred_fallthru
      _
    %p3809 = scmp.le.s32.totalorder 2, %s12
    // Predicated region
    $region73: #{_lambda_.2} parent=5 // pred_check
      %p3810 = pneg %p3809
    $region74: #{_lambda_.2} parent=5 // pred_check_branch
      %3812 = sbr.rel (%p3810) target = $region76
    $region75: #{_lambda_.2} parent=5 // pred_region
      %s3813 = ssub.s32 %s12, 2
      // Predicated region
      $region77: #{_lambda_.2} parent=75 // pred_check
        %p3814 = pneg %p184
      $region78: #{_lambda_.2} parent=75 // pred_check_branch
        %3816 = sbr.rel (%p3814) target = $region80
      $region79: #{_lambda_.2} parent=75 // pred_region
        %p3817 = scmp.lt.s32.totalorder %s24, 1
        %s3818 = scalar_select %p3817, %s24, 1
        %s3819 = smul.addr %s3818, 3
        %s3820 = smul.addr %s3819, 8
        %s3821 = scalar_lea.vmem %s6, %s3820
      $region80: #{_lambda_.2} parent=75 // pred_fallthru
        _
    $region76: #{_lambda_.2} parent=5 // pred_fallthru
      _
  $region6: #{_lambda_.2} parent=0 // loop_footer
    %s16 = sadd.s32 1, %s12
  $region7: #{_lambda_.2} parent=0 // loop_footer_branch
    %11 = sbr.rel target = $region3
  $region8: #{_lambda_.2} parent=0 // loop_exit
    _

// kernel: _lambda_.3
$region0: #{_lambda_.3}
  #allocation0 [shape = 'u32[]', space=smem, size = 0x4, offset = 0x4, fixed_abs, tag = 'smem constant byte address 0x4 - core index']
  #allocation1 [shape = 'u32[144,128]{1,0:T(1,128)}', space=vmem, size = 0x12000, scoped, tag = 'internal scratch']
  #allocation2 [shape = 'f32[2,16,100]{2,1,0:T(8,128)}', space=vmem, size = 0x4000, scoped, tag = 'scratch operand']
  #allocation3 [shape = 'f32[8,239]{1,0:T(8,128)}', space=vmem, size = 0x2000, scoped, tag = 'scratch operand']
  #allocation4 [shape = 'f32[2,8,1]{2,1,0:T(8,128)}', space=vmem, size = 0x2000, scoped, tag = 'scratch operand']
  #allocation5 [shape = 'f32[2,8,1]{2,1,0:T(8,128)}', space=vmem, size = 0x2000, scoped, tag = 'scratch operand']
  #allocation6 [shape = 'f32[8,1]{1,0:T(8,128)}', space=vmem, size = 0x1000, scoped, tag = 'scratch operand']
  #allocation7 [shape = 'f32[8,1]{1,0:T(8,128)}', space=vmem, size = 0x1000, scoped, tag = 'scratch operand']
  %s0 = inlined_call_operand.vmem [shape: f32[2,8,100], index: 0, kind: input, shape index: {}]
  %s1 = inlined_call_operand.vmem [shape: f32[1,100], index: 1, kind: input, shape index: {}]
  %s2 = inlined_call_operand.vmem [shape: f32[2,8,1], index: 2, kind: input, shape index: {}]
  %s3 = inlined_call_operand.vmem [shape: f32[2,8,1], index: 3, kind: input, shape index: {}]
  %s4 = inlined_call_operand.vmem [shape: f32[18,16,8], index: 4, kind: input, shape index: {}]
  %s5 = inlined_call_operand.vmem [shape: f32[2,16,1], index: 5, kind: input, shape index: {}]
  %s6 = inlined_call_operand.vmem [shape: f32[2,8,100], index: 6, kind: output, shape index: {}]
  %s7 = sld [smem:[#allocation0]]
  $region81: #{_lambda_.3} parent=0
    _
  %s9 = ssub.s32 1, %s7
  %s10 = scalar_select 0, %s9, %s7
  loop: start=0, step=1, limit=8
  $region2: #{_lambda_.3} parent=0 // loop_pre_header
    _
  $region3: #{_lambda_.3} parent=0 // loop_header
    %s12 = sphi 0, %s16
    %p13 = scmp.ge.s32.totalorder %s12, 8
    %s19 = sphi 0, %s31
    %s20 = sphi 0, %s27
    %s21 = sphi 0, %s19
    %s22 = sphi 0, %s20
    %s23 = sphi 0, %s21
    %s24 = sphi 0, %s22
    %s34 = sphi 0, %s36
    %s37 = sphi 0, %s34
    %s38 = sphi 0, %s37
    %s54 = sphi 0, %s38
    %s58 = sphi 0, %s58
    %s60 = sphi 0, %s58
    %s61 = sphi 0, %s60
    %s75 = sphi 0, %s61
    %s79 = sphi 0, %s79
    %s81 = sphi 0, %s79
    %s82 = sphi 0, %s81
    %s96 = sphi 0, %s82
    %s100 = sphi 0, %s100
    %s102 = sphi 0, %s100
    %s103 = sphi 0, %s102
    %s117 = sphi 0, %s103
    %s121 = sphi 0, %s121
    %s123 = sphi 0, %s121
    %s124 = sphi 0, %s123
    %s138 = sphi 0, %s124
    %s142 = sphi 0, %s142
    %s144 = sphi 0, %s142
    %s145 = sphi 0, %s144
    %s159 = sphi 0, %s145
    %s165 = sphi 0, %s167
    %s168 = sphi 0, %s165
    %s169 = sphi 0, %s168
    %s185 = sphi 0, %s169
  $region4: #{_lambda_.3} parent=0 // loop_header_branch
    %15 = sbr.rel (%p13) target = $region8
  $region5: #{_lambda_.3} parent=0 // loop_body
    %s17 = ssub.s32 %s12, 1
    %s18 = ssub.s32 %s12, 2
    %s25 = sadd.s32 1, %s20
    %p26 = scmp.ge.s32.totalorder %s25, 2
    %s27 = scalar_select %p26, 0, %s25
    %s28 = sadd.s32 1, %s19
    %s29 = scalar_select %p26, %s28, %s19
    %p30 = scmp.ge.s32.totalorder %s29, 3
    %s31 = scalar_select %p30, 0, %s29
    %s32 = ssub.s32 %s20, %s27
    %p33 = scmp.eq.s32.totalorder %s32, 0
    %s35 = sadd.s32 %s34, 1
    %s36 = scalar_select %p33, %s34, %s35
    %p39 = pneg %p33
    %p40 = scmp.eq.s32.totalorder %s12, 5
    %p41 = por %p39, %p40
    %p42 = scmp.ne.s32.totalorder %s34, %s37
    %p43 = scmp.eq.s32.totalorder %s12, 0
    %p44 = por %p42, %p43
    %p45 = scmp.ne.s32.totalorder %s34, %s37
    %p46 = scmp.eq.s32.totalorder %s17, 5
    %p47 = por %p45, %p46
    %p48 = scmp.ne.s32.totalorder %s37, %s38
    %p49 = scmp.eq.s32.totalorder %s17, 0
    %p50 = por %p48, %p49
    %p51 = scmp.ne.s32.totalorder %s37, %s38
    %p52 = scmp.eq.s32.totalorder %s18, 5
    %p53 = por %p51, %p52
    %p55 = scmp.ne.s32.totalorder %s38, %s54
    %p56 = scmp.eq.s32.totalorder %s18, 0
    %p57 = por %p55, %p56
    %s59 = sadd.s32 %s58, 1
    %p62 = scmp.eq.s32.totalorder %s12, 5
    %p63 = scmp.ne.s32.totalorder %s58, %s60
    %p64 = scmp.eq.s32.totalorder %s12, 0
    %p65 = por %p63, %p64
    %p66 = scmp.ne.s32.totalorder %s58, %s60
    %p67 = scmp.eq.s32.totalorder %s17, 5
    %p68 = por %p66, %p67
    %p69 = scmp.ne.s32.totalorder %s60, %s61
    %p70 = scmp.eq.s32.totalorder %s17, 0
    %p71 = por %p69, %p70
    %p72 = scmp.ne.s32.totalorder %s60, %s61
    %p73 = scmp.eq.s32.totalorder %s18, 5
    %p74 = por %p72, %p73
    %p76 = scmp.ne.s32.totalorder %s61, %s75
    %p77 = scmp.eq.s32.totalorder %s18, 0
    %p78 = por %p76, %p77
    %s80 = sadd.s32 %s79, 1
    %p83 = scmp.eq.s32.totalorder %s12, 5
    %p84 = scmp.ne.s32.totalorder %s79, %s81
    %p85 = scmp.eq.s32.totalorder %s12, 0
    %p86 = por %p84, %p85
    %p87 = scmp.ne.s32.totalorder %s79, %s81
    %p88 = scmp.eq.s32.totalorder %s17, 5
    %p89 = por %p87, %p88
    %p90 = scmp.ne.s32.totalorder %s81, %s82
    %p91 = scmp.eq.s32.totalorder %s17, 0
    %p92 = por %p90, %p91
    %p93 = scmp.ne.s32.totalorder %s81, %s82
    %p94 = scmp.eq.s32.totalorder %s18, 5
    %p95 = por %p93, %p94
    %p97 = scmp.ne.s32.totalorder %s82, %s96
    %p98 = scmp.eq.s32.totalorder %s18, 0
    %p99 = por %p97, %p98
    %s101 = sadd.s32 %s100, 1
    %p104 = scmp.eq.s32.totalorder %s12, 5
    %p105 = scmp.ne.s32.totalorder %s100, %s102
    %p106 = scmp.eq.s32.totalorder %s12, 0
    %p107 = por %p105, %p106
    %p108 = scmp.ne.s32.totalorder %s100, %s102
    %p109 = scmp.eq.s32.totalorder %s17, 5
    %p110 = por %p108, %p109
    %p111 = scmp.ne.s32.totalorder %s102, %s103
    %p112 = scmp.eq.s32.totalorder %s17, 0
    %p113 = por %p111, %p112
    %p114 = scmp.ne.s32.totalorder %s102, %s103
    %p115 = scmp.eq.s32.totalorder %s18, 5
    %p116 = por %p114, %p115
    %p118 = scmp.ne.s32.totalorder %s103, %s117
    %p119 = scmp.eq.s32.totalorder %s18, 0
    %p120 = por %p118, %p119
    %s122 = sadd.s32 %s121, 1
    %p125 = scmp.eq.s32.totalorder %s12, 5
    %p126 = scmp.ne.s32.totalorder %s121, %s123
    %p127 = scmp.eq.s32.totalorder %s12, 0
    %p128 = por %p126, %p127
    %p129 = scmp.ne.s32.totalorder %s121, %s123
    %p130 = scmp.eq.s32.totalorder %s17, 5
    %p131 = por %p129, %p130
    %p132 = scmp.ne.s32.totalorder %s123, %s124
    %p133 = scmp.eq.s32.totalorder %s17, 0
    %p134 = por %p132, %p133
    %p135 = scmp.ne.s32.totalorder %s123, %s124
    %p136 = scmp.eq.s32.totalorder %s18, 5
    %p137 = por %p135, %p136
    %p139 = scmp.ne.s32.totalorder %s124, %s138
    %p140 = scmp.eq.s32.totalorder %s18, 0
    %p141 = por %p139, %p140
    %s143 = sadd.s32 %s142, 1
    %p146 = scmp.eq.s32.totalorder %s12, 5
    %p147 = scmp.ne.s32.totalorder %s142, %s144
    %p148 = scmp.eq.s32.totalorder %s12, 0
    %p149 = por %p147, %p148
    %p150 = scmp.ne.s32.totalorder %s142, %s144
    %p151 = scmp.eq.s32.totalorder %s17, 5
    %p152 = por %p150, %p151
    %p153 = scmp.ne.s32.totalorder %s144, %s145
    %p154 = scmp.eq.s32.totalorder %s17, 0
    %p155 = por %p153, %p154
    %p156 = scmp.ne.s32.totalorder %s144, %s145
    %p157 = scmp.eq.s32.totalorder %s18, 5
    %p158 = por %p156, %p157
    %p160 = scmp.ne.s32.totalorder %s145, %s159
    %p161 = scmp.eq.s32.totalorder %s18, 0
    %p162 = por %p160, %p161
    %s163 = ssub.s32 %s20, %s27
    %p164 = scmp.eq.s32.totalorder %s163, 0
    %s166 = sadd.s32 %s165, 1
    %s167 = scalar_select %p164, %s165, %s166
    %p170 = pneg %p164
    %p171 = scmp.eq.s32.totalorder %s12, 5
    %p172 = por %p170, %p171
    %p173 = scmp.ne.s32.totalorder %s165, %s168
    %p174 = scmp.eq.s32.totalorder %s12, 0
    %p175 = por %p173, %p174
    %p176 = scmp.ne.s32.totalorder %s165, %s168
    %p177 = scmp.eq.s32.totalorder %s17, 5
    %p178 = por %p176, %p177
    %p179 = scmp.ne.s32.totalorder %s168, %s169
    %p180 = scmp.eq.s32.totalorder %s17, 0
    %p181 = por %p179, %p180
    %p182 = scmp.ne.s32.totalorder %s168, %s169
    %p183 = scmp.eq.s32.totalorder %s18, 5
    %p184 = por %p182, %p183
    %p186 = scmp.ne.s32.totalorder %s169, %s185
    %p187 = scmp.eq.s32.totalorder %s18, 0
    %p188 = por %p186, %p187
    %p189 = scmp.le.s32.totalorder 1, %s12
    %p190 = scmp.lt.s32.totalorder %s12, 7
    %p191 = pnand %p189, %p190
    %p192 = pneg %p191
    // Predicated region
    $region9: #{_lambda_.3} parent=5 // pred_check
      _
    $region10: #{_lambda_.3} parent=5 // pred_check_branch
      %194 = sbr.rel (%p191) target = $region12
    $region11: #{_lambda_.3} parent=5 // pred_region
      %s195 = ssub.s32 %s12, 1
      // Predicated region
      $region13: #{_lambda_.3} parent=11 // pred_check
        %p196 = pneg %p71
      $region14: #{_lambda_.3} parent=11 // pred_check_branch
        %198 = sbr.rel (%p196) target = $region16
      $region15: #{_lambda_.3} parent=11 // pred_region
        _
      $region16: #{_lambda_.3} parent=11 // pred_fallthru
        _
      // Predicated region
      $region17: #{_lambda_.3} parent=11 // pred_check
        %p199 = pneg %p92
      $region18: #{_lambda_.3} parent=11 // pred_check_branch
        %201 = sbr.rel (%p199) target = $region20
      $region19: #{_lambda_.3} parent=11 // pred_region
        _
      $region20: #{_lambda_.3} parent=11 // pred_fallthru
        _
      // Predicated region
      $region21: #{_lambda_.3} parent=11 // pred_check
        %p202 = pneg %p113
      $region22: #{_lambda_.3} parent=11 // pred_check_branch
        %204 = sbr.rel (%p202) target = $region24
      $region23: #{_lambda_.3} parent=11 // pred_region
        _
      $region24: #{_lambda_.3} parent=11 // pred_fallthru
        _
      // Predicated region
      $region25: #{_lambda_.3} parent=11 // pred_check
        %p205 = pneg %p134
      $region26: #{_lambda_.3} parent=11 // pred_check_branch
        %207 = sbr.rel (%p205) target = $region28
      $region27: #{_lambda_.3} parent=11 // pred_region
        _
      $region28: #{_lambda_.3} parent=11 // pred_fallthru
        _
      // Predicated region
      $region29: #{_lambda_.3} parent=11 // pred_check
        %p208 = pneg %p155
      $region30: #{_lambda_.3} parent=11 // pred_check_branch
        %210 = sbr.rel (%p208) target = $region32
      $region31: #{_lambda_.3} parent=11 // pred_region
        _
      $region32: #{_lambda_.3} parent=11 // pred_fallthru
        _
    $region12: #{_lambda_.3} parent=5 // pred_fallthru
      _
    %p211 = scmp.lt.s32.totalorder %s12, 6
    // Predicated region
    $region33: #{_lambda_.3} parent=5 // pred_check
      %p212 = pneg %p211
    $region34: #{_lambda_.3} parent=5 // pred_check_branch
      %214 = sbr.rel (%p212) target = $region36
    $region35: #{_lambda_.3} parent=5 // pred_region
      // Predicated region
      $region37: #{_lambda_.3} parent=35 // pred_check
        %p215 = pneg %p44
      $region38: #{_lambda_.3} parent=35 // pred_check_branch
        %217 = sbr.rel (%p215) target = $region40
      $region39: #{_lambda_.3} parent=35 // pred_region
        %p218 = scmp.lt.s32.totalorder %s20, 1
        %s219 = scalar_select %p218, %s20, 1
        %s220 = smul.addr %s219, 8
        %s221 = scalar_lea.vmem %s0, %s220
      $region40: #{_lambda_.3} parent=35 // pred_fallthru
        _
    $region36: #{_lambda_.3} parent=5 // pred_fallthru
      _
    %p222 = scmp.le.s32.totalorder 1, %s12
    %p223 = scmp.lt.s32.totalorder %s12, 7
    %p224 = pnand %p222, %p223
    %p225 = pneg %p224
    // Predicated region
    $region41: #{_lambda_.3} parent=5 // pred_check
      _
    $region42: #{_lambda_.3} parent=5 // pred_check_branch
      %227 = sbr.rel (%p224) target = $region44
    $region43: #{_lambda_.3} parent=5 // pred_region
      %s228 = ssub.s32 %s12, 1
      %p229 = scmp.lt.s32.totalorder %s22, 1
      %s230 = scalar_select %p229, %s22, 1
      %s231 = smul.addr %s230, 8
      %s232 = scalar_lea.vmem %s0, %s231
      %p233 = pneg %p50
      %p234 = pneg %p47
      %p235 = pneg %p71
      %p236 = pneg %p68
      %p237 = pneg %p92
      %p238 = pneg %p89
      %p239 = pneg %p113
      %p240 = pneg %p110
      %p241 = pneg %p134
      %p242 = pneg %p131
      %p243 = pneg %p155
      %p244 = pneg %p152
      %p245 = pneg %p181
      %p246 = pneg %p178
      %p247 = scmp.lt.s32.totalorder %s22, 1
      %s248 = scalar_select %p247, %s22, 1
      %s249 = smul.addr %s248, 8
      %s250 = scalar_lea.vmem %s6, %s249
      %p251 = scmp.lt.s32.totalorder %s22, 1
      %s252 = scalar_select %p251, %s22, 1
      %s253 = smul.addr %s252, 8
      %s254 = scalar_lea.vmem %s0, %s253
      %p255 = scmp.lt.s32.totalorder %s22, 1
      %s256 = scalar_select %p255, %s22, 1
      %s257 = smul.addr %s256, 8
      %s258 = scalar_lea.vmem %s6, %s257
      %s259 = scvt.s32.f32 %s22
      %v260 = vld [vmem:[%s1] sm:$0x1]
      %p261 = scmp.eq.s32.totalorder %s21, 0
      // Predicated region
      $region45: #{_lambda_.3} parent=43 // pred_check
        %p262 = pneg %p261
      $region46: #{_lambda_.3} parent=43 // pred_check_branch
        %264 = sbr.rel (%p262) target = $region48
      $region47: #{_lambda_.3} parent=43 // pred_region
        %p265 = scmp.eq.s32.totalorder %s22, 0
        // Predicated region
        $region49: #{_lambda_.3} parent=47 // pred_check
          %p266 = pneg %p265
        $region50: #{_lambda_.3} parent=47 // pred_check_branch
          %268 = sbr.rel (%p266) target = $region52
        $region51: #{_lambda_.3} parent=47 // pred_region
          %269 = vst [vmem:[#allocation3] sm:$0xff] 0.0
          %vm270 = vcmask 909088
          %271 = vst.msk [vmem:[#allocation3 + $0x8] sm:$0xff] %vm270, 0.0
          %vm272 = vcmask 7168
          %273 = vst.msk [vmem:[#allocation4] sm:$0xff] %vm272, 0.0
          %274 = vst.msk [vmem:[#allocation5] sm:$0xff] %vm272, 0.0
        $region52: #{_lambda_.3} parent=47 // pred_fallthru
          _
        %v275 = vld [vmem:[%s254] sm:$0xff]
        %s276 = smul.u32 %s22, 16
        %s277 = scalar_lea.vmem [#allocation2], %s276
        %vm278 = vcmask 818176
        %279 = vst.msk [vmem:[%s277] sm:$0xff] %vm278, %v275
        %v280 = vsel %vm278, %v275, 0.0
        %281 = vadd.xlane.f32.xlu0 %v280
        %v282 = vpop.xlane.xlu0 %281
        %v283 = vmul.f32 %v282, 0.015625
        %v284 = vsub.f32 %v275, %v283
        %v286 = vlaneseq
        %v287 = vshrl.u32 %v286, 7
        %v288 = vsub.s32 0, %v287
        %v289 = vrot.slane %v260, %v288
        %v291 = vmul.f32 %v284, %v289
        %v292 = vmul.f32 %v291, %v291
        %v293 = vsel %vm278, %v292, 0.0
        %294 = vadd.xlane.f32.xlu0 %v293
        %v295 = vpop.xlane.xlu0 %294
        %v296 = vld [vmem:[#allocation4] sm:$0xff]
        %v297 = vsub.f32 %v283, %v296
        %s298 = sadd.f32 %s259, 1.0
        %v299 = vstv %s298
        %v300 = vrcp.pop %v299
        %s301 = vtos %v300
        %v302 = vstv %s301
        %v303 = vmul.f32 %v297, %v302
        %v304 = vadd.f32 %v296, %v303
        %vm305 = vcmask 7168
        %306 = vst.msk [vmem:[#allocation4] sm:$0xff] %vm305, %v304
        %v307 = vld [vmem:[#allocation5] sm:$0xff]
        %v308 = vadd.f32 %v307, %v295
        %v309 = vmul.f32 %v297, %v297
        %s310 = smul.f32 %s259, 64.0
        %s311 = smul.f32 %s310, %s301
        %v312 = vstv %s311
        %v313 = vmul.f32 %v309, %v312
        %v314 = vadd.f32 %v308, %v313
        %315 = vst.msk [vmem:[#allocation5] sm:$0xff] %vm305, %v314
      $region48: #{_lambda_.3} parent=43 // pred_fallthru
        _
      %p316 = scmp.eq.s32.totalorder %s21, 1
      // Predicated region
      $region53: #{_lambda_.3} parent=43 // pred_check
        %p317 = pneg %p316
      $region54: #{_lambda_.3} parent=43 // pred_check_branch
        %319 = sbr.rel (%p317) target = $region56
      $region55: #{_lambda_.3} parent=43 // pred_region
        %p320 = scmp.eq.s32.totalorder %s22, 0
        // Predicated region
        $region57: #{_lambda_.3} parent=55 // pred_check
          %p321 = pneg %p320
        $region58: #{_lambda_.3} parent=55 // pred_check_branch
          %323 = sbr.rel (%p321) target = $region60
        $region59: #{_lambda_.3} parent=55 // pred_region
          %v324 = vld [vmem:[#allocation4] sm:$0xff]
          %v325 = vld [vmem:[#allocation5] sm:$0xff]
          %v326 = vmul.f32 %v325, 0.0078125
          %v327 = vmax.f32 %v326, 0.0
          %v328 = vld [vmem:[%s2] sm:$0xff]
          %v329 = vadd.f32 %v327, 1e-12
          %v330 = vrsqrt.pop %v329
          %v331 = vmul.f32 %v328, %v330
          %vm332 = vcmask 7168
          %333 = vst.msk [vmem:[#allocation6] sm:$0xff] %vm332, %v331
          %v334 = vld [vmem:[%s3] sm:$0xff]
          %v335 = vmul.f32 %v324, %v331
          %v336 = vsub.f32 %v334, %v335
          %337 = vst.msk [vmem:[#allocation7] sm:$0xff] %vm332, %v336
          %s338 = scalar_lea.vmem [#allocation4], 8
          %339 = vst.msk [vmem:[%s338] sm:$0xff] %vm332, 0.0
          %s340 = scalar_lea.vmem [#allocation5], 8
          %341 = vst.msk [vmem:[%s340] sm:$0xff] %vm332, 0.0
        $region60: #{_lambda_.3} parent=55 // pred_fallthru
          _
        %s342 = smul.u32 %s22, 16
        %s343 = scalar_lea.vmem [#allocation2], %s342
        %v344 = vld [vmem:[%s343] sm:$0xff]
        %v345 = vld [vmem:[#allocation6] sm:$0xff]
        %347 = vset.pattern.permute.xlu0 0
        %348 = vperm.xlu0 %347, %v345
        %v349 = vpop.permute.xlu0 %348
        %v351 = vmul.f32 %v344, %v349
        %v352 = vld [vmem:[#allocation7] sm:$0xff]
        %354 = vset.pattern.permute.xlu0 0
        %355 = vperm.xlu0 %354, %v352
        %v356 = vpop.permute.xlu0 %355
        %v358 = vadd.f32 %v351, %v356
        %v359 = vmax.f32 %v358, 0.0
        %v361 = vlaneseq
        %v362 = vshrl.u32 %v361, 7
        %v363 = vsub.s32 0, %v362
        %v364 = vrot.slane %v260, %v363
        %v366 = vmul.f32 %v359, %v364
        %vm367 = vcmask 818176
        %368 = vst.msk [vmem:[#allocation3 + $0x8] sm:$0xff] %vm367, %v366
        %v369 = vld [vmem:[%s5] sm:$0xff]
        %v370 = vld [vmem:[%s5 + $0x8] sm:$0xff]
        %372 = vset.pattern.permute.xlu0 0
        %373 = vperm.xlu0 %372, %v369
        %v374 = vpop.permute.xlu0 %373
        %377 = vset.pattern.permute.xlu0 0
        %378 = vperm.xlu0 %377, %v370
        %v379 = vpop.permute.xlu0 %378
        %v381 = vadd.f32 %v374, 0.0
        %v382 = vadd.f32 %v379, 0.0
        %v383 = vld [vmem:[%s4] sm:$0xff]
        %v384 = vld [vmem:[%s4 + $0x8] sm:$0xff]
        %v385 = vld [vmem:[#allocation3] sm:$0xff]
        %v386 = vld [vmem:[#allocation3 + $0x8] sm:$0xff]
        %389 = vrot.lane.b32.xlu0 %v385, 11
        %v390 = vpop.permute.xlu0 %389
        %391 = vrot.lane.b32.xlu0 %v386, 11
        %v392 = vpop.permute.xlu0 %391
        %vm393 = vcmask 89088
        %v394 = vsel %vm393, %v390, %v392
        %vm396 = vcmask 64512
        %v398 = vsel %vm396, %v383, 0
        %v401 = vsel %vm396, %v384, 0
        %403 = vmatprep.subr.mxu0 0.0
        %404 = vmatpush1.msra.mxu0 %v394
        %405 = vmatprep.subr.mxu0 0.0
        %406 = vmatpush1.msra.mxu0 0.0
        %407 = vmatprep.subr.mxu0 0.0
        %408 = vmatpush1.msra.mxu0 0.0
        %409 = vmatprep.subr.mxu0 0.0
        %410 = vmatpush1.msra.mxu0 0.0
        %411 = vmatprep.subr.mxu0 0.0
        %412 = vmatpush1.msra.mxu0 0.0
        %413 = vmatprep.subr.mxu0 0.0
        %414 = vmatpush1.msra.mxu0 0.0
        %415 = vmatprep.subr.mxu0 0.0
        %416 = vmatpush1.msra.mxu0 0.0
        %417 = vmatprep.subr.mxu0 0.0
        %418 = vmatpush1.msra.mxu0 0.0
        %419 = vmatprep.subr.mxu0 0.0
        %420 = vmatpush1.msra.mxu0 0.0
        %421 = vmatprep.subr.mxu0 0.0
        %422 = vmatpush1.msra.mxu0 0.0
        %423 = vmatprep.subr.mxu0 0.0
        %424 = vmatpush1.msra.mxu0 0.0
        %425 = vmatprep.subr.mxu0 0.0
        %426 = vmatpush1.msra.mxu0 0.0
        %427 = vmatprep.subr.mxu0 0.0
        %428 = vmatpush1.msra.mxu0 0.0
        %429 = vmatprep.subr.mxu0 0.0
        %430 = vmatpush1.msra.mxu0 0.0
        %431 = vmatprep.subr.mxu0 0.0
        %432 = vmatpush1.msra.mxu0 0.0
        %433 = vmatprep.subr.mxu0 0.0
        %434 = vmatpush1.msra.mxu0 0.0
        %435 = vmatprep.subr.mxu0 0.0
        %436 = vmatpush1.msra.mxu0 0.0
        %437 = vmatprep.subr.mxu0 0.0
        %438 = vmatpush1.msra.mxu0 0.0
        %439 = vmatprep.subr.mxu0 0.0
        %440 = vmatpush1.msra.mxu0 0.0
        %441 = vmatprep.subr.mxu0 0.0
        %442 = vmatpush1.msra.mxu0 0.0
        %443 = vmatprep.subr.mxu0 0.0
        %444 = vmatpush1.msra.mxu0 0.0
        %445 = vmatprep.subr.mxu0 0.0
        %446 = vmatpush1.msra.mxu0 0.0
        %447 = vmatprep.subr.mxu0 0.0
        %448 = vmatpush1.msra.mxu0 0.0
        %449 = vmatprep.subr.mxu0 0.0
        %450 = vmatpush1.msra.mxu0 0.0
        %451 = vmatprep.subr.mxu0 0.0
        %452 = vmatpush1.msra.mxu0 0.0
        %453 = vmatprep.subr.mxu0 0.0
        %454 = vmatpush1.msra.mxu0 0.0
        %455 = vmatprep.subr.mxu0 0.0
        %456 = vmatpush1.msra.mxu0 0.0
        %457 = vmatprep.subr.mxu0 0.0
        %458 = vmatpush1.msra.mxu0 0.0
        %459 = vmatprep.subr.mxu0 0.0
        %460 = vmatpush1.msra.mxu0 0.0
        %461 = vmatprep.subr.mxu0 0.0
        %462 = vmatpush1.msra.mxu0 0.0
        %463 = vmatprep.subr.mxu0 0.0
        %464 = vmatpush1.msra.mxu0 0.0
        %465 = vmatprep.subr.mxu0 0.0
        %466 = vmatpush1.msra.mxu0 0.0
        %467 = vmatprep.mubr.f32.mxu0 0.0
        %468 = vmatmul.mubr.f32.gmra.mrb[0].mxu0 %v398
        %v469 = vpop.f32.mrb[0].mxu0
        %v470 = vadd.f32 0.0, %v469
        %v471 = vpop.f32.mrb[0].mxu0
        %472 = vmatprep.mubr.f32.mxu0 0.0
        %473 = vmatmul.mubr.f32.gmra.mrb[0].mxu0 %v401
        %v474 = vpop.f32.mrb[0].mxu0
        %v475 = vadd.f32 0.0, %v474
        %v476 = vpop.f32.mrb[0].mxu0
        %477 = vdwg.mxu0
        %v478 = vadd.f32 %v381, %v470
        %v479 = vadd.f32 %v382, %v475
        %s480 = scalar_lea.vmem %s4, 16
        %v481 = vld [vmem:[%s480] sm:$0xff]
        %v482 = vld [vmem:[%s480 + $0x8] sm:$0xff]
        %483 = vrot.lane.b32.xlu0 %v385, 10
        %v484 = vpop.permute.xlu0 %483
        %485 = vrot.lane.b32.xlu0 %v386, 10
        %v486 = vpop.permute.xlu0 %485
        %vm487 = vcmask 80896
        %v488 = vsel %vm487, %v484, %v486
        %v491 = vsel %vm396, %v481, 0
        %v494 = vsel %vm396, %v482, 0
        %496 = vmatprep.subr.mxu0 0.0
        %497 = vmatpush1.msra.mxu0 %v488
        %498 = vmatprep.subr.mxu0 0.0
        %499 = vmatpush1.msra.mxu0 0.0
        %500 = vmatprep.subr.mxu0 0.0
        %501 = vmatpush1.msra.mxu0 0.0
        %502 = vmatprep.subr.mxu0 0.0
        %503 = vmatpush1.msra.mxu0 0.0
        %504 = vmatprep.subr.mxu0 0.0
        %505 = vmatpush1.msra.mxu0 0.0
        %506 = vmatprep.subr.mxu0 0.0
        %507 = vmatpush1.msra.mxu0 0.0
        %508 = vmatprep.subr.mxu0 0.0
        %509 = vmatpush1.msra.mxu0 0.0
        %510 = vmatprep.subr.mxu0 0.0
        %511 = vmatpush1.msra.mxu0 0.0
        %512 = vmatprep.subr.mxu0 0.0
        %513 = vmatpush1.msra.mxu0 0.0
        %514 = vmatprep.subr.mxu0 0.0
        %515 = vmatpush1.msra.mxu0 0.0
        %516 = vmatprep.subr.mxu0 0.0
        %517 = vmatpush1.msra.mxu0 0.0
        %518 = vmatprep.subr.mxu0 0.0
        %519 = vmatpush1.msra.mxu0 0.0
        %520 = vmatprep.subr.mxu0 0.0
        %521 = vmatpush1.msra.mxu0 0.0
        %522 = vmatprep.subr.mxu0 0.0
        %523 = vmatpush1.msra.mxu0 0.0
        %524 = vmatprep.subr.mxu0 0.0
        %525 = vmatpush1.msra.mxu0 0.0
        %526 = vmatprep.subr.mxu0 0.0
        %527 = vmatpush1.msra.mxu0 0.0
        %528 = vmatprep.subr.mxu0 0.0
        %529 = vmatpush1.msra.mxu0 0.0
        %530 = vmatprep.subr.mxu0 0.0
        %531 = vmatpush1.msra.mxu0 0.0
        %532 = vmatprep.subr.mxu0 0.0
        %533 = vmatpush1.msra.mxu0 0.0
        %534 = vmatprep.subr.mxu0 0.0
        %535 = vmatpush1.msra.mxu0 0.0
        %536 = vmatprep.subr.mxu0 0.0
        %537 = vmatpush1.msra.mxu0 0.0
        %538 = vmatprep.subr.mxu0 0.0
        %539 = vmatpush1.msra.mxu0 0.0
        %540 = vmatprep.subr.mxu0 0.0
        %541 = vmatpush1.msra.mxu0 0.0
        %542 = vmatprep.subr.mxu0 0.0
        %543 = vmatpush1.msra.mxu0 0.0
        %544 = vmatprep.subr.mxu0 0.0
        %545 = vmatpush1.msra.mxu0 0.0
        %546 = vmatprep.subr.mxu0 0.0
        %547 = vmatpush1.msra.mxu0 0.0
        %548 = vmatprep.subr.mxu0 0.0
        %549 = vmatpush1.msra.mxu0 0.0
        %550 = vmatprep.subr.mxu0 0.0
        %551 = vmatpush1.msra.mxu0 0.0
        %552 = vmatprep.subr.mxu0 0.0
        %553 = vmatpush1.msra.mxu0 0.0
        %554 = vmatprep.subr.mxu0 0.0
        %555 = vmatpush1.msra.mxu0 0.0
        %556 = vmatprep.subr.mxu0 0.0
        %557 = vmatpush1.msra.mxu0 0.0
        %558 = vmatprep.subr.mxu0 0.0
        %559 = vmatpush1.msra.mxu0 0.0
        %560 = vmatprep.mubr.f32.mxu0 0.0
        %561 = vmatmul.mubr.f32.gmra.mrb[0].mxu0 %v491
        %v562 = vpop.f32.mrb[0].mxu0
        %v563 = vadd.f32 0.0, %v562
        %v564 = vpop.f32.mrb[0].mxu0
        %565 = vmatprep.mubr.f32.mxu0 0.0
        %566 = vmatmul.mubr.f32.gmra.mrb[0].mxu0 %v494
        %v567 = vpop.f32.mrb[0].mxu0
        %v568 = vadd.f32 0.0, %v567
        %v569 = vpop.f32.mrb[0].mxu0
        %570 = vdwg.mxu0
        %v571 = vadd.f32 %v478, %v563
        %v572 = vadd.f32 %v479, %v568
        %s573 = scalar_lea.vmem %s4, 32
        %v574 = vld [vmem:[%s573] sm:$0xff]
        %v575 = vld [vmem:[%s573 + $0x8] sm:$0xff]
        %576 = vrot.lane.b32.xlu0 %v385, 9
        %v577 = vpop.permute.xlu0 %576
        %578 = vrot.lane.b32.xlu0 %v386, 9
        %v579 = vpop.permute.xlu0 %578
        %vm580 = vcmask 72704
        %v581 = vsel %vm580, %v577, %v579
        %v584 = vsel %vm396, %v574, 0
        %v587 = vsel %vm396, %v575, 0
        %589 = vmatprep.subr.mxu0 0.0
        %590 = vmatpush1.msra.mxu0 %v581
        %591 = vmatprep.subr.mxu0 0.0
        %592 = vmatpush1.msra.mxu0 0.0
        %593 = vmatprep.subr.mxu0 0.0
        %594 = vmatpush1.msra.mxu0 0.0
        %595 = vmatprep.subr.mxu0 0.0
        %596 = vmatpush1.msra.mxu0 0.0
        %597 = vmatprep.subr.mxu0 0.0
        %598 = vmatpush1.msra.mxu0 0.0
        %599 = vmatprep.subr.mxu0 0.0
        %600 = vmatpush1.msra.mxu0 0.0
        %601 = vmatprep.subr.mxu0 0.0
        %602 = vmatpush1.msra.mxu0 0.0
        %603 = vmatprep.subr.mxu0 0.0
        %604 = vmatpush1.msra.mxu0 0.0
        %605 = vmatprep.subr.mxu0 0.0
        %606 = vmatpush1.msra.mxu0 0.0
        %607 = vmatprep.subr.mxu0 0.0
        %608 = vmatpush1.msra.mxu0 0.0
        %609 = vmatprep.subr.mxu0 0.0
        %610 = vmatpush1.msra.mxu0 0.0
        %611 = vmatprep.subr.mxu0 0.0
        %612 = vmatpush1.msra.mxu0 0.0
        %613 = vmatprep.subr.mxu0 0.0
        %614 = vmatpush1.msra.mxu0 0.0
        %615 = vmatprep.subr.mxu0 0.0
        %616 = vmatpush1.msra.mxu0 0.0
        %617 = vmatprep.subr.mxu0 0.0
        %618 = vmatpush1.msra.mxu0 0.0
        %619 = vmatprep.subr.mxu0 0.0
        %620 = vmatpush1.msra.mxu0 0.0
        %621 = vmatprep.subr.mxu0 0.0
        %622 = vmatpush1.msra.mxu0 0.0
        %623 = vmatprep.subr.mxu0 0.0
        %624 = vmatpush1.msra.mxu0 0.0
        %625 = vmatprep.subr.mxu0 0.0
        %626 = vmatpush1.msra.mxu0 0.0
        %627 = vmatprep.subr.mxu0 0.0
        %628 = vmatpush1.msra.mxu0 0.0
        %629 = vmatprep.subr.mxu0 0.0
        %630 = vmatpush1.msra.mxu0 0.0
        %631 = vmatprep.subr.mxu0 0.0
        %632 = vmatpush1.msra.mxu0 0.0
        %633 = vmatprep.subr.mxu0 0.0
        %634 = vmatpush1.msra.mxu0 0.0
        %635 = vmatprep.subr.mxu0 0.0
        %636 = vmatpush1.msra.mxu0 0.0
        %637 = vmatprep.subr.mxu0 0.0
        %638 = vmatpush1.msra.mxu0 0.0
        %639 = vmatprep.subr.mxu0 0.0
        %640 = vmatpush1.msra.mxu0 0.0
        %641 = vmatprep.subr.mxu0 0.0
        %642 = vmatpush1.msra.mxu0 0.0
        %643 = vmatprep.subr.mxu0 0.0
        %644 = vmatpush1.msra.mxu0 0.0
        %645 = vmatprep.subr.mxu0 0.0
        %646 = vmatpush1.msra.mxu0 0.0
        %647 = vmatprep.subr.mxu0 0.0
        %648 = vmatpush1.msra.mxu0 0.0
        %649 = vmatprep.subr.mxu0 0.0
        %650 = vmatpush1.msra.mxu0 0.0
        %651 = vmatprep.subr.mxu0 0.0
        %652 = vmatpush1.msra.mxu0 0.0
        %653 = vmatprep.mubr.f32.mxu0 0.0
        %654 = vmatmul.mubr.f32.gmra.mrb[0].mxu0 %v584
        %v655 = vpop.f32.mrb[0].mxu0
        %v656 = vadd.f32 0.0, %v655
        %v657 = vpop.f32.mrb[0].mxu0
        %658 = vmatprep.mubr.f32.mxu0 0.0
        %659 = vmatmul.mubr.f32.gmra.mrb[0].mxu0 %v587
        %v660 = vpop.f32.mrb[0].mxu0
        %v661 = vadd.f32 0.0, %v660
        %v662 = vpop.f32.mrb[0].mxu0
        %663 = vdwg.mxu0
        %v664 = vadd.f32 %v571, %v656
        %v665 = vadd.f32 %v572, %v661
        %s666 = scalar_lea.vmem %s4, 48
        %v667 = vld [vmem:[%s666] sm:$0xff]
        %v668 = vld [vmem:[%s666 + $0x8] sm:$0xff]
        %669 = vrot.lane.b32.xlu0 %v385, 1
        %v670 = vpop.permute.xlu0 %669
        %671 = vrot.lane.b32.xlu0 %v386, 1
        %v672 = vpop.permute.xlu0 %671
        %vm673 = vcmask 7168
        %v674 = vsel %vm673, %v670, %v672
        %v677 = vsel %vm396, %v667, 0
        %v680 = vsel %vm396, %v668, 0
        %682 = vmatprep.subr.mxu0 0.0
        %683 = vmatpush1.msra.mxu0 %v674
        %684 = vmatprep.subr.mxu0 0.0
        %685 = vmatpush1.msra.mxu0 0.0
        %686 = vmatprep.subr.mxu0 0.0
        %687 = vmatpush1.msra.mxu0 0.0
        %688 = vmatprep.subr.mxu0 0.0
        %689 = vmatpush1.msra.mxu0 0.0
        %690 = vmatprep.subr.mxu0 0.0
        %691 = vmatpush1.msra.mxu0 0.0
        %692 = vmatprep.subr.mxu0 0.0
        %693 = vmatpush1.msra.mxu0 0.0
        %694 = vmatprep.subr.mxu0 0.0
        %695 = vmatpush1.msra.mxu0 0.0
        %696 = vmatprep.subr.mxu0 0.0
        %697 = vmatpush1.msra.mxu0 0.0
        %698 = vmatprep.subr.mxu0 0.0
        %699 = vmatpush1.msra.mxu0 0.0
        %700 = vmatprep.subr.mxu0 0.0
        %701 = vmatpush1.msra.mxu0 0.0
        %702 = vmatprep.subr.mxu0 0.0
        %703 = vmatpush1.msra.mxu0 0.0
        %704 = vmatprep.subr.mxu0 0.0
        %705 = vmatpush1.msra.mxu0 0.0
        %706 = vmatprep.subr.mxu0 0.0
        %707 = vmatpush1.msra.mxu0 0.0
        %708 = vmatprep.subr.mxu0 0.0
        %709 = vmatpush1.msra.mxu0 0.0
        %710 = vmatprep.subr.mxu0 0.0
        %711 = vmatpush1.msra.mxu0 0.0
        %712 = vmatprep.subr.mxu0 0.0
        %713 = vmatpush1.msra.mxu0 0.0
        %714 = vmatprep.subr.mxu0 0.0
        %715 = vmatpush1.msra.mxu0 0.0
        %716 = vmatprep.subr.mxu0 0.0
        %717 = vmatpush1.msra.mxu0 0.0
        %718 = vmatprep.subr.mxu0 0.0
        %719 = vmatpush1.msra.mxu0 0.0
        %720 = vmatprep.subr.mxu0 0.0
        %721 = vmatpush1.msra.mxu0 0.0
        %722 = vmatprep.subr.mxu0 0.0
        %723 = vmatpush1.msra.mxu0 0.0
        %724 = vmatprep.subr.mxu0 0.0
        %725 = vmatpush1.msra.mxu0 0.0
        %726 = vmatprep.subr.mxu0 0.0
        %727 = vmatpush1.msra.mxu0 0.0
        %728 = vmatprep.subr.mxu0 0.0
        %729 = vmatpush1.msra.mxu0 0.0
        %730 = vmatprep.subr.mxu0 0.0
        %731 = vmatpush1.msra.mxu0 0.0
        %732 = vmatprep.subr.mxu0 0.0
        %733 = vmatpush1.msra.mxu0 0.0
        %734 = vmatprep.subr.mxu0 0.0
        %735 = vmatpush1.msra.mxu0 0.0
        %736 = vmatprep.subr.mxu0 0.0
        %737 = vmatpush1.msra.mxu0 0.0
        %738 = vmatprep.subr.mxu0 0.0
        %739 = vmatpush1.msra.mxu0 0.0
        %740 = vmatprep.subr.mxu0 0.0
        %741 = vmatpush1.msra.mxu0 0.0
        %742 = vmatprep.subr.mxu0 0.0
        %743 = vmatpush1.msra.mxu0 0.0
        %744 = vmatprep.subr.mxu0 0.0
        %745 = vmatpush1.msra.mxu0 0.0
        %746 = vmatprep.mubr.f32.mxu0 0.0
        %747 = vmatmul.mubr.f32.gmra.mrb[0].mxu0 %v677
        %v748 = vpop.f32.mrb[0].mxu0
        %v749 = vadd.f32 0.0, %v748
        %v750 = vpop.f32.mrb[0].mxu0
        %751 = vmatprep.mubr.f32.mxu0 0.0
        %752 = vmatmul.mubr.f32.gmra.mrb[0].mxu0 %v680
        %v753 = vpop.f32.mrb[0].mxu0
        %v754 = vadd.f32 0.0, %v753
        %v755 = vpop.f32.mrb[0].mxu0
        %756 = vdwg.mxu0
        %v757 = vadd.f32 %v664, %v749
        %v758 = vadd.f32 %v665, %v754
        %s759 = scalar_lea.vmem %s4, 64
        %v760 = vld [vmem:[%s759] sm:$0xff]
        %v761 = vld [vmem:[%s759 + $0x8] sm:$0xff]
        %v763 = vsel %vm396, %v760, 0
        %v766 = vsel %vm396, %v761, 0
        %768 = vmatprep.subr.mxu0 0.0
        %769 = vmatpush1.msra.mxu0 %v386
        %770 = vmatprep.subr.mxu0 0.0
        %771 = vmatpush1.msra.mxu0 0.0
        %772 = vmatprep.subr.mxu0 0.0
        %773 = vmatpush1.msra.mxu0 0.0
        %774 = vmatprep.subr.mxu0 0.0
        %775 = vmatpush1.msra.mxu0 0.0
        %776 = vmatprep.subr.mxu0 0.0
        %777 = vmatpush1.msra.mxu0 0.0
        %778 = vmatprep.subr.mxu0 0.0
        %779 = vmatpush1.msra.mxu0 0.0
        %780 = vmatprep.subr.mxu0 0.0
        %781 = vmatpush1.msra.mxu0 0.0
        %782 = vmatprep.subr.mxu0 0.0
        %783 = vmatpush1.msra.mxu0 0.0
        %784 = vmatprep.subr.mxu0 0.0
        %785 = vmatpush1.msra.mxu0 0.0
        %786 = vmatprep.subr.mxu0 0.0
        %787 = vmatpush1.msra.mxu0 0.0
        %788 = vmatprep.subr.mxu0 0.0
        %789 = vmatpush1.msra.mxu0 0.0
        %790 = vmatprep.subr.mxu0 0.0
        %791 = vmatpush1.msra.mxu0 0.0
        %792 = vmatprep.subr.mxu0 0.0
        %793 = vmatpush1.msra.mxu0 0.0
        %794 = vmatprep.subr.mxu0 0.0
        %795 = vmatpush1.msra.mxu0 0.0
        %796 = vmatprep.subr.mxu0 0.0
        %797 = vmatpush1.msra.mxu0 0.0
        %798 = vmatprep.subr.mxu0 0.0
        %799 = vmatpush1.msra.mxu0 0.0
        %800 = vmatprep.subr.mxu0 0.0
        %801 = vmatpush1.msra.mxu0 0.0
        %802 = vmatprep.subr.mxu0 0.0
        %803 = vmatpush1.msra.mxu0 0.0
        %804 = vmatprep.subr.mxu0 0.0
        %805 = vmatpush1.msra.mxu0 0.0
        %806 = vmatprep.subr.mxu0 0.0
        %807 = vmatpush1.msra.mxu0 0.0
        %808 = vmatprep.subr.mxu0 0.0
        %809 = vmatpush1.msra.mxu0 0.0
        %810 = vmatprep.subr.mxu0 0.0
        %811 = vmatpush1.msra.mxu0 0.0
        %812 = vmatprep.subr.mxu0 0.0
        %813 = vmatpush1.msra.mxu0 0.0
        %814 = vmatprep.subr.mxu0 0.0
        %815 = vmatpush1.msra.mxu0 0.0
        %816 = vmatprep.subr.mxu0 0.0
        %817 = vmatpush1.msra.mxu0 0.0
        %818 = vmatprep.subr.mxu0 0.0
        %819 = vmatpush1.msra.mxu0 0.0
        %820 = vmatprep.subr.mxu0 0.0
        %821 = vmatpush1.msra.mxu0 0.0
        %822 = vmatprep.subr.mxu0 0.0
        %823 = vmatpush1.msra.mxu0 0.0
        %824 = vmatprep.subr.mxu0 0.0
        %825 = vmatpush1.msra.mxu0 0.0
        %826 = vmatprep.subr.mxu0 0.0
        %827 = vmatpush1.msra.mxu0 0.0
        %828 = vmatprep.subr.mxu0 0.0
        %829 = vmatpush1.msra.mxu0 0.0
        %830 = vmatprep.subr.mxu0 0.0
        %831 = vmatpush1.msra.mxu0 0.0
        %832 = vmatprep.mubr.f32.mxu0 0.0
        %833 = vmatmul.mubr.f32.gmra.mrb[0].mxu0 %v763
        %v834 = vpop.f32.mrb[0].mxu0
        %v835 = vadd.f32 0.0, %v834
        %v836 = vpop.f32.mrb[0].mxu0
        %837 = vmatprep.mubr.f32.mxu0 0.0
        %838 = vmatmul.mubr.f32.gmra.mrb[0].mxu0 %v766
        %v839 = vpop.f32.mrb[0].mxu0
        %v840 = vadd.f32 0.0, %v839
        %v841 = vpop.f32.mrb[0].mxu0
        %842 = vdwg.mxu0
        %v843 = vadd.f32 %v757, %v835
        %v844 = vadd.f32 %v758, %v840
        %s845 = scalar_lea.vmem %s4, 80
        %v846 = vld [vmem:[%s845] sm:$0xff]
        %v847 = vld [vmem:[%s845 + $0x8] sm:$0xff]
        %848 = vrot.lane.b32.xlu0 %v386, 127
        %v849 = vpop.permute.xlu0 %848
        %v852 = vsel %vm396, %v846, 0
        %v855 = vsel %vm396, %v847, 0
        %857 = vmatprep.subr.mxu0 0.0
        %858 = vmatpush1.msra.mxu0 %v849
        %859 = vmatprep.subr.mxu0 0.0
        %860 = vmatpush1.msra.mxu0 0.0
        %861 = vmatprep.subr.mxu0 0.0
        %862 = vmatpush1.msra.mxu0 0.0
        %863 = vmatprep.subr.mxu0 0.0
        %864 = vmatpush1.msra.mxu0 0.0
        %865 = vmatprep.subr.mxu0 0.0
        %866 = vmatpush1.msra.mxu0 0.0
        %867 = vmatprep.subr.mxu0 0.0
        %868 = vmatpush1.msra.mxu0 0.0
        %869 = vmatprep.subr.mxu0 0.0
        %870 = vmatpush1.msra.mxu0 0.0
        %871 = vmatprep.subr.mxu0 0.0
        %872 = vmatpush1.msra.mxu0 0.0
        %873 = vmatprep.subr.mxu0 0.0
        %874 = vmatpush1.msra.mxu0 0.0
        %875 = vmatprep.subr.mxu0 0.0
        %876 = vmatpush1.msra.mxu0 0.0
        %877 = vmatprep.subr.mxu0 0.0
        %878 = vmatpush1.msra.mxu0 0.0
        %879 = vmatprep.subr.mxu0 0.0
        %880 = vmatpush1.msra.mxu0 0.0
        %881 = vmatprep.subr.mxu0 0.0
        %882 = vmatpush1.msra.mxu0 0.0
        %883 = vmatprep.subr.mxu0 0.0
        %884 = vmatpush1.msra.mxu0 0.0
        %885 = vmatprep.subr.mxu0 0.0
        %886 = vmatpush1.msra.mxu0 0.0
        %887 = vmatprep.subr.mxu0 0.0
        %888 = vmatpush1.msra.mxu0 0.0
        %889 = vmatprep.subr.mxu0 0.0
        %890 = vmatpush1.msra.mxu0 0.0
        %891 = vmatprep.subr.mxu0 0.0
        %892 = vmatpush1.msra.mxu0 0.0
        %893 = vmatprep.subr.mxu0 0.0
        %894 = vmatpush1.msra.mxu0 0.0
        %895 = vmatprep.subr.mxu0 0.0
        %896 = vmatpush1.msra.mxu0 0.0
        %897 = vmatprep.subr.mxu0 0.0
        %898 = vmatpush1.msra.mxu0 0.0
        %899 = vmatprep.subr.mxu0 0.0
        %900 = vmatpush1.msra.mxu0 0.0
        %901 = vmatprep.subr.mxu0 0.0
        %902 = vmatpush1.msra.mxu0 0.0
        %903 = vmatprep.subr.mxu0 0.0
        %904 = vmatpush1.msra.mxu0 0.0
        %905 = vmatprep.subr.mxu0 0.0
        %906 = vmatpush1.msra.mxu0 0.0
        %907 = vmatprep.subr.mxu0 0.0
        %908 = vmatpush1.msra.mxu0 0.0
        %909 = vmatprep.subr.mxu0 0.0
        %910 = vmatpush1.msra.mxu0 0.0
        %911 = vmatprep.subr.mxu0 0.0
        %912 = vmatpush1.msra.mxu0 0.0
        %913 = vmatprep.subr.mxu0 0.0
        %914 = vmatpush1.msra.mxu0 0.0
        %915 = vmatprep.subr.mxu0 0.0
        %916 = vmatpush1.msra.mxu0 0.0
        %917 = vmatprep.subr.mxu0 0.0
        %918 = vmatpush1.msra.mxu0 0.0
        %919 = vmatprep.subr.mxu0 0.0
        %920 = vmatpush1.msra.mxu0 0.0
        %921 = vmatprep.mubr.f32.mxu0 0.0
        %922 = vmatmul.mubr.f32.gmra.mrb[0].mxu0 %v852
        %v923 = vpop.f32.mrb[0].mxu0
        %v924 = vadd.f32 0.0, %v923
        %v925 = vpop.f32.mrb[0].mxu0
        %926 = vmatprep.mubr.f32.mxu0 0.0
        %927 = vmatmul.mubr.f32.gmra.mrb[0].mxu0 %v855
        %v928 = vpop.f32.mrb[0].mxu0
        %v929 = vadd.f32 0.0, %v928
        %v930 = vpop.f32.mrb[0].mxu0
        %931 = vdwg.mxu0
        %v932 = vadd.f32 %v843, %v924
        %v933 = vadd.f32 %v844, %v929
        %s934 = scalar_lea.vmem %s4, 96
        %v935 = vld [vmem:[%s934] sm:$0xff]
        %v936 = vld [vmem:[%s934 + $0x8] sm:$0xff]
        %937 = vrot.lane.b32.xlu0 %v386, 119
        %v938 = vpop.permute.xlu0 %937
        %v941 = vsel %vm396, %v935, 0
        %v944 = vsel %vm396, %v936, 0
        %946 = vmatprep.subr.mxu0 0.0
        %947 = vmatpush1.msra.mxu0 %v938
        %948 = vmatprep.subr.mxu0 0.0
        %949 = vmatpush1.msra.mxu0 0.0
        %950 = vmatprep.subr.mxu0 0.0
        %951 = vmatpush1.msra.mxu0 0.0
        %952 = vmatprep.subr.mxu0 0.0
        %953 = vmatpush1.msra.mxu0 0.0
        %954 = vmatprep.subr.mxu0 0.0
        %955 = vmatpush1.msra.mxu0 0.0
        %956 = vmatprep.subr.mxu0 0.0
        %957 = vmatpush1.msra.mxu0 0.0
        %958 = vmatprep.subr.mxu0 0.0
        %959 = vmatpush1.msra.mxu0 0.0
        %960 = vmatprep.subr.mxu0 0.0
        %961 = vmatpush1.msra.mxu0 0.0
        %962 = vmatprep.subr.mxu0 0.0
        %963 = vmatpush1.msra.mxu0 0.0
        %964 = vmatprep.subr.mxu0 0.0
        %965 = vmatpush1.msra.mxu0 0.0
        %966 = vmatprep.subr.mxu0 0.0
        %967 = vmatpush1.msra.mxu0 0.0
        %968 = vmatprep.subr.mxu0 0.0
        %969 = vmatpush1.msra.mxu0 0.0
        %970 = vmatprep.subr.mxu0 0.0
        %971 = vmatpush1.msra.mxu0 0.0
        %972 = vmatprep.subr.mxu0 0.0
        %973 = vmatpush1.msra.mxu0 0.0
        %974 = vmatprep.subr.mxu0 0.0
        %975 = vmatpush1.msra.mxu0 0.0
        %976 = vmatprep.subr.mxu0 0.0
        %977 = vmatpush1.msra.mxu0 0.0
        %978 = vmatprep.subr.mxu0 0.0
        %979 = vmatpush1.msra.mxu0 0.0
        %980 = vmatprep.subr.mxu0 0.0
        %981 = vmatpush1.msra.mxu0 0.0
        %982 = vmatprep.subr.mxu0 0.0
        %983 = vmatpush1.msra.mxu0 0.0
        %984 = vmatprep.subr.mxu0 0.0
        %985 = vmatpush1.msra.mxu0 0.0
        %986 = vmatprep.subr.mxu0 0.0
        %987 = vmatpush1.msra.mxu0 0.0
        %988 = vmatprep.subr.mxu0 0.0
        %989 = vmatpush1.msra.mxu0 0.0
        %990 = vmatprep.subr.mxu0 0.0
        %991 = vmatpush1.msra.mxu0 0.0
        %992 = vmatprep.subr.mxu0 0.0
        %993 = vmatpush1.msra.mxu0 0.0
        %994 = vmatprep.subr.mxu0 0.0
        %995 = vmatpush1.msra.mxu0 0.0
        %996 = vmatprep.subr.mxu0 0.0
        %997 = vmatpush1.msra.mxu0 0.0
        %998 = vmatprep.subr.mxu0 0.0
        %999 = vmatpush1.msra.mxu0 0.0
        %1000 = vmatprep.subr.mxu0 0.0
        %1001 = vmatpush1.msra.mxu0 0.0
        %1002 = vmatprep.subr.mxu0 0.0
        %1003 = vmatpush1.msra.mxu0 0.0
        %1004 = vmatprep.subr.mxu0 0.0
        %1005 = vmatpush1.msra.mxu0 0.0
        %1006 = vmatprep.subr.mxu0 0.0
        %1007 = vmatpush1.msra.mxu0 0.0
        %1008 = vmatprep.subr.mxu0 0.0
        %1009 = vmatpush1.msra.mxu0 0.0
        %1010 = vmatprep.mubr.f32.mxu0 0.0
        %1011 = vmatmul.mubr.f32.gmra.mrb[0].mxu0 %v941
        %v1012 = vpop.f32.mrb[0].mxu0
        %v1013 = vadd.f32 0.0, %v1012
        %v1014 = vpop.f32.mrb[0].mxu0
        %1015 = vmatprep.mubr.f32.mxu0 0.0
        %1016 = vmatmul.mubr.f32.gmra.mrb[0].mxu0 %v944
        %v1017 = vpop.f32.mrb[0].mxu0
        %v1018 = vadd.f32 0.0, %v1017
        %v1019 = vpop.f32.mrb[0].mxu0
        %1020 = vdwg.mxu0
        %v1021 = vadd.f32 %v932, %v1013
        %v1022 = vadd.f32 %v933, %v1018
        %s1023 = scalar_lea.vmem %s4, 112
        %v1024 = vld [vmem:[%s1023] sm:$0xff]
        %v1025 = vld [vmem:[%s1023 + $0x8] sm:$0xff]
        %1026 = vrot.lane.b32.xlu0 %v386, 118
        %v1027 = vpop.permute.xlu0 %1026
        %v1030 = vsel %vm396, %v1024, 0
        %v1033 = vsel %vm396, %v1025, 0
        %1035 = vmatprep.subr.mxu0 0.0
        %1036 = vmatpush1.msra.mxu0 %v1027
        %1037 = vmatprep.subr.mxu0 0.0
        %1038 = vmatpush1.msra.mxu0 0.0
        %1039 = vmatprep.subr.mxu0 0.0
        %1040 = vmatpush1.msra.mxu0 0.0
        %1041 = vmatprep.subr.mxu0 0.0
        %1042 = vmatpush1.msra.mxu0 0.0
        %1043 = vmatprep.subr.mxu0 0.0
        %1044 = vmatpush1.msra.mxu0 0.0
        %1045 = vmatprep.subr.mxu0 0.0
        %1046 = vmatpush1.msra.mxu0 0.0
        %1047 = vmatprep.subr.mxu0 0.0
        %1048 = vmatpush1.msra.mxu0 0.0
        %1049 = vmatprep.subr.mxu0 0.0
        %1050 = vmatpush1.msra.mxu0 0.0
        %1051 = vmatprep.subr.mxu0 0.0
        %1052 = vmatpush1.msra.mxu0 0.0
        %1053 = vmatprep.subr.mxu0 0.0
        %1054 = vmatpush1.msra.mxu0 0.0
        %1055 = vmatprep.subr.mxu0 0.0
        %1056 = vmatpush1.msra.mxu0 0.0
        %1057 = vmatprep.subr.mxu0 0.0
        %1058 = vmatpush1.msra.mxu0 0.0
        %1059 = vmatprep.subr.mxu0 0.0
        %1060 = vmatpush1.msra.mxu0 0.0
        %1061 = vmatprep.subr.mxu0 0.0
        %1062 = vmatpush1.msra.mxu0 0.0
        %1063 = vmatprep.subr.mxu0 0.0
        %1064 = vmatpush1.msra.mxu0 0.0
        %1065 = vmatprep.subr.mxu0 0.0
        %1066 = vmatpush1.msra.mxu0 0.0
        %1067 = vmatprep.subr.mxu0 0.0
        %1068 = vmatpush1.msra.mxu0 0.0
        %1069 = vmatprep.subr.mxu0 0.0
        %1070 = vmatpush1.msra.mxu0 0.0
        %1071 = vmatprep.subr.mxu0 0.0
        %1072 = vmatpush1.msra.mxu0 0.0
        %1073 = vmatprep.subr.mxu0 0.0
        %1074 = vmatpush1.msra.mxu0 0.0
        %1075 = vmatprep.subr.mxu0 0.0
        %1076 = vmatpush1.msra.mxu0 0.0
        %1077 = vmatprep.subr.mxu0 0.0
        %1078 = vmatpush1.msra.mxu0 0.0
        %1079 = vmatprep.subr.mxu0 0.0
        %1080 = vmatpush1.msra.mxu0 0.0
        %1081 = vmatprep.subr.mxu0 0.0
        %1082 = vmatpush1.msra.mxu0 0.0
        %1083 = vmatprep.subr.mxu0 0.0
        %1084 = vmatpush1.msra.mxu0 0.0
        %1085 = vmatprep.subr.mxu0 0.0
        %1086 = vmatpush1.msra.mxu0 0.0
        %1087 = vmatprep.subr.mxu0 0.0
        %1088 = vmatpush1.msra.mxu0 0.0
        %1089 = vmatprep.subr.mxu0 0.0
        %1090 = vmatpush1.msra.mxu0 0.0
        %1091 = vmatprep.subr.mxu0 0.0
        %1092 = vmatpush1.msra.mxu0 0.0
        %1093 = vmatprep.subr.mxu0 0.0
        %1094 = vmatpush1.msra.mxu0 0.0
        %1095 = vmatprep.subr.mxu0 0.0
        %1096 = vmatpush1.msra.mxu0 0.0
        %1097 = vmatprep.subr.mxu0 0.0
        %1098 = vmatpush1.msra.mxu0 0.0
        %1099 = vmatprep.mubr.f32.mxu0 0.0
        %1100 = vmatmul.mubr.f32.gmra.mrb[0].mxu0 %v1030
        %v1101 = vpop.f32.mrb[0].mxu0
        %v1102 = vadd.f32 0.0, %v1101
        %v1103 = vpop.f32.mrb[0].mxu0
        %1104 = vmatprep.mubr.f32.mxu0 0.0
        %1105 = vmatmul.mubr.f32.gmra.mrb[0].mxu0 %v1033
        %v1106 = vpop.f32.mrb[0].mxu0
        %v1107 = vadd.f32 0.0, %v1106
        %v1108 = vpop.f32.mrb[0].mxu0
        %1109 = vdwg.mxu0
        %v1110 = vadd.f32 %v1021, %v1102
        %v1111 = vadd.f32 %v1022, %v1107
        %s1112 = scalar_lea.vmem %s4, 128
        %v1113 = vld [vmem:[%s1112] sm:$0xff]
        %v1114 = vld [vmem:[%s1112 + $0x8] sm:$0xff]
        %1115 = vrot.lane.b32.xlu0 %v386, 117
        %v1116 = vpop.permute.xlu0 %1115
        %v1119 = vsel %vm396, %v1113, 0
        %v1122 = vsel %vm396, %v1114, 0
        %1124 = vmatprep.subr.mxu0 0.0
        %1125 = vmatpush1.msra.mxu0 %v1116
        %1126 = vmatprep.subr.mxu0 0.0
        %1127 = vmatpush1.msra.mxu0 0.0
        %1128 = vmatprep.subr.mxu0 0.0
        %1129 = vmatpush1.msra.mxu0 0.0
        %1130 = vmatprep.subr.mxu0 0.0
        %1131 = vmatpush1.msra.mxu0 0.0
        %1132 = vmatprep.subr.mxu0 0.0
        %1133 = vmatpush1.msra.mxu0 0.0
        %1134 = vmatprep.subr.mxu0 0.0
        %1135 = vmatpush1.msra.mxu0 0.0
        %1136 = vmatprep.subr.mxu0 0.0
        %1137 = vmatpush1.msra.mxu0 0.0
        %1138 = vmatprep.subr.mxu0 0.0
        %1139 = vmatpush1.msra.mxu0 0.0
        %1140 = vmatprep.subr.mxu0 0.0
        %1141 = vmatpush1.msra.mxu0 0.0
        %1142 = vmatprep.subr.mxu0 0.0
        %1143 = vmatpush1.msra.mxu0 0.0
        %1144 = vmatprep.subr.mxu0 0.0
        %1145 = vmatpush1.msra.mxu0 0.0
        %1146 = vmatprep.subr.mxu0 0.0
        %1147 = vmatpush1.msra.mxu0 0.0
        %1148 = vmatprep.subr.mxu0 0.0
        %1149 = vmatpush1.msra.mxu0 0.0
        %1150 = vmatprep.subr.mxu0 0.0
        %1151 = vmatpush1.msra.mxu0 0.0
        %1152 = vmatprep.subr.mxu0 0.0
        %1153 = vmatpush1.msra.mxu0 0.0
        %1154 = vmatprep.subr.mxu0 0.0
        %1155 = vmatpush1.msra.mxu0 0.0
        %1156 = vmatprep.subr.mxu0 0.0
        %1157 = vmatpush1.msra.mxu0 0.0
        %1158 = vmatprep.subr.mxu0 0.0
        %1159 = vmatpush1.msra.mxu0 0.0
        %1160 = vmatprep.subr.mxu0 0.0
        %1161 = vmatpush1.msra.mxu0 0.0
        %1162 = vmatprep.subr.mxu0 0.0
        %1163 = vmatpush1.msra.mxu0 0.0
        %1164 = vmatprep.subr.mxu0 0.0
        %1165 = vmatpush1.msra.mxu0 0.0
        %1166 = vmatprep.subr.mxu0 0.0
        %1167 = vmatpush1.msra.mxu0 0.0
        %1168 = vmatprep.subr.mxu0 0.0
        %1169 = vmatpush1.msra.mxu0 0.0
        %1170 = vmatprep.subr.mxu0 0.0
        %1171 = vmatpush1.msra.mxu0 0.0
        %1172 = vmatprep.subr.mxu0 0.0
        %1173 = vmatpush1.msra.mxu0 0.0
        %1174 = vmatprep.subr.mxu0 0.0
        %1175 = vmatpush1.msra.mxu0 0.0
        %1176 = vmatprep.subr.mxu0 0.0
        %1177 = vmatpush1.msra.mxu0 0.0
        %1178 = vmatprep.subr.mxu0 0.0
        %1179 = vmatpush1.msra.mxu0 0.0
        %1180 = vmatprep.subr.mxu0 0.0
        %1181 = vmatpush1.msra.mxu0 0.0
        %1182 = vmatprep.subr.mxu0 0.0
        %1183 = vmatpush1.msra.mxu0 0.0
        %1184 = vmatprep.subr.mxu0 0.0
        %1185 = vmatpush1.msra.mxu0 0.0
        %1186 = vmatprep.subr.mxu0 0.0
        %1187 = vmatpush1.msra.mxu0 0.0
        %1188 = vmatprep.mubr.f32.mxu0 0.0
        %1189 = vmatmul.mubr.f32.gmra.mrb[0].mxu0 %v1119
        %v1190 = vpop.f32.mrb[0].mxu0
        %v1191 = vadd.f32 0.0, %v1190
        %v1192 = vpop.f32.mrb[0].mxu0
        %1193 = vmatprep.mubr.f32.mxu0 0.0
        %1194 = vmatmul.mubr.f32.gmra.mrb[0].mxu0 %v1122
        %v1195 = vpop.f32.mrb[0].mxu0
        %v1196 = vadd.f32 0.0, %v1195
        %v1197 = vpop.f32.mrb[0].mxu0
        %1198 = vdwg.mxu0
        %v1199 = vadd.f32 %v1110, %v1191
        %v1200 = vadd.f32 %v1111, %v1196
        %v1201 = vmul.f32 %v1199, %v364
        %v1202 = vmul.f32 %v1200, %v364
        %1203 = vst.msk [vmem:[%s343] sm:$0xff] %vm367, %v1201
        %1204 = vst.msk [vmem:[%s343 + $0x8] sm:$0xff] %vm367, %v1202
        %v1205 = vsel %vm367, %v1201, 0.0
        %1206 = vadd.xlane.f32.xlu0 %v1205
        %v1207 = vpop.xlane.xlu0 %1206
        %v1208 = vmul.f32 %v1207, 0.015625
        %v1209 = vsub.f32 %v1201, %v1208
        %v1210 = vmul.f32 %v1209, %v364
        %v1211 = vmul.f32 %v1210, %v1210
        %v1212 = vsel %vm367, %v1211, 0.0
        %1213 = vadd.xlane.f32.xlu0 %v1212
        %v1214 = vpop.xlane.xlu0 %1213
        %s1215 = scalar_lea.vmem [#allocation4], 8
        %v1216 = vld [vmem:[%s1215] sm:$0xff]
        %v1217 = vsub.f32 %v1208, %v1216
        %s1218 = sadd.f32 %s259, 1.0
        %v1219 = vstv %s1218
        %v1220 = vrcp.pop %v1219
        %s1221 = vtos %v1220
        %v1222 = vstv %s1221
        %v1223 = vmul.f32 %v1217, %v1222
        %v1224 = vadd.f32 %v1216, %v1223
        %1225 = vst.msk [vmem:[%s1215] sm:$0xff] %vm673, %v1224
        %s1226 = scalar_lea.vmem [#allocation5], 8
        %v1227 = vld [vmem:[%s1226] sm:$0xff]
        %v1228 = vadd.f32 %v1227, %v1214
        %v1229 = vmul.f32 %v1217, %v1217
        %s1230 = smul.f32 %s259, 64.0
        %s1231 = smul.f32 %s1230, %s1221
        %v1232 = vstv %s1231
        %v1233 = vmul.f32 %v1229, %v1232
        %v1234 = vadd.f32 %v1228, %v1233
        %1235 = vst.msk [vmem:[%s1226] sm:$0xff] %vm673, %v1234
      $region56: #{_lambda_.3} parent=43 // pred_fallthru
        _
      %p1236 = scmp.eq.s32.totalorder %s21, 2
      // Predicated region
      $region61: #{_lambda_.3} parent=43 // pred_check
        %p1237 = pneg %p1236
      $region62: #{_lambda_.3} parent=43 // pred_check_branch
        %1239 = sbr.rel (%p1237) target = $region64
      $region63: #{_lambda_.3} parent=43 // pred_region
        %p1240 = scmp.eq.s32.totalorder %s22, 0
        // Predicated region
        $region65: #{_lambda_.3} parent=63 // pred_check
          %p1241 = pneg %p1240
        $region66: #{_lambda_.3} parent=63 // pred_check_branch
          %1243 = sbr.rel (%p1241) target = $region68
        $region67: #{_lambda_.3} parent=63 // pred_region
          %s1244 = scalar_lea.vmem [#allocation4], 8
          %v1245 = vld [vmem:[%s1244] sm:$0xff]
          %s1246 = scalar_lea.vmem [#allocation5], 8
          %v1247 = vld [vmem:[%s1246] sm:$0xff]
          %v1248 = vmul.f32 %v1247, 0.0078125
          %v1249 = vmax.f32 %v1248, 0.0
          %s1250 = scalar_lea.vmem %s2, 8
          %v1251 = vld [vmem:[%s1250] sm:$0xff]
          %v1252 = vadd.f32 %v1249, 1e-12
          %v1253 = vrsqrt.pop %v1252
          %v1254 = vmul.f32 %v1251, %v1253
          %vm1255 = vcmask 7168
          %1256 = vst.msk [vmem:[#allocation6] sm:$0xff] %vm1255, %v1254
          %s1257 = scalar_lea.vmem %s3, 8
          %v1258 = vld [vmem:[%s1257] sm:$0xff]
          %v1259 = vmul.f32 %v1245, %v1254
          %v1260 = vsub.f32 %v1258, %v1259
          %1261 = vst.msk [vmem:[#allocation7] sm:$0xff] %vm1255, %v1260
        $region68: #{_lambda_.3} parent=63 // pred_fallthru
          _
        %s1262 = smul.u32 %s22, 16
        %s1263 = scalar_lea.vmem [#allocation2], %s1262
        %v1264 = vld [vmem:[%s1263] sm:$0xff]
        %v1265 = vld [vmem:[#allocation6] sm:$0xff]
        %1267 = vset.pattern.permute.xlu0 0
        %1268 = vperm.xlu0 %1267, %v1265
        %v1269 = vpop.permute.xlu0 %1268
        %v1271 = vmul.f32 %v1264, %v1269
        %v1272 = vld [vmem:[#allocation7] sm:$0xff]
        %1274 = vset.pattern.permute.xlu0 0
        %1275 = vperm.xlu0 %1274, %v1272
        %v1276 = vpop.permute.xlu0 %1275
        %v1278 = vadd.f32 %v1271, %v1276
        %v1279 = vmax.f32 %v1278, 0.0
        %v1281 = vlaneseq
        %v1282 = vshrl.u32 %v1281, 7
        %v1283 = vsub.s32 0, %v1282
        %v1284 = vrot.slane %v260, %v1283
        %v1286 = vmul.f32 %v1279, %v1284
        %vm1287 = vcmask 818176
        %1288 = vst.msk [vmem:[#allocation3 + $0x8] sm:$0xff] %vm1287, %v1286
        %s1289 = scalar_lea.vmem %s5, 16
        %v1290 = vld [vmem:[%s1289] sm:$0xff]
        %1292 = vset.pattern.permute.xlu0 0
        %1293 = vperm.xlu0 %1292, %v1290
        %v1294 = vpop.permute.xlu0 %1293
        %v1296 = vadd.f32 %v1294, 0.0
        %s1297 = scalar_lea.vmem %s4, 144
        %v1298 = vld [vmem:[%s1297] sm:$0xff]
        %v1299 = vld [vmem:[%s1297 + $0x8] sm:$0xff]
        %v1300 = vld [vmem:[#allocation3] sm:$0xff]
        %v1301 = vld [vmem:[#allocation3 + $0x8] sm:$0xff]
        %1304 = vrot.lane.b32.xlu0 %v1300, 11
        %v1305 = vpop.permute.xlu0 %1304
        %1306 = vrot.lane.b32.xlu0 %v1301, 11
        %v1307 = vpop.permute.xlu0 %1306
        %vm1308 = vcmask 89088
        %v1309 = vsel %vm1308, %v1305, %v1307
        %vm1311 = vcmask 64512
        %v1313 = vsel %vm1311, %v1298, 0
        %v1316 = vsel %vm1311, %v1299, 0
        %1318 = vmatprep.subr.mxu0 0.0
        %1319 = vmatpush1.msra.mxu0 %v1309
        %1320 = vmatprep.subr.mxu0 0.0
        %1321 = vmatpush1.msra.mxu0 0.0
        %1322 = vmatprep.subr.mxu0 0.0
        %1323 = vmatpush1.msra.mxu0 0.0
        %1324 = vmatprep.subr.mxu0 0.0
        %1325 = vmatpush1.msra.mxu0 0.0
        %1326 = vmatprep.subr.mxu0 0.0
        %1327 = vmatpush1.msra.mxu0 0.0
        %1328 = vmatprep.subr.mxu0 0.0
        %1329 = vmatpush1.msra.mxu0 0.0
        %1330 = vmatprep.subr.mxu0 0.0
        %1331 = vmatpush1.msra.mxu0 0.0
        %1332 = vmatprep.subr.mxu0 0.0
        %1333 = vmatpush1.msra.mxu0 0.0
        %1334 = vmatprep.subr.mxu0 0.0
        %1335 = vmatpush1.msra.mxu0 0.0
        %1336 = vmatprep.subr.mxu0 0.0
        %1337 = vmatpush1.msra.mxu0 0.0
        %1338 = vmatprep.subr.mxu0 0.0
        %1339 = vmatpush1.msra.mxu0 0.0
        %1340 = vmatprep.subr.mxu0 0.0
        %1341 = vmatpush1.msra.mxu0 0.0
        %1342 = vmatprep.subr.mxu0 0.0
        %1343 = vmatpush1.msra.mxu0 0.0
        %1344 = vmatprep.subr.mxu0 0.0
        %1345 = vmatpush1.msra.mxu0 0.0
        %1346 = vmatprep.subr.mxu0 0.0
        %1347 = vmatpush1.msra.mxu0 0.0
        %1348 = vmatprep.subr.mxu0 0.0
        %1349 = vmatpush1.msra.mxu0 0.0
        %1350 = vmatprep.subr.mxu0 0.0
        %1351 = vmatpush1.msra.mxu0 0.0
        %1352 = vmatprep.subr.mxu0 0.0
        %1353 = vmatpush1.msra.mxu0 0.0
        %1354 = vmatprep.subr.mxu0 0.0
        %1355 = vmatpush1.msra.mxu0 0.0
        %1356 = vmatprep.subr.mxu0 0.0
        %1357 = vmatpush1.msra.mxu0 0.0
        %1358 = vmatprep.subr.mxu0 0.0
        %1359 = vmatpush1.msra.mxu0 0.0
        %1360 = vmatprep.subr.mxu0 0.0
        %1361 = vmatpush1.msra.mxu0 0.0
        %1362 = vmatprep.subr.mxu0 0.0
        %1363 = vmatpush1.msra.mxu0 0.0
        %1364 = vmatprep.subr.mxu0 0.0
        %1365 = vmatpush1.msra.mxu0 0.0
        %1366 = vmatprep.subr.mxu0 0.0
        %1367 = vmatpush1.msra.mxu0 0.0
        %1368 = vmatprep.subr.mxu0 0.0
        %1369 = vmatpush1.msra.mxu0 0.0
        %1370 = vmatprep.subr.mxu0 0.0
        %1371 = vmatpush1.msra.mxu0 0.0
        %1372 = vmatprep.subr.mxu0 0.0
        %1373 = vmatpush1.msra.mxu0 0.0
        %1374 = vmatprep.subr.mxu0 0.0
        %1375 = vmatpush1.msra.mxu0 0.0
        %1376 = vmatprep.subr.mxu0 0.0
        %1377 = vmatpush1.msra.mxu0 0.0
        %1378 = vmatprep.subr.mxu0 0.0
        %1379 = vmatpush1.msra.mxu0 0.0
        %1380 = vmatprep.subr.mxu0 0.0
        %1381 = vmatpush1.msra.mxu0 0.0
        %1382 = vmatprep.mubr.f32.mxu0 0.0
        %1383 = vmatmul.mubr.f32.gmra.mrb[0].mxu0 %v1313
        %v1384 = vpop.f32.mrb[0].mxu0
        %v1385 = vadd.f32 0.0, %v1384
        %v1386 = vpop.f32.mrb[0].mxu0
        %1387 = vmatprep.mubr.f32.mxu0 0.0
        %1388 = vmatmul.mubr.f32.gmra.mrb[0].mxu0 %v1316
        %v1389 = vpop.f32.mrb[0].mxu0
        %v1390 = vpop.f32.mrb[0].mxu0
        %1391 = vdwg.mxu0
        %v1392 = vadd.f32 %v1296, %v1385
        %s1393 = scalar_lea.vmem %s4, 160
        %v1394 = vld [vmem:[%s1393] sm:$0xff]
        %v1395 = vld [vmem:[%s1393 + $0x8] sm:$0xff]
        %1396 = vrot.lane.b32.xlu0 %v1300, 10
        %v1397 = vpop.permute.xlu0 %1396
        %1398 = vrot.lane.b32.xlu0 %v1301, 10
        %v1399 = vpop.permute.xlu0 %1398
        %vm1400 = vcmask 80896
        %v1401 = vsel %vm1400, %v1397, %v1399
        %v1404 = vsel %vm1311, %v1394, 0
        %v1407 = vsel %vm1311, %v1395, 0
        %1409 = vmatprep.subr.mxu0 0.0
        %1410 = vmatpush1.msra.mxu0 %v1401
        %1411 = vmatprep.subr.mxu0 0.0
        %1412 = vmatpush1.msra.mxu0 0.0
        %1413 = vmatprep.subr.mxu0 0.0
        %1414 = vmatpush1.msra.mxu0 0.0
        %1415 = vmatprep.subr.mxu0 0.0
        %1416 = vmatpush1.msra.mxu0 0.0
        %1417 = vmatprep.subr.mxu0 0.0
        %1418 = vmatpush1.msra.mxu0 0.0
        %1419 = vmatprep.subr.mxu0 0.0
        %1420 = vmatpush1.msra.mxu0 0.0
        %1421 = vmatprep.subr.mxu0 0.0
        %1422 = vmatpush1.msra.mxu0 0.0
        %1423 = vmatprep.subr.mxu0 0.0
        %1424 = vmatpush1.msra.mxu0 0.0
        %1425 = vmatprep.subr.mxu0 0.0
        %1426 = vmatpush1.msra.mxu0 0.0
        %1427 = vmatprep.subr.mxu0 0.0
        %1428 = vmatpush1.msra.mxu0 0.0
        %1429 = vmatprep.subr.mxu0 0.0
        %1430 = vmatpush1.msra.mxu0 0.0
        %1431 = vmatprep.subr.mxu0 0.0
        %1432 = vmatpush1.msra.mxu0 0.0
        %1433 = vmatprep.subr.mxu0 0.0
        %1434 = vmatpush1.msra.mxu0 0.0
        %1435 = vmatprep.subr.mxu0 0.0
        %1436 = vmatpush1.msra.mxu0 0.0
        %1437 = vmatprep.subr.mxu0 0.0
        %1438 = vmatpush1.msra.mxu0 0.0
        %1439 = vmatprep.subr.mxu0 0.0
        %1440 = vmatpush1.msra.mxu0 0.0
        %1441 = vmatprep.subr.mxu0 0.0
        %1442 = vmatpush1.msra.mxu0 0.0
        %1443 = vmatprep.subr.mxu0 0.0
        %1444 = vmatpush1.msra.mxu0 0.0
        %1445 = vmatprep.subr.mxu0 0.0
        %1446 = vmatpush1.msra.mxu0 0.0
        %1447 = vmatprep.subr.mxu0 0.0
        %1448 = vmatpush1.msra.mxu0 0.0
        %1449 = vmatprep.subr.mxu0 0.0
        %1450 = vmatpush1.msra.mxu0 0.0
        %1451 = vmatprep.subr.mxu0 0.0
        %1452 = vmatpush1.msra.mxu0 0.0
        %1453 = vmatprep.subr.mxu0 0.0
        %1454 = vmatpush1.msra.mxu0 0.0
        %1455 = vmatprep.subr.mxu0 0.0
        %1456 = vmatpush1.msra.mxu0 0.0
        %1457 = vmatprep.subr.mxu0 0.0
        %1458 = vmatpush1.msra.mxu0 0.0
        %1459 = vmatprep.subr.mxu0 0.0
        %1460 = vmatpush1.msra.mxu0 0.0
        %1461 = vmatprep.subr.mxu0 0.0
        %1462 = vmatpush1.msra.mxu0 0.0
        %1463 = vmatprep.subr.mxu0 0.0
        %1464 = vmatpush1.msra.mxu0 0.0
        %1465 = vmatprep.subr.mxu0 0.0
        %1466 = vmatpush1.msra.mxu0 0.0
        %1467 = vmatprep.subr.mxu0 0.0
        %1468 = vmatpush1.msra.mxu0 0.0
        %1469 = vmatprep.subr.mxu0 0.0
        %1470 = vmatpush1.msra.mxu0 0.0
        %1471 = vmatprep.subr.mxu0 0.0
        %1472 = vmatpush1.msra.mxu0 0.0
        %1473 = vmatprep.mubr.f32.mxu0 0.0
        %1474 = vmatmul.mubr.f32.gmra.mrb[0].mxu0 %v1404
        %v1475 = vpop.f32.mrb[0].mxu0
        %v1476 = vadd.f32 0.0, %v1475
        %v1477 = vpop.f32.mrb[0].mxu0
        %1478 = vmatprep.mubr.f32.mxu0 0.0
        %1479 = vmatmul.mubr.f32.gmra.mrb[0].mxu0 %v1407
        %v1480 = vpop.f32.mrb[0].mxu0
        %v1481 = vpop.f32.mrb[0].mxu0
        %1482 = vdwg.mxu0
        %v1483 = vadd.f32 %v1392, %v1476
        %s1484 = scalar_lea.vmem %s4, 176
        %v1485 = vld [vmem:[%s1484] sm:$0xff]
        %v1486 = vld [vmem:[%s1484 + $0x8] sm:$0xff]
        %1487 = vrot.lane.b32.xlu0 %v1300, 9
        %v1488 = vpop.permute.xlu0 %1487
        %1489 = vrot.lane.b32.xlu0 %v1301, 9
        %v1490 = vpop.permute.xlu0 %1489
        %vm1491 = vcmask 72704
        %v1492 = vsel %vm1491, %v1488, %v1490
        %v1495 = vsel %vm1311, %v1485, 0
        %v1498 = vsel %vm1311, %v1486, 0
        %1500 = vmatprep.subr.mxu0 0.0
        %1501 = vmatpush1.msra.mxu0 %v1492
        %1502 = vmatprep.subr.mxu0 0.0
        %1503 = vmatpush1.msra.mxu0 0.0
        %1504 = vmatprep.subr.mxu0 0.0
        %1505 = vmatpush1.msra.mxu0 0.0
        %1506 = vmatprep.subr.mxu0 0.0
        %1507 = vmatpush1.msra.mxu0 0.0
        %1508 = vmatprep.subr.mxu0 0.0
        %1509 = vmatpush1.msra.mxu0 0.0
        %1510 = vmatprep.subr.mxu0 0.0
        %1511 = vmatpush1.msra.mxu0 0.0
        %1512 = vmatprep.subr.mxu0 0.0
        %1513 = vmatpush1.msra.mxu0 0.0
        %1514 = vmatprep.subr.mxu0 0.0
        %1515 = vmatpush1.msra.mxu0 0.0
        %1516 = vmatprep.subr.mxu0 0.0
        %1517 = vmatpush1.msra.mxu0 0.0
        %1518 = vmatprep.subr.mxu0 0.0
        %1519 = vmatpush1.msra.mxu0 0.0
        %1520 = vmatprep.subr.mxu0 0.0
        %1521 = vmatpush1.msra.mxu0 0.0
        %1522 = vmatprep.subr.mxu0 0.0
        %1523 = vmatpush1.msra.mxu0 0.0
        %1524 = vmatprep.subr.mxu0 0.0
        %1525 = vmatpush1.msra.mxu0 0.0
        %1526 = vmatprep.subr.mxu0 0.0
        %1527 = vmatpush1.msra.mxu0 0.0
        %1528 = vmatprep.subr.mxu0 0.0
        %1529 = vmatpush1.msra.mxu0 0.0
        %1530 = vmatprep.subr.mxu0 0.0
        %1531 = vmatpush1.msra.mxu0 0.0
        %1532 = vmatprep.subr.mxu0 0.0
        %1533 = vmatpush1.msra.mxu0 0.0
        %1534 = vmatprep.subr.mxu0 0.0
        %1535 = vmatpush1.msra.mxu0 0.0
        %1536 = vmatprep.subr.mxu0 0.0
        %1537 = vmatpush1.msra.mxu0 0.0
        %1538 = vmatprep.subr.mxu0 0.0
        %1539 = vmatpush1.msra.mxu0 0.0
        %1540 = vmatprep.subr.mxu0 0.0
        %1541 = vmatpush1.msra.mxu0 0.0
        %1542 = vmatprep.subr.mxu0 0.0
        %1543 = vmatpush1.msra.mxu0 0.0
        %1544 = vmatprep.subr.mxu0 0.0
        %1545 = vmatpush1.msra.mxu0 0.0
        %1546 = vmatprep.subr.mxu0 0.0
        %1547 = vmatpush1.msra.mxu0 0.0
        %1548 = vmatprep.subr.mxu0 0.0
        %1549 = vmatpush1.msra.mxu0 0.0
        %1550 = vmatprep.subr.mxu0 0.0
        %1551 = vmatpush1.msra.mxu0 0.0
        %1552 = vmatprep.subr.mxu0 0.0
        %1553 = vmatpush1.msra.mxu0 0.0
        %1554 = vmatprep.subr.mxu0 0.0
        %1555 = vmatpush1.msra.mxu0 0.0
        %1556 = vmatprep.subr.mxu0 0.0
        %1557 = vmatpush1.msra.mxu0 0.0
        %1558 = vmatprep.subr.mxu0 0.0
        %1559 = vmatpush1.msra.mxu0 0.0
        %1560 = vmatprep.subr.mxu0 0.0
        %1561 = vmatpush1.msra.mxu0 0.0
        %1562 = vmatprep.subr.mxu0 0.0
        %1563 = vmatpush1.msra.mxu0 0.0
        %1564 = vmatprep.mubr.f32.mxu0 0.0
        %1565 = vmatmul.mubr.f32.gmra.mrb[0].mxu0 %v1495
        %v1566 = vpop.f32.mrb[0].mxu0
        %v1567 = vadd.f32 0.0, %v1566
        %v1568 = vpop.f32.mrb[0].mxu0
        %1569 = vmatprep.mubr.f32.mxu0 0.0
        %1570 = vmatmul.mubr.f32.gmra.mrb[0].mxu0 %v1498
        %v1571 = vpop.f32.mrb[0].mxu0
        %v1572 = vpop.f32.mrb[0].mxu0
        %1573 = vdwg.mxu0
        %v1574 = vadd.f32 %v1483, %v1567
        %s1575 = scalar_lea.vmem %s4, 192
        %v1576 = vld [vmem:[%s1575] sm:$0xff]
        %v1577 = vld [vmem:[%s1575 + $0x8] sm:$0xff]
        %1578 = vrot.lane.b32.xlu0 %v1300, 1
        %v1579 = vpop.permute.xlu0 %1578
        %1580 = vrot.lane.b32.xlu0 %v1301, 1
        %v1581 = vpop.permute.xlu0 %1580
        %vm1582 = vcmask 7168
        %v1583 = vsel %vm1582, %v1579, %v1581
        %v1586 = vsel %vm1311, %v1576, 0
        %v1589 = vsel %vm1311, %v1577, 0
        %1591 = vmatprep.subr.mxu0 0.0
        %1592 = vmatpush1.msra.mxu0 %v1583
        %1593 = vmatprep.subr.mxu0 0.0
        %1594 = vmatpush1.msra.mxu0 0.0
        %1595 = vmatprep.subr.mxu0 0.0
        %1596 = vmatpush1.msra.mxu0 0.0
        %1597 = vmatprep.subr.mxu0 0.0
        %1598 = vmatpush1.msra.mxu0 0.0
        %1599 = vmatprep.subr.mxu0 0.0
        %1600 = vmatpush1.msra.mxu0 0.0
        %1601 = vmatprep.subr.mxu0 0.0
        %1602 = vmatpush1.msra.mxu0 0.0
        %1603 = vmatprep.subr.mxu0 0.0
        %1604 = vmatpush1.msra.mxu0 0.0
        %1605 = vmatprep.subr.mxu0 0.0
        %1606 = vmatpush1.msra.mxu0 0.0
        %1607 = vmatprep.subr.mxu0 0.0
        %1608 = vmatpush1.msra.mxu0 0.0
        %1609 = vmatprep.subr.mxu0 0.0
        %1610 = vmatpush1.msra.mxu0 0.0
        %1611 = vmatprep.subr.mxu0 0.0
        %1612 = vmatpush1.msra.mxu0 0.0
        %1613 = vmatprep.subr.mxu0 0.0
        %1614 = vmatpush1.msra.mxu0 0.0
        %1615 = vmatprep.subr.mxu0 0.0
        %1616 = vmatpush1.msra.mxu0 0.0
        %1617 = vmatprep.subr.mxu0 0.0
        %1618 = vmatpush1.msra.mxu0 0.0
        %1619 = vmatprep.subr.mxu0 0.0
        %1620 = vmatpush1.msra.mxu0 0.0
        %1621 = vmatprep.subr.mxu0 0.0
        %1622 = vmatpush1.msra.mxu0 0.0
        %1623 = vmatprep.subr.mxu0 0.0
        %1624 = vmatpush1.msra.mxu0 0.0
        %1625 = vmatprep.subr.mxu0 0.0
        %1626 = vmatpush1.msra.mxu0 0.0
        %1627 = vmatprep.subr.mxu0 0.0
        %1628 = vmatpush1.msra.mxu0 0.0
        %1629 = vmatprep.subr.mxu0 0.0
        %1630 = vmatpush1.msra.mxu0 0.0
        %1631 = vmatprep.subr.mxu0 0.0
        %1632 = vmatpush1.msra.mxu0 0.0
        %1633 = vmatprep.subr.mxu0 0.0
        %1634 = vmatpush1.msra.mxu0 0.0
        %1635 = vmatprep.subr.mxu0 0.0
        %1636 = vmatpush1.msra.mxu0 0.0
        %1637 = vmatprep.subr.mxu0 0.0
        %1638 = vmatpush1.msra.mxu0 0.0
        %1639 = vmatprep.subr.mxu0 0.0
        %1640 = vmatpush1.msra.mxu0 0.0
        %1641 = vmatprep.subr.mxu0 0.0
        %1642 = vmatpush1.msra.mxu0 0.0
        %1643 = vmatprep.subr.mxu0 0.0
        %1644 = vmatpush1.msra.mxu0 0.0
        %1645 = vmatprep.subr.mxu0 0.0
        %1646 = vmatpush1.msra.mxu0 0.0
        %1647 = vmatprep.subr.mxu0 0.0
        %1648 = vmatpush1.msra.mxu0 0.0
        %1649 = vmatprep.subr.mxu0 0.0
        %1650 = vmatpush1.msra.mxu0 0.0
        %1651 = vmatprep.subr.mxu0 0.0
        %1652 = vmatpush1.msra.mxu0 0.0
        %1653 = vmatprep.subr.mxu0 0.0
        %1654 = vmatpush1.msra.mxu0 0.0
        %1655 = vmatprep.mubr.f32.mxu0 0.0
        %1656 = vmatmul.mubr.f32.gmra.mrb[0].mxu0 %v1586
        %v1657 = vpop.f32.mrb[0].mxu0
        %v1658 = vadd.f32 0.0, %v1657
        %v1659 = vpop.f32.mrb[0].mxu0
        %1660 = vmatprep.mubr.f32.mxu0 0.0
        %1661 = vmatmul.mubr.f32.gmra.mrb[0].mxu0 %v1589
        %v1662 = vpop.f32.mrb[0].mxu0
        %v1663 = vpop.f32.mrb[0].mxu0
        %1664 = vdwg.mxu0
        %v1665 = vadd.f32 %v1574, %v1658
        %s1666 = scalar_lea.vmem %s4, 208
        %v1667 = vld [vmem:[%s1666] sm:$0xff]
        %v1668 = vld [vmem:[%s1666 + $0x8] sm:$0xff]
        %v1670 = vsel %vm1311, %v1667, 0
        %v1673 = vsel %vm1311, %v1668, 0
        %1675 = vmatprep.subr.mxu0 0.0
        %1676 = vmatpush1.msra.mxu0 %v1301
        %1677 = vmatprep.subr.mxu0 0.0
        %1678 = vmatpush1.msra.mxu0 0.0
        %1679 = vmatprep.subr.mxu0 0.0
        %1680 = vmatpush1.msra.mxu0 0.0
        %1681 = vmatprep.subr.mxu0 0.0
        %1682 = vmatpush1.msra.mxu0 0.0
        %1683 = vmatprep.subr.mxu0 0.0
        %1684 = vmatpush1.msra.mxu0 0.0
        %1685 = vmatprep.subr.mxu0 0.0
        %1686 = vmatpush1.msra.mxu0 0.0
        %1687 = vmatprep.subr.mxu0 0.0
        %1688 = vmatpush1.msra.mxu0 0.0
        %1689 = vmatprep.subr.mxu0 0.0
        %1690 = vmatpush1.msra.mxu0 0.0
        %1691 = vmatprep.subr.mxu0 0.0
        %1692 = vmatpush1.msra.mxu0 0.0
        %1693 = vmatprep.subr.mxu0 0.0
        %1694 = vmatpush1.msra.mxu0 0.0
        %1695 = vmatprep.subr.mxu0 0.0
        %1696 = vmatpush1.msra.mxu0 0.0
        %1697 = vmatprep.subr.mxu0 0.0
        %1698 = vmatpush1.msra.mxu0 0.0
        %1699 = vmatprep.subr.mxu0 0.0
        %1700 = vmatpush1.msra.mxu0 0.0
        %1701 = vmatprep.subr.mxu0 0.0
        %1702 = vmatpush1.msra.mxu0 0.0
        %1703 = vmatprep.subr.mxu0 0.0
        %1704 = vmatpush1.msra.mxu0 0.0
        %1705 = vmatprep.subr.mxu0 0.0
        %1706 = vmatpush1.msra.mxu0 0.0
        %1707 = vmatprep.subr.mxu0 0.0
        %1708 = vmatpush1.msra.mxu0 0.0
        %1709 = vmatprep.subr.mxu0 0.0
        %1710 = vmatpush1.msra.mxu0 0.0
        %1711 = vmatprep.subr.mxu0 0.0
        %1712 = vmatpush1.msra.mxu0 0.0
        %1713 = vmatprep.subr.mxu0 0.0
        %1714 = vmatpush1.msra.mxu0 0.0
        %1715 = vmatprep.subr.mxu0 0.0
        %1716 = vmatpush1.msra.mxu0 0.0
        %1717 = vmatprep.subr.mxu0 0.0
        %1718 = vmatpush1.msra.mxu0 0.0
        %1719 = vmatprep.subr.mxu0 0.0
        %1720 = vmatpush1.msra.mxu0 0.0
        %1721 = vmatprep.subr.mxu0 0.0
        %1722 = vmatpush1.msra.mxu0 0.0
        %1723 = vmatprep.subr.mxu0 0.0
        %1724 = vmatpush1.msra.mxu0 0.0
        %1725 = vmatprep.subr.mxu0 0.0
        %1726 = vmatpush1.msra.mxu0 0.0
        %1727 = vmatprep.subr.mxu0 0.0
        %1728 = vmatpush1.msra.mxu0 0.0
        %1729 = vmatprep.subr.mxu0 0.0
        %1730 = vmatpush1.msra.mxu0 0.0
        %1731 = vmatprep.subr.mxu0 0.0
        %1732 = vmatpush1.msra.mxu0 0.0
        %1733 = vmatprep.subr.mxu0 0.0
        %1734 = vmatpush1.msra.mxu0 0.0
        %1735 = vmatprep.subr.mxu0 0.0
        %1736 = vmatpush1.msra.mxu0 0.0
        %1737 = vmatprep.subr.mxu0 0.0
        %1738 = vmatpush1.msra.mxu0 0.0
        %1739 = vmatprep.mubr.f32.mxu0 0.0
        %1740 = vmatmul.mubr.f32.gmra.mrb[0].mxu0 %v1670
        %v1741 = vpop.f32.mrb[0].mxu0
        %v1742 = vadd.f32 0.0, %v1741
        %v1743 = vpop.f32.mrb[0].mxu0
        %1744 = vmatprep.mubr.f32.mxu0 0.0
        %1745 = vmatmul.mubr.f32.gmra.mrb[0].mxu0 %v1673
        %v1746 = vpop.f32.mrb[0].mxu0
        %v1747 = vpop.f32.mrb[0].mxu0
        %1748 = vdwg.mxu0
        %v1749 = vadd.f32 %v1665, %v1742
        %s1750 = scalar_lea.vmem %s4, 224
        %v1751 = vld [vmem:[%s1750] sm:$0xff]
        %v1752 = vld [vmem:[%s1750 + $0x8] sm:$0xff]
        %1753 = vrot.lane.b32.xlu0 %v1301, 127
        %v1754 = vpop.permute.xlu0 %1753
        %v1757 = vsel %vm1311, %v1751, 0
        %v1760 = vsel %vm1311, %v1752, 0
        %1762 = vmatprep.subr.mxu0 0.0
        %1763 = vmatpush1.msra.mxu0 %v1754
        %1764 = vmatprep.subr.mxu0 0.0
        %1765 = vmatpush1.msra.mxu0 0.0
        %1766 = vmatprep.subr.mxu0 0.0
        %1767 = vmatpush1.msra.mxu0 0.0
        %1768 = vmatprep.subr.mxu0 0.0
        %1769 = vmatpush1.msra.mxu0 0.0
        %1770 = vmatprep.subr.mxu0 0.0
        %1771 = vmatpush1.msra.mxu0 0.0
        %1772 = vmatprep.subr.mxu0 0.0
        %1773 = vmatpush1.msra.mxu0 0.0
        %1774 = vmatprep.subr.mxu0 0.0
        %1775 = vmatpush1.msra.mxu0 0.0
        %1776 = vmatprep.subr.mxu0 0.0
        %1777 = vmatpush1.msra.mxu0 0.0
        %1778 = vmatprep.subr.mxu0 0.0
        %1779 = vmatpush1.msra.mxu0 0.0
        %1780 = vmatprep.subr.mxu0 0.0
        %1781 = vmatpush1.msra.mxu0 0.0
        %1782 = vmatprep.subr.mxu0 0.0
        %1783 = vmatpush1.msra.mxu0 0.0
        %1784 = vmatprep.subr.mxu0 0.0
        %1785 = vmatpush1.msra.mxu0 0.0
        %1786 = vmatprep.subr.mxu0 0.0
        %1787 = vmatpush1.msra.mxu0 0.0
        %1788 = vmatprep.subr.mxu0 0.0
        %1789 = vmatpush1.msra.mxu0 0.0
        %1790 = vmatprep.subr.mxu0 0.0
        %1791 = vmatpush1.msra.mxu0 0.0
        %1792 = vmatprep.subr.mxu0 0.0
        %1793 = vmatpush1.msra.mxu0 0.0
        %1794 = vmatprep.subr.mxu0 0.0
        %1795 = vmatpush1.msra.mxu0 0.0
        %1796 = vmatprep.subr.mxu0 0.0
        %1797 = vmatpush1.msra.mxu0 0.0
        %1798 = vmatprep.subr.mxu0 0.0
        %1799 = vmatpush1.msra.mxu0 0.0
        %1800 = vmatprep.subr.mxu0 0.0
        %1801 = vmatpush1.msra.mxu0 0.0
        %1802 = vmatprep.subr.mxu0 0.0
        %1803 = vmatpush1.msra.mxu0 0.0
        %1804 = vmatprep.subr.mxu0 0.0
        %1805 = vmatpush1.msra.mxu0 0.0
        %1806 = vmatprep.subr.mxu0 0.0
        %1807 = vmatpush1.msra.mxu0 0.0
        %1808 = vmatprep.subr.mxu0 0.0
        %1809 = vmatpush1.msra.mxu0 0.0
        %1810 = vmatprep.subr.mxu0 0.0
        %1811 = vmatpush1.msra.mxu0 0.0
        %1812 = vmatprep.subr.mxu0 0.0
        %1813 = vmatpush1.msra.mxu0 0.0
        %1814 = vmatprep.subr.mxu0 0.0
        %1815 = vmatpush1.msra.mxu0 0.0
        %1816 = vmatprep.subr.mxu0 0.0
        %1817 = vmatpush1.msra.mxu0 0.0
        %1818 = vmatprep.subr.mxu0 0.0
        %1819 = vmatpush1.msra.mxu0 0.0
        %1820 = vmatprep.subr.mxu0 0.0
        %1821 = vmatpush1.msra.mxu0 0.0
        %1822 = vmatprep.subr.mxu0 0.0
        %1823 = vmatpush1.msra.mxu0 0.0
        %1824 = vmatprep.subr.mxu0 0.0
        %1825 = vmatpush1.msra.mxu0 0.0
        %1826 = vmatprep.mubr.f32.mxu0 0.0
        %1827 = vmatmul.mubr.f32.gmra.mrb[0].mxu0 %v1757
        %v1828 = vpop.f32.mrb[0].mxu0
        %v1829 = vadd.f32 0.0, %v1828
        %v1830 = vpop.f32.mrb[0].mxu0
        %1831 = vmatprep.mubr.f32.mxu0 0.0
        %1832 = vmatmul.mubr.f32.gmra.mrb[0].mxu0 %v1760
        %v1833 = vpop.f32.mrb[0].mxu0
        %v1834 = vpop.f32.mrb[0].mxu0
        %1835 = vdwg.mxu0
        %v1836 = vadd.f32 %v1749, %v1829
        %s1837 = scalar_lea.vmem %s4, 240
        %v1838 = vld [vmem:[%s1837] sm:$0xff]
        %v1839 = vld [vmem:[%s1837 + $0x8] sm:$0xff]
        %1840 = vrot.lane.b32.xlu0 %v1301, 119
        %v1841 = vpop.permute.xlu0 %1840
        %v1844 = vsel %vm1311, %v1838, 0
        %v1847 = vsel %vm1311, %v1839, 0
        %1849 = vmatprep.subr.mxu0 0.0
        %1850 = vmatpush1.msra.mxu0 %v1841
        %1851 = vmatprep.subr.mxu0 0.0
        %1852 = vmatpush1.msra.mxu0 0.0
        %1853 = vmatprep.subr.mxu0 0.0
        %1854 = vmatpush1.msra.mxu0 0.0
        %1855 = vmatprep.subr.mxu0 0.0
        %1856 = vmatpush1.msra.mxu0 0.0
        %1857 = vmatprep.subr.mxu0 0.0
        %1858 = vmatpush1.msra.mxu0 0.0
        %1859 = vmatprep.subr.mxu0 0.0
        %1860 = vmatpush1.msra.mxu0 0.0
        %1861 = vmatprep.subr.mxu0 0.0
        %1862 = vmatpush1.msra.mxu0 0.0
        %1863 = vmatprep.subr.mxu0 0.0
        %1864 = vmatpush1.msra.mxu0 0.0
        %1865 = vmatprep.subr.mxu0 0.0
        %1866 = vmatpush1.msra.mxu0 0.0
        %1867 = vmatprep.subr.mxu0 0.0
        %1868 = vmatpush1.msra.mxu0 0.0
        %1869 = vmatprep.subr.mxu0 0.0
        %1870 = vmatpush1.msra.mxu0 0.0
        %1871 = vmatprep.subr.mxu0 0.0
        %1872 = vmatpush1.msra.mxu0 0.0
        %1873 = vmatprep.subr.mxu0 0.0
        %1874 = vmatpush1.msra.mxu0 0.0
        %1875 = vmatprep.subr.mxu0 0.0
        %1876 = vmatpush1.msra.mxu0 0.0
        %1877 = vmatprep.subr.mxu0 0.0
        %1878 = vmatpush1.msra.mxu0 0.0
        %1879 = vmatprep.subr.mxu0 0.0
        %1880 = vmatpush1.msra.mxu0 0.0
        %1881 = vmatprep.subr.mxu0 0.0
        %1882 = vmatpush1.msra.mxu0 0.0
        %1883 = vmatprep.subr.mxu0 0.0
        %1884 = vmatpush1.msra.mxu0 0.0
        %1885 = vmatprep.subr.mxu0 0.0
        %1886 = vmatpush1.msra.mxu0 0.0
        %1887 = vmatprep.subr.mxu0 0.0
        %1888 = vmatpush1.msra.mxu0 0.0
        %1889 = vmatprep.subr.mxu0 0.0
        %1890 = vmatpush1.msra.mxu0 0.0
        %1891 = vmatprep.subr.mxu0 0.0
        %1892 = vmatpush1.msra.mxu0 0.0
        %1893 = vmatprep.subr.mxu0 0.0
        %1894 = vmatpush1.msra.mxu0 0.0
        %1895 = vmatprep.subr.mxu0 0.0
        %1896 = vmatpush1.msra.mxu0 0.0
        %1897 = vmatprep.subr.mxu0 0.0
        %1898 = vmatpush1.msra.mxu0 0.0
        %1899 = vmatprep.subr.mxu0 0.0
        %1900 = vmatpush1.msra.mxu0 0.0
        %1901 = vmatprep.subr.mxu0 0.0
        %1902 = vmatpush1.msra.mxu0 0.0
        %1903 = vmatprep.subr.mxu0 0.0
        %1904 = vmatpush1.msra.mxu0 0.0
        %1905 = vmatprep.subr.mxu0 0.0
        %1906 = vmatpush1.msra.mxu0 0.0
        %1907 = vmatprep.subr.mxu0 0.0
        %1908 = vmatpush1.msra.mxu0 0.0
        %1909 = vmatprep.subr.mxu0 0.0
        %1910 = vmatpush1.msra.mxu0 0.0
        %1911 = vmatprep.subr.mxu0 0.0
        %1912 = vmatpush1.msra.mxu0 0.0
        %1913 = vmatprep.mubr.f32.mxu0 0.0
        %1914 = vmatmul.mubr.f32.gmra.mrb[0].mxu0 %v1844
        %v1915 = vpop.f32.mrb[0].mxu0
        %v1916 = vadd.f32 0.0, %v1915
        %v1917 = vpop.f32.mrb[0].mxu0
        %1918 = vmatprep.mubr.f32.mxu0 0.0
        %1919 = vmatmul.mubr.f32.gmra.mrb[0].mxu0 %v1847
        %v1920 = vpop.f32.mrb[0].mxu0
        %v1921 = vpop.f32.mrb[0].mxu0
        %1922 = vdwg.mxu0
        %v1923 = vadd.f32 %v1836, %v1916
        %s1924 = scalar_lea.vmem %s4, 256
        %v1925 = vld [vmem:[%s1924] sm:$0xff]
        %v1926 = vld [vmem:[%s1924 + $0x8] sm:$0xff]
        %1927 = vrot.lane.b32.xlu0 %v1301, 118
        %v1928 = vpop.permute.xlu0 %1927
        %v1931 = vsel %vm1311, %v1925, 0
        %v1934 = vsel %vm1311, %v1926, 0
        %1936 = vmatprep.subr.mxu0 0.0
        %1937 = vmatpush1.msra.mxu0 %v1928
        %1938 = vmatprep.subr.mxu0 0.0
        %1939 = vmatpush1.msra.mxu0 0.0
        %1940 = vmatprep.subr.mxu0 0.0
        %1941 = vmatpush1.msra.mxu0 0.0
        %1942 = vmatprep.subr.mxu0 0.0
        %1943 = vmatpush1.msra.mxu0 0.0
        %1944 = vmatprep.subr.mxu0 0.0
        %1945 = vmatpush1.msra.mxu0 0.0
        %1946 = vmatprep.subr.mxu0 0.0
        %1947 = vmatpush1.msra.mxu0 0.0
        %1948 = vmatprep.subr.mxu0 0.0
        %1949 = vmatpush1.msra.mxu0 0.0
        %1950 = vmatprep.subr.mxu0 0.0
        %1951 = vmatpush1.msra.mxu0 0.0
        %1952 = vmatprep.subr.mxu0 0.0
        %1953 = vmatpush1.msra.mxu0 0.0
        %1954 = vmatprep.subr.mxu0 0.0
        %1955 = vmatpush1.msra.mxu0 0.0
        %1956 = vmatprep.subr.mxu0 0.0
        %1957 = vmatpush1.msra.mxu0 0.0
        %1958 = vmatprep.subr.mxu0 0.0
        %1959 = vmatpush1.msra.mxu0 0.0
        %1960 = vmatprep.subr.mxu0 0.0
        %1961 = vmatpush1.msra.mxu0 0.0
        %1962 = vmatprep.subr.mxu0 0.0
        %1963 = vmatpush1.msra.mxu0 0.0
        %1964 = vmatprep.subr.mxu0 0.0
        %1965 = vmatpush1.msra.mxu0 0.0
        %1966 = vmatprep.subr.mxu0 0.0
        %1967 = vmatpush1.msra.mxu0 0.0
        %1968 = vmatprep.subr.mxu0 0.0
        %1969 = vmatpush1.msra.mxu0 0.0
        %1970 = vmatprep.subr.mxu0 0.0
        %1971 = vmatpush1.msra.mxu0 0.0
        %1972 = vmatprep.subr.mxu0 0.0
        %1973 = vmatpush1.msra.mxu0 0.0
        %1974 = vmatprep.subr.mxu0 0.0
        %1975 = vmatpush1.msra.mxu0 0.0
        %1976 = vmatprep.subr.mxu0 0.0
        %1977 = vmatpush1.msra.mxu0 0.0
        %1978 = vmatprep.subr.mxu0 0.0
        %1979 = vmatpush1.msra.mxu0 0.0
        %1980 = vmatprep.subr.mxu0 0.0
        %1981 = vmatpush1.msra.mxu0 0.0
        %1982 = vmatprep.subr.mxu0 0.0
        %1983 = vmatpush1.msra.mxu0 0.0
        %1984 = vmatprep.subr.mxu0 0.0
        %1985 = vmatpush1.msra.mxu0 0.0
        %1986 = vmatprep.subr.mxu0 0.0
        %1987 = vmatpush1.msra.mxu0 0.0
        %1988 = vmatprep.subr.mxu0 0.0
        %1989 = vmatpush1.msra.mxu0 0.0
        %1990 = vmatprep.subr.mxu0 0.0
        %1991 = vmatpush1.msra.mxu0 0.0
        %1992 = vmatprep.subr.mxu0 0.0
        %1993 = vmatpush1.msra.mxu0 0.0
        %1994 = vmatprep.subr.mxu0 0.0
        %1995 = vmatpush1.msra.mxu0 0.0
        %1996 = vmatprep.subr.mxu0 0.0
        %1997 = vmatpush1.msra.mxu0 0.0
        %1998 = vmatprep.subr.mxu0 0.0
        %1999 = vmatpush1.msra.mxu0 0.0
        %2000 = vmatprep.mubr.f32.mxu0 0.0
        %2001 = vmatmul.mubr.f32.gmra.mrb[0].mxu0 %v1931
        %v2002 = vpop.f32.mrb[0].mxu0
        %v2003 = vadd.f32 0.0, %v2002
        %v2004 = vpop.f32.mrb[0].mxu0
        %2005 = vmatprep.mubr.f32.mxu0 0.0
        %2006 = vmatmul.mubr.f32.gmra.mrb[0].mxu0 %v1934
        %v2007 = vpop.f32.mrb[0].mxu0
        %v2008 = vpop.f32.mrb[0].mxu0
        %2009 = vdwg.mxu0
        %v2010 = vadd.f32 %v1923, %v2003
        %s2011 = scalar_lea.vmem %s4, 272
        %v2012 = vld [vmem:[%s2011] sm:$0xff]
        %v2013 = vld [vmem:[%s2011 + $0x8] sm:$0xff]
        %2014 = vrot.lane.b32.xlu0 %v1301, 117
        %v2015 = vpop.permute.xlu0 %2014
        %v2018 = vsel %vm1311, %v2012, 0
        %v2021 = vsel %vm1311, %v2013, 0
        %2023 = vmatprep.subr.mxu0 0.0
        %2024 = vmatpush1.msra.mxu0 %v2015
        %2025 = vmatprep.subr.mxu0 0.0
        %2026 = vmatpush1.msra.mxu0 0.0
        %2027 = vmatprep.subr.mxu0 0.0
        %2028 = vmatpush1.msra.mxu0 0.0
        %2029 = vmatprep.subr.mxu0 0.0
        %2030 = vmatpush1.msra.mxu0 0.0
        %2031 = vmatprep.subr.mxu0 0.0
        %2032 = vmatpush1.msra.mxu0 0.0
        %2033 = vmatprep.subr.mxu0 0.0
        %2034 = vmatpush1.msra.mxu0 0.0
        %2035 = vmatprep.subr.mxu0 0.0
        %2036 = vmatpush1.msra.mxu0 0.0
        %2037 = vmatprep.subr.mxu0 0.0
        %2038 = vmatpush1.msra.mxu0 0.0
        %2039 = vmatprep.subr.mxu0 0.0
        %2040 = vmatpush1.msra.mxu0 0.0
        %2041 = vmatprep.subr.mxu0 0.0
        %2042 = vmatpush1.msra.mxu0 0.0
        %2043 = vmatprep.subr.mxu0 0.0
        %2044 = vmatpush1.msra.mxu0 0.0
        %2045 = vmatprep.subr.mxu0 0.0
        %2046 = vmatpush1.msra.mxu0 0.0
        %2047 = vmatprep.subr.mxu0 0.0
        %2048 = vmatpush1.msra.mxu0 0.0
        %2049 = vmatprep.subr.mxu0 0.0
        %2050 = vmatpush1.msra.mxu0 0.0
        %2051 = vmatprep.subr.mxu0 0.0
        %2052 = vmatpush1.msra.mxu0 0.0
        %2053 = vmatprep.subr.mxu0 0.0
        %2054 = vmatpush1.msra.mxu0 0.0
        %2055 = vmatprep.subr.mxu0 0.0
        %2056 = vmatpush1.msra.mxu0 0.0
        %2057 = vmatprep.subr.mxu0 0.0
        %2058 = vmatpush1.msra.mxu0 0.0
        %2059 = vmatprep.subr.mxu0 0.0
        %2060 = vmatpush1.msra.mxu0 0.0
        %2061 = vmatprep.subr.mxu0 0.0
        %2062 = vmatpush1.msra.mxu0 0.0
        %2063 = vmatprep.subr.mxu0 0.0
        %2064 = vmatpush1.msra.mxu0 0.0
        %2065 = vmatprep.subr.mxu0 0.0
        %2066 = vmatpush1.msra.mxu0 0.0
        %2067 = vmatprep.subr.mxu0 0.0
        %2068 = vmatpush1.msra.mxu0 0.0
        %2069 = vmatprep.subr.mxu0 0.0
        %2070 = vmatpush1.msra.mxu0 0.0
        %2071 = vmatprep.subr.mxu0 0.0
        %2072 = vmatpush1.msra.mxu0 0.0
        %2073 = vmatprep.subr.mxu0 0.0
        %2074 = vmatpush1.msra.mxu0 0.0
        %2075 = vmatprep.subr.mxu0 0.0
        %2076 = vmatpush1.msra.mxu0 0.0
        %2077 = vmatprep.subr.mxu0 0.0
        %2078 = vmatpush1.msra.mxu0 0.0
        %2079 = vmatprep.subr.mxu0 0.0
        %2080 = vmatpush1.msra.mxu0 0.0
        %2081 = vmatprep.subr.mxu0 0.0
        %2082 = vmatpush1.msra.mxu0 0.0
        %2083 = vmatprep.subr.mxu0 0.0
        %2084 = vmatpush1.msra.mxu0 0.0
        %2085 = vmatprep.subr.mxu0 0.0
        %2086 = vmatpush1.msra.mxu0 0.0
        %2087 = vmatprep.mubr.f32.mxu0 0.0
        %2088 = vmatmul.mubr.f32.gmra.mrb[0].mxu0 %v2018
        %v2089 = vpop.f32.mrb[0].mxu0
        %v2090 = vadd.f32 0.0, %v2089
        %v2091 = vpop.f32.mrb[0].mxu0
        %2092 = vmatprep.mubr.f32.mxu0 0.0
        %2093 = vmatmul.mubr.f32.gmra.mrb[0].mxu0 %v2021
        %v2094 = vpop.f32.mrb[0].mxu0
        %v2095 = vpop.f32.mrb[0].mxu0
        %2096 = vdwg.mxu0
        %v2097 = vadd.f32 %v2010, %v2090
        %v2098 = vmul.f32 %v2097, %v1284
        %v2099 = vld [vmem:[%s1263 + $0x8] sm:$0xff]
        %v2100 = vadd.f32 %v2098, %v2099
        %2101 = vst.msk [vmem:[%s258] sm:$0xff] %vm1287, %v2100
      $region64: #{_lambda_.3} parent=43 // pred_fallthru
        _
      %p2102 = scmp.lt.s32.totalorder %s22, 1
      %s2103 = scalar_select %p2102, %s22, 1
      %s2104 = smul.addr %s2103, 8
      %s2105 = scalar_lea.vmem %s6, %s2104
      // Predicated region
      $region69: #{_lambda_.3} parent=43 // pred_check
        %p2106 = pneg %p178
      $region70: #{_lambda_.3} parent=43 // pred_check_branch
        %2108 = sbr.rel (%p2106) target = $region72
      $region71: #{_lambda_.3} parent=43 // pred_region
        _
      $region72: #{_lambda_.3} parent=43 // pred_fallthru
        _
    $region44: #{_lambda_.3} parent=5 // pred_fallthru
      _
    %p2109 = scmp.le.s32.totalorder 2, %s12
    // Predicated region
    $region73: #{_lambda_.3} parent=5 // pred_check
      %p2110 = pneg %p2109
    $region74: #{_lambda_.3} parent=5 // pred_check_branch
      %2112 = sbr.rel (%p2110) target = $region76
    $region75: #{_lambda_.3} parent=5 // pred_region
      %s2113 = ssub.s32 %s12, 2
      // Predicated region
      $region77: #{_lambda_.3} parent=75 // pred_check
        %p2114 = pneg %p184
      $region78: #{_lambda_.3} parent=75 // pred_check_branch
        %2116 = sbr.rel (%p2114) target = $region80
      $region79: #{_lambda_.3} parent=75 // pred_region
        %p2117 = scmp.lt.s32.totalorder %s24, 1
        %s2118 = scalar_select %p2117, %s24, 1
        %s2119 = smul.addr %s2118, 8
        %s2120 = scalar_lea.vmem %s6, %s2119
      $region80: #{_lambda_.3} parent=75 // pred_fallthru
        _
    $region76: #{_lambda_.3} parent=5 // pred_fallthru
      _
  $region6: #{_lambda_.3} parent=0 // loop_footer
    %s16 = sadd.s32 1, %s12
  $region7: #{_lambda_.3} parent=0 // loop_footer_branch
    %11 = sbr.rel target = $region3
  $region8: #{_lambda_.3} parent=0 // loop_exit
    _

</llo_original>
